<compile_context>
chip_gen: v6e
topology: v6e:2x2x1
jax: 0.10.0
libtpu: 0.0.40
codegen_flags: <defaults>
</compile_context>

<pallas_src>
from functools import partial

import jax
import jax.numpy as jnp
from jax import lax
from jax.experimental import pallas as pl
from jax.experimental.pallas import tpu as pltpu

NUM_STEPS = 4


def _round_up(x, m):
    return (x + m - 1) // m * m


# --------------------------------- in-kernel helpers ----------------------------------
def _tap_offsets(Wp):
    # tap index t = ky*3 + kx ; lane offset of that tap relative to the centre pixel
    return tuple((dy - 1) * Wp + (dx - 1) for dy in range(3) for dx in range(3))


def _rolled(x, d, L):
    # result[p] = x[(p + d) mod L]; wrap-around only touches halo / pad lanes (masked).
    if d == 0:
        return x
    return pltpu.roll(x, (-d) % L, axis=1)


def _fill_patches(x, patch_ref, offs, L):
    """Write the 9-tap shifted stack of x (C, L) into patch_ref rows t*C:(t+1)*C."""
    C = x.shape[0]
    for t, d in enumerate(offs):
        patch_ref[t * C:(t + 1) * C, :] = _rolled(x, d, L)


def _patches_value(x, offs, L):
    # value-form tap stack (used once, for the 3-channel stem conv)
    return jnp.concatenate([_rolled(x, d, L) for d in offs], axis=0)


# ------------------------------- Pos2Weight (one call) ---------------------------------
def _p2w_kernel(pos_ref, w1_ref, b1_ref, w2_ref, b2_ref, w3_ref, b3_ref, lw_ref):
    h1 = jnp.maximum(
        jnp.dot(w1_ref[...], pos_ref[...], preferred_element_type=jnp.float32)
        + b1_ref[...], 0.0)
    h2 = jnp.maximum(
        jnp.dot(w2_ref[...], h1, preferred_element_type=jnp.float32) + b2_ref[...], 0.0)
    for o in range(3):                               # output already in (o, tap*G0+c, p)
        lw_ref[o] = (jnp.dot(w3_ref[o], h2, preferred_element_type=jnp.float32)
                     + b3_ref[o])


def _p2w_call(pos_t, w1t, b1c, w2t, b2c, w3p, b3p):
    def cspec(a):
        return pl.BlockSpec(a.shape, lambda i: (0,) * a.ndim)

    args = (pos_t, w1t, b1c, w2t, b2c, w3p, b3p)
    out_shape = jax.ShapeDtypeStruct((w3p.shape[0], w3p.shape[1], pos_t.shape[1]),
                                     jnp.float32)
    return pl.pallas_call(
        _p2w_kernel,
        out_shape=out_shape,
        grid=(1,),
        in_specs=[cspec(a) for a in args],
        out_specs=pl.BlockSpec(out_shape.shape, lambda i: (0, 0, 0)),
    )(*args)


# ------------------- fused stem + 4 feedback steps + meta-upsample ---------------------
def _fused_kernel(mask_ref, img_ref, lw_ref,
                  smw_ref, smb_ref, ciw_ref, cib_ref, fiw_ref, fib_ref, pr_ref,
                  cinw_ref, cinb_ref, coutw_ref, coutb_ref,
                  c3w_ref, c3b_ref, c1w_ref, c1b_ref,
                  amw_ref, amb_ref,
                  out_ref,
                  feat_s, hid_s, inter_s, patch_s, fcat_s,
                  *, Wp, PPL, G0):
    offs = _tap_offsets(Wp)
    step = pl.program_id(1)

    mask1 = mask_ref[...]                                 # (1, PPL), 1 on interior lanes
    mask8 = jnp.broadcast_to(mask1, (G0, PPL))            # hoisted broadcasts (no re-CSE)
    mask3 = jnp.broadcast_to(mask1, (3, PPL))

    def mm(w, x):
        return jnp.dot(w, x, preferred_element_type=jnp.float32)

    def conv3x3(w, b, x, mask=None):
        # w: (G0, 9*G0) f32 value; bf16 MXU operands, f32 accumulation; conv + ReLU.
        _fill_patches(x, patch_s, offs, PPL)
        y = mm(w.astype(jnp.bfloat16), patch_s[...].astype(jnp.bfloat16)) + b
        y = jnp.maximum(y, 0.0)
        return y * mask if mask is not None else y

    # ---------------- stem: sub_mean + conv_in + feat_in (step == 0 only) --------------
    @pl.when(step == 0)
    def _stem():
        img = img_ref[0]                                                    # (3, PPL)
        x_sm = (mm(smw_ref[...], img) + smb_ref[...]) * mask3               # sub_mean
        inter_s[...] = x_sm                              # bilinear x1 == identity
        pr = pr_ref[...]
        a0 = pr[:, 0:1]
        a1 = pr[:, 1:2]
        p27 = _patches_value(x_sm, offs, PPL).astype(jnp.bfloat16)
        y = mm(ciw_ref[...].astype(jnp.bfloat16), p27) + cib_ref[...]       # conv_in 3x3
        y = jnp.maximum(y, 0.0) + a0 * jnp.minimum(y, 0.0)                  # PReLU
        z = mm(fiw_ref[...], y) + fib_ref[...]                              # feat_in 1x1
        z = jnp.maximum(z, 0.0) + a1 * jnp.minimum(z, 0.0)                  # PReLU
        feat_s[...] = z
        hid_s[...] = z                              # FeedbackBlock reset: last_hidden = x

    # ------------------------------- feedback step --------------------------------------
    x_in = feat_s[...]
    hid = hid_s[...]
    xx = (mm(cinw_ref[...], jnp.concatenate([x_in, hid], axis=0))
          + cinb_ref[...]) * mask8                                          # compress_in

    k1 = (4 * G0, 3 * G0, 2 * G0, 4 * G0)            # real K of ci1, ci2, ci3, compress_out
    # conv layers whose output feeds another 3x3 tap stack (halo must stay zero)
    need_mask = (True, True, True, False, True, True, False, True, False, False)

    def fpn_body(f, xin):
        b3 = f * 10
        b1 = f * 4

        def c3(inp, l):
            m = mask8 if need_mask[l] else None
            return conv3x3(c3w_ref[b3 + l], c3b_ref[b3 + l], inp, m)

        def c1(parts, j):                             # concat + 1x1 conv (K zero-padded)
            w = c1w_ref[b1 + j][:, :k1[j]]
            y = mm(w, jnp.concatenate(parts, axis=0)) + c1b_ref[b1 + j]
            return y * mask8                          # every 1x1 output reaches a tap stack

        x1 = c3(xin, 0); x2 = c3(x1, 1); x3 = c3(x2, 2); x4 = c3(x3, 3)
        x11 = xin + x4
        x5r = c1([x1, x2, x3, x4], 0)
        x5 = c3(x5r, 4); x6 = c3(x5, 5); x7 = c3(x6, 6)
        x12 = x5r + x7
        x8r = c1([x5, x6, x7], 1)
        x8 = c3(x8r, 7); x9 = c3(x8, 8)
        x13 = x8r + x9
        x10r = c1([x8, x9], 2)
        x10 = c3(x10r, 9)
        x14 = x10r + x10
        out = c1([x11, x12, x13, x14], 3) + xin       # FPN residual
        row = pl.multiple_of(f * G0, G0)
        fcat_s[pl.ds(row, G0), :] = out               # cat(fpn1..fpn4) for compress_out
        return out

    lax.fori_loop(0, 4, fpn_body, xx)

    h = (mm(coutw_ref[...], fcat_s[...]) + coutb_ref[...]) * mask8          # compress_out
    hid_s[...] = h                                                          # next hidden

    # meta-upsample (scale 1): per-pixel (9*G0 -> 3) local-weight contraction, lane-dense
    _fill_patches(h, patch_s, offs, PPL)
    ph = patch_s[...]
    meta = jnp.concatenate(
        [jnp.sum(ph * lw_ref[o], axis=0, keepdims=True) for o in range(3)], axis=0)
    y = mm(amw_ref[...], meta + inter_s[...]) + amb_ref[...]    # + inter_res, add_mean
    out_ref[0, 0] = y.astype(out_ref.dtype)


def _fused_call(mask, img, lw, p, *, N, H, W, G0, PPL):
    Wp = W + 2
    bp = p["block"]

    def cspec(a):                                     # full-array block, grid-invariant
        return pl.BlockSpec(a.shape, lambda n, s: (0,) * a.ndim)

    inputs = (mask, img, lw,
              p["sub_mean_w"], p["sub_mean_b"],
              p["conv_in_w"], p["conv_in_b"],
              p["feat_in_w"], p["feat_in_b"], p["prelu"],
              bp["cin_w"], bp["cin_b"], bp["cout_w"], bp["cout_b"],
              bp["c3_w"], bp["c3_b"], bp["c1_w"], bp["c1_b"],
              p["add_mean_w"], p["add_mean_b"])

    in_specs = [cspec(a) for a in inputs]
    in_specs[1] = pl.BlockSpec((1, 3, PPL), lambda n, s: (n, 0, 0))   # per-batch image

    return pl.pallas_call(
        partial(_fused_kernel, Wp=Wp, PPL=PPL, G0=G0),
        out_shape=jax.ShapeDtypeStruct((N, NUM_STEPS, 3, PPL), jnp.float32),
        grid=(N, NUM_STEPS),
        in_specs=in_specs,
        out_specs=pl.BlockSpec((1, 1, 3, PPL), lambda n, s: (n, s, 0, 0)),
        scratch_shapes=[
            pltpu.VMEM((G0, PPL), jnp.float32),        # feat (feat_in output)
            pltpu.VMEM((G0, PPL), jnp.float32),        # last_hidden
            pltpu.VMEM((3, PPL), jnp.float32),         # inter_res (sub_mean output)
            pltpu.VMEM((9 * G0, PPL), jnp.float32),    # shared 3x3 tap stack
            pltpu.VMEM((4 * G0, PPL), jnp.float32),    # cat(fpn1..fpn4)
        ],
        compiler_params=pltpu.CompilerParams(
            dimension_semantics=("parallel", "arbitrary"),
            vmem_limit_bytes=32 * 1024 * 1024),
    )(*inputs)


# ----------------------------------- model wiring --------------------------------------
def metafpn1_forward(x_nchw, pos_mat, params):
    """x_nchw: (N,3,H,W); pos_mat: (1, H*W, 3). scale = 1. Returns 4 NCHW outputs."""
    N, C, H, W = x_nchw.shape
    G0 = params["feat_in_w"].shape[0]
    Hp, Wp = H + 2, W + 2
    PP = Hp * Wp
    PPL = _round_up(PP, 128)
    P = H * W

    # pad once per forward; the kernel keeps the halo zero with an interior mask
    img = jnp.pad(x_nchw, ((0, 0), (0, 0), (1, 1), (1, 1))).reshape(N, C, PP)
    img = jnp.pad(img, ((0, 0), (0, 0), (0, PPL - PP)))
    mask = jnp.pad(jnp.ones((H, W), jnp.float32), ((1, 1), (1, 1))).reshape(1, PP)
    mask = jnp.pad(mask, ((0, 0), (0, PPL - PP)))

    # Pos2Weight MLP: identical every step in the reference loop -> hoisted, one call.
    # PyTorch F.unfold pairing: flat P2W index = c*27 + t*3 + o  (t = ky*3 + kx);
    # weights are pre-permuted so the kernel emits lw directly as [o, t*G0+c, p].
    p2w = params["p2w"]
    pos_t = pos_mat.reshape(P, 3).T                                       # (3, P)
    w1t = p2w["w1"].T
    b1c = p2w["b1"].reshape(-1, 1)
    w2t = p2w["w2"].T
    b2c = p2w["b2"].reshape(-1, 1)
    w3p = p2w["w3"].reshape(-1, G0, 9, 3).transpose(3, 2, 1, 0).reshape(3, 9 * G0, -1)
    b3p = p2w["b3"].reshape(G0, 9, 3).transpose(2, 1, 0).reshape(3, 9 * G0, 1)
    lwk = _p2w_call(pos_t, w1t, b1c, w2t, b2c, w3p, b3p)                  # (3, 9*G0, P)
    lw = jnp.pad(lwk.reshape(3, 9 * G0, H, W), ((0, 0), (0, 0), (1, 1), (1, 1)))
    lw = lw.reshape(3, 9 * G0, PP)
    lw = jnp.pad(lw, ((0, 0), (0, 0), (0, PPL - PP)))

    out_all = _fused_call(mask, img, lw, params, N=N, H=H, W=W, G0=G0, PPL=PPL)
    out5 = out_all[..., :PP].reshape(N, NUM_STEPS, 3, Hp, Wp)[:, :, :, 1:H + 1, 1:W + 1]
    return [out5[:, s] for s in range(NUM_STEPS)]


# ----------------------------------- parameter init ------------------------------------
def init_params(key, G0=8, n_colors=3, rgb_range=255.0):
    keys = iter(jax.random.split(key, 256))

    def nrm(shape, scale=0.05):
        return scale * jax.random.normal(next(keys), shape, dtype=jnp.float32)

    def conv3_w(cout, cin):
        # stored (Cout, ky, kx, Cin) flattened -> K index = (ky*3+kx)*Cin + ci, matching
        # the in-kernel tap-stack order (transpose when loading PyTorch (Cout,Cin,ky,kx)).
        return nrm((cout, 3, 3, cin)).reshape(cout, 9 * cin)

    # 40 block conv3x3 layers packed: index = fpn_idx*10 + layer_idx
    c3_w = jnp.stack([conv3_w(G0, G0) for _ in range(40)])               # (40, G0, 9*G0)
    c3_b = jnp.stack([nrm((G0, 1)) for _ in range(40)])

    # per-FPN 1x1 layers [ci1, ci2, ci3, compress_out], K zero-padded to 4*G0;
    # packed flat: index = fpn_idx*4 + layer_idx
    ks = (4 * G0, 3 * G0, 2 * G0, 4 * G0)

    def padded_1x1(k):
        return jnp.zeros((G0, 4 * G0), jnp.float32).at[:, :k].set(nrm((G0, k)))

    c1_w = jnp.stack([padded_1x1(k) for _ in range(4) for k in ks])      # (16, G0, 4*G0)
    c1_b = jnp.stack([nrm((G0, 1)) for _ in range(16)])

    rgb_mean = jnp.array([0.4488, 0.4371, 0.404], jnp.float32)
    return {
        "sub_mean_w": jnp.eye(3, dtype=jnp.float32),                     # rgb_std = 1
        "sub_mean_b": (-rgb_range * rgb_mean).reshape(3, 1),
        "add_mean_w": jnp.eye(3, dtype=jnp.float32),
        "add_mean_b": (rgb_range * rgb_mean).reshape(3, 1),
        "conv_in_w": conv3_w(4 * G0, n_colors),
        "conv_in_b": nrm((4 * G0, 1)),
        "feat_in_w": nrm((G0, 4 * G0)),
        "feat_in_b": nrm((G0, 1)),
        "prelu": jnp.full((1, 2), 0.25, jnp.float32),  # learned PReLU alphas (conv_in, feat_in)
        "block": {
            "cin_w": nrm((G0, 2 * G0)), "cin_b": nrm((G0, 1)),
            "cout_w": nrm((G0, 4 * G0)), "cout_b": nrm((G0, 1)),
            # FPN.compress_in4 exists in __init__ but is unused in FPN.forward -> omitted
            "c3_w": c3_w, "c3_b": c3_b,
            "c1_w": c1_w, "c1_b": c1_b,
        },
        "p2w": {
            "w1": nrm((3, 256)), "b1": nrm((256,)),
            "w2": nrm((256, 512)), "b2": nrm((512,)),
            "w3": nrm((512, 9 * G0 * 3)), "b3": nrm((9 * G0 * 3,)),
        },
    }


if __name__ == "__main__":
    key = jax.random.PRNGKey(0)
    k_in, k_pos, k_par = jax.random.split(key, 3)

    N, C, H, W = 2, 3, 16, 16     # NCHW input like the PyTorch reference
    G0 = 8                        # args.G0 (num_features)

    x = jax.random.normal(k_in, (N, C, H, W), dtype=jnp.float32)
    pos_mat = jax.random.uniform(k_pos, (1, H * W, 3), dtype=jnp.float32)
    params = init_params(k_par, G0=G0, n_colors=C)

    fwd = jax.jit(metafpn1_forward)
    outs = jax.block_until_ready(fwd(x, pos_mat, params))

    assert len(outs) == 4
    for o in outs:
        assert o.shape == (N, 3, H, W)
        assert bool(jnp.all(jnp.isfinite(o)))
    print("KERNEL_OK")
</pallas_src>

<mosaic_0001>
module attributes {stable_mosaic.version = 11 : i64} {
  func.func @_p2w_kernel(%arg0: i32, %arg1: memref<3x256xf32, #tpu.memory_space<vmem>>, %arg2: memref<256x3xf32, #tpu.memory_space<vmem>>, %arg3: memref<256x1xf32, #tpu.memory_space<vmem>>, %arg4: memref<512x256xf32, #tpu.memory_space<vmem>>, %arg5: memref<512x1xf32, #tpu.memory_space<vmem>>, %arg6: memref<3x72x512xf32, #tpu.memory_space<vmem>>, %arg7: memref<3x72x1xf32, #tpu.memory_space<vmem>>, %arg8: memref<3x72x256xf32, #tpu.memory_space<vmem>>) attributes {dimension_semantics = [#tpu.dimension_semantics<arbitrary>], iteration_bounds = array<i64: 1>, scalar_prefetch = 0 : i64, scratch_operands = 0 : i64, tpu.core_type = #tpu.core_type<tc>, window_params = [{pipeline_mode = #tpu.pipeline_mode<synchronous>, transform_indices = @transform_0, window_bounds = array<i64: 3, 256>}, {pipeline_mode = #tpu.pipeline_mode<synchronous>, transform_indices = @transform_1, window_bounds = array<i64: 256, 3>}, {pipeline_mode = #tpu.pipeline_mode<synchronous>, transform_indices = @transform_2, window_bounds = array<i64: 256, 1>}, {pipeline_mode = #tpu.pipeline_mode<synchronous>, transform_indices = @transform_3, window_bounds = array<i64: 512, 256>}, {pipeline_mode = #tpu.pipeline_mode<synchronous>, transform_indices = @transform_4, window_bounds = array<i64: 512, 1>}, {pipeline_mode = #tpu.pipeline_mode<synchronous>, transform_indices = @transform_5, window_bounds = array<i64: 3, 72, 512>}, {pipeline_mode = #tpu.pipeline_mode<synchronous>, transform_indices = @transform_6, window_bounds = array<i64: 3, 72, 1>}, {pipeline_mode = #tpu.pipeline_mode<synchronous>, transform_indices = @transform_7, window_bounds = array<i64: 3, 72, 256>}]} {
    %c0 = arith.constant 0 : index
    %c0_0 = arith.constant 0 : index
    %0 = vector.load %arg2[%c0, %c0_0] : memref<256x3xf32, #tpu.memory_space<vmem>>, vector<256x3xf32>
    %c0_1 = arith.constant 0 : index
    %c0_2 = arith.constant 0 : index
    %1 = vector.load %arg1[%c0_1, %c0_2] : memref<3x256xf32, #tpu.memory_space<vmem>>, vector<3x256xf32>
    %cst = arith.constant dense<0.000000e+00> : vector<256x256xf32>
    %2 = tpu.matmul %0, %1, %cst {dimension_numbers = #tpu.dot_dimension_numbers<[1], [0], [0], [1], [0, 0, 1, 1], [], []>} : vector<256x3xf32>, vector<3x256xf32>, vector<256x256xf32> -> vector<256x256xf32>
    %c0_3 = arith.constant 0 : index
    %c0_4 = arith.constant 0 : index
    %3 = vector.load %arg3[%c0_3, %c0_4] : memref<256x1xf32, #tpu.memory_space<vmem>>, vector<256x1xf32>
    %4 = vector.broadcast %3 : vector<256x1xf32> to vector<256x256xf32>
    %5 = arith.addf %2, %4 : vector<256x256xf32>
    %cst_5 = arith.constant 0.000000e+00 : f32
    %6 = vector.broadcast %cst_5 : f32 to vector<256x256xf32>
    %7 = arith.maximumf %5, %6 : vector<256x256xf32>
    %c0_6 = arith.constant 0 : index
    %c0_7 = arith.constant 0 : index
    %8 = vector.load %arg4[%c0_6, %c0_7] : memref<512x256xf32, #tpu.memory_space<vmem>>, vector<512x256xf32>
    %cst_8 = arith.constant dense<0.000000e+00> : vector<512x256xf32>
    %9 = tpu.matmul %8, %7, %cst_8 {dimension_numbers = #tpu.dot_dimension_numbers<[1], [0], [0], [1], [0, 0, 1, 1], [], []>} : vector<512x256xf32>, vector<256x256xf32>, vector<512x256xf32> -> vector<512x256xf32>
    %c0_9 = arith.constant 0 : index
    %c0_10 = arith.constant 0 : index
    %10 = vector.load %arg5[%c0_9, %c0_10] : memref<512x1xf32, #tpu.memory_space<vmem>>, vector<512x1xf32>
    %11 = vector.broadcast %10 : vector<512x1xf32> to vector<512x256xf32>
    %12 = arith.addf %9, %11 : vector<512x256xf32>
    %cst_11 = arith.constant 0.000000e+00 : f32
    %13 = vector.broadcast %cst_11 : f32 to vector<512x256xf32>
    %14 = arith.maximumf %12, %13 : vector<512x256xf32>
    %c0_12 = arith.constant 0 : index
    %c0_13 = arith.constant 0 : index
    %c0_14 = arith.constant 0 : index
    %15 = vector.load %arg6[%c0_12, %c0_13, %c0_14] : memref<3x72x512xf32, #tpu.memory_space<vmem>>, vector<1x72x512xf32>
    %16 = vector.shape_cast %15 : vector<1x72x512xf32> to vector<72x512xf32>
    %cst_15 = arith.constant dense<0.000000e+00> : vector<72x256xf32>
    %17 = tpu.matmul %16, %14, %cst_15 {dimension_numbers = #tpu.dot_dimension_numbers<[1], [0], [0], [1], [0, 0, 1, 1], [], []>} : vector<72x512xf32>, vector<512x256xf32>, vector<72x256xf32> -> vector<72x256xf32>
    %c0_16 = arith.constant 0 : index
    %c0_17 = arith.constant 0 : index
    %c0_18 = arith.constant 0 : index
    %18 = vector.load %arg7[%c0_16, %c0_17, %c0_18] : memref<3x72x1xf32, #tpu.memory_space<vmem>>, vector<1x72x1xf32>
    %19 = vector.shape_cast %18 : vector<1x72x1xf32> to vector<72x1xf32>
    %20 = vector.broadcast %19 : vector<72x1xf32> to vector<72x256xf32>
    %21 = arith.addf %17, %20 : vector<72x256xf32>
    %c0_19 = arith.constant 0 : index
    %c0_20 = arith.constant 0 : index
    %c0_21 = arith.constant 0 : index
    %22 = vector.load %arg8[%c0_19, %c0_20, %c0_21] : memref<3x72x256xf32, #tpu.memory_space<vmem>>, vector<1x72x256xf32>
    %23 = vector.shape_cast %22 : vector<1x72x256xf32> to vector<72x256xf32>
    %24 = vector.shape_cast %21 : vector<72x256xf32> to vector<1x72x256xf32>
    tpu.vector_store %arg8[%c0_19, %c0_20, %c0_21], %24 {strides = array<i32>} : memref<3x72x256xf32, #tpu.memory_space<vmem>>, vector<1x72x256xf32>,
    %c1 = arith.constant 1 : index
    %c0_22 = arith.constant 0 : index
    %c0_23 = arith.constant 0 : index
    %25 = vector.load %arg6[%c1, %c0_22, %c0_23] : memref<3x72x512xf32, #tpu.memory_space<vmem>>, vector<1x72x512xf32>
    %26 = vector.shape_cast %25 : vector<1x72x512xf32> to vector<72x512xf32>
    %cst_24 = arith.constant dense<0.000000e+00> : vector<72x256xf32>
    %27 = tpu.matmul %26, %14, %cst_24 {dimension_numbers = #tpu.dot_dimension_numbers<[1], [0], [0], [1], [0, 0, 1, 1], [], []>} : vector<72x512xf32>, vector<512x256xf32>, vector<72x256xf32> -> vector<72x256xf32>
    %c1_25 = arith.constant 1 : index
    %c0_26 = arith.constant 0 : index
    %c0_27 = arith.constant 0 : index
    %28 = vector.load %arg7[%c1_25, %c0_26, %c0_27] : memref<3x72x1xf32, #tpu.memory_space<vmem>>, vector<1x72x1xf32>
    %29 = vector.shape_cast %28 : vector<1x72x1xf32> to vector<72x1xf32>
    %30 = vector.broadcast %29 : vector<72x1xf32> to vector<72x256xf32>
    %31 = arith.addf %27, %30 : vector<72x256xf32>
    %c1_28 = arith.constant 1 : index
    %c0_29 = arith.constant 0 : index
    %c0_30 = arith.constant 0 : index
    %32 = vector.load %arg8[%c1_28, %c0_29, %c0_30] : memref<3x72x256xf32, #tpu.memory_space<vmem>>, vector<1x72x256xf32>
    %33 = vector.shape_cast %32 : vector<1x72x256xf32> to vector<72x256xf32>
    %34 = vector.shape_cast %31 : vector<72x256xf32> to vector<1x72x256xf32>
    tpu.vector_store %arg8[%c1_28, %c0_29, %c0_30], %34 {strides = array<i32>} : memref<3x72x256xf32, #tpu.memory_space<vmem>>, vector<1x72x256xf32>,
    %c2 = arith.constant 2 : index
    %c0_31 = arith.constant 0 : index
    %c0_32 = arith.constant 0 : index
    %35 = vector.load %arg6[%c2, %c0_31, %c0_32] : memref<3x72x512xf32, #tpu.memory_space<vmem>>, vector<1x72x512xf32>
    %36 = vector.shape_cast %35 : vector<1x72x512xf32> to vector<72x512xf32>
    %cst_33 = arith.constant dense<0.000000e+00> : vector<72x256xf32>
    %37 = tpu.matmul %36, %14, %cst_33 {dimension_numbers = #tpu.dot_dimension_numbers<[1], [0], [0], [1], [0, 0, 1, 1], [], []>} : vector<72x512xf32>, vector<512x256xf32>, vector<72x256xf32> -> vector<72x256xf32>
    %c2_34 = arith.constant 2 : index
    %c0_35 = arith.constant 0 : index
    %c0_36 = arith.constant 0 : index
    %38 = vector.load %arg7[%c2_34, %c0_35, %c0_36] : memref<3x72x1xf32, #tpu.memory_space<vmem>>, vector<1x72x1xf32>
    %39 = vector.shape_cast %38 : vector<1x72x1xf32> to vector<72x1xf32>
    %40 = vector.broadcast %39 : vector<72x1xf32> to vector<72x256xf32>
    %41 = arith.addf %37, %40 : vector<72x256xf32>
    %c2_37 = arith.constant 2 : index
    %c0_38 = arith.constant 0 : index
    %c0_39 = arith.constant 0 : index
    %42 = vector.load %arg8[%c2_37, %c0_38, %c0_39] : memref<3x72x256xf32, #tpu.memory_space<vmem>>, vector<1x72x256xf32>
    %43 = vector.shape_cast %42 : vector<1x72x256xf32> to vector<72x256xf32>
    %44 = vector.shape_cast %41 : vector<72x256xf32> to vector<1x72x256xf32>
    tpu.vector_store %arg8[%c2_37, %c0_38, %c0_39], %44 {strides = array<i32>} : memref<3x72x256xf32, #tpu.memory_space<vmem>>, vector<1x72x256xf32>,
    return
  }
  func.func @transform_0(%arg0: i32) -> (i32, i32) {
    %c0_i32 = arith.constant 0 : i32
    %c0_i32_0 = arith.constant 0 : i32
    %c0_i32_1 = arith.constant 0 : i32
    return %c0_i32, %c0_i32_0 : i32, i32
  }
  func.func @transform_1(%arg0: i32) -> (i32, i32) {
    %c0_i32 = arith.constant 0 : i32
    %c0_i32_0 = arith.constant 0 : i32
    %c0_i32_1 = arith.constant 0 : i32
    return %c0_i32, %c0_i32_0 : i32, i32
  }
  func.func @transform_2(%arg0: i32) -> (i32, i32) {
    %c0_i32 = arith.constant 0 : i32
    %c0_i32_0 = arith.constant 0 : i32
    %c0_i32_1 = arith.constant 0 : i32
    return %c0_i32, %c0_i32_0 : i32, i32
  }
  func.func @transform_3(%arg0: i32) -> (i32, i32) {
    %c0_i32 = arith.constant 0 : i32
    %c0_i32_0 = arith.constant 0 : i32
    %c0_i32_1 = arith.constant 0 : i32
    return %c0_i32, %c0_i32_0 : i32, i32
  }
  func.func @transform_4(%arg0: i32) -> (i32, i32) {
    %c0_i32 = arith.constant 0 : i32
    %c0_i32_0 = arith.constant 0 : i32
    %c0_i32_1 = arith.constant 0 : i32
    return %c0_i32, %c0_i32_0 : i32, i32
  }
  func.func @transform_5(%arg0: i32) -> (i32, i32, i32) {
    %c0_i32 = arith.constant 0 : i32
    %c0_i32_0 = arith.constant 0 : i32
    %c0_i32_1 = arith.constant 0 : i32
    %c0_i32_2 = arith.constant 0 : i32
    return %c0_i32, %c0_i32_0, %c0_i32_1 : i32, i32, i32
  }
  func.func @transform_6(%arg0: i32) -> (i32, i32, i32) {
    %c0_i32 = arith.constant 0 : i32
    %c0_i32_0 = arith.constant 0 : i32
    %c0_i32_1 = arith.constant 0 : i32
    %c0_i32_2 = arith.constant 0 : i32
    return %c0_i32, %c0_i32_0, %c0_i32_1 : i32, i32, i32
  }
  func.func @transform_7(%arg0: i32) -> (i32, i32, i32) {
    %c0_i32 = arith.constant 0 : i32
    %c0_i32_0 = arith.constant 0 : i32
    %c0_i32_1 = arith.constant 0 : i32
    %c0_i32_2 = arith.constant 0 : i32
    return %c0_i32, %c0_i32_0, %c0_i32_1 : i32, i32, i32
  }
}

module attributes {stable_mosaic.version = 11 : i64} {
  func.func @_fused_kernel(%arg0: i32, %arg1: i32, %arg2: memref<1x384xf32, #tpu.memory_space<vmem>>, %arg3: memref<1x3x384xf32, #tpu.memory_space<vmem>>, %arg4: memref<3x72x384xf32, #tpu.memory_space<vmem>>, %arg5: memref<3x3xf32, #tpu.memory_space<vmem>>, %arg6: memref<3x1xf32, #tpu.memory_space<vmem>>, %arg7: memref<32x27xf32, #tpu.memory_space<vmem>>, %arg8: memref<32x1xf32, #tpu.memory_space<vmem>>, %arg9: memref<8x32xf32, #tpu.memory_space<vmem>>, %arg10: memref<8x1xf32, #tpu.memory_space<vmem>>, %arg11: memref<1x2xf32, #tpu.memory_space<vmem>>, %arg12: memref<8x16xf32, #tpu.memory_space<vmem>>, %arg13: memref<8x1xf32, #tpu.memory_space<vmem>>, %arg14: memref<8x32xf32, #tpu.memory_space<vmem>>, %arg15: memref<8x1xf32, #tpu.memory_space<vmem>>, %arg16: memref<40x8x72xf32, #tpu.memory_space<vmem>>, %arg17: memref<40x8x1xf32, #tpu.memory_space<vmem>>, %arg18: memref<16x8x32xf32, #tpu.memory_space<vmem>>, %arg19: memref<16x8x1xf32, #tpu.memory_space<vmem>>, %arg20: memref<3x3xf32, #tpu.memory_space<vmem>>, %arg21: memref<3x1xf32, #tpu.memory_space<vmem>>, %arg22: memref<1x1x3x384xf32, #tpu.memory_space<vmem>>, %arg23: memref<8x384xf32, #tpu.memory_space<vmem>>, %arg24: memref<8x384xf32, #tpu.memory_space<vmem>>, %arg25: memref<3x384xf32, #tpu.memory_space<vmem>>, %arg26: memref<72x384xf32, #tpu.memory_space<vmem>>, %arg27: memref<32x384xf32, #tpu.memory_space<vmem>>) attributes {dimension_semantics = [#tpu.dimension_semantics<parallel>, #tpu.dimension_semantics<arbitrary>], iteration_bounds = array<i64: 2, 4>, scalar_prefetch = 0 : i64, scratch_operands = 5 : i64, tpu.core_type = #tpu.core_type<tc>, window_params = [{pipeline_mode = #tpu.pipeline_mode<synchronous>, transform_indices = @transform_0, window_bounds = array<i64: 1, 384>}, {transform_indices = @transform_1, window_bounds = array<i64: 1, 3, 384>}, {pipeline_mode = #tpu.pipeline_mode<synchronous>, transform_indices = @transform_2, window_bounds = array<i64: 3, 72, 384>}, {pipeline_mode = #tpu.pipeline_mode<synchronous>, transform_indices = @transform_3, window_bounds = array<i64: 3, 3>}, {pipeline_mode = #tpu.pipeline_mode<synchronous>, transform_indices = @transform_4, window_bounds = array<i64: 3, 1>}, {pipeline_mode = #tpu.pipeline_mode<synchronous>, transform_indices = @transform_5, window_bounds = array<i64: 32, 27>}, {pipeline_mode = #tpu.pipeline_mode<synchronous>, transform_indices = @transform_6, window_bounds = array<i64: 32, 1>}, {pipeline_mode = #tpu.pipeline_mode<synchronous>, transform_indices = @transform_7, window_bounds = array<i64: 8, 32>}, {pipeline_mode = #tpu.pipeline_mode<synchronous>, transform_indices = @transform_8, window_bounds = array<i64: 8, 1>}, {pipeline_mode = #tpu.pipeline_mode<synchronous>, transform_indices = @transform_9, window_bounds = array<i64: 1, 2>}, {pipeline_mode = #tpu.pipeline_mode<synchronous>, transform_indices = @transform_10, window_bounds = array<i64: 8, 16>}, {pipeline_mode = #tpu.pipeline_mode<synchronous>, transform_indices = @transform_11, window_bounds = array<i64: 8, 1>}, {pipeline_mode = #tpu.pipeline_mode<synchronous>, transform_indices = @transform_12, window_bounds = array<i64: 8, 32>}, {pipeline_mode = #tpu.pipeline_mode<synchronous>, transform_indices = @transform_13, window_bounds = array<i64: 8, 1>}, {pipeline_mode = #tpu.pipeline_mode<synchronous>, transform_indices = @transform_14, window_bounds = array<i64: 40, 8, 72>}, {pipeline_mode = #tpu.pipeline_mode<synchronous>, transform_indices = @transform_15, window_bounds = array<i64: 40, 8, 1>}, {pipeline_mode = #tpu.pipeline_mode<synchronous>, transform_indices = @transform_16, window_bounds = array<i64: 16, 8, 32>}, {pipeline_mode = #tpu.pipeline_mode<synchronous>, transform_indices = @transform_17, window_bounds = array<i64: 16, 8, 1>}, {pipeline_mode = #tpu.pipeline_mode<synchronous>, transform_indices = @transform_18, window_bounds = array<i64: 3, 3>}, {pipeline_mode = #tpu.pipeline_mode<synchronous>, transform_indices = @transform_19, window_bounds = array<i64: 3, 1>}, {transform_indices = @transform_20, window_bounds = array<i64: 1, 1, 3, 384>}]} {
    %c0 = arith.constant 0 : index
    %c0_0 = arith.constant 0 : index
    %0 = vector.load %arg2[%c0, %c0_0] : memref<1x384xf32, #tpu.memory_space<vmem>>, vector<1x384xf32>
    %1 = vector.shape_cast %0 : vector<1x384xf32> to vector<1x384xf32>
    %2 = vector.broadcast %1 : vector<1x384xf32> to vector<8x384xf32>
    %3 = vector.shape_cast %0 : vector<1x384xf32> to vector<1x384xf32>
    %4 = vector.broadcast %3 : vector<1x384xf32> to vector<3x384xf32>
    %c0_i32 = arith.constant 0 : i32
    %5 = arith.cmpi eq, %arg1, %c0_i32 : i32
    %6 = arith.extui %5 : i1 to i32
    %c0_i32_1 = arith.constant 0 : i32
    %7 = arith.cmpi ne, %6, %c0_i32_1 : i32
    scf.if %7 {
      %c0_55 = arith.constant 0 : index
      %c0_56 = arith.constant 0 : index
      %c0_57 = arith.constant 0 : index
      %71 = vector.load %arg3[%c0_55, %c0_56, %c0_57] : memref<1x3x384xf32, #tpu.memory_space<vmem>>, vector<1x3x384xf32>
      %72 = vector.shape_cast %71 : vector<1x3x384xf32> to vector<3x384xf32>
      %c0_58 = arith.constant 0 : index
      %c0_59 = arith.constant 0 : index
      %73 = vector.load %arg5[%c0_58, %c0_59] : memref<3x3xf32, #tpu.memory_space<vmem>>, vector<3x3xf32>
      %cst_60 = arith.constant dense<0.000000e+00> : vector<3x384xf32>
      %74 = tpu.matmul %73, %72, %cst_60 {dimension_numbers = #tpu.dot_dimension_numbers<[1], [0], [0], [1], [0, 0, 1, 1], [], []>} : vector<3x3xf32>, vector<3x384xf32>, vector<3x384xf32> -> vector<3x384xf32>
      %c0_61 = arith.constant 0 : index
      %c0_62 = arith.constant 0 : index
      %75 = vector.load %arg6[%c0_61, %c0_62] : memref<3x1xf32, #tpu.memory_space<vmem>>, vector<3x1xf32>
      %76 = vector.broadcast %75 : vector<3x1xf32> to vector<3x384xf32>
      %77 = arith.addf %74, %76 : vector<3x384xf32>
      %78 = arith.mulf %77, %4 : vector<3x384xf32>
      %c0_63 = arith.constant 0 : index
      %c0_64 = arith.constant 0 : index
      %79 = vector.load %arg25[%c0_63, %c0_64] : memref<3x384xf32, #tpu.memory_space<vmem>>, vector<3x384xf32>
      tpu.vector_store %arg25[%c0_63, %c0_64], %78 {strides = array<i32>} : memref<3x384xf32, #tpu.memory_space<vmem>>, vector<3x384xf32>,
      %c0_65 = arith.constant 0 : index
      %c0_66 = arith.constant 0 : index
      %80 = vector.load %arg11[%c0_65, %c0_66] : memref<1x2xf32, #tpu.memory_space<vmem>>, vector<1x2xf32>
      %81 = vector.extract_strided_slice %80 {offsets = [0, 0], sizes = [1, 1], strides = [1, 1]} : vector<1x2xf32> to vector<1x1xf32>
      %82 = vector.extract_strided_slice %80 {offsets = [0, 1], sizes = [1, 1], strides = [1, 1]} : vector<1x2xf32> to vector<1x1xf32>
      %c19_i32_67 = arith.constant 19 : i32
      %83 = tpu.dynamic_rotate %78 by %c19_i32_67 dim 1 : vector<3x384xf32>, i32 -> vector<3x384xf32>
      %c18_i32_68 = arith.constant 18 : i32
      %84 = tpu.dynamic_rotate %78 by %c18_i32_68 dim 1 : vector<3x384xf32>, i32 -> vector<3x384xf32>
      %c17_i32_69 = arith.constant 17 : i32
      %85 = tpu.dynamic_rotate %78 by %c17_i32_69 dim 1 : vector<3x384xf32>, i32 -> vector<3x384xf32>
      %c1_i32_70 = arith.constant 1 : i32
      %86 = tpu.dynamic_rotate %78 by %c1_i32_70 dim 1 : vector<3x384xf32>, i32 -> vector<3x384xf32>
      %c383_i32_71 = arith.constant 383 : i32
      %87 = tpu.dynamic_rotate %78 by %c383_i32_71 dim 1 : vector<3x384xf32>, i32 -> vector<3x384xf32>
      %c367_i32_72 = arith.constant 367 : i32
      %88 = tpu.dynamic_rotate %78 by %c367_i32_72 dim 1 : vector<3x384xf32>, i32 -> vector<3x384xf32>
      %c366_i32_73 = arith.constant 366 : i32
      %89 = tpu.dynamic_rotate %78 by %c366_i32_73 dim 1 : vector<3x384xf32>, i32 -> vector<3x384xf32>
      %c365_i32_74 = arith.constant 365 : i32
      %90 = tpu.dynamic_rotate %78 by %c365_i32_74 dim 1 : vector<3x384xf32>, i32 -> vector<3x384xf32>
      %91 = tpu.concatenate %83, %84, %85, %86, %78, %87, %88, %89, %90 in 0 : vector<3x384xf32>, vector<3x384xf32>, vector<3x384xf32>, vector<3x384xf32>, vector<3x384xf32>, vector<3x384xf32>, vector<3x384xf32>, vector<3x384xf32>, vector<3x384xf32> -> vector<27x384xf32>
      %92 = arith.truncf %91 : vector<27x384xf32> to vector<27x384xbf16>
      %c0_75 = arith.constant 0 : index
      %c0_76 = arith.constant 0 : index
      %93 = vector.load %arg7[%c0_75, %c0_76] : memref<32x27xf32, #tpu.memory_space<vmem>>, vector<32x27xf32>
      %94 = arith.truncf %93 : vector<32x27xf32> to vector<32x27xbf16>
      %cst_77 = arith.constant dense<0.000000e+00> : vector<32x384xf32>
      %95 = tpu.matmul %94, %92, %cst_77 {dimension_numbers = #tpu.dot_dimension_numbers<[1], [0], [0], [1], [0, 0, 1, 1], [], []>} : vector<32x27xbf16>, vector<27x384xbf16>, vector<32x384xf32> -> vector<32x384xf32>
      %c0_78 = arith.constant 0 : index
      %c0_79 = arith.constant 0 : index
      %96 = vector.load %arg8[%c0_78, %c0_79] : memref<32x1xf32, #tpu.memory_space<vmem>>, vector<32x1xf32>
      %97 = vector.broadcast %96 : vector<32x1xf32> to vector<32x384xf32>
      %98 = arith.addf %95, %97 : vector<32x384xf32>
      %cst_80 = arith.constant 0.000000e+00 : f32
      %99 = vector.broadcast %cst_80 : f32 to vector<32x384xf32>
      %100 = arith.maximumf %98, %99 : vector<32x384xf32>
      %cst_81 = arith.constant 0.000000e+00 : f32
      %101 = vector.broadcast %cst_81 : f32 to vector<32x384xf32>
      %102 = arith.minimumf %98, %101 : vector<32x384xf32>
      %103 = vector.broadcast %81 : vector<1x1xf32> to vector<32x384xf32>
      %104 = arith.mulf %103, %102 : vector<32x384xf32>
      %105 = arith.addf %100, %104 : vector<32x384xf32>
      %c0_82 = arith.constant 0 : index
      %c0_83 = arith.constant 0 : index
      %106 = vector.load %arg9[%c0_82, %c0_83] : memref<8x32xf32, #tpu.memory_space<vmem>>, vector<8x32xf32>
      %cst_84 = arith.constant dense<0.000000e+00> : vector<8x384xf32>
      %107 = tpu.matmul %106, %105, %cst_84 {dimension_numbers = #tpu.dot_dimension_numbers<[1], [0], [0], [1], [0, 0, 1, 1], [], []>} : vector<8x32xf32>, vector<32x384xf32>, vector<8x384xf32> -> vector<8x384xf32>
      %c0_85 = arith.constant 0 : index
      %c0_86 = arith.constant 0 : index
      %108 = vector.load %arg10[%c0_85, %c0_86] : memref<8x1xf32, #tpu.memory_space<vmem>>, vector<8x1xf32>
      %109 = vector.broadcast %108 : vector<8x1xf32> to vector<8x384xf32>
      %110 = arith.addf %107, %109 : vector<8x384xf32>
      %cst_87 = arith.constant 0.000000e+00 : f32
      %111 = vector.broadcast %cst_87 : f32 to vector<8x384xf32>
      %112 = arith.maximumf %110, %111 : vector<8x384xf32>
      %cst_88 = arith.constant 0.000000e+00 : f32
      %113 = vector.broadcast %cst_88 : f32 to vector<8x384xf32>
      %114 = arith.minimumf %110, %113 : vector<8x384xf32>
      %115 = vector.broadcast %82 : vector<1x1xf32> to vector<8x384xf32>
      %116 = arith.mulf %115, %114 : vector<8x384xf32>
      %117 = arith.addf %112, %116 : vector<8x384xf32>
      %c0_89 = arith.constant 0 : index
      %c0_90 = arith.constant 0 : index
      %118 = vector.load %arg23[%c0_89, %c0_90] : memref<8x384xf32, #tpu.memory_space<vmem>>, vector<8x384xf32>
      tpu.vector_store %arg23[%c0_89, %c0_90], %117 {strides = array<i32>} : memref<8x384xf32, #tpu.memory_space<vmem>>, vector<8x384xf32>,
      %c0_91 = arith.constant 0 : index
      %c0_92 = arith.constant 0 : index
      %119 = vector.load %arg24[%c0_91, %c0_92] : memref<8x384xf32, #tpu.memory_space<vmem>>, vector<8x384xf32>
      tpu.vector_store %arg24[%c0_91, %c0_92], %117 {strides = array<i32>} : memref<8x384xf32, #tpu.memory_space<vmem>>, vector<8x384xf32>,
    } else {
    }
    %c0_2 = arith.constant 0 : index
    %c0_3 = arith.constant 0 : index
    %8 = vector.load %arg23[%c0_2, %c0_3] : memref<8x384xf32, #tpu.memory_space<vmem>>, vector<8x384xf32>
    %c0_4 = arith.constant 0 : index
    %c0_5 = arith.constant 0 : index
    %9 = vector.load %arg24[%c0_4, %c0_5] : memref<8x384xf32, #tpu.memory_space<vmem>>, vector<8x384xf32>
    %c0_6 = arith.constant 0 : index
    %c0_7 = arith.constant 0 : index
    %10 = vector.load %arg12[%c0_6, %c0_7] : memref<8x16xf32, #tpu.memory_space<vmem>>, vector<8x16xf32>
    %11 = tpu.concatenate %8, %9 in 0 : vector<8x384xf32>, vector<8x384xf32> -> vector<16x384xf32>
    %cst = arith.constant dense<0.000000e+00> : vector<8x384xf32>
    %12 = tpu.matmul %10, %11, %cst {dimension_numbers = #tpu.dot_dimension_numbers<[1], [0], [0], [1], [0, 0, 1, 1], [], []>} : vector<8x16xf32>, vector<16x384xf32>, vector<8x384xf32> -> vector<8x384xf32>
    %c0_8 = arith.constant 0 : index
    %c0_9 = arith.constant 0 : index
    %13 = vector.load %arg13[%c0_8, %c0_9] : memref<8x1xf32, #tpu.memory_space<vmem>>, vector<8x1xf32>
    %14 = vector.broadcast %13 : vector<8x1xf32> to vector<8x384xf32>
    %15 = arith.addf %12, %14 : vector<8x384xf32>
    %16 = arith.mulf %15, %2 : vector<8x384xf32>
    %c0_i32_10 = arith.constant 0 : i32
    %c4_i32 = arith.constant 4 : i32
    %17 = arith.addi %c0_i32_10, %c4_i32 : i32
    %c1_i32 = arith.constant 1 : i32
    %18 = scf.for %arg28 = %c0_i32_10 to %17 step %c1_i32 iter_args(%arg29 = %16) -> (vector<8x384xf32>)  : i32 {
      %c10_i32 = arith.constant 10 : i32
      %71 = arith.muli %arg28, %c10_i32 : i32
      %c4_i32_55 = arith.constant 4 : i32
      %72 = arith.muli %arg28, %c4_i32_55 : i32
      %c0_i32_56 = arith.constant 0 : i32
      %73 = arith.addi %71, %c0_i32_56 : i32
      %74 = arith.index_cast %73 : i32 to index
      %c0_57 = arith.constant 0 : index
      %c0_58 = arith.constant 0 : index
      %75 = vector.load %arg16[%74, %c0_57, %c0_58] : memref<40x8x72xf32, #tpu.memory_space<vmem>>, vector<1x8x72xf32>
      %76 = vector.shape_cast %75 : vector<1x8x72xf32> to vector<8x72xf32>
      %c0_i32_59 = arith.constant 0 : i32
      %77 = arith.addi %71, %c0_i32_59 : i32
      %78 = arith.index_cast %77 : i32 to index
      %c0_60 = arith.constant 0 : index
      %c0_61 = arith.constant 0 : index
      %79 = vector.load %arg17[%78, %c0_60, %c0_61] : memref<40x8x1xf32, #tpu.memory_space<vmem>>, vector<1x8x1xf32>
      %80 = vector.shape_cast %79 : vector<1x8x1xf32> to vector<8x1xf32>
      %c19_i32_62 = arith.constant 19 : i32
      %81 = tpu.dynamic_rotate %arg29 by %c19_i32_62 dim 1 : vector<8x384xf32>, i32 -> vector<8x384xf32>
      %c0_63 = arith.constant 0 : index
      %c0_64 = arith.constant 0 : index
      %82 = vector.load %arg26[%c0_63, %c0_64] : memref<72x384xf32, #tpu.memory_space<vmem>>, vector<8x384xf32>
      tpu.vector_store %arg26[%c0_63, %c0_64], %81 {strides = array<i32>} : memref<72x384xf32, #tpu.memory_space<vmem>>, vector<8x384xf32>,
      %c18_i32_65 = arith.constant 18 : i32
      %83 = tpu.dynamic_rotate %arg29 by %c18_i32_65 dim 1 : vector<8x384xf32>, i32 -> vector<8x384xf32>
      %c8_66 = arith.constant 8 : index
      %c0_67 = arith.constant 0 : index
      %84 = vector.load %arg26[%c8_66, %c0_67] : memref<72x384xf32, #tpu.memory_space<vmem>>, vector<8x384xf32>
      tpu.vector_store %arg26[%c8_66, %c0_67], %83 {strides = array<i32>} : memref<72x384xf32, #tpu.memory_space<vmem>>, vector<8x384xf32>,
      %c17_i32_68 = arith.constant 17 : i32
      %85 = tpu.dynamic_rotate %arg29 by %c17_i32_68 dim 1 : vector<8x384xf32>, i32 -> vector<8x384xf32>
      %c16_69 = arith.constant 16 : index
      %c0_70 = arith.constant 0 : index
      %86 = vector.load %arg26[%c16_69, %c0_70] : memref<72x384xf32, #tpu.memory_space<vmem>>, vector<8x384xf32>
      tpu.vector_store %arg26[%c16_69, %c0_70], %85 {strides = array<i32>} : memref<72x384xf32, #tpu.memory_space<vmem>>, vector<8x384xf32>,
      %c1_i32_71 = arith.constant 1 : i32
      %87 = tpu.dynamic_rotate %arg29 by %c1_i32_71 dim 1 : vector<8x384xf32>, i32 -> vector<8x384xf32>
      %c24_72 = arith.constant 24 : index
      %c0_73 = arith.constant 0 : index
      %88 = vector.load %arg26[%c24_72, %c0_73] : memref<72x384xf32, #tpu.memory_space<vmem>>, vector<8x384xf32>
      tpu.vector_store %arg26[%c24_72, %c0_73], %87 {strides = array<i32>} : memref<72x384xf32, #tpu.memory_space<vmem>>, vector<8x384xf32>,
      %c32_74 = arith.constant 32 : index
      %c0_75 = arith.constant 0 : index
      %89 = vector.load %arg26[%c32_74, %c0_75] : memref<72x384xf32, #tpu.memory_space<vmem>>, vector<8x384xf32>
      tpu.vector_store %arg26[%c32_74, %c0_75], %arg29 {strides = array<i32>} : memref<72x384xf32, #tpu.memory_space<vmem>>, vector<8x384xf32>,
      %c383_i32_76 = arith.constant 383 : i32
      %90 = tpu.dynamic_rotate %arg29 by %c383_i32_76 dim 1 : vector<8x384xf32>, i32 -> vector<8x384xf32>
      %c40_77 = arith.constant 40 : index
      %c0_78 = arith.constant 0 : index
      %91 = vector.load %arg26[%c40_77, %c0_78] : memref<72x384xf32, #tpu.memory_space<vmem>>, vector<8x384xf32>
      tpu.vector_store %arg26[%c40_77, %c0_78], %90 {strides = array<i32>} : memref<72x384xf32, #tpu.memory_space<vmem>>, vector<8x384xf32>,
      %c367_i32_79 = arith.constant 367 : i32
      %92 = tpu.dynamic_rotate %arg29 by %c367_i32_79 dim 1 : vector<8x384xf32>, i32 -> vector<8x384xf32>
      %c48_80 = arith.constant 48 : index
      %c0_81 = arith.constant 0 : index
      %93 = vector.load %arg26[%c48_80, %c0_81] : memref<72x384xf32, #tpu.memory_space<vmem>>, vector<8x384xf32>
      tpu.vector_store %arg26[%c48_80, %c0_81], %92 {strides = array<i32>} : memref<72x384xf32, #tpu.memory_space<vmem>>, vector<8x384xf32>,
      %c366_i32_82 = arith.constant 366 : i32
      %94 = tpu.dynamic_rotate %arg29 by %c366_i32_82 dim 1 : vector<8x384xf32>, i32 -> vector<8x384xf32>
      %c56_83 = arith.constant 56 : index
      %c0_84 = arith.constant 0 : index
      %95 = vector.load %arg26[%c56_83, %c0_84] : memref<72x384xf32, #tpu.memory_space<vmem>>, vector<8x384xf32>
      tpu.vector_store %arg26[%c56_83, %c0_84], %94 {strides = array<i32>} : memref<72x384xf32, #tpu.memory_space<vmem>>, vector<8x384xf32>,
      %c365_i32_85 = arith.constant 365 : i32
      %96 = tpu.dynamic_rotate %arg29 by %c365_i32_85 dim 1 : vector<8x384xf32>, i32 -> vector<8x384xf32>
      %c64_86 = arith.constant 64 : index
      %c0_87 = arith.constant 0 : index
      %97 = vector.load %arg26[%c64_86, %c0_87] : memref<72x384xf32, #tpu.memory_space<vmem>>, vector<8x384xf32>
      tpu.vector_store %arg26[%c64_86, %c0_87], %96 {strides = array<i32>} : memref<72x384xf32, #tpu.memory_space<vmem>>, vector<8x384xf32>,
      %98 = arith.truncf %76 : vector<8x72xf32> to vector<8x72xbf16>
      %c0_88 = arith.constant 0 : index
      %c0_89 = arith.constant 0 : index
      %99 = vector.load %arg26[%c0_88, %c0_89] : memref<72x384xf32, #tpu.memory_space<vmem>>, vector<72x384xf32>
      %100 = arith.truncf %99 : vector<72x384xf32> to vector<72x384xbf16>
      %cst_90 = arith.constant dense<0.000000e+00> : vector<8x384xf32>
      %101 = tpu.matmul %98, %100, %cst_90 {dimension_numbers = #tpu.dot_dimension_numbers<[1], [0], [0], [1], [0, 0, 1, 1], [], []>} : vector<8x72xbf16>, vector<72x384xbf16>, vector<8x384xf32> -> vector<8x384xf32>
      %102 = vector.broadcast %80 : vector<8x1xf32> to vector<8x384xf32>
      %103 = arith.addf %101, %102 : vector<8x384xf32>
      %cst_91 = arith.constant 0.000000e+00 : f32
      %104 = vector.broadcast %cst_91 : f32 to vector<8x384xf32>
      %105 = arith.maximumf %103, %104 : vector<8x384xf32>
      %106 = arith.mulf %105, %2 : vector<8x384xf32>
      %c1_i32_92 = arith.constant 1 : i32
      %107 = arith.addi %71, %c1_i32_92 : i32
      %108 = arith.index_cast %107 : i32 to index
      %c0_93 = arith.constant 0 : index
      %c0_94 = arith.constant 0 : index
      %109 = vector.load %arg16[%108, %c0_93, %c0_94] : memref<40x8x72xf32, #tpu.memory_space<vmem>>, vector<1x8x72xf32>
      %110 = vector.shape_cast %109 : vector<1x8x72xf32> to vector<8x72xf32>
      %c1_i32_95 = arith.constant 1 : i32
      %111 = arith.addi %71, %c1_i32_95 : i32
      %112 = arith.index_cast %111 : i32 to index
      %c0_96 = arith.constant 0 : index
      %c0_97 = arith.constant 0 : index
      %113 = vector.load %arg17[%112, %c0_96, %c0_97] : memref<40x8x1xf32, #tpu.memory_space<vmem>>, vector<1x8x1xf32>
      %114 = vector.shape_cast %113 : vector<1x8x1xf32> to vector<8x1xf32>
      %c19_i32_98 = arith.constant 19 : i32
      %115 = tpu.dynamic_rotate %106 by %c19_i32_98 dim 1 : vector<8x384xf32>, i32 -> vector<8x384xf32>
      %c0_99 = arith.constant 0 : index
      %c0_100 = arith.constant 0 : index
      %116 = vector.load %arg26[%c0_99, %c0_100] : memref<72x384xf32, #tpu.memory_space<vmem>>, vector<8x384xf32>
      tpu.vector_store %arg26[%c0_99, %c0_100], %115 {strides = array<i32>} : memref<72x384xf32, #tpu.memory_space<vmem>>, vector<8x384xf32>,
      %c18_i32_101 = arith.constant 18 : i32
      %117 = tpu.dynamic_rotate %106 by %c18_i32_101 dim 1 : vector<8x384xf32>, i32 -> vector<8x384xf32>
      %c8_102 = arith.constant 8 : index
      %c0_103 = arith.constant 0 : index
      %118 = vector.load %arg26[%c8_102, %c0_103] : memref<72x384xf32, #tpu.memory_space<vmem>>, vector<8x384xf32>
      tpu.vector_store %arg26[%c8_102, %c0_103], %117 {strides = array<i32>} : memref<72x384xf32, #tpu.memory_space<vmem>>, vector<8x384xf32>,
      %c17_i32_104 = arith.constant 17 : i32
      %119 = tpu.dynamic_rotate %106 by %c17_i32_104 dim 1 : vector<8x384xf32>, i32 -> vector<8x384xf32>
      %c16_105 = arith.constant 16 : index
      %c0_106 = arith.constant 0 : index
      %120 = vector.load %arg26[%c16_105, %c0_106] : memref<72x384xf32, #tpu.memory_space<vmem>>, vector<8x384xf32>
      tpu.vector_store %arg26[%c16_105, %c0_106], %119 {strides = array<i32>} : memref<72x384xf32, #tpu.memory_space<vmem>>, vector<8x384xf32>,
      %c1_i32_107 = arith.constant 1 : i32
      %121 = tpu.dynamic_rotate %106 by %c1_i32_107 dim 1 : vector<8x384xf32>, i32 -> vector<8x384xf32>
      %c24_108 = arith.constant 24 : index
      %c0_109 = arith.constant 0 : index
      %122 = vector.load %arg26[%c24_108, %c0_109] : memref<72x384xf32, #tpu.memory_space<vmem>>, vector<8x384xf32>
      tpu.vector_store %arg26[%c24_108, %c0_109], %121 {strides = array<i32>} : memref<72x384xf32, #tpu.memory_space<vmem>>, vector<8x384xf32>,
      %c32_110 = arith.constant 32 : index
      %c0_111 = arith.constant 0 : index
      %123 = vector.load %arg26[%c32_110, %c0_111] : memref<72x384xf32, #tpu.memory_space<vmem>>, vector<8x384xf32>
      tpu.vector_store %arg26[%c32_110, %c0_111], %106 {strides = array<i32>} : memref<72x384xf32, #tpu.memory_space<vmem>>, vector<8x384xf32>,
      %c383_i32_112 = arith.constant 383 : i32
      %124 = tpu.dynamic_rotate %106 by %c383_i32_112 dim 1 : vector<8x384xf32>, i32 -> vector<8x384xf32>
      %c40_113 = arith.constant 40 : index
      %c0_114 = arith.constant 0 : index
      %125 = vector.load %arg26[%c40_113, %c0_114] : memref<72x384xf32, #tpu.memory_space<vmem>>, vector<8x384xf32>
      tpu.vector_store %arg26[%c40_113, %c0_114], %124 {strides = array<i32>} : memref<72x384xf32, #tpu.memory_space<vmem>>, vector<8x384xf32>,
      %c367_i32_115 = arith.constant 367 : i32
      %126 = tpu.dynamic_rotate %106 by %c367_i32_115 dim 1 : vector<8x384xf32>, i32 -> vector<8x384xf32>
      %c48_116 = arith.constant 48 : index
      %c0_117 = arith.constant 0 : index
      %127 = vector.load %arg26[%c48_116, %c0_117] : memref<72x384xf32, #tpu.memory_space<vmem>>, vector<8x384xf32>
      tpu.vector_store %arg26[%c48_116, %c0_117], %126 {strides = array<i32>} : memref<72x384xf32, #tpu.memory_space<vmem>>, vector<8x384xf32>,
      %c366_i32_118 = arith.constant 366 : i32
      %128 = tpu.dynamic_rotate %106 by %c366_i32_118 dim 1 : vector<8x384xf32>, i32 -> vector<8x384xf32>
      %c56_119 = arith.constant 56 : index
      %c0_120 = arith.constant 0 : index
      %129 = vector.load %arg26[%c56_119, %c0_120] : memref<72x384xf32, #tpu.memory_space<vmem>>, vector<8x384xf32>
      tpu.vector_store %arg26[%c56_119, %c0_120], %128 {strides = array<i32>} : memref<72x384xf32, #tpu.memory_space<vmem>>, vector<8x384xf32>,
      %c365_i32_121 = arith.constant 365 : i32
      %130 = tpu.dynamic_rotate %106 by %c365_i32_121 dim 1 : vector<8x384xf32>, i32 -> vector<8x384xf32>
      %c64_122 = arith.constant 64 : index
      %c0_123 = arith.constant 0 : index
      %131 = vector.load %arg26[%c64_122, %c0_123] : memref<72x384xf32, #tpu.memory_space<vmem>>, vector<8x384xf32>
      tpu.vector_store %arg26[%c64_122, %c0_123], %130 {strides = array<i32>} : memref<72x384xf32, #tpu.memory_space<vmem>>, vector<8x384xf32>,
      %132 = arith.truncf %110 : vector<8x72xf32> to vector<8x72xbf16>
      %c0_124 = arith.constant 0 : index
      %c0_125 = arith.constant 0 : index
      %133 = vector.load %arg26[%c0_124, %c0_125] : memref<72x384xf32, #tpu.memory_space<vmem>>, vector<72x384xf32>
      %134 = arith.truncf %133 : vector<72x384xf32> to vector<72x384xbf16>
      %cst_126 = arith.constant dense<0.000000e+00> : vector<8x384xf32>
      %135 = tpu.matmul %132, %134, %cst_126 {dimension_numbers = #tpu.dot_dimension_numbers<[1], [0], [0], [1], [0, 0, 1, 1], [], []>} : vector<8x72xbf16>, vector<72x384xbf16>, vector<8x384xf32> -> vector<8x384xf32>
      %136 = vector.broadcast %114 : vector<8x1xf32> to vector<8x384xf32>
      %137 = arith.addf %135, %136 : vector<8x384xf32>
      %cst_127 = arith.constant 0.000000e+00 : f32
      %138 = vector.broadcast %cst_127 : f32 to vector<8x384xf32>
      %139 = arith.maximumf %137, %138 : vector<8x384xf32>
      %140 = arith.mulf %139, %2 : vector<8x384xf32>
      %c2_i32 = arith.constant 2 : i32
      %141 = arith.addi %71, %c2_i32 : i32
      %142 = arith.index_cast %141 : i32 to index
      %c0_128 = arith.constant 0 : index
      %c0_129 = arith.constant 0 : index
      %143 = vector.load %arg16[%142, %c0_128, %c0_129] : memref<40x8x72xf32, #tpu.memory_space<vmem>>, vector<1x8x72xf32>
      %144 = vector.shape_cast %143 : vector<1x8x72xf32> to vector<8x72xf32>
      %c2_i32_130 = arith.constant 2 : i32
      %145 = arith.addi %71, %c2_i32_130 : i32
      %146 = arith.index_cast %145 : i32 to index
      %c0_131 = arith.constant 0 : index
      %c0_132 = arith.constant 0 : index
      %147 = vector.load %arg17[%146, %c0_131, %c0_132] : memref<40x8x1xf32, #tpu.memory_space<vmem>>, vector<1x8x1xf32>
      %148 = vector.shape_cast %147 : vector<1x8x1xf32> to vector<8x1xf32>
      %c19_i32_133 = arith.constant 19 : i32
      %149 = tpu.dynamic_rotate %140 by %c19_i32_133 dim 1 : vector<8x384xf32>, i32 -> vector<8x384xf32>
      %c0_134 = arith.constant 0 : index
      %c0_135 = arith.constant 0 : index
      %150 = vector.load %arg26[%c0_134, %c0_135] : memref<72x384xf32, #tpu.memory_space<vmem>>, vector<8x384xf32>
      tpu.vector_store %arg26[%c0_134, %c0_135], %149 {strides = array<i32>} : memref<72x384xf32, #tpu.memory_space<vmem>>, vector<8x384xf32>,
      %c18_i32_136 = arith.constant 18 : i32
      %151 = tpu.dynamic_rotate %140 by %c18_i32_136 dim 1 : vector<8x384xf32>, i32 -> vector<8x384xf32>
      %c8_137 = arith.constant 8 : index
      %c0_138 = arith.constant 0 : index
      %152 = vector.load %arg26[%c8_137, %c0_138] : memref<72x384xf32, #tpu.memory_space<vmem>>, vector<8x384xf32>
      tpu.vector_store %arg26[%c8_137, %c0_138], %151 {strides = array<i32>} : memref<72x384xf32, #tpu.memory_space<vmem>>, vector<8x384xf32>,
      %c17_i32_139 = arith.constant 17 : i32
      %153 = tpu.dynamic_rotate %140 by %c17_i32_139 dim 1 : vector<8x384xf32>, i32 -> vector<8x384xf32>
      %c16_140 = arith.constant 16 : index
      %c0_141 = arith.constant 0 : index
      %154 = vector.load %arg26[%c16_140, %c0_141] : memref<72x384xf32, #tpu.memory_space<vmem>>, vector<8x384xf32>
      tpu.vector_store %arg26[%c16_140, %c0_141], %153 {strides = array<i32>} : memref<72x384xf32, #tpu.memory_space<vmem>>, vector<8x384xf32>,
      %c1_i32_142 = arith.constant 1 : i32
      %155 = tpu.dynamic_rotate %140 by %c1_i32_142 dim 1 : vector<8x384xf32>, i32 -> vector<8x384xf32>
      %c24_143 = arith.constant 24 : index
      %c0_144 = arith.constant 0 : index
      %156 = vector.load %arg26[%c24_143, %c0_144] : memref<72x384xf32, #tpu.memory_space<vmem>>, vector<8x384xf32>
      tpu.vector_store %arg26[%c24_143, %c0_144], %155 {strides = array<i32>} : memref<72x384xf32, #tpu.memory_space<vmem>>, vector<8x384xf32>,
      %c32_145 = arith.constant 32 : index
      %c0_146 = arith.constant 0 : index
      %157 = vector.load %arg26[%c32_145, %c0_146] : memref<72x384xf32, #tpu.memory_space<vmem>>, vector<8x384xf32>
      tpu.vector_store %arg26[%c32_145, %c0_146], %140 {strides = array<i32>} : memref<72x384xf32, #tpu.memory_space<vmem>>, vector<8x384xf32>,
      %c383_i32_147 = arith.constant 383 : i32
      %158 = tpu.dynamic_rotate %140 by %c383_i32_147 dim 1 : vector<8x384xf32>, i32 -> vector<8x384xf32>
      %c40_148 = arith.constant 40 : index
      %c0_149 = arith.constant 0 : index
      %159 = vector.load %arg26[%c40_148, %c0_149] : memref<72x384xf32, #tpu.memory_space<vmem>>, vector<8x384xf32>
      tpu.vector_store %arg26[%c40_148, %c0_149], %158 {strides = array<i32>} : memref<72x384xf32, #tpu.memory_space<vmem>>, vector<8x384xf32>,
      %c367_i32_150 = arith.constant 367 : i32
      %160 = tpu.dynamic_rotate %140 by %c367_i32_150 dim 1 : vector<8x384xf32>, i32 -> vector<8x384xf32>
      %c48_151 = arith.constant 48 : index
      %c0_152 = arith.constant 0 : index
      %161 = vector.load %arg26[%c48_151, %c0_152] : memref<72x384xf32, #tpu.memory_space<vmem>>, vector<8x384xf32>
      tpu.vector_store %arg26[%c48_151, %c0_152], %160 {strides = array<i32>} : memref<72x384xf32, #tpu.memory_space<vmem>>, vector<8x384xf32>,
      %c366_i32_153 = arith.constant 366 : i32
      %162 = tpu.dynamic_rotate %140 by %c366_i32_153 dim 1 : vector<8x384xf32>, i32 -> vector<8x384xf32>
      %c56_154 = arith.constant 56 : index
      %c0_155 = arith.constant 0 : index
      %163 = vector.load %arg26[%c56_154, %c0_155] : memref<72x384xf32, #tpu.memory_space<vmem>>, vector<8x384xf32>
      tpu.vector_store %arg26[%c56_154, %c0_155], %162 {strides = array<i32>} : memref<72x384xf32, #tpu.memory_space<vmem>>, vector<8x384xf32>,
      %c365_i32_156 = arith.constant 365 : i32
      %164 = tpu.dynamic_rotate %140 by %c365_i32_156 dim 1 : vector<8x384xf32>, i32 -> vector<8x384xf32>
      %c64_157 = arith.constant 64 : index
      %c0_158 = arith.constant 0 : index
      %165 = vector.load %arg26[%c64_157, %c0_158] : memref<72x384xf32, #tpu.memory_space<vmem>>, vector<8x384xf32>
      tpu.vector_store %arg26[%c64_157, %c0_158], %164 {strides = array<i32>} : memref<72x384xf32, #tpu.memory_space<vmem>>, vector<8x384xf32>,
      %166 = arith.truncf %144 : vector<8x72xf32> to vector<8x72xbf16>
      %c0_159 = arith.constant 0 : index
      %c0_160 = arith.constant 0 : index
      %167 = vector.load %arg26[%c0_159, %c0_160] : memref<72x384xf32, #tpu.memory_space<vmem>>, vector<72x384xf32>
      %168 = arith.truncf %167 : vector<72x384xf32> to vector<72x384xbf16>
      %cst_161 = arith.constant dense<0.000000e+00> : vector<8x384xf32>
      %169 = tpu.matmul %166, %168, %cst_161 {dimension_numbers = #tpu.dot_dimension_numbers<[1], [0], [0], [1], [0, 0, 1, 1], [], []>} : vector<8x72xbf16>, vector<72x384xbf16>, vector<8x384xf32> -> vector<8x384xf32>
      %170 = vector.broadcast %148 : vector<8x1xf32> to vector<8x384xf32>
      %171 = arith.addf %169, %170 : vector<8x384xf32>
      %cst_162 = arith.constant 0.000000e+00 : f32
      %172 = vector.broadcast %cst_162 : f32 to vector<8x384xf32>
      %173 = arith.maximumf %171, %172 : vector<8x384xf32>
      %174 = arith.mulf %173, %2 : vector<8x384xf32>
      %c3_i32 = arith.constant 3 : i32
      %175 = arith.addi %71, %c3_i32 : i32
      %176 = arith.index_cast %175 : i32 to index
      %c0_163 = arith.constant 0 : index
      %c0_164 = arith.constant 0 : index
      %177 = vector.load %arg16[%176, %c0_163, %c0_164] : memref<40x8x72xf32, #tpu.memory_space<vmem>>, vector<1x8x72xf32>
      %178 = vector.shape_cast %177 : vector<1x8x72xf32> to vector<8x72xf32>
      %c3_i32_165 = arith.constant 3 : i32
      %179 = arith.addi %71, %c3_i32_165 : i32
      %180 = arith.index_cast %179 : i32 to index
      %c0_166 = arith.constant 0 : index
      %c0_167 = arith.constant 0 : index
      %181 = vector.load %arg17[%180, %c0_166, %c0_167] : memref<40x8x1xf32, #tpu.memory_space<vmem>>, vector<1x8x1xf32>
      %182 = vector.shape_cast %181 : vector<1x8x1xf32> to vector<8x1xf32>
      %c19_i32_168 = arith.constant 19 : i32
      %183 = tpu.dynamic_rotate %174 by %c19_i32_168 dim 1 : vector<8x384xf32>, i32 -> vector<8x384xf32>
      %c0_169 = arith.constant 0 : index
      %c0_170 = arith.constant 0 : index
      %184 = vector.load %arg26[%c0_169, %c0_170] : memref<72x384xf32, #tpu.memory_space<vmem>>, vector<8x384xf32>
      tpu.vector_store %arg26[%c0_169, %c0_170], %183 {strides = array<i32>} : memref<72x384xf32, #tpu.memory_space<vmem>>, vector<8x384xf32>,
      %c18_i32_171 = arith.constant 18 : i32
      %185 = tpu.dynamic_rotate %174 by %c18_i32_171 dim 1 : vector<8x384xf32>, i32 -> vector<8x384xf32>
      %c8_172 = arith.constant 8 : index
      %c0_173 = arith.constant 0 : index
      %186 = vector.load %arg26[%c8_172, %c0_173] : memref<72x384xf32, #tpu.memory_space<vmem>>, vector<8x384xf32>
      tpu.vector_store %arg26[%c8_172, %c0_173], %185 {strides = array<i32>} : memref<72x384xf32, #tpu.memory_space<vmem>>, vector<8x384xf32>,
      %c17_i32_174 = arith.constant 17 : i32
      %187 = tpu.dynamic_rotate %174 by %c17_i32_174 dim 1 : vector<8x384xf32>, i32 -> vector<8x384xf32>
      %c16_175 = arith.constant 16 : index
      %c0_176 = arith.constant 0 : index
      %188 = vector.load %arg26[%c16_175, %c0_176] : memref<72x384xf32, #tpu.memory_space<vmem>>, vector<8x384xf32>
      tpu.vector_store %arg26[%c16_175, %c0_176], %187 {strides = array<i32>} : memref<72x384xf32, #tpu.memory_space<vmem>>, vector<8x384xf32>,
      %c1_i32_177 = arith.constant 1 : i32
      %189 = tpu.dynamic_rotate %174 by %c1_i32_177 dim 1 : vector<8x384xf32>, i32 -> vector<8x384xf32>
      %c24_178 = arith.constant 24 : index
      %c0_179 = arith.constant 0 : index
      %190 = vector.load %arg26[%c24_178, %c0_179] : memref<72x384xf32, #tpu.memory_space<vmem>>, vector<8x384xf32>
      tpu.vector_store %arg26[%c24_178, %c0_179], %189 {strides = array<i32>} : memref<72x384xf32, #tpu.memory_space<vmem>>, vector<8x384xf32>,
      %c32_180 = arith.constant 32 : index
      %c0_181 = arith.constant 0 : index
      %191 = vector.load %arg26[%c32_180, %c0_181] : memref<72x384xf32, #tpu.memory_space<vmem>>, vector<8x384xf32>
      tpu.vector_store %arg26[%c32_180, %c0_181], %174 {strides = array<i32>} : memref<72x384xf32, #tpu.memory_space<vmem>>, vector<8x384xf32>,
      %c383_i32_182 = arith.constant 383 : i32
      %192 = tpu.dynamic_rotate %174 by %c383_i32_182 dim 1 : vector<8x384xf32>, i32 -> vector<8x384xf32>
      %c40_183 = arith.constant 40 : index
      %c0_184 = arith.constant 0 : index
      %193 = vector.load %arg26[%c40_183, %c0_184] : memref<72x384xf32, #tpu.memory_space<vmem>>, vector<8x384xf32>
      tpu.vector_store %arg26[%c40_183, %c0_184], %192 {strides = array<i32>} : memref<72x384xf32, #tpu.memory_space<vmem>>, vector<8x384xf32>,
      %c367_i32_185 = arith.constant 367 : i32
      %194 = tpu.dynamic_rotate %174 by %c367_i32_185 dim 1 : vector<8x384xf32>, i32 -> vector<8x384xf32>
      %c48_186 = arith.constant 48 : index
      %c0_187 = arith.constant 0 : index
      %195 = vector.load %arg26[%c48_186, %c0_187] : memref<72x384xf32, #tpu.memory_space<vmem>>, vector<8x384xf32>
      tpu.vector_store %arg26[%c48_186, %c0_187], %194 {strides = array<i32>} : memref<72x384xf32, #tpu.memory_space<vmem>>, vector<8x384xf32>,
      %c366_i32_188 = arith.constant 366 : i32
      %196 = tpu.dynamic_rotate %174 by %c366_i32_188 dim 1 : vector<8x384xf32>, i32 -> vector<8x384xf32>
      %c56_189 = arith.constant 56 : index
      %c0_190 = arith.constant 0 : index
      %197 = vector.load %arg26[%c56_189, %c0_190] : memref<72x384xf32, #tpu.memory_space<vmem>>, vector<8x384xf32>
      tpu.vector_store %arg26[%c56_189, %c0_190], %196 {strides = array<i32>} : memref<72x384xf32, #tpu.memory_space<vmem>>, vector<8x384xf32>,
      %c365_i32_191 = arith.constant 365 : i32
      %198 = tpu.dynamic_rotate %174 by %c365_i32_191 dim 1 : vector<8x384xf32>, i32 -> vector<8x384xf32>
      %c64_192 = arith.constant 64 : index
      %c0_193 = arith.constant 0 : index
      %199 = vector.load %arg26[%c64_192, %c0_193] : memref<72x384xf32, #tpu.memory_space<vmem>>, vector<8x384xf32>
      tpu.vector_store %arg26[%c64_192, %c0_193], %198 {strides = array<i32>} : memref<72x384xf32, #tpu.memory_space<vmem>>, vector<8x384xf32>,
      %200 = arith.truncf %178 : vector<8x72xf32> to vector<8x72xbf16>
      %c0_194 = arith.constant 0 : index
      %c0_195 = arith.constant 0 : index
      %201 = vector.load %arg26[%c0_194, %c0_195] : memref<72x384xf32, #tpu.memory_space<vmem>>, vector<72x384xf32>
      %202 = arith.truncf %201 : vector<72x384xf32> to vector<72x384xbf16>
      %cst_196 = arith.constant dense<0.000000e+00> : vector<8x384xf32>
      %203 = tpu.matmul %200, %202, %cst_196 {dimension_numbers = #tpu.dot_dimension_numbers<[1], [0], [0], [1], [0, 0, 1, 1], [], []>} : vector<8x72xbf16>, vector<72x384xbf16>, vector<8x384xf32> -> vector<8x384xf32>
      %204 = vector.broadcast %182 : vector<8x1xf32> to vector<8x384xf32>
      %205 = arith.addf %203, %204 : vector<8x384xf32>
      %cst_197 = arith.constant 0.000000e+00 : f32
      %206 = vector.broadcast %cst_197 : f32 to vector<8x384xf32>
      %207 = arith.maximumf %205, %206 : vector<8x384xf32>
      %208 = arith.addf %arg29, %207 : vector<8x384xf32>
      %c0_i32_198 = arith.constant 0 : i32
      %209 = arith.addi %72, %c0_i32_198 : i32
      %210 = arith.index_cast %209 : i32 to index
      %c0_199 = arith.constant 0 : index
      %c0_200 = arith.constant 0 : index
      %211 = vector.load %arg18[%210, %c0_199, %c0_200] : memref<16x8x32xf32, #tpu.memory_space<vmem>>, vector<1x8x32xf32>
      %212 = vector.shape_cast %211 : vector<1x8x32xf32> to vector<8x32xf32>
      %213 = tpu.concatenate %106, %140, %174, %207 in 0 : vector<8x384xf32>, vector<8x384xf32>, vector<8x384xf32>, vector<8x384xf32> -> vector<32x384xf32>
      %cst_201 = arith.constant dense<0.000000e+00> : vector<8x384xf32>
      %214 = tpu.matmul %212, %213, %cst_201 {dimension_numbers = #tpu.dot_dimension_numbers<[1], [0], [0], [1], [0, 0, 1, 1], [], []>} : vector<8x32xf32>, vector<32x384xf32>, vector<8x384xf32> -> vector<8x384xf32>
      %c0_i32_202 = arith.constant 0 : i32
      %215 = arith.addi %72, %c0_i32_202 : i32
      %216 = arith.index_cast %215 : i32 to index
      %c0_203 = arith.constant 0 : index
      %c0_204 = arith.constant 0 : index
      %217 = vector.load %arg19[%216, %c0_203, %c0_204] : memref<16x8x1xf32, #tpu.memory_space<vmem>>, vector<1x8x1xf32>
      %218 = vector.shape_cast %217 : vector<1x8x1xf32> to vector<8x1xf32>
      %219 = vector.broadcast %218 : vector<8x1xf32> to vector<8x384xf32>
      %220 = arith.addf %214, %219 : vector<8x384xf32>
      %221 = arith.mulf %220, %2 : vector<8x384xf32>
      %c4_i32_205 = arith.constant 4 : i32
      %222 = arith.addi %71, %c4_i32_205 : i32
      %223 = arith.index_cast %222 : i32 to index
      %c0_206 = arith.constant 0 : index
      %c0_207 = arith.constant 0 : index
      %224 = vector.load %arg16[%223, %c0_206, %c0_207] : memref<40x8x72xf32, #tpu.memory_space<vmem>>, vector<1x8x72xf32>
      %225 = vector.shape_cast %224 : vector<1x8x72xf32> to vector<8x72xf32>
      %c4_i32_208 = arith.constant 4 : i32
      %226 = arith.addi %71, %c4_i32_208 : i32
      %227 = arith.index_cast %226 : i32 to index
      %c0_209 = arith.constant 0 : index
      %c0_210 = arith.constant 0 : index
      %228 = vector.load %arg17[%227, %c0_209, %c0_210] : memref<40x8x1xf32, #tpu.memory_space<vmem>>, vector<1x8x1xf32>
      %229 = vector.shape_cast %228 : vector<1x8x1xf32> to vector<8x1xf32>
      %c19_i32_211 = arith.constant 19 : i32
      %230 = tpu.dynamic_rotate %221 by %c19_i32_211 dim 1 : vector<8x384xf32>, i32 -> vector<8x384xf32>
      %c0_212 = arith.constant 0 : index
      %c0_213 = arith.constant 0 : index
      %231 = vector.load %arg26[%c0_212, %c0_213] : memref<72x384xf32, #tpu.memory_space<vmem>>, vector<8x384xf32>
      tpu.vector_store %arg26[%c0_212, %c0_213], %230 {strides = array<i32>} : memref<72x384xf32, #tpu.memory_space<vmem>>, vector<8x384xf32>,
      %c18_i32_214 = arith.constant 18 : i32
      %232 = tpu.dynamic_rotate %221 by %c18_i32_214 dim 1 : vector<8x384xf32>, i32 -> vector<8x384xf32>
      %c8_215 = arith.constant 8 : index
      %c0_216 = arith.constant 0 : index
      %233 = vector.load %arg26[%c8_215, %c0_216] : memref<72x384xf32, #tpu.memory_space<vmem>>, vector<8x384xf32>
      tpu.vector_store %arg26[%c8_215, %c0_216], %232 {strides = array<i32>} : memref<72x384xf32, #tpu.memory_space<vmem>>, vector<8x384xf32>,
      %c17_i32_217 = arith.constant 17 : i32
      %234 = tpu.dynamic_rotate %221 by %c17_i32_217 dim 1 : vector<8x384xf32>, i32 -> vector<8x384xf32>
      %c16_218 = arith.constant 16 : index
      %c0_219 = arith.constant 0 : index
      %235 = vector.load %arg26[%c16_218, %c0_219] : memref<72x384xf32, #tpu.memory_space<vmem>>, vector<8x384xf32>
      tpu.vector_store %arg26[%c16_218, %c0_219], %234 {strides = array<i32>} : memref<72x384xf32, #tpu.memory_space<vmem>>, vector<8x384xf32>,
      %c1_i32_220 = arith.constant 1 : i32
      %236 = tpu.dynamic_rotate %221 by %c1_i32_220 dim 1 : vector<8x384xf32>, i32 -> vector<8x384xf32>
      %c24_221 = arith.constant 24 : index
      %c0_222 = arith.constant 0 : index
      %237 = vector.load %arg26[%c24_221, %c0_222] : memref<72x384xf32, #tpu.memory_space<vmem>>, vector<8x384xf32>
      tpu.vector_store %arg26[%c24_221, %c0_222], %236 {strides = array<i32>} : memref<72x384xf32, #tpu.memory_space<vmem>>, vector<8x384xf32>,
      %c32_223 = arith.constant 32 : index
      %c0_224 = arith.constant 0 : index
      %238 = vector.load %arg26[%c32_223, %c0_224] : memref<72x384xf32, #tpu.memory_space<vmem>>, vector<8x384xf32>
      tpu.vector_store %arg26[%c32_223, %c0_224], %221 {strides = array<i32>} : memref<72x384xf32, #tpu.memory_space<vmem>>, vector<8x384xf32>,
      %c383_i32_225 = arith.constant 383 : i32
      %239 = tpu.dynamic_rotate %221 by %c383_i32_225 dim 1 : vector<8x384xf32>, i32 -> vector<8x384xf32>
      %c40_226 = arith.constant 40 : index
      %c0_227 = arith.constant 0 : index
      %240 = vector.load %arg26[%c40_226, %c0_227] : memref<72x384xf32, #tpu.memory_space<vmem>>, vector<8x384xf32>
      tpu.vector_store %arg26[%c40_226, %c0_227], %239 {strides = array<i32>} : memref<72x384xf32, #tpu.memory_space<vmem>>, vector<8x384xf32>,
      %c367_i32_228 = arith.constant 367 : i32
      %241 = tpu.dynamic_rotate %221 by %c367_i32_228 dim 1 : vector<8x384xf32>, i32 -> vector<8x384xf32>
      %c48_229 = arith.constant 48 : index
      %c0_230 = arith.constant 0 : index
      %242 = vector.load %arg26[%c48_229, %c0_230] : memref<72x384xf32, #tpu.memory_space<vmem>>, vector<8x384xf32>
      tpu.vector_store %arg26[%c48_229, %c0_230], %241 {strides = array<i32>} : memref<72x384xf32, #tpu.memory_space<vmem>>, vector<8x384xf32>,
      %c366_i32_231 = arith.constant 366 : i32
      %243 = tpu.dynamic_rotate %221 by %c366_i32_231 dim 1 : vector<8x384xf32>, i32 -> vector<8x384xf32>
      %c56_232 = arith.constant 56 : index
      %c0_233 = arith.constant 0 : index
      %244 = vector.load %arg26[%c56_232, %c0_233] : memref<72x384xf32, #tpu.memory_space<vmem>>, vector<8x384xf32>
      tpu.vector_store %arg26[%c56_232, %c0_233], %243 {strides = array<i32>} : memref<72x384xf32, #tpu.memory_space<vmem>>, vector<8x384xf32>,
      %c365_i32_234 = arith.constant 365 : i32
      %245 = tpu.dynamic_rotate %221 by %c365_i32_234 dim 1 : vector<8x384xf32>, i32 -> vector<8x384xf32>
      %c64_235 = arith.constant 64 : index
      %c0_236 = arith.constant 0 : index
      %246 = vector.load %arg26[%c64_235, %c0_236] : memref<72x384xf32, #tpu.memory_space<vmem>>, vector<8x384xf32>
      tpu.vector_store %arg26[%c64_235, %c0_236], %245 {strides = array<i32>} : memref<72x384xf32, #tpu.memory_space<vmem>>, vector<8x384xf32>,
      %247 = arith.truncf %225 : vector<8x72xf32> to vector<8x72xbf16>
      %c0_237 = arith.constant 0 : index
      %c0_238 = arith.constant 0 : index
      %248 = vector.load %arg26[%c0_237, %c0_238] : memref<72x384xf32, #tpu.memory_space<vmem>>, vector<72x384xf32>
      %249 = arith.truncf %248 : vector<72x384xf32> to vector<72x384xbf16>
      %cst_239 = arith.constant dense<0.000000e+00> : vector<8x384xf32>
      %250 = tpu.matmul %247, %249, %cst_239 {dimension_numbers = #tpu.dot_dimension_numbers<[1], [0], [0], [1], [0, 0, 1, 1], [], []>} : vector<8x72xbf16>, vector<72x384xbf16>, vector<8x384xf32> -> vector<8x384xf32>
      %251 = vector.broadcast %229 : vector<8x1xf32> to vector<8x384xf32>
      %252 = arith.addf %250, %251 : vector<8x384xf32>
      %cst_240 = arith.constant 0.000000e+00 : f32
      %253 = vector.broadcast %cst_240 : f32 to vector<8x384xf32>
      %254 = arith.maximumf %252, %253 : vector<8x384xf32>
      %255 = arith.mulf %254, %2 : vector<8x384xf32>
      %c5_i32 = arith.constant 5 : i32
      %256 = arith.addi %71, %c5_i32 : i32
      %257 = arith.index_cast %256 : i32 to index
      %c0_241 = arith.constant 0 : index
      %c0_242 = arith.constant 0 : index
      %258 = vector.load %arg16[%257, %c0_241, %c0_242] : memref<40x8x72xf32, #tpu.memory_space<vmem>>, vector<1x8x72xf32>
      %259 = vector.shape_cast %258 : vector<1x8x72xf32> to vector<8x72xf32>
      %c5_i32_243 = arith.constant 5 : i32
      %260 = arith.addi %71, %c5_i32_243 : i32
      %261 = arith.index_cast %260 : i32 to index
      %c0_244 = arith.constant 0 : index
      %c0_245 = arith.constant 0 : index
      %262 = vector.load %arg17[%261, %c0_244, %c0_245] : memref<40x8x1xf32, #tpu.memory_space<vmem>>, vector<1x8x1xf32>
      %263 = vector.shape_cast %262 : vector<1x8x1xf32> to vector<8x1xf32>
      %c19_i32_246 = arith.constant 19 : i32
      %264 = tpu.dynamic_rotate %255 by %c19_i32_246 dim 1 : vector<8x384xf32>, i32 -> vector<8x384xf32>
      %c0_247 = arith.constant 0 : index
      %c0_248 = arith.constant 0 : index
      %265 = vector.load %arg26[%c0_247, %c0_248] : memref<72x384xf32, #tpu.memory_space<vmem>>, vector<8x384xf32>
      tpu.vector_store %arg26[%c0_247, %c0_248], %264 {strides = array<i32>} : memref<72x384xf32, #tpu.memory_space<vmem>>, vector<8x384xf32>,
      %c18_i32_249 = arith.constant 18 : i32
      %266 = tpu.dynamic_rotate %255 by %c18_i32_249 dim 1 : vector<8x384xf32>, i32 -> vector<8x384xf32>
      %c8_250 = arith.constant 8 : index
      %c0_251 = arith.constant 0 : index
      %267 = vector.load %arg26[%c8_250, %c0_251] : memref<72x384xf32, #tpu.memory_space<vmem>>, vector<8x384xf32>
      tpu.vector_store %arg26[%c8_250, %c0_251], %266 {strides = array<i32>} : memref<72x384xf32, #tpu.memory_space<vmem>>, vector<8x384xf32>,
      %c17_i32_252 = arith.constant 17 : i32
      %268 = tpu.dynamic_rotate %255 by %c17_i32_252 dim 1 : vector<8x384xf32>, i32 -> vector<8x384xf32>
      %c16_253 = arith.constant 16 : index
      %c0_254 = arith.constant 0 : index
      %269 = vector.load %arg26[%c16_253, %c0_254] : memref<72x384xf32, #tpu.memory_space<vmem>>, vector<8x384xf32>
      tpu.vector_store %arg26[%c16_253, %c0_254], %268 {strides = array<i32>} : memref<72x384xf32, #tpu.memory_space<vmem>>, vector<8x384xf32>,
      %c1_i32_255 = arith.constant 1 : i32
      %270 = tpu.dynamic_rotate %255 by %c1_i32_255 dim 1 : vector<8x384xf32>, i32 -> vector<8x384xf32>
      %c24_256 = arith.constant 24 : index
      %c0_257 = arith.constant 0 : index
      %271 = vector.load %arg26[%c24_256, %c0_257] : memref<72x384xf32, #tpu.memory_space<vmem>>, vector<8x384xf32>
      tpu.vector_store %arg26[%c24_256, %c0_257], %270 {strides = array<i32>} : memref<72x384xf32, #tpu.memory_space<vmem>>, vector<8x384xf32>,
      %c32_258 = arith.constant 32 : index
      %c0_259 = arith.constant 0 : index
      %272 = vector.load %arg26[%c32_258, %c0_259] : memref<72x384xf32, #tpu.memory_space<vmem>>, vector<8x384xf32>
      tpu.vector_store %arg26[%c32_258, %c0_259], %255 {strides = array<i32>} : memref<72x384xf32, #tpu.memory_space<vmem>>, vector<8x384xf32>,
      %c383_i32_260 = arith.constant 383 : i32
      %273 = tpu.dynamic_rotate %255 by %c383_i32_260 dim 1 : vector<8x384xf32>, i32 -> vector<8x384xf32>
      %c40_261 = arith.constant 40 : index
      %c0_262 = arith.constant 0 : index
      %274 = vector.load %arg26[%c40_261, %c0_262] : memref<72x384xf32, #tpu.memory_space<vmem>>, vector<8x384xf32>
      tpu.vector_store %arg26[%c40_261, %c0_262], %273 {strides = array<i32>} : memref<72x384xf32, #tpu.memory_space<vmem>>, vector<8x384xf32>,
      %c367_i32_263 = arith.constant 367 : i32
      %275 = tpu.dynamic_rotate %255 by %c367_i32_263 dim 1 : vector<8x384xf32>, i32 -> vector<8x384xf32>
      %c48_264 = arith.constant 48 : index
      %c0_265 = arith.constant 0 : index
      %276 = vector.load %arg26[%c48_264, %c0_265] : memref<72x384xf32, #tpu.memory_space<vmem>>, vector<8x384xf32>
      tpu.vector_store %arg26[%c48_264, %c0_265], %275 {strides = array<i32>} : memref<72x384xf32, #tpu.memory_space<vmem>>, vector<8x384xf32>,
      %c366_i32_266 = arith.constant 366 : i32
      %277 = tpu.dynamic_rotate %255 by %c366_i32_266 dim 1 : vector<8x384xf32>, i32 -> vector<8x384xf32>
      %c56_267 = arith.constant 56 : index
      %c0_268 = arith.constant 0 : index
      %278 = vector.load %arg26[%c56_267, %c0_268] : memref<72x384xf32, #tpu.memory_space<vmem>>, vector<8x384xf32>
      tpu.vector_store %arg26[%c56_267, %c0_268], %277 {strides = array<i32>} : memref<72x384xf32, #tpu.memory_space<vmem>>, vector<8x384xf32>,
      %c365_i32_269 = arith.constant 365 : i32
      %279 = tpu.dynamic_rotate %255 by %c365_i32_269 dim 1 : vector<8x384xf32>, i32 -> vector<8x384xf32>
      %c64_270 = arith.constant 64 : index
      %c0_271 = arith.constant 0 : index
      %280 = vector.load %arg26[%c64_270, %c0_271] : memref<72x384xf32, #tpu.memory_space<vmem>>, vector<8x384xf32>
      tpu.vector_store %arg26[%c64_270, %c0_271], %279 {strides = array<i32>} : memref<72x384xf32, #tpu.memory_space<vmem>>, vector<8x384xf32>,
      %281 = arith.truncf %259 : vector<8x72xf32> to vector<8x72xbf16>
      %c0_272 = arith.constant 0 : index
      %c0_273 = arith.constant 0 : index
      %282 = vector.load %arg26[%c0_272, %c0_273] : memref<72x384xf32, #tpu.memory_space<vmem>>, vector<72x384xf32>
      %283 = arith.truncf %282 : vector<72x384xf32> to vector<72x384xbf16>
      %cst_274 = arith.constant dense<0.000000e+00> : vector<8x384xf32>
      %284 = tpu.matmul %281, %283, %cst_274 {dimension_numbers = #tpu.dot_dimension_numbers<[1], [0], [0], [1], [0, 0, 1, 1], [], []>} : vector<8x72xbf16>, vector<72x384xbf16>, vector<8x384xf32> -> vector<8x384xf32>
      %285 = vector.broadcast %263 : vector<8x1xf32> to vector<8x384xf32>
      %286 = arith.addf %284, %285 : vector<8x384xf32>
      %cst_275 = arith.constant 0.000000e+00 : f32
      %287 = vector.broadcast %cst_275 : f32 to vector<8x384xf32>
      %288 = arith.maximumf %286, %287 : vector<8x384xf32>
      %289 = arith.mulf %288, %2 : vector<8x384xf32>
      %c6_i32 = arith.constant 6 : i32
      %290 = arith.addi %71, %c6_i32 : i32
      %291 = arith.index_cast %290 : i32 to index
      %c0_276 = arith.constant 0 : index
      %c0_277 = arith.constant 0 : index
      %292 = vector.load %arg16[%291, %c0_276, %c0_277] : memref<40x8x72xf32, #tpu.memory_space<vmem>>, vector<1x8x72xf32>
      %293 = vector.shape_cast %292 : vector<1x8x72xf32> to vector<8x72xf32>
      %c6_i32_278 = arith.constant 6 : i32
      %294 = arith.addi %71, %c6_i32_278 : i32
      %295 = arith.index_cast %294 : i32 to index
      %c0_279 = arith.constant 0 : index
      %c0_280 = arith.constant 0 : index
      %296 = vector.load %arg17[%295, %c0_279, %c0_280] : memref<40x8x1xf32, #tpu.memory_space<vmem>>, vector<1x8x1xf32>
      %297 = vector.shape_cast %296 : vector<1x8x1xf32> to vector<8x1xf32>
      %c19_i32_281 = arith.constant 19 : i32
      %298 = tpu.dynamic_rotate %289 by %c19_i32_281 dim 1 : vector<8x384xf32>, i32 -> vector<8x384xf32>
      %c0_282 = arith.constant 0 : index
      %c0_283 = arith.constant 0 : index
      %299 = vector.load %arg26[%c0_282, %c0_283] : memref<72x384xf32, #tpu.memory_space<vmem>>, vector<8x384xf32>
      tpu.vector_store %arg26[%c0_282, %c0_283], %298 {strides = array<i32>} : memref<72x384xf32, #tpu.memory_space<vmem>>, vector<8x384xf32>,
      %c18_i32_284 = arith.constant 18 : i32
      %300 = tpu.dynamic_rotate %289 by %c18_i32_284 dim 1 : vector<8x384xf32>, i32 -> vector<8x384xf32>
      %c8_285 = arith.constant 8 : index
      %c0_286 = arith.constant 0 : index
      %301 = vector.load %arg26[%c8_285, %c0_286] : memref<72x384xf32, #tpu.memory_space<vmem>>, vector<8x384xf32>
      tpu.vector_store %arg26[%c8_285, %c0_286], %300 {strides = array<i32>} : memref<72x384xf32, #tpu.memory_space<vmem>>, vector<8x384xf32>,
      %c17_i32_287 = arith.constant 17 : i32
      %302 = tpu.dynamic_rotate %289 by %c17_i32_287 dim 1 : vector<8x384xf32>, i32 -> vector<8x384xf32>
      %c16_288 = arith.constant 16 : index
      %c0_289 = arith.constant 0 : index
      %303 = vector.load %arg26[%c16_288, %c0_289] : memref<72x384xf32, #tpu.memory_space<vmem>>, vector<8x384xf32>
      tpu.vector_store %arg26[%c16_288, %c0_289], %302 {strides = array<i32>} : memref<72x384xf32, #tpu.memory_space<vmem>>, vector<8x384xf32>,
      %c1_i32_290 = arith.constant 1 : i32
      %304 = tpu.dynamic_rotate %289 by %c1_i32_290 dim 1 : vector<8x384xf32>, i32 -> vector<8x384xf32>
      %c24_291 = arith.constant 24 : index
      %c0_292 = arith.constant 0 : index
      %305 = vector.load %arg26[%c24_291, %c0_292] : memref<72x384xf32, #tpu.memory_space<vmem>>, vector<8x384xf32>
      tpu.vector_store %arg26[%c24_291, %c0_292], %304 {strides = array<i32>} : memref<72x384xf32, #tpu.memory_space<vmem>>, vector<8x384xf32>,
      %c32_293 = arith.constant 32 : index
      %c0_294 = arith.constant 0 : index
      %306 = vector.load %arg26[%c32_293, %c0_294] : memref<72x384xf32, #tpu.memory_space<vmem>>, vector<8x384xf32>
      tpu.vector_store %arg26[%c32_293, %c0_294], %289 {strides = array<i32>} : memref<72x384xf32, #tpu.memory_space<vmem>>, vector<8x384xf32>,
      %c383_i32_295 = arith.constant 383 : i32
      %307 = tpu.dynamic_rotate %289 by %c383_i32_295 dim 1 : vector<8x384xf32>, i32 -> vector<8x384xf32>
      %c40_296 = arith.constant 40 : index
      %c0_297 = arith.constant 0 : index
      %308 = vector.load %arg26[%c40_296, %c0_297] : memref<72x384xf32, #tpu.memory_space<vmem>>, vector<8x384xf32>
      tpu.vector_store %arg26[%c40_296, %c0_297], %307 {strides = array<i32>} : memref<72x384xf32, #tpu.memory_space<vmem>>, vector<8x384xf32>,
      %c367_i32_298 = arith.constant 367 : i32
      %309 = tpu.dynamic_rotate %289 by %c367_i32_298 dim 1 : vector<8x384xf32>, i32 -> vector<8x384xf32>
      %c48_299 = arith.constant 48 : index
      %c0_300 = arith.constant 0 : index
      %310 = vector.load %arg26[%c48_299, %c0_300] : memref<72x384xf32, #tpu.memory_space<vmem>>, vector<8x384xf32>
      tpu.vector_store %arg26[%c48_299, %c0_300], %309 {strides = array<i32>} : memref<72x384xf32, #tpu.memory_space<vmem>>, vector<8x384xf32>,
      %c366_i32_301 = arith.constant 366 : i32
      %311 = tpu.dynamic_rotate %289 by %c366_i32_301 dim 1 : vector<8x384xf32>, i32 -> vector<8x384xf32>
      %c56_302 = arith.constant 56 : index
      %c0_303 = arith.constant 0 : index
      %312 = vector.load %arg26[%c56_302, %c0_303] : memref<72x384xf32, #tpu.memory_space<vmem>>, vector<8x384xf32>
      tpu.vector_store %arg26[%c56_302, %c0_303], %311 {strides = array<i32>} : memref<72x384xf32, #tpu.memory_space<vmem>>, vector<8x384xf32>,
      %c365_i32_304 = arith.constant 365 : i32
      %313 = tpu.dynamic_rotate %289 by %c365_i32_304 dim 1 : vector<8x384xf32>, i32 -> vector<8x384xf32>
      %c64_305 = arith.constant 64 : index
      %c0_306 = arith.constant 0 : index
      %314 = vector.load %arg26[%c64_305, %c0_306] : memref<72x384xf32, #tpu.memory_space<vmem>>, vector<8x384xf32>
      tpu.vector_store %arg26[%c64_305, %c0_306], %313 {strides = array<i32>} : memref<72x384xf32, #tpu.memory_space<vmem>>, vector<8x384xf32>,
      %315 = arith.truncf %293 : vector<8x72xf32> to vector<8x72xbf16>
      %c0_307 = arith.constant 0 : index
      %c0_308 = arith.constant 0 : index
      %316 = vector.load %arg26[%c0_307, %c0_308] : memref<72x384xf32, #tpu.memory_space<vmem>>, vector<72x384xf32>
      %317 = arith.truncf %316 : vector<72x384xf32> to vector<72x384xbf16>
      %cst_309 = arith.constant dense<0.000000e+00> : vector<8x384xf32>
      %318 = tpu.matmul %315, %317, %cst_309 {dimension_numbers = #tpu.dot_dimension_numbers<[1], [0], [0], [1], [0, 0, 1, 1], [], []>} : vector<8x72xbf16>, vector<72x384xbf16>, vector<8x384xf32> -> vector<8x384xf32>
      %319 = vector.broadcast %297 : vector<8x1xf32> to vector<8x384xf32>
      %320 = arith.addf %318, %319 : vector<8x384xf32>
      %cst_310 = arith.constant 0.000000e+00 : f32
      %321 = vector.broadcast %cst_310 : f32 to vector<8x384xf32>
      %322 = arith.maximumf %320, %321 : vector<8x384xf32>
      %323 = arith.addf %221, %322 : vector<8x384xf32>
      %c1_i32_311 = arith.constant 1 : i32
      %324 = arith.addi %72, %c1_i32_311 : i32
      %325 = arith.index_cast %324 : i32 to index
      %c0_312 = arith.constant 0 : index
      %c0_313 = arith.constant 0 : index
      %326 = vector.load %arg18[%325, %c0_312, %c0_313] : memref<16x8x32xf32, #tpu.memory_space<vmem>>, vector<1x8x32xf32>
      %327 = vector.shape_cast %326 : vector<1x8x32xf32> to vector<8x32xf32>
      %328 = vector.extract_strided_slice %327 {offsets = [0, 0], sizes = [8, 24], strides = [1, 1]} : vector<8x32xf32> to vector<8x24xf32>
      %329 = tpu.concatenate %255, %289, %322 in 0 : vector<8x384xf32>, vector<8x384xf32>, vector<8x384xf32> -> vector<24x384xf32>
      %cst_314 = arith.constant dense<0.000000e+00> : vector<8x384xf32>
      %330 = tpu.matmul %328, %329, %cst_314 {dimension_numbers = #tpu.dot_dimension_numbers<[1], [0], [0], [1], [0, 0, 1, 1], [], []>} : vector<8x24xf32>, vector<24x384xf32>, vector<8x384xf32> -> vector<8x384xf32>
      %c1_i32_315 = arith.constant 1 : i32
      %331 = arith.addi %72, %c1_i32_315 : i32
      %332 = arith.index_cast %331 : i32 to index
      %c0_316 = arith.constant 0 : index
      %c0_317 = arith.constant 0 : index
      %333 = vector.load %arg19[%332, %c0_316, %c0_317] : memref<16x8x1xf32, #tpu.memory_space<vmem>>, vector<1x8x1xf32>
      %334 = vector.shape_cast %333 : vector<1x8x1xf32> to vector<8x1xf32>
      %335 = vector.broadcast %334 : vector<8x1xf32> to vector<8x384xf32>
      %336 = arith.addf %330, %335 : vector<8x384xf32>
      %337 = arith.mulf %336, %2 : vector<8x384xf32>
      %c7_i32 = arith.constant 7 : i32
      %338 = arith.addi %71, %c7_i32 : i32
      %339 = arith.index_cast %338 : i32 to index
      %c0_318 = arith.constant 0 : index
      %c0_319 = arith.constant 0 : index
      %340 = vector.load %arg16[%339, %c0_318, %c0_319] : memref<40x8x72xf32, #tpu.memory_space<vmem>>, vector<1x8x72xf32>
      %341 = vector.shape_cast %340 : vector<1x8x72xf32> to vector<8x72xf32>
      %c7_i32_320 = arith.constant 7 : i32
      %342 = arith.addi %71, %c7_i32_320 : i32
      %343 = arith.index_cast %342 : i32 to index
      %c0_321 = arith.constant 0 : index
      %c0_322 = arith.constant 0 : index
      %344 = vector.load %arg17[%343, %c0_321, %c0_322] : memref<40x8x1xf32, #tpu.memory_space<vmem>>, vector<1x8x1xf32>
      %345 = vector.shape_cast %344 : vector<1x8x1xf32> to vector<8x1xf32>
      %c19_i32_323 = arith.constant 19 : i32
      %346 = tpu.dynamic_rotate %337 by %c19_i32_323 dim 1 : vector<8x384xf32>, i32 -> vector<8x384xf32>
      %c0_324 = arith.constant 0 : index
      %c0_325 = arith.constant 0 : index
      %347 = vector.load %arg26[%c0_324, %c0_325] : memref<72x384xf32, #tpu.memory_space<vmem>>, vector<8x384xf32>
      tpu.vector_store %arg26[%c0_324, %c0_325], %346 {strides = array<i32>} : memref<72x384xf32, #tpu.memory_space<vmem>>, vector<8x384xf32>,
      %c18_i32_326 = arith.constant 18 : i32
      %348 = tpu.dynamic_rotate %337 by %c18_i32_326 dim 1 : vector<8x384xf32>, i32 -> vector<8x384xf32>
      %c8_327 = arith.constant 8 : index
      %c0_328 = arith.constant 0 : index
      %349 = vector.load %arg26[%c8_327, %c0_328] : memref<72x384xf32, #tpu.memory_space<vmem>>, vector<8x384xf32>
      tpu.vector_store %arg26[%c8_327, %c0_328], %348 {strides = array<i32>} : memref<72x384xf32, #tpu.memory_space<vmem>>, vector<8x384xf32>,
      %c17_i32_329 = arith.constant 17 : i32
      %350 = tpu.dynamic_rotate %337 by %c17_i32_329 dim 1 : vector<8x384xf32>, i32 -> vector<8x384xf32>
      %c16_330 = arith.constant 16 : index
      %c0_331 = arith.constant 0 : index
      %351 = vector.load %arg26[%c16_330, %c0_331] : memref<72x384xf32, #tpu.memory_space<vmem>>, vector<8x384xf32>
      tpu.vector_store %arg26[%c16_330, %c0_331], %350 {strides = array<i32>} : memref<72x384xf32, #tpu.memory_space<vmem>>, vector<8x384xf32>,
      %c1_i32_332 = arith.constant 1 : i32
      %352 = tpu.dynamic_rotate %337 by %c1_i32_332 dim 1 : vector<8x384xf32>, i32 -> vector<8x384xf32>
      %c24_333 = arith.constant 24 : index
      %c0_334 = arith.constant 0 : index
      %353 = vector.load %arg26[%c24_333, %c0_334] : memref<72x384xf32, #tpu.memory_space<vmem>>, vector<8x384xf32>
      tpu.vector_store %arg26[%c24_333, %c0_334], %352 {strides = array<i32>} : memref<72x384xf32, #tpu.memory_space<vmem>>, vector<8x384xf32>,
      %c32_335 = arith.constant 32 : index
      %c0_336 = arith.constant 0 : index
      %354 = vector.load %arg26[%c32_335, %c0_336] : memref<72x384xf32, #tpu.memory_space<vmem>>, vector<8x384xf32>
      tpu.vector_store %arg26[%c32_335, %c0_336], %337 {strides = array<i32>} : memref<72x384xf32, #tpu.memory_space<vmem>>, vector<8x384xf32>,
      %c383_i32_337 = arith.constant 383 : i32
      %355 = tpu.dynamic_rotate %337 by %c383_i32_337 dim 1 : vector<8x384xf32>, i32 -> vector<8x384xf32>
      %c40_338 = arith.constant 40 : index
      %c0_339 = arith.constant 0 : index
      %356 = vector.load %arg26[%c40_338, %c0_339] : memref<72x384xf32, #tpu.memory_space<vmem>>, vector<8x384xf32>
      tpu.vector_store %arg26[%c40_338, %c0_339], %355 {strides = array<i32>} : memref<72x384xf32, #tpu.memory_space<vmem>>, vector<8x384xf32>,
      %c367_i32_340 = arith.constant 367 : i32
      %357 = tpu.dynamic_rotate %337 by %c367_i32_340 dim 1 : vector<8x384xf32>, i32 -> vector<8x384xf32>
      %c48_341 = arith.constant 48 : index
      %c0_342 = arith.constant 0 : index
      %358 = vector.load %arg26[%c48_341, %c0_342] : memref<72x384xf32, #tpu.memory_space<vmem>>, vector<8x384xf32>
      tpu.vector_store %arg26[%c48_341, %c0_342], %357 {strides = array<i32>} : memref<72x384xf32, #tpu.memory_space<vmem>>, vector<8x384xf32>,
      %c366_i32_343 = arith.constant 366 : i32
      %359 = tpu.dynamic_rotate %337 by %c366_i32_343 dim 1 : vector<8x384xf32>, i32 -> vector<8x384xf32>
      %c56_344 = arith.constant 56 : index
      %c0_345 = arith.constant 0 : index
      %360 = vector.load %arg26[%c56_344, %c0_345] : memref<72x384xf32, #tpu.memory_space<vmem>>, vector<8x384xf32>
      tpu.vector_store %arg26[%c56_344, %c0_345], %359 {strides = array<i32>} : memref<72x384xf32, #tpu.memory_space<vmem>>, vector<8x384xf32>,
      %c365_i32_346 = arith.constant 365 : i32
      %361 = tpu.dynamic_rotate %337 by %c365_i32_346 dim 1 : vector<8x384xf32>, i32 -> vector<8x384xf32>
      %c64_347 = arith.constant 64 : index
      %c0_348 = arith.constant 0 : index
      %362 = vector.load %arg26[%c64_347, %c0_348] : memref<72x384xf32, #tpu.memory_space<vmem>>, vector<8x384xf32>
      tpu.vector_store %arg26[%c64_347, %c0_348], %361 {strides = array<i32>} : memref<72x384xf32, #tpu.memory_space<vmem>>, vector<8x384xf32>,
      %363 = arith.truncf %341 : vector<8x72xf32> to vector<8x72xbf16>
      %c0_349 = arith.constant 0 : index
      %c0_350 = arith.constant 0 : index
      %364 = vector.load %arg26[%c0_349, %c0_350] : memref<72x384xf32, #tpu.memory_space<vmem>>, vector<72x384xf32>
      %365 = arith.truncf %364 : vector<72x384xf32> to vector<72x384xbf16>
      %cst_351 = arith.constant dense<0.000000e+00> : vector<8x384xf32>
      %366 = tpu.matmul %363, %365, %cst_351 {dimension_numbers = #tpu.dot_dimension_numbers<[1], [0], [0], [1], [0, 0, 1, 1], [], []>} : vector<8x72xbf16>, vector<72x384xbf16>, vector<8x384xf32> -> vector<8x384xf32>
      %367 = vector.broadcast %345 : vector<8x1xf32> to vector<8x384xf32>
      %368 = arith.addf %366, %367 : vector<8x384xf32>
      %cst_352 = arith.constant 0.000000e+00 : f32
      %369 = vector.broadcast %cst_352 : f32 to vector<8x384xf32>
      %370 = arith.maximumf %368, %369 : vector<8x384xf32>
      %371 = arith.mulf %370, %2 : vector<8x384xf32>
      %c8_i32 = arith.constant 8 : i32
      %372 = arith.addi %71, %c8_i32 : i32
      %373 = arith.index_cast %372 : i32 to index
      %c0_353 = arith.constant 0 : index
      %c0_354 = arith.constant 0 : index
      %374 = vector.load %arg16[%373, %c0_353, %c0_354] : memref<40x8x72xf32, #tpu.memory_space<vmem>>, vector<1x8x72xf32>
      %375 = vector.shape_cast %374 : vector<1x8x72xf32> to vector<8x72xf32>
      %c8_i32_355 = arith.constant 8 : i32
      %376 = arith.addi %71, %c8_i32_355 : i32
      %377 = arith.index_cast %376 : i32 to index
      %c0_356 = arith.constant 0 : index
      %c0_357 = arith.constant 0 : index
      %378 = vector.load %arg17[%377, %c0_356, %c0_357] : memref<40x8x1xf32, #tpu.memory_space<vmem>>, vector<1x8x1xf32>
      %379 = vector.shape_cast %378 : vector<1x8x1xf32> to vector<8x1xf32>
      %c19_i32_358 = arith.constant 19 : i32
      %380 = tpu.dynamic_rotate %371 by %c19_i32_358 dim 1 : vector<8x384xf32>, i32 -> vector<8x384xf32>
      %c0_359 = arith.constant 0 : index
      %c0_360 = arith.constant 0 : index
      %381 = vector.load %arg26[%c0_359, %c0_360] : memref<72x384xf32, #tpu.memory_space<vmem>>, vector<8x384xf32>
      tpu.vector_store %arg26[%c0_359, %c0_360], %380 {strides = array<i32>} : memref<72x384xf32, #tpu.memory_space<vmem>>, vector<8x384xf32>,
      %c18_i32_361 = arith.constant 18 : i32
      %382 = tpu.dynamic_rotate %371 by %c18_i32_361 dim 1 : vector<8x384xf32>, i32 -> vector<8x384xf32>
      %c8_362 = arith.constant 8 : index
      %c0_363 = arith.constant 0 : index
      %383 = vector.load %arg26[%c8_362, %c0_363] : memref<72x384xf32, #tpu.memory_space<vmem>>, vector<8x384xf32>
      tpu.vector_store %arg26[%c8_362, %c0_363], %382 {strides = array<i32>} : memref<72x384xf32, #tpu.memory_space<vmem>>, vector<8x384xf32>,
      %c17_i32_364 = arith.constant 17 : i32
      %384 = tpu.dynamic_rotate %371 by %c17_i32_364 dim 1 : vector<8x384xf32>, i32 -> vector<8x384xf32>
      %c16_365 = arith.constant 16 : index
      %c0_366 = arith.constant 0 : index
      %385 = vector.load %arg26[%c16_365, %c0_366] : memref<72x384xf32, #tpu.memory_space<vmem>>, vector<8x384xf32>
      tpu.vector_store %arg26[%c16_365, %c0_366], %384 {strides = array<i32>} : memref<72x384xf32, #tpu.memory_space<vmem>>, vector<8x384xf32>,
      %c1_i32_367 = arith.constant 1 : i32
      %386 = tpu.dynamic_rotate %371 by %c1_i32_367 dim 1 : vector<8x384xf32>, i32 -> vector<8x384xf32>
      %c24_368 = arith.constant 24 : index
      %c0_369 = arith.constant 0 : index
      %387 = vector.load %arg26[%c24_368, %c0_369] : memref<72x384xf32, #tpu.memory_space<vmem>>, vector<8x384xf32>
      tpu.vector_store %arg26[%c24_368, %c0_369], %386 {strides = array<i32>} : memref<72x384xf32, #tpu.memory_space<vmem>>, vector<8x384xf32>,
      %c32_370 = arith.constant 32 : index
      %c0_371 = arith.constant 0 : index
      %388 = vector.load %arg26[%c32_370, %c0_371] : memref<72x384xf32, #tpu.memory_space<vmem>>, vector<8x384xf32>
      tpu.vector_store %arg26[%c32_370, %c0_371], %371 {strides = array<i32>} : memref<72x384xf32, #tpu.memory_space<vmem>>, vector<8x384xf32>,
      %c383_i32_372 = arith.constant 383 : i32
      %389 = tpu.dynamic_rotate %371 by %c383_i32_372 dim 1 : vector<8x384xf32>, i32 -> vector<8x384xf32>
      %c40_373 = arith.constant 40 : index
      %c0_374 = arith.constant 0 : index
      %390 = vector.load %arg26[%c40_373, %c0_374] : memref<72x384xf32, #tpu.memory_space<vmem>>, vector<8x384xf32>
      tpu.vector_store %arg26[%c40_373, %c0_374], %389 {strides = array<i32>} : memref<72x384xf32, #tpu.memory_space<vmem>>, vector<8x384xf32>,
      %c367_i32_375 = arith.constant 367 : i32
      %391 = tpu.dynamic_rotate %371 by %c367_i32_375 dim 1 : vector<8x384xf32>, i32 -> vector<8x384xf32>
      %c48_376 = arith.constant 48 : index
      %c0_377 = arith.constant 0 : index
      %392 = vector.load %arg26[%c48_376, %c0_377] : memref<72x384xf32, #tpu.memory_space<vmem>>, vector<8x384xf32>
      tpu.vector_store %arg26[%c48_376, %c0_377], %391 {strides = array<i32>} : memref<72x384xf32, #tpu.memory_space<vmem>>, vector<8x384xf32>,
      %c366_i32_378 = arith.constant 366 : i32
      %393 = tpu.dynamic_rotate %371 by %c366_i32_378 dim 1 : vector<8x384xf32>, i32 -> vector<8x384xf32>
      %c56_379 = arith.constant 56 : index
      %c0_380 = arith.constant 0 : index
      %394 = vector.load %arg26[%c56_379, %c0_380] : memref<72x384xf32, #tpu.memory_space<vmem>>, vector<8x384xf32>
      tpu.vector_store %arg26[%c56_379, %c0_380], %393 {strides = array<i32>} : memref<72x384xf32, #tpu.memory_space<vmem>>, vector<8x384xf32>,
      %c365_i32_381 = arith.constant 365 : i32
      %395 = tpu.dynamic_rotate %371 by %c365_i32_381 dim 1 : vector<8x384xf32>, i32 -> vector<8x384xf32>
      %c64_382 = arith.constant 64 : index
      %c0_383 = arith.constant 0 : index
      %396 = vector.load %arg26[%c64_382, %c0_383] : memref<72x384xf32, #tpu.memory_space<vmem>>, vector<8x384xf32>
      tpu.vector_store %arg26[%c64_382, %c0_383], %395 {strides = array<i32>} : memref<72x384xf32, #tpu.memory_space<vmem>>, vector<8x384xf32>,
      %397 = arith.truncf %375 : vector<8x72xf32> to vector<8x72xbf16>
      %c0_384 = arith.constant 0 : index
      %c0_385 = arith.constant 0 : index
      %398 = vector.load %arg26[%c0_384, %c0_385] : memref<72x384xf32, #tpu.memory_space<vmem>>, vector<72x384xf32>
      %399 = arith.truncf %398 : vector<72x384xf32> to vector<72x384xbf16>
      %cst_386 = arith.constant dense<0.000000e+00> : vector<8x384xf32>
      %400 = tpu.matmul %397, %399, %cst_386 {dimension_numbers = #tpu.dot_dimension_numbers<[1], [0], [0], [1], [0, 0, 1, 1], [], []>} : vector<8x72xbf16>, vector<72x384xbf16>, vector<8x384xf32> -> vector<8x384xf32>
      %401 = vector.broadcast %379 : vector<8x1xf32> to vector<8x384xf32>
      %402 = arith.addf %400, %401 : vector<8x384xf32>
      %cst_387 = arith.constant 0.000000e+00 : f32
      %403 = vector.broadcast %cst_387 : f32 to vector<8x384xf32>
      %404 = arith.maximumf %402, %403 : vector<8x384xf32>
      %405 = arith.addf %337, %404 : vector<8x384xf32>
      %c2_i32_388 = arith.constant 2 : i32
      %406 = arith.addi %72, %c2_i32_388 : i32
      %407 = arith.index_cast %406 : i32 to index
      %c0_389 = arith.constant 0 : index
      %c0_390 = arith.constant 0 : index
      %408 = vector.load %arg18[%407, %c0_389, %c0_390] : memref<16x8x32xf32, #tpu.memory_space<vmem>>, vector<1x8x32xf32>
      %409 = vector.shape_cast %408 : vector<1x8x32xf32> to vector<8x32xf32>
      %410 = vector.extract_strided_slice %409 {offsets = [0, 0], sizes = [8, 16], strides = [1, 1]} : vector<8x32xf32> to vector<8x16xf32>
      %411 = tpu.concatenate %371, %404 in 0 : vector<8x384xf32>, vector<8x384xf32> -> vector<16x384xf32>
      %cst_391 = arith.constant dense<0.000000e+00> : vector<8x384xf32>
      %412 = tpu.matmul %410, %411, %cst_391 {dimension_numbers = #tpu.dot_dimension_numbers<[1], [0], [0], [1], [0, 0, 1, 1], [], []>} : vector<8x16xf32>, vector<16x384xf32>, vector<8x384xf32> -> vector<8x384xf32>
      %c2_i32_392 = arith.constant 2 : i32
      %413 = arith.addi %72, %c2_i32_392 : i32
      %414 = arith.index_cast %413 : i32 to index
      %c0_393 = arith.constant 0 : index
      %c0_394 = arith.constant 0 : index
      %415 = vector.load %arg19[%414, %c0_393, %c0_394] : memref<16x8x1xf32, #tpu.memory_space<vmem>>, vector<1x8x1xf32>
      %416 = vector.shape_cast %415 : vector<1x8x1xf32> to vector<8x1xf32>
      %417 = vector.broadcast %416 : vector<8x1xf32> to vector<8x384xf32>
      %418 = arith.addf %412, %417 : vector<8x384xf32>
      %419 = arith.mulf %418, %2 : vector<8x384xf32>
      %c9_i32 = arith.constant 9 : i32
      %420 = arith.addi %71, %c9_i32 : i32
      %421 = arith.index_cast %420 : i32 to index
      %c0_395 = arith.constant 0 : index
      %c0_396 = arith.constant 0 : index
      %422 = vector.load %arg16[%421, %c0_395, %c0_396] : memref<40x8x72xf32, #tpu.memory_space<vmem>>, vector<1x8x72xf32>
      %423 = vector.shape_cast %422 : vector<1x8x72xf32> to vector<8x72xf32>
      %c9_i32_397 = arith.constant 9 : i32
      %424 = arith.addi %71, %c9_i32_397 : i32
      %425 = arith.index_cast %424 : i32 to index
      %c0_398 = arith.constant 0 : index
      %c0_399 = arith.constant 0 : index
      %426 = vector.load %arg17[%425, %c0_398, %c0_399] : memref<40x8x1xf32, #tpu.memory_space<vmem>>, vector<1x8x1xf32>
      %427 = vector.shape_cast %426 : vector<1x8x1xf32> to vector<8x1xf32>
      %c19_i32_400 = arith.constant 19 : i32
      %428 = tpu.dynamic_rotate %419 by %c19_i32_400 dim 1 : vector<8x384xf32>, i32 -> vector<8x384xf32>
      %c0_401 = arith.constant 0 : index
      %c0_402 = arith.constant 0 : index
      %429 = vector.load %arg26[%c0_401, %c0_402] : memref<72x384xf32, #tpu.memory_space<vmem>>, vector<8x384xf32>
      tpu.vector_store %arg26[%c0_401, %c0_402], %428 {strides = array<i32>} : memref<72x384xf32, #tpu.memory_space<vmem>>, vector<8x384xf32>,
      %c18_i32_403 = arith.constant 18 : i32
      %430 = tpu.dynamic_rotate %419 by %c18_i32_403 dim 1 : vector<8x384xf32>, i32 -> vector<8x384xf32>
      %c8_404 = arith.constant 8 : index
      %c0_405 = arith.constant 0 : index
      %431 = vector.load %arg26[%c8_404, %c0_405] : memref<72x384xf32, #tpu.memory_space<vmem>>, vector<8x384xf32>
      tpu.vector_store %arg26[%c8_404, %c0_405], %430 {strides = array<i32>} : memref<72x384xf32, #tpu.memory_space<vmem>>, vector<8x384xf32>,
      %c17_i32_406 = arith.constant 17 : i32
      %432 = tpu.dynamic_rotate %419 by %c17_i32_406 dim 1 : vector<8x384xf32>, i32 -> vector<8x384xf32>
      %c16_407 = arith.constant 16 : index
      %c0_408 = arith.constant 0 : index
      %433 = vector.load %arg26[%c16_407, %c0_408] : memref<72x384xf32, #tpu.memory_space<vmem>>, vector<8x384xf32>
      tpu.vector_store %arg26[%c16_407, %c0_408], %432 {strides = array<i32>} : memref<72x384xf32, #tpu.memory_space<vmem>>, vector<8x384xf32>,
      %c1_i32_409 = arith.constant 1 : i32
      %434 = tpu.dynamic_rotate %419 by %c1_i32_409 dim 1 : vector<8x384xf32>, i32 -> vector<8x384xf32>
      %c24_410 = arith.constant 24 : index
      %c0_411 = arith.constant 0 : index
      %435 = vector.load %arg26[%c24_410, %c0_411] : memref<72x384xf32, #tpu.memory_space<vmem>>, vector<8x384xf32>
      tpu.vector_store %arg26[%c24_410, %c0_411], %434 {strides = array<i32>} : memref<72x384xf32, #tpu.memory_space<vmem>>, vector<8x384xf32>,
      %c32_412 = arith.constant 32 : index
      %c0_413 = arith.constant 0 : index
      %436 = vector.load %arg26[%c32_412, %c0_413] : memref<72x384xf32, #tpu.memory_space<vmem>>, vector<8x384xf32>
      tpu.vector_store %arg26[%c32_412, %c0_413], %419 {strides = array<i32>} : memref<72x384xf32, #tpu.memory_space<vmem>>, vector<8x384xf32>,
      %c383_i32_414 = arith.constant 383 : i32
      %437 = tpu.dynamic_rotate %419 by %c383_i32_414 dim 1 : vector<8x384xf32>, i32 -> vector<8x384xf32>
      %c40_415 = arith.constant 40 : index
      %c0_416 = arith.constant 0 : index
      %438 = vector.load %arg26[%c40_415, %c0_416] : memref<72x384xf32, #tpu.memory_space<vmem>>, vector<8x384xf32>
      tpu.vector_store %arg26[%c40_415, %c0_416], %437 {strides = array<i32>} : memref<72x384xf32, #tpu.memory_space<vmem>>, vector<8x384xf32>,
      %c367_i32_417 = arith.constant 367 : i32
      %439 = tpu.dynamic_rotate %419 by %c367_i32_417 dim 1 : vector<8x384xf32>, i32 -> vector<8x384xf32>
      %c48_418 = arith.constant 48 : index
      %c0_419 = arith.constant 0 : index
      %440 = vector.load %arg26[%c48_418, %c0_419] : memref<72x384xf32, #tpu.memory_space<vmem>>, vector<8x384xf32>
      tpu.vector_store %arg26[%c48_418, %c0_419], %439 {strides = array<i32>} : memref<72x384xf32, #tpu.memory_space<vmem>>, vector<8x384xf32>,
      %c366_i32_420 = arith.constant 366 : i32
      %441 = tpu.dynamic_rotate %419 by %c366_i32_420 dim 1 : vector<8x384xf32>, i32 -> vector<8x384xf32>
      %c56_421 = arith.constant 56 : index
      %c0_422 = arith.constant 0 : index
      %442 = vector.load %arg26[%c56_421, %c0_422] : memref<72x384xf32, #tpu.memory_space<vmem>>, vector<8x384xf32>
      tpu.vector_store %arg26[%c56_421, %c0_422], %441 {strides = array<i32>} : memref<72x384xf32, #tpu.memory_space<vmem>>, vector<8x384xf32>,
      %c365_i32_423 = arith.constant 365 : i32
      %443 = tpu.dynamic_rotate %419 by %c365_i32_423 dim 1 : vector<8x384xf32>, i32 -> vector<8x384xf32>
      %c64_424 = arith.constant 64 : index
      %c0_425 = arith.constant 0 : index
      %444 = vector.load %arg26[%c64_424, %c0_425] : memref<72x384xf32, #tpu.memory_space<vmem>>, vector<8x384xf32>
      tpu.vector_store %arg26[%c64_424, %c0_425], %443 {strides = array<i32>} : memref<72x384xf32, #tpu.memory_space<vmem>>, vector<8x384xf32>,
      %445 = arith.truncf %423 : vector<8x72xf32> to vector<8x72xbf16>
      %c0_426 = arith.constant 0 : index
      %c0_427 = arith.constant 0 : index
      %446 = vector.load %arg26[%c0_426, %c0_427] : memref<72x384xf32, #tpu.memory_space<vmem>>, vector<72x384xf32>
      %447 = arith.truncf %446 : vector<72x384xf32> to vector<72x384xbf16>
      %cst_428 = arith.constant dense<0.000000e+00> : vector<8x384xf32>
      %448 = tpu.matmul %445, %447, %cst_428 {dimension_numbers = #tpu.dot_dimension_numbers<[1], [0], [0], [1], [0, 0, 1, 1], [], []>} : vector<8x72xbf16>, vector<72x384xbf16>, vector<8x384xf32> -> vector<8x384xf32>
      %449 = vector.broadcast %427 : vector<8x1xf32> to vector<8x384xf32>
      %450 = arith.addf %448, %449 : vector<8x384xf32>
      %cst_429 = arith.constant 0.000000e+00 : f32
      %451 = vector.broadcast %cst_429 : f32 to vector<8x384xf32>
      %452 = arith.maximumf %450, %451 : vector<8x384xf32>
      %453 = arith.addf %419, %452 : vector<8x384xf32>
      %c3_i32_430 = arith.constant 3 : i32
      %454 = arith.addi %72, %c3_i32_430 : i32
      %455 = arith.index_cast %454 : i32 to index
      %c0_431 = arith.constant 0 : index
      %c0_432 = arith.constant 0 : index
      %456 = vector.load %arg18[%455, %c0_431, %c0_432] : memref<16x8x32xf32, #tpu.memory_space<vmem>>, vector<1x8x32xf32>
      %457 = vector.shape_cast %456 : vector<1x8x32xf32> to vector<8x32xf32>
      %458 = tpu.concatenate %208, %323, %405, %453 in 0 : vector<8x384xf32>, vector<8x384xf32>, vector<8x384xf32>, vector<8x384xf32> -> vector<32x384xf32>
      %cst_433 = arith.constant dense<0.000000e+00> : vector<8x384xf32>
      %459 = tpu.matmul %457, %458, %cst_433 {dimension_numbers = #tpu.dot_dimension_numbers<[1], [0], [0], [1], [0, 0, 1, 1], [], []>} : vector<8x32xf32>, vector<32x384xf32>, vector<8x384xf32> -> vector<8x384xf32>
      %c3_i32_434 = arith.constant 3 : i32
      %460 = arith.addi %72, %c3_i32_434 : i32
      %461 = arith.index_cast %460 : i32 to index
      %c0_435 = arith.constant 0 : index
      %c0_436 = arith.constant 0 : index
      %462 = vector.load %arg19[%461, %c0_435, %c0_436] : memref<16x8x1xf32, #tpu.memory_space<vmem>>, vector<1x8x1xf32>
      %463 = vector.shape_cast %462 : vector<1x8x1xf32> to vector<8x1xf32>
      %464 = vector.broadcast %463 : vector<8x1xf32> to vector<8x384xf32>
      %465 = arith.addf %459, %464 : vector<8x384xf32>
      %466 = arith.mulf %465, %2 : vector<8x384xf32>
      %467 = arith.addf %466, %arg29 : vector<8x384xf32>
      %c8_i32_437 = arith.constant 8 : i32
      %468 = arith.muli %arg28, %c8_i32_437 : i32
      %469 = tpu.assume_multiple %468, 8 : i32
      %470 = arith.index_cast %469 : i32 to index
      %c0_438 = arith.constant 0 : index
      %471 = vector.load %arg27[%470, %c0_438] : memref<32x384xf32, #tpu.memory_space<vmem>>, vector<8x384xf32>
      tpu.vector_store %arg27[%470, %c0_438], %467 {strides = array<i32>} : memref<32x384xf32, #tpu.memory_space<vmem>>, vector<8x384xf32>,
      scf.yield %467 : vector<8x384xf32>
    }
    %c4_i32_11 = arith.constant 4 : i32
    %c0_12 = arith.constant 0 : index
    %c0_13 = arith.constant 0 : index
    %19 = vector.load %arg14[%c0_12, %c0_13] : memref<8x32xf32, #tpu.memory_space<vmem>>, vector<8x32xf32>
    %c0_14 = arith.constant 0 : index
    %c0_15 = arith.constant 0 : index
    %20 = vector.load %arg27[%c0_14, %c0_15] : memref<32x384xf32, #tpu.memory_space<vmem>>, vector<32x384xf32>
    %cst_16 = arith.constant dense<0.000000e+00> : vector<8x384xf32>
    %21 = tpu.matmul %19, %20, %cst_16 {dimension_numbers = #tpu.dot_dimension_numbers<[1], [0], [0], [1], [0, 0, 1, 1], [], []>} : vector<8x32xf32>, vector<32x384xf32>, vector<8x384xf32> -> vector<8x384xf32>
    %c0_17 = arith.constant 0 : index
    %c0_18 = arith.constant 0 : index
    %22 = vector.load %arg15[%c0_17, %c0_18] : memref<8x1xf32, #tpu.memory_space<vmem>>, vector<8x1xf32>
    %23 = vector.broadcast %22 : vector<8x1xf32> to vector<8x384xf32>
    %24 = arith.addf %21, %23 : vector<8x384xf32>
    %25 = arith.mulf %24, %2 : vector<8x384xf32>
    %c0_19 = arith.constant 0 : index
    %c0_20 = arith.constant 0 : index
    %26 = vector.load %arg24[%c0_19, %c0_20] : memref<8x384xf32, #tpu.memory_space<vmem>>, vector<8x384xf32>
    tpu.vector_store %arg24[%c0_19, %c0_20], %25 {strides = array<i32>} : memref<8x384xf32, #tpu.memory_space<vmem>>, vector<8x384xf32>,
    %c19_i32 = arith.constant 19 : i32
    %27 = tpu.dynamic_rotate %25 by %c19_i32 dim 1 : vector<8x384xf32>, i32 -> vector<8x384xf32>
    %c0_21 = arith.constant 0 : index
    %c0_22 = arith.constant 0 : index
    %28 = vector.load %arg26[%c0_21, %c0_22] : memref<72x384xf32, #tpu.memory_space<vmem>>, vector<8x384xf32>
    tpu.vector_store %arg26[%c0_21, %c0_22], %27 {strides = array<i32>} : memref<72x384xf32, #tpu.memory_space<vmem>>, vector<8x384xf32>,
    %c18_i32 = arith.constant 18 : i32
    %29 = tpu.dynamic_rotate %25 by %c18_i32 dim 1 : vector<8x384xf32>, i32 -> vector<8x384xf32>
    %c8 = arith.constant 8 : index
    %c0_23 = arith.constant 0 : index
    %30 = vector.load %arg26[%c8, %c0_23] : memref<72x384xf32, #tpu.memory_space<vmem>>, vector<8x384xf32>
    tpu.vector_store %arg26[%c8, %c0_23], %29 {strides = array<i32>} : memref<72x384xf32, #tpu.memory_space<vmem>>, vector<8x384xf32>,
    %c17_i32 = arith.constant 17 : i32
    %31 = tpu.dynamic_rotate %25 by %c17_i32 dim 1 : vector<8x384xf32>, i32 -> vector<8x384xf32>
    %c16 = arith.constant 16 : index
    %c0_24 = arith.constant 0 : index
    %32 = vector.load %arg26[%c16, %c0_24] : memref<72x384xf32, #tpu.memory_space<vmem>>, vector<8x384xf32>
    tpu.vector_store %arg26[%c16, %c0_24], %31 {strides = array<i32>} : memref<72x384xf32, #tpu.memory_space<vmem>>, vector<8x384xf32>,
    %c1_i32_25 = arith.constant 1 : i32
    %33 = tpu.dynamic_rotate %25 by %c1_i32_25 dim 1 : vector<8x384xf32>, i32 -> vector<8x384xf32>
    %c24 = arith.constant 24 : index
    %c0_26 = arith.constant 0 : index
    %34 = vector.load %arg26[%c24, %c0_26] : memref<72x384xf32, #tpu.memory_space<vmem>>, vector<8x384xf32>
    tpu.vector_store %arg26[%c24, %c0_26], %33 {strides = array<i32>} : memref<72x384xf32, #tpu.memory_space<vmem>>, vector<8x384xf32>,
    %c32 = arith.constant 32 : index
    %c0_27 = arith.constant 0 : index
    %35 = vector.load %arg26[%c32, %c0_27] : memref<72x384xf32, #tpu.memory_space<vmem>>, vector<8x384xf32>
    tpu.vector_store %arg26[%c32, %c0_27], %25 {strides = array<i32>} : memref<72x384xf32, #tpu.memory_space<vmem>>, vector<8x384xf32>,
    %c383_i32 = arith.constant 383 : i32
    %36 = tpu.dynamic_rotate %25 by %c383_i32 dim 1 : vector<8x384xf32>, i32 -> vector<8x384xf32>
    %c40 = arith.constant 40 : index
    %c0_28 = arith.constant 0 : index
    %37 = vector.load %arg26[%c40, %c0_28] : memref<72x384xf32, #tpu.memory_space<vmem>>, vector<8x384xf32>
    tpu.vector_store %arg26[%c40, %c0_28], %36 {strides = array<i32>} : memref<72x384xf32, #tpu.memory_space<vmem>>, vector<8x384xf32>,
    %c367_i32 = arith.constant 367 : i32
    %38 = tpu.dynamic_rotate %25 by %c367_i32 dim 1 : vector<8x384xf32>, i32 -> vector<8x384xf32>
    %c48 = arith.constant 48 : index
    %c0_29 = arith.constant 0 : index
    %39 = vector.load %arg26[%c48, %c0_29] : memref<72x384xf32, #tpu.memory_space<vmem>>, vector<8x384xf32>
    tpu.vector_store %arg26[%c48, %c0_29], %38 {strides = array<i32>} : memref<72x384xf32, #tpu.memory_space<vmem>>, vector<8x384xf32>,
    %c366_i32 = arith.constant 366 : i32
    %40 = tpu.dynamic_rotate %25 by %c366_i32 dim 1 : vector<8x384xf32>, i32 -> vector<8x384xf32>
    %c56 = arith.constant 56 : index
    %c0_30 = arith.constant 0 : index
    %41 = vector.load %arg26[%c56, %c0_30] : memref<72x384xf32, #tpu.memory_space<vmem>>, vector<8x384xf32>
    tpu.vector_store %arg26[%c56, %c0_30], %40 {strides = array<i32>} : memref<72x384xf32, #tpu.memory_space<vmem>>, vector<8x384xf32>,
    %c365_i32 = arith.constant 365 : i32
    %42 = tpu.dynamic_rotate %25 by %c365_i32 dim 1 : vector<8x384xf32>, i32 -> vector<8x384xf32>
    %c64 = arith.constant 64 : index
    %c0_31 = arith.constant 0 : index
    %43 = vector.load %arg26[%c64, %c0_31] : memref<72x384xf32, #tpu.memory_space<vmem>>, vector<8x384xf32>
    tpu.vector_store %arg26[%c64, %c0_31], %42 {strides = array<i32>} : memref<72x384xf32, #tpu.memory_space<vmem>>, vector<8x384xf32>,
    %c0_32 = arith.constant 0 : index
    %c0_33 = arith.constant 0 : index
    %44 = vector.load %arg26[%c0_32, %c0_33] : memref<72x384xf32, #tpu.memory_space<vmem>>, vector<72x384xf32>
    %c0_34 = arith.constant 0 : index
    %c0_35 = arith.constant 0 : index
    %c0_36 = arith.constant 0 : index
    %45 = vector.load %arg4[%c0_34, %c0_35, %c0_36] : memref<3x72x384xf32, #tpu.memory_space<vmem>>, vector<1x72x384xf32>
    %46 = vector.shape_cast %45 : vector<1x72x384xf32> to vector<72x384xf32>
    %47 = arith.mulf %44, %46 : vector<72x384xf32>
    %cst_37 = arith.constant dense<0.000000e+00> : vector<384xf32>
    %48 = vector.multi_reduction <add>, %47, %cst_37 [0] : vector<72x384xf32> to vector<384xf32>
    %49 = vector.shape_cast %48 : vector<384xf32> to vector<1x384xf32>
    %c1 = arith.constant 1 : index
    %c0_38 = arith.constant 0 : index
    %c0_39 = arith.constant 0 : index
    %50 = vector.load %arg4[%c1, %c0_38, %c0_39] : memref<3x72x384xf32, #tpu.memory_space<vmem>>, vector<1x72x384xf32>
    %51 = vector.shape_cast %50 : vector<1x72x384xf32> to vector<72x384xf32>
    %52 = arith.mulf %44, %51 : vector<72x384xf32>
    %cst_40 = arith.constant dense<0.000000e+00> : vector<384xf32>
    %53 = vector.multi_reduction <add>, %52, %cst_40 [0] : vector<72x384xf32> to vector<384xf32>
    %54 = vector.shape_cast %53 : vector<384xf32> to vector<1x384xf32>
    %c2 = arith.constant 2 : index
    %c0_41 = arith.constant 0 : index
    %c0_42 = arith.constant 0 : index
    %55 = vector.load %arg4[%c2, %c0_41, %c0_42] : memref<3x72x384xf32, #tpu.memory_space<vmem>>, vector<1x72x384xf32>
    %56 = vector.shape_cast %55 : vector<1x72x384xf32> to vector<72x384xf32>
    %57 = arith.mulf %44, %56 : vector<72x384xf32>
    %cst_43 = arith.constant dense<0.000000e+00> : vector<384xf32>
    %58 = vector.multi_reduction <add>, %57, %cst_43 [0] : vector<72x384xf32> to vector<384xf32>
    %59 = vector.shape_cast %58 : vector<384xf32> to vector<1x384xf32>
    %60 = tpu.concatenate %49, %54, %59 in 0 : vector<1x384xf32>, vector<1x384xf32>, vector<1x384xf32> -> vector<3x384xf32>
    %c0_44 = arith.constant 0 : index
    %c0_45 = arith.constant 0 : index
    %61 = vector.load %arg20[%c0_44, %c0_45] : memref<3x3xf32, #tpu.memory_space<vmem>>, vector<3x3xf32>
    %c0_46 = arith.constant 0 : index
    %c0_47 = arith.constant 0 : index
    %62 = vector.load %arg25[%c0_46, %c0_47] : memref<3x384xf32, #tpu.memory_space<vmem>>, vector<3x384xf32>
    %63 = arith.addf %60, %62 : vector<3x384xf32>
    %cst_48 = arith.constant dense<0.000000e+00> : vector<3x384xf32>
    %64 = tpu.matmul %61, %63, %cst_48 {dimension_numbers = #tpu.dot_dimension_numbers<[1], [0], [0], [1], [0, 0, 1, 1], [], []>} : vector<3x3xf32>, vector<3x384xf32>, vector<3x384xf32> -> vector<3x384xf32>
    %c0_49 = arith.constant 0 : index
    %c0_50 = arith.constant 0 : index
    %65 = vector.load %arg21[%c0_49, %c0_50] : memref<3x1xf32, #tpu.memory_space<vmem>>, vector<3x1xf32>
    %66 = vector.broadcast %65 : vector<3x1xf32> to vector<3x384xf32>
    %67 = arith.addf %64, %66 : vector<3x384xf32>
    %c0_51 = arith.constant 0 : index
    %c0_52 = arith.constant 0 : index
    %c0_53 = arith.constant 0 : index
    %c0_54 = arith.constant 0 : index
    %68 = vector.load %arg22[%c0_51, %c0_52, %c0_53, %c0_54] : memref<1x1x3x384xf32, #tpu.memory_space<vmem>>, vector<1x1x3x384xf32>
    %69 = vector.shape_cast %68 : vector<1x1x3x384xf32> to vector<3x384xf32>
    %70 = vector.shape_cast %67 : vector<3x384xf32> to vector<1x1x3x384xf32>
    tpu.vector_store %arg22[%c0_51, %c0_52, %c0_53, %c0_54], %70 {strides = array<i32>} : memref<1x1x3x384xf32, #tpu.memory_space<vmem>>, vector<1x1x3x384xf32>,
    return
  }
  func.func @transform_0(%arg0: i32, %arg1: i32) -> (i32, i32) {
    %c0_i32 = arith.constant 0 : i32
    %c0_i32_0 = arith.constant 0 : i32
    %c0_i32_1 = arith.constant 0 : i32
    return %c0_i32, %c0_i32_0 : i32, i32
  }
  func.func @transform_1(%arg0: i32, %arg1: i32) -> (i32, i32, i32) {
    %c0_i32 = arith.constant 0 : i32
    %c0_i32_0 = arith.constant 0 : i32
    %c0_i32_1 = arith.constant 0 : i32
    return %arg0, %c0_i32, %c0_i32_0 : i32, i32, i32
  }
  func.func @transform_2(%arg0: i32, %arg1: i32) -> (i32, i32, i32) {
    %c0_i32 = arith.constant 0 : i32
    %c0_i32_0 = arith.constant 0 : i32
    %c0_i32_1 = arith.constant 0 : i32
    %c0_i32_2 = arith.constant 0 : i32
    return %c0_i32, %c0_i32_0, %c0_i32_1 : i32, i32, i32
  }
  func.func @transform_3(%arg0: i32, %arg1: i32) -> (i32, i32) {
    %c0_i32 = arith.constant 0 : i32
    %c0_i32_0 = arith.constant 0 : i32
    %c0_i32_1 = arith.constant 0 : i32
    return %c0_i32, %c0_i32_0 : i32, i32
  }
  func.func @transform_4(%arg0: i32, %arg1: i32) -> (i32, i32) {
    %c0_i32 = arith.constant 0 : i32
    %c0_i32_0 = arith.constant 0 : i32
    %c0_i32_1 = arith.constant 0 : i32
    return %c0_i32, %c0_i32_0 : i32, i32
  }
  func.func @transform_5(%arg0: i32, %arg1: i32) -> (i32, i32) {
    %c0_i32 = arith.constant 0 : i32
    %c0_i32_0 = arith.constant 0 : i32
    %c0_i32_1 = arith.constant 0 : i32
    return %c0_i32, %c0_i32_0 : i32, i32
  }
  func.func @transform_6(%arg0: i32, %arg1: i32) -> (i32, i32) {
    %c0_i32 = arith.constant 0 : i32
    %c0_i32_0 = arith.constant 0 : i32
    %c0_i32_1 = arith.constant 0 : i32
    return %c0_i32, %c0_i32_0 : i32, i32
  }
  func.func @transform_7(%arg0: i32, %arg1: i32) -> (i32, i32) {
    %c0_i32 = arith.constant 0 : i32
    %c0_i32_0 = arith.constant 0 : i32
    %c0_i32_1 = arith.constant 0 : i32
    return %c0_i32, %c0_i32_0 : i32, i32
  }
  func.func @transform_8(%arg0: i32, %arg1: i32) -> (i32, i32) {
    %c0_i32 = arith.constant 0 : i32
    %c0_i32_0 = arith.constant 0 : i32
    %c0_i32_1 = arith.constant 0 : i32
    return %c0_i32, %c0_i32_0 : i32, i32
  }
  func.func @transform_9(%arg0: i32, %arg1: i32) -> (i32, i32) {
    %c0_i32 = arith.constant 0 : i32
    %c0_i32_0 = arith.constant 0 : i32
    %c0_i32_1 = arith.constant 0 : i32
    return %c0_i32, %c0_i32_0 : i32, i32
  }
  func.func @transform_10(%arg0: i32, %arg1: i32) -> (i32, i32) {
    %c0_i32 = arith.constant 0 : i32
    %c0_i32_0 = arith.constant 0 : i32
    %c0_i32_1 = arith.constant 0 : i32
    return %c0_i32, %c0_i32_0 : i32, i32
  }
  func.func @transform_11(%arg0: i32, %arg1: i32) -> (i32, i32) {
    %c0_i32 = arith.constant 0 : i32
    %c0_i32_0 = arith.constant 0 : i32
    %c0_i32_1 = arith.constant 0 : i32
    return %c0_i32, %c0_i32_0 : i32, i32
  }
  func.func @transform_12(%arg0: i32, %arg1: i32) -> (i32, i32) {
    %c0_i32 = arith.constant 0 : i32
    %c0_i32_0 = arith.constant 0 : i32
    %c0_i32_1 = arith.constant 0 : i32
    return %c0_i32, %c0_i32_0 : i32, i32
  }
  func.func @transform_13(%arg0: i32, %arg1: i32) -> (i32, i32) {
    %c0_i32 = arith.constant 0 : i32
    %c0_i32_0 = arith.constant 0 : i32
    %c0_i32_1 = arith.constant 0 : i32
    return %c0_i32, %c0_i32_0 : i32, i32
  }
  func.func @transform_14(%arg0: i32, %arg1: i32) -> (i32, i32, i32) {
    %c0_i32 = arith.constant 0 : i32
    %c0_i32_0 = arith.constant 0 : i32
    %c0_i32_1 = arith.constant 0 : i32
    %c0_i32_2 = arith.constant 0 : i32
    return %c0_i32, %c0_i32_0, %c0_i32_1 : i32, i32, i32
  }
  func.func @transform_15(%arg0: i32, %arg1: i32) -> (i32, i32, i32) {
    %c0_i32 = arith.constant 0 : i32
    %c0_i32_0 = arith.constant 0 : i32
    %c0_i32_1 = arith.constant 0 : i32
    %c0_i32_2 = arith.constant 0 : i32
    return %c0_i32, %c0_i32_0, %c0_i32_1 : i32, i32, i32
  }
  func.func @transform_16(%arg0: i32, %arg1: i32) -> (i32, i32, i32) {
    %c0_i32 = arith.constant 0 : i32
    %c0_i32_0 = arith.constant 0 : i32
    %c0_i32_1 = arith.constant 0 : i32
    %c0_i32_2 = arith.constant 0 : i32
    return %c0_i32, %c0_i32_0, %c0_i32_1 : i32, i32, i32
  }
  func.func @transform_17(%arg0: i32, %arg1: i32) -> (i32, i32, i32) {
    %c0_i32 = arith.constant 0 : i32
    %c0_i32_0 = arith.constant 0 : i32
    %c0_i32_1 = arith.constant 0 : i32
    %c0_i32_2 = arith.constant 0 : i32
    return %c0_i32, %c0_i32_0, %c0_i32_1 : i32, i32, i32
  }
  func.func @transform_18(%arg0: i32, %arg1: i32) -> (i32, i32) {
    %c0_i32 = arith.constant 0 : i32
    %c0_i32_0 = arith.constant 0 : i32
    %c0_i32_1 = arith.constant 0 : i32
    return %c0_i32, %c0_i32_0 : i32, i32
  }
  func.func @transform_19(%arg0: i32, %arg1: i32) -> (i32, i32) {
    %c0_i32 = arith.constant 0 : i32
    %c0_i32_0 = arith.constant 0 : i32
    %c0_i32_1 = arith.constant 0 : i32
    return %c0_i32, %c0_i32_0 : i32, i32
  }
  func.func @transform_20(%arg0: i32, %arg1: i32) -> (i32, i32, i32, i32) {
    %c0_i32 = arith.constant 0 : i32
    %c0_i32_0 = arith.constant 0 : i32
    %c0_i32_1 = arith.constant 0 : i32
    return %arg0, %arg1, %c0_i32, %c0_i32_0 : i32, i32, i32, i32
  }
}

</mosaic_0001>

<llo_original>
// kernel: metafpn1_forward.2
$region0: #{metafpn1_forward.2}
  #allocation0 [shape = 'u32[]', space=smem, size = 0x4, offset = 0x4, fixed_abs, tag = 'smem constant byte address 0x4 - core index']
  #allocation1 [shape = 'u32[144,128]{1,0:T(1,128)}', space=vmem, size = 0x12000, scoped, tag = 'internal scratch']
  %s0 = inlined_call_operand.vmem [shape: f32[3,256], index: 0, kind: input, shape index: {}]
  %s1 = inlined_call_operand.vmem [shape: f32[256,3], index: 1, kind: input, shape index: {}]
  %s2 = inlined_call_operand.vmem [shape: f32[256,1], index: 2, kind: input, shape index: {}]
  %s3 = inlined_call_operand.vmem [shape: f32[512,256], index: 3, kind: input, shape index: {}]
  %s4 = inlined_call_operand.vmem [shape: f32[512,1], index: 4, kind: input, shape index: {}]
  %s5 = inlined_call_operand.vmem [shape: f32[3,72,512], index: 5, kind: input, shape index: {}]
  %s6 = inlined_call_operand.vmem [shape: f32[3,72,1], index: 6, kind: input, shape index: {}]
  %s7 = inlined_call_operand.vmem [shape: f32[3,72,256], index: 7, kind: output, shape index: {}]
  %s8 = sld [smem:[#allocation0]]
  $region38: #{metafpn1_forward.2} parent=0
    _
  %s10 = ssub.s32 1, %s8
  %s11 = scalar_select 0, %s10, %s8
  // Predicated region
  $region2: #{metafpn1_forward.2} parent=0 // pred_check
    _
  $region3: #{metafpn1_forward.2} parent=0 // pred_check_branch
    %13 = sbr.rel (0) target = $region5
  $region4: #{metafpn1_forward.2} parent=0 // pred_region
    _
  $region5: #{metafpn1_forward.2} parent=0 // pred_fallthru
    _
  // Predicated region
  $region6: #{metafpn1_forward.2} parent=0 // pred_check
    _
  $region7: #{metafpn1_forward.2} parent=0 // pred_check_branch
    %15 = sbr.rel (0) target = $region9
  $region8: #{metafpn1_forward.2} parent=0 // pred_region
    _
  $region9: #{metafpn1_forward.2} parent=0 // pred_fallthru
    _
  // Predicated region
  $region10: #{metafpn1_forward.2} parent=0 // pred_check
    _
  $region11: #{metafpn1_forward.2} parent=0 // pred_check_branch
    %17 = sbr.rel (0) target = $region13
  $region12: #{metafpn1_forward.2} parent=0 // pred_region
    _
  $region13: #{metafpn1_forward.2} parent=0 // pred_fallthru
    _
  // Predicated region
  $region14: #{metafpn1_forward.2} parent=0 // pred_check
    _
  $region15: #{metafpn1_forward.2} parent=0 // pred_check_branch
    %19 = sbr.rel (0) target = $region17
  $region16: #{metafpn1_forward.2} parent=0 // pred_region
    _
  $region17: #{metafpn1_forward.2} parent=0 // pred_fallthru
    _
  // Predicated region
  $region18: #{metafpn1_forward.2} parent=0 // pred_check
    _
  $region19: #{metafpn1_forward.2} parent=0 // pred_check_branch
    %21 = sbr.rel (0) target = $region21
  $region20: #{metafpn1_forward.2} parent=0 // pred_region
    _
  $region21: #{metafpn1_forward.2} parent=0 // pred_fallthru
    _
  // Predicated region
  $region22: #{metafpn1_forward.2} parent=0 // pred_check
    _
  $region23: #{metafpn1_forward.2} parent=0 // pred_check_branch
    %23 = sbr.rel (0) target = $region25
  $region24: #{metafpn1_forward.2} parent=0 // pred_region
    _
  $region25: #{metafpn1_forward.2} parent=0 // pred_fallthru
    _
  // Predicated region
  $region26: #{metafpn1_forward.2} parent=0 // pred_check
    _
  $region27: #{metafpn1_forward.2} parent=0 // pred_check_branch
    %25 = sbr.rel (0) target = $region29
  $region28: #{metafpn1_forward.2} parent=0 // pred_region
    _
  $region29: #{metafpn1_forward.2} parent=0 // pred_fallthru
    _
  %v26 = vld [vmem:[%s1] sm:$0xff]
  %v27 = vld [vmem:[%s1 + $0x8] sm:$0xff]
  %v28 = vld [vmem:[%s1 + $0x10] sm:$0xff]
  %v29 = vld [vmem:[%s1 + $0x18] sm:$0xff]
  %v30 = vld [vmem:[%s1 + $0x20] sm:$0xff]
  %v31 = vld [vmem:[%s1 + $0x28] sm:$0xff]
  %v32 = vld [vmem:[%s1 + $0x30] sm:$0xff]
  %v33 = vld [vmem:[%s1 + $0x38] sm:$0xff]
  %v34 = vld [vmem:[%s1 + $0x40] sm:$0xff]
  %v35 = vld [vmem:[%s1 + $0x48] sm:$0xff]
  %v36 = vld [vmem:[%s1 + $0x50] sm:$0xff]
  %v37 = vld [vmem:[%s1 + $0x58] sm:$0xff]
  %v38 = vld [vmem:[%s1 + $0x60] sm:$0xff]
  %v39 = vld [vmem:[%s1 + $0x68] sm:$0xff]
  %v40 = vld [vmem:[%s1 + $0x70] sm:$0xff]
  %v41 = vld [vmem:[%s1 + $0x78] sm:$0xff]
  %v42 = vld [vmem:[%s1 + $0x80] sm:$0xff]
  %v43 = vld [vmem:[%s1 + $0x88] sm:$0xff]
  %v44 = vld [vmem:[%s1 + $0x90] sm:$0xff]
  %v45 = vld [vmem:[%s1 + $0x98] sm:$0xff]
  %v46 = vld [vmem:[%s1 + $0xa0] sm:$0xff]
  %v47 = vld [vmem:[%s1 + $0xa8] sm:$0xff]
  %v48 = vld [vmem:[%s1 + $0xb0] sm:$0xff]
  %v49 = vld [vmem:[%s1 + $0xb8] sm:$0xff]
  %v50 = vld [vmem:[%s1 + $0xc0] sm:$0xff]
  %v51 = vld [vmem:[%s1 + $0xc8] sm:$0xff]
  %v52 = vld [vmem:[%s1 + $0xd0] sm:$0xff]
  %v53 = vld [vmem:[%s1 + $0xd8] sm:$0xff]
  %v54 = vld [vmem:[%s1 + $0xe0] sm:$0xff]
  %v55 = vld [vmem:[%s1 + $0xe8] sm:$0xff]
  %v56 = vld [vmem:[%s1 + $0xf0] sm:$0xff]
  %v57 = vld [vmem:[%s1 + $0xf8] sm:$0xff]
  %v58 = vld [vmem:[%s0] sm:$0x77]
  %v59 = vld [vmem:[%s2] sm:$0xff]
  %v60 = vld [vmem:[%s2 + $0x8] sm:$0xff]
  %v61 = vld [vmem:[%s2 + $0x10] sm:$0xff]
  %v62 = vld [vmem:[%s2 + $0x18] sm:$0xff]
  %v63 = vld [vmem:[%s2 + $0x20] sm:$0xff]
  %v64 = vld [vmem:[%s2 + $0x28] sm:$0xff]
  %v65 = vld [vmem:[%s2 + $0x30] sm:$0xff]
  %v66 = vld [vmem:[%s2 + $0x38] sm:$0xff]
  %v67 = vld [vmem:[%s2 + $0x40] sm:$0xff]
  %v68 = vld [vmem:[%s2 + $0x48] sm:$0xff]
  %v69 = vld [vmem:[%s2 + $0x50] sm:$0xff]
  %v70 = vld [vmem:[%s2 + $0x58] sm:$0xff]
  %v71 = vld [vmem:[%s2 + $0x60] sm:$0xff]
  %v72 = vld [vmem:[%s2 + $0x68] sm:$0xff]
  %v73 = vld [vmem:[%s2 + $0x70] sm:$0xff]
  %v74 = vld [vmem:[%s2 + $0x78] sm:$0xff]
  %v75 = vld [vmem:[%s2 + $0x80] sm:$0xff]
  %v76 = vld [vmem:[%s2 + $0x88] sm:$0xff]
  %v77 = vld [vmem:[%s2 + $0x90] sm:$0xff]
  %v78 = vld [vmem:[%s2 + $0x98] sm:$0xff]
  %v79 = vld [vmem:[%s2 + $0xa0] sm:$0xff]
  %v80 = vld [vmem:[%s2 + $0xa8] sm:$0xff]
  %v81 = vld [vmem:[%s2 + $0xb0] sm:$0xff]
  %v82 = vld [vmem:[%s2 + $0xb8] sm:$0xff]
  %v83 = vld [vmem:[%s2 + $0xc0] sm:$0xff]
  %v84 = vld [vmem:[%s2 + $0xc8] sm:$0xff]
  %v85 = vld [vmem:[%s2 + $0xd0] sm:$0xff]
  %v86 = vld [vmem:[%s2 + $0xd8] sm:$0xff]
  %v87 = vld [vmem:[%s2 + $0xe0] sm:$0xff]
  %v88 = vld [vmem:[%s2 + $0xe8] sm:$0xff]
  %v89 = vld [vmem:[%s2 + $0xf0] sm:$0xff]
  %v90 = vld [vmem:[%s2 + $0xf8] sm:$0xff]
  %92 = vset.pattern.permute.xlu0 0
  %93 = vperm.xlu0 %92, %v59
  %v94 = vpop.permute.xlu0 %93
  %97 = vset.pattern.permute.xlu0 0
  %98 = vperm.xlu0 %97, %v60
  %v99 = vpop.permute.xlu0 %98
  %102 = vset.pattern.permute.xlu0 0
  %103 = vperm.xlu0 %102, %v61
  %v104 = vpop.permute.xlu0 %103
  %107 = vset.pattern.permute.xlu0 0
  %108 = vperm.xlu0 %107, %v62
  %v109 = vpop.permute.xlu0 %108
  %112 = vset.pattern.permute.xlu0 0
  %113 = vperm.xlu0 %112, %v63
  %v114 = vpop.permute.xlu0 %113
  %117 = vset.pattern.permute.xlu0 0
  %118 = vperm.xlu0 %117, %v64
  %v119 = vpop.permute.xlu0 %118
  %122 = vset.pattern.permute.xlu0 0
  %123 = vperm.xlu0 %122, %v65
  %v124 = vpop.permute.xlu0 %123
  %127 = vset.pattern.permute.xlu0 0
  %128 = vperm.xlu0 %127, %v66
  %v129 = vpop.permute.xlu0 %128
  %132 = vset.pattern.permute.xlu0 0
  %133 = vperm.xlu0 %132, %v67
  %v134 = vpop.permute.xlu0 %133
  %137 = vset.pattern.permute.xlu0 0
  %138 = vperm.xlu0 %137, %v68
  %v139 = vpop.permute.xlu0 %138
  %142 = vset.pattern.permute.xlu0 0
  %143 = vperm.xlu0 %142, %v69
  %v144 = vpop.permute.xlu0 %143
  %147 = vset.pattern.permute.xlu0 0
  %148 = vperm.xlu0 %147, %v70
  %v149 = vpop.permute.xlu0 %148
  %152 = vset.pattern.permute.xlu0 0
  %153 = vperm.xlu0 %152, %v71
  %v154 = vpop.permute.xlu0 %153
  %157 = vset.pattern.permute.xlu0 0
  %158 = vperm.xlu0 %157, %v72
  %v159 = vpop.permute.xlu0 %158
  %162 = vset.pattern.permute.xlu0 0
  %163 = vperm.xlu0 %162, %v73
  %v164 = vpop.permute.xlu0 %163
  %167 = vset.pattern.permute.xlu0 0
  %168 = vperm.xlu0 %167, %v74
  %v169 = vpop.permute.xlu0 %168
  %172 = vset.pattern.permute.xlu0 0
  %173 = vperm.xlu0 %172, %v75
  %v174 = vpop.permute.xlu0 %173
  %177 = vset.pattern.permute.xlu0 0
  %178 = vperm.xlu0 %177, %v76
  %v179 = vpop.permute.xlu0 %178
  %182 = vset.pattern.permute.xlu0 0
  %183 = vperm.xlu0 %182, %v77
  %v184 = vpop.permute.xlu0 %183
  %187 = vset.pattern.permute.xlu0 0
  %188 = vperm.xlu0 %187, %v78
  %v189 = vpop.permute.xlu0 %188
  %192 = vset.pattern.permute.xlu0 0
  %193 = vperm.xlu0 %192, %v79
  %v194 = vpop.permute.xlu0 %193
  %197 = vset.pattern.permute.xlu0 0
  %198 = vperm.xlu0 %197, %v80
  %v199 = vpop.permute.xlu0 %198
  %202 = vset.pattern.permute.xlu0 0
  %203 = vperm.xlu0 %202, %v81
  %v204 = vpop.permute.xlu0 %203
  %207 = vset.pattern.permute.xlu0 0
  %208 = vperm.xlu0 %207, %v82
  %v209 = vpop.permute.xlu0 %208
  %212 = vset.pattern.permute.xlu0 0
  %213 = vperm.xlu0 %212, %v83
  %v214 = vpop.permute.xlu0 %213
  %217 = vset.pattern.permute.xlu0 0
  %218 = vperm.xlu0 %217, %v84
  %v219 = vpop.permute.xlu0 %218
  %222 = vset.pattern.permute.xlu0 0
  %223 = vperm.xlu0 %222, %v85
  %v224 = vpop.permute.xlu0 %223
  %227 = vset.pattern.permute.xlu0 0
  %228 = vperm.xlu0 %227, %v86
  %v229 = vpop.permute.xlu0 %228
  %232 = vset.pattern.permute.xlu0 0
  %233 = vperm.xlu0 %232, %v87
  %v234 = vpop.permute.xlu0 %233
  %237 = vset.pattern.permute.xlu0 0
  %238 = vperm.xlu0 %237, %v88
  %v239 = vpop.permute.xlu0 %238
  %242 = vset.pattern.permute.xlu0 0
  %243 = vperm.xlu0 %242, %v89
  %v244 = vpop.permute.xlu0 %243
  %247 = vset.pattern.permute.xlu0 0
  %248 = vperm.xlu0 %247, %v90
  %v249 = vpop.permute.xlu0 %248
  %v252 = vcombine.high %v58, %v58
  %vm253 = vcmask 23552
  %v255 = vsel %vm253, %v26, 0
  %v258 = vsel %vm253, %v27, 0
  %v261 = vsel %vm253, %v28, 0
  %v264 = vsel %vm253, %v29, 0
  %v267 = vsel %vm253, %v30, 0
  %v270 = vsel %vm253, %v31, 0
  %v273 = vsel %vm253, %v32, 0
  %v276 = vsel %vm253, %v33, 0
  %v279 = vsel %vm253, %v34, 0
  %v282 = vsel %vm253, %v35, 0
  %v285 = vsel %vm253, %v36, 0
  %v288 = vsel %vm253, %v37, 0
  %v291 = vsel %vm253, %v38, 0
  %v294 = vsel %vm253, %v39, 0
  %v297 = vsel %vm253, %v40, 0
  %v300 = vsel %vm253, %v41, 0
  %v303 = vsel %vm253, %v42, 0
  %v306 = vsel %vm253, %v43, 0
  %v309 = vsel %vm253, %v44, 0
  %v312 = vsel %vm253, %v45, 0
  %v315 = vsel %vm253, %v46, 0
  %v318 = vsel %vm253, %v47, 0
  %v321 = vsel %vm253, %v48, 0
  %v324 = vsel %vm253, %v49, 0
  %v327 = vsel %vm253, %v50, 0
  %v330 = vsel %vm253, %v51, 0
  %v333 = vsel %vm253, %v52, 0
  %v336 = vsel %vm253, %v53, 0
  %v339 = vsel %vm253, %v54, 0
  %v342 = vsel %vm253, %v55, 0
  %v345 = vsel %vm253, %v56, 0
  %v348 = vsel %vm253, %v57, 0
  %vm350 = vcmask 1042432
  %v351 = vsel %vm350, %v58, 0
  %v353 = vsel %vm350, %v252, 0
  %355 = vmatprep.subr.mxu0 0.0
  %356 = vmatpush1.msra.mxu0 0.0
  %357 = vmatprep.subr.mxu0 0.0
  %358 = vmatpush1.msra.mxu0 0.0
  %359 = vmatprep.subr.mxu0 0.0
  %360 = vmatpush1.msra.mxu0 0.0
  %361 = vmatprep.subr.mxu0 0.0
  %362 = vmatpush1.msra.mxu0 0.0
  %363 = vmatprep.subr.mxu0 0.0
  %364 = vmatpush1.msra.mxu0 0.0
  %365 = vmatprep.subr.mxu0 0.0
  %366 = vmatpush1.msra.mxu0 0.0
  %367 = vmatprep.subr.mxu0 0.0
  %368 = vmatpush1.msra.mxu0 0.0
  %369 = vmatprep.subr.mxu0 0.0
  %370 = vmatpush1.msra.mxu0 0.0
  %371 = vmatprep.subr.mxu0 0.0
  %372 = vmatpush1.msra.mxu0 0.0
  %373 = vmatprep.subr.mxu0 0.0
  %374 = vmatpush1.msra.mxu0 0.0
  %375 = vmatprep.subr.mxu0 0.0
  %376 = vmatpush1.msra.mxu0 0.0
  %377 = vmatprep.subr.mxu0 0.0
  %378 = vmatpush1.msra.mxu0 0.0
  %379 = vmatprep.subr.mxu0 0.0
  %380 = vmatpush1.msra.mxu0 0.0
  %381 = vmatprep.subr.mxu0 0.0
  %382 = vmatpush1.msra.mxu0 0.0
  %383 = vmatprep.subr.mxu0 0.0
  %384 = vmatpush1.msra.mxu0 0.0
  %385 = vmatprep.subr.mxu0 %v353
  %386 = vmatpush1.msra.mxu0 %v351
  %387 = vmatprep.subr.mxu0 0.0
  %388 = vmatpush2.msra.mxu0 0.0
  %389 = vmatprep.subr.mxu0 0.0
  %390 = vmatpush2.msra.mxu0 0.0
  %391 = vmatprep.subr.mxu0 0.0
  %392 = vmatpush2.msra.mxu0 0.0
  %393 = vmatprep.subr.mxu0 0.0
  %394 = vmatpush2.msra.mxu0 0.0
  %395 = vmatprep.subr.mxu0 0.0
  %396 = vmatpush2.msra.mxu0 0.0
  %397 = vmatprep.subr.mxu0 0.0
  %398 = vmatpush2.msra.mxu0 0.0
  %399 = vmatprep.subr.mxu0 0.0
  %400 = vmatpush2.msra.mxu0 0.0
  %401 = vmatprep.subr.mxu0 0.0
  %402 = vmatpush2.msra.mxu0 0.0
  %403 = vmatprep.subr.mxu0 0.0
  %404 = vmatpush2.msra.mxu0 0.0
  %405 = vmatprep.subr.mxu0 0.0
  %406 = vmatpush2.msra.mxu0 0.0
  %407 = vmatprep.subr.mxu0 0.0
  %408 = vmatpush2.msra.mxu0 0.0
  %409 = vmatprep.subr.mxu0 0.0
  %410 = vmatpush2.msra.mxu0 0.0
  %411 = vmatprep.subr.mxu0 0.0
  %412 = vmatpush2.msra.mxu0 0.0
  %413 = vmatprep.subr.mxu0 0.0
  %414 = vmatpush2.msra.mxu0 0.0
  %415 = vmatprep.subr.mxu0 0.0
  %416 = vmatpush2.msra.mxu0 0.0
  %417 = vmatprep.subr.mxu0 0.0
  %418 = vmatpush2.msra.mxu0 0.0
  %419 = vmatprep.mubr.f32.mxu0 0.0
  %420 = vmatmul.mubr.f32.gmra.mxu0 %v255
  %v421 = vpop.f32.mrf.mxu0
  %v422 = vadd.f32 %v94, %v421
  %v423 = vpop.f32.mrf.mxu0
  %v424 = vadd.f32 %v94, %v423
  %425 = vmatprep.mubr.f32.mxu0 0.0
  %426 = vmatmul.mubr.f32.gmra.mxu0 %v258
  %v427 = vpop.f32.mrf.mxu0
  %v428 = vadd.f32 %v99, %v427
  %v429 = vpop.f32.mrf.mxu0
  %v430 = vadd.f32 %v99, %v429
  %431 = vmatprep.mubr.f32.mxu0 0.0
  %432 = vmatmul.mubr.f32.gmra.mxu0 %v261
  %v433 = vpop.f32.mrf.mxu0
  %v434 = vadd.f32 %v104, %v433
  %v435 = vpop.f32.mrf.mxu0
  %v436 = vadd.f32 %v104, %v435
  %437 = vmatprep.mubr.f32.mxu0 0.0
  %438 = vmatmul.mubr.f32.gmra.mxu0 %v264
  %v439 = vpop.f32.mrf.mxu0
  %v440 = vadd.f32 %v109, %v439
  %v441 = vpop.f32.mrf.mxu0
  %v442 = vadd.f32 %v109, %v441
  %443 = vmatprep.mubr.f32.mxu0 0.0
  %444 = vmatmul.mubr.f32.gmra.mxu0 %v267
  %v445 = vpop.f32.mrf.mxu0
  %v446 = vadd.f32 %v114, %v445
  %v447 = vpop.f32.mrf.mxu0
  %v448 = vadd.f32 %v114, %v447
  %449 = vmatprep.mubr.f32.mxu0 0.0
  %450 = vmatmul.mubr.f32.gmra.mxu0 %v270
  %v451 = vpop.f32.mrf.mxu0
  %v452 = vadd.f32 %v119, %v451
  %v453 = vpop.f32.mrf.mxu0
  %v454 = vadd.f32 %v119, %v453
  %455 = vmatprep.mubr.f32.mxu0 0.0
  %456 = vmatmul.mubr.f32.gmra.mxu0 %v273
  %v457 = vpop.f32.mrf.mxu0
  %v458 = vadd.f32 %v124, %v457
  %v459 = vpop.f32.mrf.mxu0
  %v460 = vadd.f32 %v124, %v459
  %461 = vmatprep.mubr.f32.mxu0 0.0
  %462 = vmatmul.mubr.f32.gmra.mxu0 %v276
  %v463 = vpop.f32.mrf.mxu0
  %v464 = vadd.f32 %v129, %v463
  %v465 = vpop.f32.mrf.mxu0
  %v466 = vadd.f32 %v129, %v465
  %467 = vmatprep.mubr.f32.mxu0 0.0
  %468 = vmatmul.mubr.f32.gmra.mxu0 %v279
  %v469 = vpop.f32.mrf.mxu0
  %v470 = vadd.f32 %v134, %v469
  %v471 = vpop.f32.mrf.mxu0
  %v472 = vadd.f32 %v134, %v471
  %473 = vmatprep.mubr.f32.mxu0 0.0
  %474 = vmatmul.mubr.f32.gmra.mxu0 %v282
  %v475 = vpop.f32.mrf.mxu0
  %v476 = vadd.f32 %v139, %v475
  %v477 = vpop.f32.mrf.mxu0
  %v478 = vadd.f32 %v139, %v477
  %479 = vmatprep.mubr.f32.mxu0 0.0
  %480 = vmatmul.mubr.f32.gmra.mxu0 %v285
  %v481 = vpop.f32.mrf.mxu0
  %v482 = vadd.f32 %v144, %v481
  %v483 = vpop.f32.mrf.mxu0
  %v484 = vadd.f32 %v144, %v483
  %485 = vmatprep.mubr.f32.mxu0 0.0
  %486 = vmatmul.mubr.f32.gmra.mxu0 %v288
  %v487 = vpop.f32.mrf.mxu0
  %v488 = vadd.f32 %v149, %v487
  %v489 = vpop.f32.mrf.mxu0
  %v490 = vadd.f32 %v149, %v489
  %491 = vmatprep.mubr.f32.mxu0 0.0
  %492 = vmatmul.mubr.f32.gmra.mxu0 %v291
  %v493 = vpop.f32.mrf.mxu0
  %v494 = vadd.f32 %v154, %v493
  %v495 = vpop.f32.mrf.mxu0
  %v496 = vadd.f32 %v154, %v495
  %497 = vmatprep.mubr.f32.mxu0 0.0
  %498 = vmatmul.mubr.f32.gmra.mxu0 %v294
  %v499 = vpop.f32.mrf.mxu0
  %v500 = vadd.f32 %v159, %v499
  %v501 = vpop.f32.mrf.mxu0
  %v502 = vadd.f32 %v159, %v501
  %503 = vmatprep.mubr.f32.mxu0 0.0
  %504 = vmatmul.mubr.f32.gmra.mxu0 %v297
  %v505 = vpop.f32.mrf.mxu0
  %v506 = vadd.f32 %v164, %v505
  %v507 = vpop.f32.mrf.mxu0
  %v508 = vadd.f32 %v164, %v507
  %509 = vmatprep.mubr.f32.mxu0 0.0
  %510 = vmatmul.mubr.f32.gmra.mxu0 %v300
  %v511 = vpop.f32.mrf.mxu0
  %v512 = vadd.f32 %v169, %v511
  %v513 = vpop.f32.mrf.mxu0
  %v514 = vadd.f32 %v169, %v513
  %515 = vmatprep.mubr.f32.mxu0 0.0
  %516 = vmatmul.mubr.f32.gmra.mxu0 %v303
  %v517 = vpop.f32.mrf.mxu0
  %v518 = vadd.f32 %v174, %v517
  %v519 = vpop.f32.mrf.mxu0
  %v520 = vadd.f32 %v174, %v519
  %521 = vmatprep.mubr.f32.mxu0 0.0
  %522 = vmatmul.mubr.f32.gmra.mxu0 %v306
  %v523 = vpop.f32.mrf.mxu0
  %v524 = vadd.f32 %v179, %v523
  %v525 = vpop.f32.mrf.mxu0
  %v526 = vadd.f32 %v179, %v525
  %527 = vmatprep.mubr.f32.mxu0 0.0
  %528 = vmatmul.mubr.f32.gmra.mxu0 %v309
  %v529 = vpop.f32.mrf.mxu0
  %v530 = vadd.f32 %v184, %v529
  %v531 = vpop.f32.mrf.mxu0
  %v532 = vadd.f32 %v184, %v531
  %533 = vmatprep.mubr.f32.mxu0 0.0
  %534 = vmatmul.mubr.f32.gmra.mxu0 %v312
  %v535 = vpop.f32.mrf.mxu0
  %v536 = vadd.f32 %v189, %v535
  %v537 = vpop.f32.mrf.mxu0
  %v538 = vadd.f32 %v189, %v537
  %539 = vmatprep.mubr.f32.mxu0 0.0
  %540 = vmatmul.mubr.f32.gmra.mxu0 %v315
  %v541 = vpop.f32.mrf.mxu0
  %v542 = vadd.f32 %v194, %v541
  %v543 = vpop.f32.mrf.mxu0
  %v544 = vadd.f32 %v194, %v543
  %545 = vmatprep.mubr.f32.mxu0 0.0
  %546 = vmatmul.mubr.f32.gmra.mxu0 %v318
  %v547 = vpop.f32.mrf.mxu0
  %v548 = vadd.f32 %v199, %v547
  %v549 = vpop.f32.mrf.mxu0
  %v550 = vadd.f32 %v199, %v549
  %551 = vmatprep.mubr.f32.mxu0 0.0
  %552 = vmatmul.mubr.f32.gmra.mxu0 %v321
  %v553 = vpop.f32.mrf.mxu0
  %v554 = vadd.f32 %v204, %v553
  %v555 = vpop.f32.mrf.mxu0
  %v556 = vadd.f32 %v204, %v555
  %557 = vmatprep.mubr.f32.mxu0 0.0
  %558 = vmatmul.mubr.f32.gmra.mxu0 %v324
  %v559 = vpop.f32.mrf.mxu0
  %v560 = vadd.f32 %v209, %v559
  %v561 = vpop.f32.mrf.mxu0
  %v562 = vadd.f32 %v209, %v561
  %563 = vmatprep.mubr.f32.mxu0 0.0
  %564 = vmatmul.mubr.f32.gmra.mxu0 %v327
  %v565 = vpop.f32.mrf.mxu0
  %v566 = vadd.f32 %v214, %v565
  %v567 = vpop.f32.mrf.mxu0
  %v568 = vadd.f32 %v214, %v567
  %569 = vmatprep.mubr.f32.mxu0 0.0
  %570 = vmatmul.mubr.f32.gmra.mxu0 %v330
  %v571 = vpop.f32.mrf.mxu0
  %v572 = vadd.f32 %v219, %v571
  %v573 = vpop.f32.mrf.mxu0
  %v574 = vadd.f32 %v219, %v573
  %575 = vmatprep.mubr.f32.mxu0 0.0
  %576 = vmatmul.mubr.f32.gmra.mxu0 %v333
  %v577 = vpop.f32.mrf.mxu0
  %v578 = vadd.f32 %v224, %v577
  %v579 = vpop.f32.mrf.mxu0
  %v580 = vadd.f32 %v224, %v579
  %581 = vmatprep.mubr.f32.mxu0 0.0
  %582 = vmatmul.mubr.f32.gmra.mxu0 %v336
  %v583 = vpop.f32.mrf.mxu0
  %v584 = vadd.f32 %v229, %v583
  %v585 = vpop.f32.mrf.mxu0
  %v586 = vadd.f32 %v229, %v585
  %587 = vmatprep.mubr.f32.mxu0 0.0
  %588 = vmatmul.mubr.f32.gmra.mxu0 %v339
  %v589 = vpop.f32.mrf.mxu0
  %v590 = vadd.f32 %v234, %v589
  %v591 = vpop.f32.mrf.mxu0
  %v592 = vadd.f32 %v234, %v591
  %593 = vmatprep.mubr.f32.mxu0 0.0
  %594 = vmatmul.mubr.f32.gmra.mxu0 %v342
  %v595 = vpop.f32.mrf.mxu0
  %v596 = vadd.f32 %v239, %v595
  %v597 = vpop.f32.mrf.mxu0
  %v598 = vadd.f32 %v239, %v597
  %599 = vmatprep.mubr.f32.mxu0 0.0
  %600 = vmatmul.mubr.f32.gmra.mxu0 %v345
  %v601 = vpop.f32.mrf.mxu0
  %v602 = vadd.f32 %v244, %v601
  %v603 = vpop.f32.mrf.mxu0
  %v604 = vadd.f32 %v244, %v603
  %605 = vmatprep.mubr.f32.mxu0 0.0
  %606 = vmatmul.mubr.f32.gmra.mxu0 %v348
  %v607 = vpop.f32.mrf.mxu0
  %v608 = vadd.f32 %v249, %v607
  %v609 = vpop.f32.mrf.mxu0
  %v610 = vadd.f32 %v249, %v609
  %611 = vdwg.mxu0
  %v612 = vmax.f32 %v422, 0.0
  %v613 = vmax.f32 %v424, 0.0
  %v614 = vmax.f32 %v428, 0.0
  %v615 = vmax.f32 %v430, 0.0
  %v616 = vmax.f32 %v434, 0.0
  %v617 = vmax.f32 %v436, 0.0
  %v618 = vmax.f32 %v440, 0.0
  %v619 = vmax.f32 %v442, 0.0
  %v620 = vmax.f32 %v446, 0.0
  %v621 = vmax.f32 %v448, 0.0
  %v622 = vmax.f32 %v452, 0.0
  %v623 = vmax.f32 %v454, 0.0
  %v624 = vmax.f32 %v458, 0.0
  %v625 = vmax.f32 %v460, 0.0
  %v626 = vmax.f32 %v464, 0.0
  %v627 = vmax.f32 %v466, 0.0
  %v628 = vmax.f32 %v470, 0.0
  %v629 = vmax.f32 %v472, 0.0
  %v630 = vmax.f32 %v476, 0.0
  %v631 = vmax.f32 %v478, 0.0
  %v632 = vmax.f32 %v482, 0.0
  %v633 = vmax.f32 %v484, 0.0
  %v634 = vmax.f32 %v488, 0.0
  %v635 = vmax.f32 %v490, 0.0
  %v636 = vmax.f32 %v494, 0.0
  %v637 = vmax.f32 %v496, 0.0
  %v638 = vmax.f32 %v500, 0.0
  %v639 = vmax.f32 %v502, 0.0
  %v640 = vmax.f32 %v506, 0.0
  %v641 = vmax.f32 %v508, 0.0
  %v642 = vmax.f32 %v512, 0.0
  %v643 = vmax.f32 %v514, 0.0
  %v644 = vmax.f32 %v518, 0.0
  %v645 = vmax.f32 %v520, 0.0
  %v646 = vmax.f32 %v524, 0.0
  %v647 = vmax.f32 %v526, 0.0
  %v648 = vmax.f32 %v530, 0.0
  %v649 = vmax.f32 %v532, 0.0
  %v650 = vmax.f32 %v536, 0.0
  %v651 = vmax.f32 %v538, 0.0
  %v652 = vmax.f32 %v542, 0.0
  %v653 = vmax.f32 %v544, 0.0
  %v654 = vmax.f32 %v548, 0.0
  %v655 = vmax.f32 %v550, 0.0
  %v656 = vmax.f32 %v554, 0.0
  %v657 = vmax.f32 %v556, 0.0
  %v658 = vmax.f32 %v560, 0.0
  %v659 = vmax.f32 %v562, 0.0
  %v660 = vmax.f32 %v566, 0.0
  %v661 = vmax.f32 %v568, 0.0
  %v662 = vmax.f32 %v572, 0.0
  %v663 = vmax.f32 %v574, 0.0
  %v664 = vmax.f32 %v578, 0.0
  %v665 = vmax.f32 %v580, 0.0
  %v666 = vmax.f32 %v584, 0.0
  %v667 = vmax.f32 %v586, 0.0
  %v668 = vmax.f32 %v590, 0.0
  %v669 = vmax.f32 %v592, 0.0
  %v670 = vmax.f32 %v596, 0.0
  %v671 = vmax.f32 %v598, 0.0
  %v672 = vmax.f32 %v602, 0.0
  %v673 = vmax.f32 %v604, 0.0
  %v674 = vmax.f32 %v608, 0.0
  %v675 = vmax.f32 %v610, 0.0
  %v676 = vld [vmem:[%s3] sm:$0xff]
  %v677 = vld [vmem:[%s3 + $0x8] sm:$0xff]
  %v678 = vld [vmem:[%s3 + $0x10] sm:$0xff]
  %v679 = vld [vmem:[%s3 + $0x18] sm:$0xff]
  %v680 = vld [vmem:[%s3 + $0x20] sm:$0xff]
  %v681 = vld [vmem:[%s3 + $0x28] sm:$0xff]
  %v682 = vld [vmem:[%s3 + $0x30] sm:$0xff]
  %v683 = vld [vmem:[%s3 + $0x38] sm:$0xff]
  %v684 = vld [vmem:[%s3 + $0x40] sm:$0xff]
  %v685 = vld [vmem:[%s3 + $0x48] sm:$0xff]
  %v686 = vld [vmem:[%s3 + $0x50] sm:$0xff]
  %v687 = vld [vmem:[%s3 + $0x58] sm:$0xff]
  %v688 = vld [vmem:[%s3 + $0x60] sm:$0xff]
  %v689 = vld [vmem:[%s3 + $0x68] sm:$0xff]
  %v690 = vld [vmem:[%s3 + $0x70] sm:$0xff]
  %v691 = vld [vmem:[%s3 + $0x78] sm:$0xff]
  %v692 = vld [vmem:[%s3 + $0x80] sm:$0xff]
  %v693 = vld [vmem:[%s3 + $0x88] sm:$0xff]
  %v694 = vld [vmem:[%s3 + $0x90] sm:$0xff]
  %v695 = vld [vmem:[%s3 + $0x98] sm:$0xff]
  %v696 = vld [vmem:[%s3 + $0xa0] sm:$0xff]
  %v697 = vld [vmem:[%s3 + $0xa8] sm:$0xff]
  %v698 = vld [vmem:[%s3 + $0xb0] sm:$0xff]
  %v699 = vld [vmem:[%s3 + $0xb8] sm:$0xff]
  %v700 = vld [vmem:[%s3 + $0xc0] sm:$0xff]
  %v701 = vld [vmem:[%s3 + $0xc8] sm:$0xff]
  %v702 = vld [vmem:[%s3 + $0xd0] sm:$0xff]
  %v703 = vld [vmem:[%s3 + $0xd8] sm:$0xff]
  %v704 = vld [vmem:[%s3 + $0xe0] sm:$0xff]
  %v705 = vld [vmem:[%s3 + $0xe8] sm:$0xff]
  %v706 = vld [vmem:[%s3 + $0xf0] sm:$0xff]
  %v707 = vld [vmem:[%s3 + $0xf8] sm:$0xff]
  %v708 = vld [vmem:[%s3 + $0x100] sm:$0xff]
  %v709 = vld [vmem:[%s3 + $0x108] sm:$0xff]
  %v710 = vld [vmem:[%s3 + $0x110] sm:$0xff]
  %v711 = vld [vmem:[%s3 + $0x118] sm:$0xff]
  %v712 = vld [vmem:[%s3 + $0x120] sm:$0xff]
  %v713 = vld [vmem:[%s3 + $0x128] sm:$0xff]
  %v714 = vld [vmem:[%s3 + $0x130] sm:$0xff]
  %v715 = vld [vmem:[%s3 + $0x138] sm:$0xff]
  %v716 = vld [vmem:[%s3 + $0x140] sm:$0xff]
  %v717 = vld [vmem:[%s3 + $0x148] sm:$0xff]
  %v718 = vld [vmem:[%s3 + $0x150] sm:$0xff]
  %v719 = vld [vmem:[%s3 + $0x158] sm:$0xff]
  %v720 = vld [vmem:[%s3 + $0x160] sm:$0xff]
  %v721 = vld [vmem:[%s3 + $0x168] sm:$0xff]
  %v722 = vld [vmem:[%s3 + $0x170] sm:$0xff]
  %v723 = vld [vmem:[%s3 + $0x178] sm:$0xff]
  %v724 = vld [vmem:[%s3 + $0x180] sm:$0xff]
  %v725 = vld [vmem:[%s3 + $0x188] sm:$0xff]
  %v726 = vld [vmem:[%s3 + $0x190] sm:$0xff]
  %v727 = vld [vmem:[%s3 + $0x198] sm:$0xff]
  %v728 = vld [vmem:[%s3 + $0x1a0] sm:$0xff]
  %v729 = vld [vmem:[%s3 + $0x1a8] sm:$0xff]
  %v730 = vld [vmem:[%s3 + $0x1b0] sm:$0xff]
  %v731 = vld [vmem:[%s3 + $0x1b8] sm:$0xff]
  %v732 = vld [vmem:[%s3 + $0x1c0] sm:$0xff]
  %v733 = vld [vmem:[%s3 + $0x1c8] sm:$0xff]
  %v734 = vld [vmem:[%s3 + $0x1d0] sm:$0xff]
  %v735 = vld [vmem:[%s3 + $0x1d8] sm:$0xff]
  %v736 = vld [vmem:[%s3 + $0x1e0] sm:$0xff]
  %v737 = vld [vmem:[%s3 + $0x1e8] sm:$0xff]
  %v738 = vld [vmem:[%s3 + $0x1f0] sm:$0xff]
  %v739 = vld [vmem:[%s3 + $0x1f8] sm:$0xff]
  %v740 = vld [vmem:[%s3 + $0x200] sm:$0xff]
  %v741 = vld [vmem:[%s3 + $0x208] sm:$0xff]
  %v742 = vld [vmem:[%s3 + $0x210] sm:$0xff]
  %v743 = vld [vmem:[%s3 + $0x218] sm:$0xff]
  %v744 = vld [vmem:[%s3 + $0x220] sm:$0xff]
  %v745 = vld [vmem:[%s3 + $0x228] sm:$0xff]
  %v746 = vld [vmem:[%s3 + $0x230] sm:$0xff]
  %v747 = vld [vmem:[%s3 + $0x238] sm:$0xff]
  %v748 = vld [vmem:[%s3 + $0x240] sm:$0xff]
  %v749 = vld [vmem:[%s3 + $0x248] sm:$0xff]
  %v750 = vld [vmem:[%s3 + $0x250] sm:$0xff]
  %v751 = vld [vmem:[%s3 + $0x258] sm:$0xff]
  %v752 = vld [vmem:[%s3 + $0x260] sm:$0xff]
  %v753 = vld [vmem:[%s3 + $0x268] sm:$0xff]
  %v754 = vld [vmem:[%s3 + $0x270] sm:$0xff]
  %v755 = vld [vmem:[%s3 + $0x278] sm:$0xff]
  %v756 = vld [vmem:[%s3 + $0x280] sm:$0xff]
  %v757 = vld [vmem:[%s3 + $0x288] sm:$0xff]
  %v758 = vld [vmem:[%s3 + $0x290] sm:$0xff]
  %v759 = vld [vmem:[%s3 + $0x298] sm:$0xff]
  %v760 = vld [vmem:[%s3 + $0x2a0] sm:$0xff]
  %v761 = vld [vmem:[%s3 + $0x2a8] sm:$0xff]
  %v762 = vld [vmem:[%s3 + $0x2b0] sm:$0xff]
  %v763 = vld [vmem:[%s3 + $0x2b8] sm:$0xff]
  %v764 = vld [vmem:[%s3 + $0x2c0] sm:$0xff]
  %v765 = vld [vmem:[%s3 + $0x2c8] sm:$0xff]
  %v766 = vld [vmem:[%s3 + $0x2d0] sm:$0xff]
  %v767 = vld [vmem:[%s3 + $0x2d8] sm:$0xff]
  %v768 = vld [vmem:[%s3 + $0x2e0] sm:$0xff]
  %v769 = vld [vmem:[%s3 + $0x2e8] sm:$0xff]
  %v770 = vld [vmem:[%s3 + $0x2f0] sm:$0xff]
  %v771 = vld [vmem:[%s3 + $0x2f8] sm:$0xff]
  %v772 = vld [vmem:[%s3 + $0x300] sm:$0xff]
  %v773 = vld [vmem:[%s3 + $0x308] sm:$0xff]
  %v774 = vld [vmem:[%s3 + $0x310] sm:$0xff]
  %v775 = vld [vmem:[%s3 + $0x318] sm:$0xff]
  %v776 = vld [vmem:[%s3 + $0x320] sm:$0xff]
  %v777 = vld [vmem:[%s3 + $0x328] sm:$0xff]
  %v778 = vld [vmem:[%s3 + $0x330] sm:$0xff]
  %v779 = vld [vmem:[%s3 + $0x338] sm:$0xff]
  %v780 = vld [vmem:[%s3 + $0x340] sm:$0xff]
  %v781 = vld [vmem:[%s3 + $0x348] sm:$0xff]
  %v782 = vld [vmem:[%s3 + $0x350] sm:$0xff]
  %v783 = vld [vmem:[%s3 + $0x358] sm:$0xff]
  %v784 = vld [vmem:[%s3 + $0x360] sm:$0xff]
  %v785 = vld [vmem:[%s3 + $0x368] sm:$0xff]
  %v786 = vld [vmem:[%s3 + $0x370] sm:$0xff]
  %v787 = vld [vmem:[%s3 + $0x378] sm:$0xff]
  %v788 = vld [vmem:[%s3 + $0x380] sm:$0xff]
  %v789 = vld [vmem:[%s3 + $0x388] sm:$0xff]
  %v790 = vld [vmem:[%s3 + $0x390] sm:$0xff]
  %v791 = vld [vmem:[%s3 + $0x398] sm:$0xff]
  %v792 = vld [vmem:[%s3 + $0x3a0] sm:$0xff]
  %v793 = vld [vmem:[%s3 + $0x3a8] sm:$0xff]
  %v794 = vld [vmem:[%s3 + $0x3b0] sm:$0xff]
  %v795 = vld [vmem:[%s3 + $0x3b8] sm:$0xff]
  %v796 = vld [vmem:[%s3 + $0x3c0] sm:$0xff]
  %v797 = vld [vmem:[%s3 + $0x3c8] sm:$0xff]
  %v798 = vld [vmem:[%s3 + $0x3d0] sm:$0xff]
  %v799 = vld [vmem:[%s3 + $0x3d8] sm:$0xff]
  %v800 = vld [vmem:[%s3 + $0x3e0] sm:$0xff]
  %v801 = vld [vmem:[%s3 + $0x3e8] sm:$0xff]
  %v802 = vld [vmem:[%s3 + $0x3f0] sm:$0xff]
  %v803 = vld [vmem:[%s3 + $0x3f8] sm:$0xff]
  %v804 = vld [vmem:[%s4] sm:$0xff]
  %v805 = vld [vmem:[%s4 + $0x8] sm:$0xff]
  %v806 = vld [vmem:[%s4 + $0x10] sm:$0xff]
  %v807 = vld [vmem:[%s4 + $0x18] sm:$0xff]
  %v808 = vld [vmem:[%s4 + $0x20] sm:$0xff]
  %v809 = vld [vmem:[%s4 + $0x28] sm:$0xff]
  %v810 = vld [vmem:[%s4 + $0x30] sm:$0xff]
  %v811 = vld [vmem:[%s4 + $0x38] sm:$0xff]
  %v812 = vld [vmem:[%s4 + $0x40] sm:$0xff]
  %v813 = vld [vmem:[%s4 + $0x48] sm:$0xff]
  %v814 = vld [vmem:[%s4 + $0x50] sm:$0xff]
  %v815 = vld [vmem:[%s4 + $0x58] sm:$0xff]
  %v816 = vld [vmem:[%s4 + $0x60] sm:$0xff]
  %v817 = vld [vmem:[%s4 + $0x68] sm:$0xff]
  %v818 = vld [vmem:[%s4 + $0x70] sm:$0xff]
  %v819 = vld [vmem:[%s4 + $0x78] sm:$0xff]
  %v820 = vld [vmem:[%s4 + $0x80] sm:$0xff]
  %v821 = vld [vmem:[%s4 + $0x88] sm:$0xff]
  %v822 = vld [vmem:[%s4 + $0x90] sm:$0xff]
  %v823 = vld [vmem:[%s4 + $0x98] sm:$0xff]
  %v824 = vld [vmem:[%s4 + $0xa0] sm:$0xff]
  %v825 = vld [vmem:[%s4 + $0xa8] sm:$0xff]
  %v826 = vld [vmem:[%s4 + $0xb0] sm:$0xff]
  %v827 = vld [vmem:[%s4 + $0xb8] sm:$0xff]
  %v828 = vld [vmem:[%s4 + $0xc0] sm:$0xff]
  %v829 = vld [vmem:[%s4 + $0xc8] sm:$0xff]
  %v830 = vld [vmem:[%s4 + $0xd0] sm:$0xff]
  %v831 = vld [vmem:[%s4 + $0xd8] sm:$0xff]
  %v832 = vld [vmem:[%s4 + $0xe0] sm:$0xff]
  %v833 = vld [vmem:[%s4 + $0xe8] sm:$0xff]
  %v834 = vld [vmem:[%s4 + $0xf0] sm:$0xff]
  %v835 = vld [vmem:[%s4 + $0xf8] sm:$0xff]
  %v836 = vld [vmem:[%s4 + $0x100] sm:$0xff]
  %v837 = vld [vmem:[%s4 + $0x108] sm:$0xff]
  %v838 = vld [vmem:[%s4 + $0x110] sm:$0xff]
  %v839 = vld [vmem:[%s4 + $0x118] sm:$0xff]
  %v840 = vld [vmem:[%s4 + $0x120] sm:$0xff]
  %v841 = vld [vmem:[%s4 + $0x128] sm:$0xff]
  %v842 = vld [vmem:[%s4 + $0x130] sm:$0xff]
  %v843 = vld [vmem:[%s4 + $0x138] sm:$0xff]
  %v844 = vld [vmem:[%s4 + $0x140] sm:$0xff]
  %v845 = vld [vmem:[%s4 + $0x148] sm:$0xff]
  %v846 = vld [vmem:[%s4 + $0x150] sm:$0xff]
  %v847 = vld [vmem:[%s4 + $0x158] sm:$0xff]
  %v848 = vld [vmem:[%s4 + $0x160] sm:$0xff]
  %v849 = vld [vmem:[%s4 + $0x168] sm:$0xff]
  %v850 = vld [vmem:[%s4 + $0x170] sm:$0xff]
  %v851 = vld [vmem:[%s4 + $0x178] sm:$0xff]
  %v852 = vld [vmem:[%s4 + $0x180] sm:$0xff]
  %v853 = vld [vmem:[%s4 + $0x188] sm:$0xff]
  %v854 = vld [vmem:[%s4 + $0x190] sm:$0xff]
  %v855 = vld [vmem:[%s4 + $0x198] sm:$0xff]
  %v856 = vld [vmem:[%s4 + $0x1a0] sm:$0xff]
  %v857 = vld [vmem:[%s4 + $0x1a8] sm:$0xff]
  %v858 = vld [vmem:[%s4 + $0x1b0] sm:$0xff]
  %v859 = vld [vmem:[%s4 + $0x1b8] sm:$0xff]
  %v860 = vld [vmem:[%s4 + $0x1c0] sm:$0xff]
  %v861 = vld [vmem:[%s4 + $0x1c8] sm:$0xff]
  %v862 = vld [vmem:[%s4 + $0x1d0] sm:$0xff]
  %v863 = vld [vmem:[%s4 + $0x1d8] sm:$0xff]
  %v864 = vld [vmem:[%s4 + $0x1e0] sm:$0xff]
  %v865 = vld [vmem:[%s4 + $0x1e8] sm:$0xff]
  %v866 = vld [vmem:[%s4 + $0x1f0] sm:$0xff]
  %v867 = vld [vmem:[%s4 + $0x1f8] sm:$0xff]
  %869 = vset.pattern.permute.xlu0 0
  %870 = vperm.xlu0 %869, %v804
  %v871 = vpop.permute.xlu0 %870
  %874 = vset.pattern.permute.xlu0 0
  %875 = vperm.xlu0 %874, %v805
  %v876 = vpop.permute.xlu0 %875
  %879 = vset.pattern.permute.xlu0 0
  %880 = vperm.xlu0 %879, %v806
  %v881 = vpop.permute.xlu0 %880
  %884 = vset.pattern.permute.xlu0 0
  %885 = vperm.xlu0 %884, %v807
  %v886 = vpop.permute.xlu0 %885
  %889 = vset.pattern.permute.xlu0 0
  %890 = vperm.xlu0 %889, %v808
  %v891 = vpop.permute.xlu0 %890
  %894 = vset.pattern.permute.xlu0 0
  %895 = vperm.xlu0 %894, %v809
  %v896 = vpop.permute.xlu0 %895
  %899 = vset.pattern.permute.xlu0 0
  %900 = vperm.xlu0 %899, %v810
  %v901 = vpop.permute.xlu0 %900
  %904 = vset.pattern.permute.xlu0 0
  %905 = vperm.xlu0 %904, %v811
  %v906 = vpop.permute.xlu0 %905
  %909 = vset.pattern.permute.xlu0 0
  %910 = vperm.xlu0 %909, %v812
  %v911 = vpop.permute.xlu0 %910
  %914 = vset.pattern.permute.xlu0 0
  %915 = vperm.xlu0 %914, %v813
  %v916 = vpop.permute.xlu0 %915
  %919 = vset.pattern.permute.xlu0 0
  %920 = vperm.xlu0 %919, %v814
  %v921 = vpop.permute.xlu0 %920
  %924 = vset.pattern.permute.xlu0 0
  %925 = vperm.xlu0 %924, %v815
  %v926 = vpop.permute.xlu0 %925
  %929 = vset.pattern.permute.xlu0 0
  %930 = vperm.xlu0 %929, %v816
  %v931 = vpop.permute.xlu0 %930
  %934 = vset.pattern.permute.xlu0 0
  %935 = vperm.xlu0 %934, %v817
  %v936 = vpop.permute.xlu0 %935
  %939 = vset.pattern.permute.xlu0 0
  %940 = vperm.xlu0 %939, %v818
  %v941 = vpop.permute.xlu0 %940
  %944 = vset.pattern.permute.xlu0 0
  %945 = vperm.xlu0 %944, %v819
  %v946 = vpop.permute.xlu0 %945
  %949 = vset.pattern.permute.xlu0 0
  %950 = vperm.xlu0 %949, %v820
  %v951 = vpop.permute.xlu0 %950
  %954 = vset.pattern.permute.xlu0 0
  %955 = vperm.xlu0 %954, %v821
  %v956 = vpop.permute.xlu0 %955
  %959 = vset.pattern.permute.xlu0 0
  %960 = vperm.xlu0 %959, %v822
  %v961 = vpop.permute.xlu0 %960
  %964 = vset.pattern.permute.xlu0 0
  %965 = vperm.xlu0 %964, %v823
  %v966 = vpop.permute.xlu0 %965
  %969 = vset.pattern.permute.xlu0 0
  %970 = vperm.xlu0 %969, %v824
  %v971 = vpop.permute.xlu0 %970
  %974 = vset.pattern.permute.xlu0 0
  %975 = vperm.xlu0 %974, %v825
  %v976 = vpop.permute.xlu0 %975
  %979 = vset.pattern.permute.xlu0 0
  %980 = vperm.xlu0 %979, %v826
  %v981 = vpop.permute.xlu0 %980
  %984 = vset.pattern.permute.xlu0 0
  %985 = vperm.xlu0 %984, %v827
  %v986 = vpop.permute.xlu0 %985
  %989 = vset.pattern.permute.xlu0 0
  %990 = vperm.xlu0 %989, %v828
  %v991 = vpop.permute.xlu0 %990
  %994 = vset.pattern.permute.xlu0 0
  %995 = vperm.xlu0 %994, %v829
  %v996 = vpop.permute.xlu0 %995
  %999 = vset.pattern.permute.xlu0 0
  %1000 = vperm.xlu0 %999, %v830
  %v1001 = vpop.permute.xlu0 %1000
  %1004 = vset.pattern.permute.xlu0 0
  %1005 = vperm.xlu0 %1004, %v831
  %v1006 = vpop.permute.xlu0 %1005
  %1009 = vset.pattern.permute.xlu0 0
  %1010 = vperm.xlu0 %1009, %v832
  %v1011 = vpop.permute.xlu0 %1010
  %1014 = vset.pattern.permute.xlu0 0
  %1015 = vperm.xlu0 %1014, %v833
  %v1016 = vpop.permute.xlu0 %1015
  %1019 = vset.pattern.permute.xlu0 0
  %1020 = vperm.xlu0 %1019, %v834
  %v1021 = vpop.permute.xlu0 %1020
  %1024 = vset.pattern.permute.xlu0 0
  %1025 = vperm.xlu0 %1024, %v835
  %v1026 = vpop.permute.xlu0 %1025
  %1029 = vset.pattern.permute.xlu0 0
  %1030 = vperm.xlu0 %1029, %v836
  %v1031 = vpop.permute.xlu0 %1030
  %1034 = vset.pattern.permute.xlu0 0
  %1035 = vperm.xlu0 %1034, %v837
  %v1036 = vpop.permute.xlu0 %1035
  %1039 = vset.pattern.permute.xlu0 0
  %1040 = vperm.xlu0 %1039, %v838
  %v1041 = vpop.permute.xlu0 %1040
  %1044 = vset.pattern.permute.xlu0 0
  %1045 = vperm.xlu0 %1044, %v839
  %v1046 = vpop.permute.xlu0 %1045
  %1049 = vset.pattern.permute.xlu0 0
  %1050 = vperm.xlu0 %1049, %v840
  %v1051 = vpop.permute.xlu0 %1050
  %1054 = vset.pattern.permute.xlu0 0
  %1055 = vperm.xlu0 %1054, %v841
  %v1056 = vpop.permute.xlu0 %1055
  %1059 = vset.pattern.permute.xlu0 0
  %1060 = vperm.xlu0 %1059, %v842
  %v1061 = vpop.permute.xlu0 %1060
  %1064 = vset.pattern.permute.xlu0 0
  %1065 = vperm.xlu0 %1064, %v843
  %v1066 = vpop.permute.xlu0 %1065
  %1069 = vset.pattern.permute.xlu0 0
  %1070 = vperm.xlu0 %1069, %v844
  %v1071 = vpop.permute.xlu0 %1070
  %1074 = vset.pattern.permute.xlu0 0
  %1075 = vperm.xlu0 %1074, %v845
  %v1076 = vpop.permute.xlu0 %1075
  %1079 = vset.pattern.permute.xlu0 0
  %1080 = vperm.xlu0 %1079, %v846
  %v1081 = vpop.permute.xlu0 %1080
  %1084 = vset.pattern.permute.xlu0 0
  %1085 = vperm.xlu0 %1084, %v847
  %v1086 = vpop.permute.xlu0 %1085
  %1089 = vset.pattern.permute.xlu0 0
  %1090 = vperm.xlu0 %1089, %v848
  %v1091 = vpop.permute.xlu0 %1090
  %1094 = vset.pattern.permute.xlu0 0
  %1095 = vperm.xlu0 %1094, %v849
  %v1096 = vpop.permute.xlu0 %1095
  %1099 = vset.pattern.permute.xlu0 0
  %1100 = vperm.xlu0 %1099, %v850
  %v1101 = vpop.permute.xlu0 %1100
  %1104 = vset.pattern.permute.xlu0 0
  %1105 = vperm.xlu0 %1104, %v851
  %v1106 = vpop.permute.xlu0 %1105
  %1109 = vset.pattern.permute.xlu0 0
  %1110 = vperm.xlu0 %1109, %v852
  %v1111 = vpop.permute.xlu0 %1110
  %1114 = vset.pattern.permute.xlu0 0
  %1115 = vperm.xlu0 %1114, %v853
  %v1116 = vpop.permute.xlu0 %1115
  %1119 = vset.pattern.permute.xlu0 0
  %1120 = vperm.xlu0 %1119, %v854
  %v1121 = vpop.permute.xlu0 %1120
  %1124 = vset.pattern.permute.xlu0 0
  %1125 = vperm.xlu0 %1124, %v855
  %v1126 = vpop.permute.xlu0 %1125
  %1129 = vset.pattern.permute.xlu0 0
  %1130 = vperm.xlu0 %1129, %v856
  %v1131 = vpop.permute.xlu0 %1130
  %1134 = vset.pattern.permute.xlu0 0
  %1135 = vperm.xlu0 %1134, %v857
  %v1136 = vpop.permute.xlu0 %1135
  %1139 = vset.pattern.permute.xlu0 0
  %1140 = vperm.xlu0 %1139, %v858
  %v1141 = vpop.permute.xlu0 %1140
  %1144 = vset.pattern.permute.xlu0 0
  %1145 = vperm.xlu0 %1144, %v859
  %v1146 = vpop.permute.xlu0 %1145
  %1149 = vset.pattern.permute.xlu0 0
  %1150 = vperm.xlu0 %1149, %v860
  %v1151 = vpop.permute.xlu0 %1150
  %1154 = vset.pattern.permute.xlu0 0
  %1155 = vperm.xlu0 %1154, %v861
  %v1156 = vpop.permute.xlu0 %1155
  %1159 = vset.pattern.permute.xlu0 0
  %1160 = vperm.xlu0 %1159, %v862
  %v1161 = vpop.permute.xlu0 %1160
  %1164 = vset.pattern.permute.xlu0 0
  %1165 = vperm.xlu0 %1164, %v863
  %v1166 = vpop.permute.xlu0 %1165
  %1169 = vset.pattern.permute.xlu0 0
  %1170 = vperm.xlu0 %1169, %v864
  %v1171 = vpop.permute.xlu0 %1170
  %1174 = vset.pattern.permute.xlu0 0
  %1175 = vperm.xlu0 %1174, %v865
  %v1176 = vpop.permute.xlu0 %1175
  %1179 = vset.pattern.permute.xlu0 0
  %1180 = vperm.xlu0 %1179, %v866
  %v1181 = vpop.permute.xlu0 %1180
  %1184 = vset.pattern.permute.xlu0 0
  %1185 = vperm.xlu0 %1184, %v867
  %v1186 = vpop.permute.xlu0 %1185
  %1188 = vmatprep.subr.mxu0 %v643
  %1189 = vmatpush1.msra.mxu0 %v642
  %1190 = vmatprep.subr.mxu0 %v641
  %1191 = vmatpush1.msra.mxu0 %v640
  %1192 = vmatprep.subr.mxu0 %v639
  %1193 = vmatpush1.msra.mxu0 %v638
  %1194 = vmatprep.subr.mxu0 %v637
  %1195 = vmatpush1.msra.mxu0 %v636
  %1196 = vmatprep.subr.mxu0 %v635
  %1197 = vmatpush1.msra.mxu0 %v634
  %1198 = vmatprep.subr.mxu0 %v633
  %1199 = vmatpush1.msra.mxu0 %v632
  %1200 = vmatprep.subr.mxu0 %v631
  %1201 = vmatpush1.msra.mxu0 %v630
  %1202 = vmatprep.subr.mxu0 %v629
  %1203 = vmatpush1.msra.mxu0 %v628
  %1204 = vmatprep.subr.mxu0 %v627
  %1205 = vmatpush1.msra.mxu0 %v626
  %1206 = vmatprep.subr.mxu0 %v625
  %1207 = vmatpush1.msra.mxu0 %v624
  %1208 = vmatprep.subr.mxu0 %v623
  %1209 = vmatpush1.msra.mxu0 %v622
  %1210 = vmatprep.subr.mxu0 %v621
  %1211 = vmatpush1.msra.mxu0 %v620
  %1212 = vmatprep.subr.mxu0 %v619
  %1213 = vmatpush1.msra.mxu0 %v618
  %1214 = vmatprep.subr.mxu0 %v617
  %1215 = vmatpush1.msra.mxu0 %v616
  %1216 = vmatprep.subr.mxu0 %v615
  %1217 = vmatpush1.msra.mxu0 %v614
  %1218 = vmatprep.subr.mxu0 %v613
  %1219 = vmatpush1.msra.mxu0 %v612
  %1220 = vmatprep.subr.mxu0 %v675
  %1221 = vmatpush2.msra.mxu0 %v674
  %1222 = vmatprep.subr.mxu0 %v673
  %1223 = vmatpush2.msra.mxu0 %v672
  %1224 = vmatprep.subr.mxu0 %v671
  %1225 = vmatpush2.msra.mxu0 %v670
  %1226 = vmatprep.subr.mxu0 %v669
  %1227 = vmatpush2.msra.mxu0 %v668
  %1228 = vmatprep.subr.mxu0 %v667
  %1229 = vmatpush2.msra.mxu0 %v666
  %1230 = vmatprep.subr.mxu0 %v665
  %1231 = vmatpush2.msra.mxu0 %v664
  %1232 = vmatprep.subr.mxu0 %v663
  %1233 = vmatpush2.msra.mxu0 %v662
  %1234 = vmatprep.subr.mxu0 %v661
  %1235 = vmatpush2.msra.mxu0 %v660
  %1236 = vmatprep.subr.mxu0 %v659
  %1237 = vmatpush2.msra.mxu0 %v658
  %1238 = vmatprep.subr.mxu0 %v657
  %1239 = vmatpush2.msra.mxu0 %v656
  %1240 = vmatprep.subr.mxu0 %v655
  %1241 = vmatpush2.msra.mxu0 %v654
  %1242 = vmatprep.subr.mxu0 %v653
  %1243 = vmatpush2.msra.mxu0 %v652
  %1244 = vmatprep.subr.mxu0 %v651
  %1245 = vmatpush2.msra.mxu0 %v650
  %1246 = vmatprep.subr.mxu0 %v649
  %1247 = vmatpush2.msra.mxu0 %v648
  %1248 = vmatprep.subr.mxu0 %v647
  %1249 = vmatpush2.msra.mxu0 %v646
  %1250 = vmatprep.subr.mxu0 %v645
  %1251 = vmatpush2.msra.mxu0 %v644
  %1252 = vmatprep.mubr.f32.mxu0 %v677
  %1253 = vmatmul.mubr.f32.gmra.mxu0 %v676
  %v1254 = vpop.f32.mrf.mxu0
  %v1255 = vadd.f32 %v871, %v1254
  %v1256 = vpop.f32.mrf.mxu0
  %v1257 = vadd.f32 %v871, %v1256
  %1258 = vmatprep.mubr.f32.mxu0 %v679
  %1259 = vmatmul.mubr.f32.gmra.mxu0 %v678
  %v1260 = vpop.f32.mrf.mxu0
  %v1261 = vadd.f32 %v876, %v1260
  %v1262 = vpop.f32.mrf.mxu0
  %v1263 = vadd.f32 %v876, %v1262
  %1264 = vmatprep.mubr.f32.mxu0 %v681
  %1265 = vmatmul.mubr.f32.gmra.mxu0 %v680
  %v1266 = vpop.f32.mrf.mxu0
  %v1267 = vadd.f32 %v881, %v1266
  %v1268 = vpop.f32.mrf.mxu0
  %v1269 = vadd.f32 %v881, %v1268
  %1270 = vmatprep.mubr.f32.mxu0 %v683
  %1271 = vmatmul.mubr.f32.gmra.mxu0 %v682
  %v1272 = vpop.f32.mrf.mxu0
  %v1273 = vadd.f32 %v886, %v1272
  %v1274 = vpop.f32.mrf.mxu0
  %v1275 = vadd.f32 %v886, %v1274
  %1276 = vmatprep.mubr.f32.mxu0 %v685
  %1277 = vmatmul.mubr.f32.gmra.mxu0 %v684
  %v1278 = vpop.f32.mrf.mxu0
  %v1279 = vadd.f32 %v891, %v1278
  %v1280 = vpop.f32.mrf.mxu0
  %v1281 = vadd.f32 %v891, %v1280
  %1282 = vmatprep.mubr.f32.mxu0 %v687
  %1283 = vmatmul.mubr.f32.gmra.mxu0 %v686
  %v1284 = vpop.f32.mrf.mxu0
  %v1285 = vadd.f32 %v896, %v1284
  %v1286 = vpop.f32.mrf.mxu0
  %v1287 = vadd.f32 %v896, %v1286
  %1288 = vmatprep.mubr.f32.mxu0 %v689
  %1289 = vmatmul.mubr.f32.gmra.mxu0 %v688
  %v1290 = vpop.f32.mrf.mxu0
  %v1291 = vadd.f32 %v901, %v1290
  %v1292 = vpop.f32.mrf.mxu0
  %v1293 = vadd.f32 %v901, %v1292
  %1294 = vmatprep.mubr.f32.mxu0 %v691
  %1295 = vmatmul.mubr.f32.gmra.mxu0 %v690
  %v1296 = vpop.f32.mrf.mxu0
  %v1297 = vadd.f32 %v906, %v1296
  %v1298 = vpop.f32.mrf.mxu0
  %v1299 = vadd.f32 %v906, %v1298
  %1300 = vmatprep.mubr.f32.mxu0 %v693
  %1301 = vmatmul.mubr.f32.gmra.mxu0 %v692
  %v1302 = vpop.f32.mrf.mxu0
  %v1303 = vadd.f32 %v911, %v1302
  %v1304 = vpop.f32.mrf.mxu0
  %v1305 = vadd.f32 %v911, %v1304
  %1306 = vmatprep.mubr.f32.mxu0 %v695
  %1307 = vmatmul.mubr.f32.gmra.mxu0 %v694
  %v1308 = vpop.f32.mrf.mxu0
  %v1309 = vadd.f32 %v916, %v1308
  %v1310 = vpop.f32.mrf.mxu0
  %v1311 = vadd.f32 %v916, %v1310
  %1312 = vmatprep.mubr.f32.mxu0 %v697
  %1313 = vmatmul.mubr.f32.gmra.mxu0 %v696
  %v1314 = vpop.f32.mrf.mxu0
  %v1315 = vadd.f32 %v921, %v1314
  %v1316 = vpop.f32.mrf.mxu0
  %v1317 = vadd.f32 %v921, %v1316
  %1318 = vmatprep.mubr.f32.mxu0 %v699
  %1319 = vmatmul.mubr.f32.gmra.mxu0 %v698
  %v1320 = vpop.f32.mrf.mxu0
  %v1321 = vadd.f32 %v926, %v1320
  %v1322 = vpop.f32.mrf.mxu0
  %v1323 = vadd.f32 %v926, %v1322
  %1324 = vmatprep.mubr.f32.mxu0 %v701
  %1325 = vmatmul.mubr.f32.gmra.mxu0 %v700
  %v1326 = vpop.f32.mrf.mxu0
  %v1327 = vadd.f32 %v931, %v1326
  %v1328 = vpop.f32.mrf.mxu0
  %v1329 = vadd.f32 %v931, %v1328
  %1330 = vmatprep.mubr.f32.mxu0 %v703
  %1331 = vmatmul.mubr.f32.gmra.mxu0 %v702
  %v1332 = vpop.f32.mrf.mxu0
  %v1333 = vadd.f32 %v936, %v1332
  %v1334 = vpop.f32.mrf.mxu0
  %v1335 = vadd.f32 %v936, %v1334
  %1336 = vmatprep.mubr.f32.mxu0 %v705
  %1337 = vmatmul.mubr.f32.gmra.mxu0 %v704
  %v1338 = vpop.f32.mrf.mxu0
  %v1339 = vadd.f32 %v941, %v1338
  %v1340 = vpop.f32.mrf.mxu0
  %v1341 = vadd.f32 %v941, %v1340
  %1342 = vmatprep.mubr.f32.mxu0 %v707
  %1343 = vmatmul.mubr.f32.gmra.mxu0 %v706
  %v1344 = vpop.f32.mrf.mxu0
  %v1345 = vadd.f32 %v946, %v1344
  %v1346 = vpop.f32.mrf.mxu0
  %v1347 = vadd.f32 %v946, %v1346
  %1348 = vmatprep.mubr.f32.mxu0 %v709
  %1349 = vmatmul.mubr.f32.gmra.mxu0 %v708
  %v1350 = vpop.f32.mrf.mxu0
  %v1351 = vadd.f32 %v951, %v1350
  %v1352 = vpop.f32.mrf.mxu0
  %v1353 = vadd.f32 %v951, %v1352
  %1354 = vmatprep.mubr.f32.mxu0 %v711
  %1355 = vmatmul.mubr.f32.gmra.mxu0 %v710
  %v1356 = vpop.f32.mrf.mxu0
  %v1357 = vadd.f32 %v956, %v1356
  %v1358 = vpop.f32.mrf.mxu0
  %v1359 = vadd.f32 %v956, %v1358
  %1360 = vmatprep.mubr.f32.mxu0 %v713
  %1361 = vmatmul.mubr.f32.gmra.mxu0 %v712
  %v1362 = vpop.f32.mrf.mxu0
  %v1363 = vadd.f32 %v961, %v1362
  %v1364 = vpop.f32.mrf.mxu0
  %v1365 = vadd.f32 %v961, %v1364
  %1366 = vmatprep.mubr.f32.mxu0 %v715
  %1367 = vmatmul.mubr.f32.gmra.mxu0 %v714
  %v1368 = vpop.f32.mrf.mxu0
  %v1369 = vadd.f32 %v966, %v1368
  %v1370 = vpop.f32.mrf.mxu0
  %v1371 = vadd.f32 %v966, %v1370
  %1372 = vmatprep.mubr.f32.mxu0 %v717
  %1373 = vmatmul.mubr.f32.gmra.mxu0 %v716
  %v1374 = vpop.f32.mrf.mxu0
  %v1375 = vadd.f32 %v971, %v1374
  %v1376 = vpop.f32.mrf.mxu0
  %v1377 = vadd.f32 %v971, %v1376
  %1378 = vmatprep.mubr.f32.mxu0 %v719
  %1379 = vmatmul.mubr.f32.gmra.mxu0 %v718
  %v1380 = vpop.f32.mrf.mxu0
  %v1381 = vadd.f32 %v976, %v1380
  %v1382 = vpop.f32.mrf.mxu0
  %v1383 = vadd.f32 %v976, %v1382
  %1384 = vmatprep.mubr.f32.mxu0 %v721
  %1385 = vmatmul.mubr.f32.gmra.mxu0 %v720
  %v1386 = vpop.f32.mrf.mxu0
  %v1387 = vadd.f32 %v981, %v1386
  %v1388 = vpop.f32.mrf.mxu0
  %v1389 = vadd.f32 %v981, %v1388
  %1390 = vmatprep.mubr.f32.mxu0 %v723
  %1391 = vmatmul.mubr.f32.gmra.mxu0 %v722
  %v1392 = vpop.f32.mrf.mxu0
  %v1393 = vadd.f32 %v986, %v1392
  %v1394 = vpop.f32.mrf.mxu0
  %v1395 = vadd.f32 %v986, %v1394
  %1396 = vmatprep.mubr.f32.mxu0 %v725
  %1397 = vmatmul.mubr.f32.gmra.mxu0 %v724
  %v1398 = vpop.f32.mrf.mxu0
  %v1399 = vadd.f32 %v991, %v1398
  %v1400 = vpop.f32.mrf.mxu0
  %v1401 = vadd.f32 %v991, %v1400
  %1402 = vmatprep.mubr.f32.mxu0 %v727
  %1403 = vmatmul.mubr.f32.gmra.mxu0 %v726
  %v1404 = vpop.f32.mrf.mxu0
  %v1405 = vadd.f32 %v996, %v1404
  %v1406 = vpop.f32.mrf.mxu0
  %v1407 = vadd.f32 %v996, %v1406
  %1408 = vmatprep.mubr.f32.mxu0 %v729
  %1409 = vmatmul.mubr.f32.gmra.mxu0 %v728
  %v1410 = vpop.f32.mrf.mxu0
  %v1411 = vadd.f32 %v1001, %v1410
  %v1412 = vpop.f32.mrf.mxu0
  %v1413 = vadd.f32 %v1001, %v1412
  %1414 = vmatprep.mubr.f32.mxu0 %v731
  %1415 = vmatmul.mubr.f32.gmra.mxu0 %v730
  %v1416 = vpop.f32.mrf.mxu0
  %v1417 = vadd.f32 %v1006, %v1416
  %v1418 = vpop.f32.mrf.mxu0
  %v1419 = vadd.f32 %v1006, %v1418
  %1420 = vmatprep.mubr.f32.mxu0 %v733
  %1421 = vmatmul.mubr.f32.gmra.mxu0 %v732
  %v1422 = vpop.f32.mrf.mxu0
  %v1423 = vadd.f32 %v1011, %v1422
  %v1424 = vpop.f32.mrf.mxu0
  %v1425 = vadd.f32 %v1011, %v1424
  %1426 = vmatprep.mubr.f32.mxu0 %v735
  %1427 = vmatmul.mubr.f32.gmra.mxu0 %v734
  %v1428 = vpop.f32.mrf.mxu0
  %v1429 = vadd.f32 %v1016, %v1428
  %v1430 = vpop.f32.mrf.mxu0
  %v1431 = vadd.f32 %v1016, %v1430
  %1432 = vmatprep.mubr.f32.mxu0 %v737
  %1433 = vmatmul.mubr.f32.gmra.mxu0 %v736
  %v1434 = vpop.f32.mrf.mxu0
  %v1435 = vadd.f32 %v1021, %v1434
  %v1436 = vpop.f32.mrf.mxu0
  %v1437 = vadd.f32 %v1021, %v1436
  %1438 = vmatprep.mubr.f32.mxu0 %v739
  %1439 = vmatmul.mubr.f32.gmra.mxu0 %v738
  %v1440 = vpop.f32.mrf.mxu0
  %v1441 = vadd.f32 %v1026, %v1440
  %v1442 = vpop.f32.mrf.mxu0
  %v1443 = vadd.f32 %v1026, %v1442
  %1444 = vmatprep.mubr.f32.mxu0 %v741
  %1445 = vmatmul.mubr.f32.gmra.mxu0 %v740
  %v1446 = vpop.f32.mrf.mxu0
  %v1447 = vadd.f32 %v1031, %v1446
  %v1448 = vpop.f32.mrf.mxu0
  %v1449 = vadd.f32 %v1031, %v1448
  %1450 = vmatprep.mubr.f32.mxu0 %v743
  %1451 = vmatmul.mubr.f32.gmra.mxu0 %v742
  %v1452 = vpop.f32.mrf.mxu0
  %v1453 = vadd.f32 %v1036, %v1452
  %v1454 = vpop.f32.mrf.mxu0
  %v1455 = vadd.f32 %v1036, %v1454
  %1456 = vmatprep.mubr.f32.mxu0 %v745
  %1457 = vmatmul.mubr.f32.gmra.mxu0 %v744
  %v1458 = vpop.f32.mrf.mxu0
  %v1459 = vadd.f32 %v1041, %v1458
  %v1460 = vpop.f32.mrf.mxu0
  %v1461 = vadd.f32 %v1041, %v1460
  %1462 = vmatprep.mubr.f32.mxu0 %v747
  %1463 = vmatmul.mubr.f32.gmra.mxu0 %v746
  %v1464 = vpop.f32.mrf.mxu0
  %v1465 = vadd.f32 %v1046, %v1464
  %v1466 = vpop.f32.mrf.mxu0
  %v1467 = vadd.f32 %v1046, %v1466
  %1468 = vmatprep.mubr.f32.mxu0 %v749
  %1469 = vmatmul.mubr.f32.gmra.mxu0 %v748
  %v1470 = vpop.f32.mrf.mxu0
  %v1471 = vadd.f32 %v1051, %v1470
  %v1472 = vpop.f32.mrf.mxu0
  %v1473 = vadd.f32 %v1051, %v1472
  %1474 = vmatprep.mubr.f32.mxu0 %v751
  %1475 = vmatmul.mubr.f32.gmra.mxu0 %v750
  %v1476 = vpop.f32.mrf.mxu0
  %v1477 = vadd.f32 %v1056, %v1476
  %v1478 = vpop.f32.mrf.mxu0
  %v1479 = vadd.f32 %v1056, %v1478
  %1480 = vmatprep.mubr.f32.mxu0 %v753
  %1481 = vmatmul.mubr.f32.gmra.mxu0 %v752
  %v1482 = vpop.f32.mrf.mxu0
  %v1483 = vadd.f32 %v1061, %v1482
  %v1484 = vpop.f32.mrf.mxu0
  %v1485 = vadd.f32 %v1061, %v1484
  %1486 = vmatprep.mubr.f32.mxu0 %v755
  %1487 = vmatmul.mubr.f32.gmra.mxu0 %v754
  %v1488 = vpop.f32.mrf.mxu0
  %v1489 = vadd.f32 %v1066, %v1488
  %v1490 = vpop.f32.mrf.mxu0
  %v1491 = vadd.f32 %v1066, %v1490
  %1492 = vmatprep.mubr.f32.mxu0 %v757
  %1493 = vmatmul.mubr.f32.gmra.mxu0 %v756
  %v1494 = vpop.f32.mrf.mxu0
  %v1495 = vadd.f32 %v1071, %v1494
  %v1496 = vpop.f32.mrf.mxu0
  %v1497 = vadd.f32 %v1071, %v1496
  %1498 = vmatprep.mubr.f32.mxu0 %v759
  %1499 = vmatmul.mubr.f32.gmra.mxu0 %v758
  %v1500 = vpop.f32.mrf.mxu0
  %v1501 = vadd.f32 %v1076, %v1500
  %v1502 = vpop.f32.mrf.mxu0
  %v1503 = vadd.f32 %v1076, %v1502
  %1504 = vmatprep.mubr.f32.mxu0 %v761
  %1505 = vmatmul.mubr.f32.gmra.mxu0 %v760
  %v1506 = vpop.f32.mrf.mxu0
  %v1507 = vadd.f32 %v1081, %v1506
  %v1508 = vpop.f32.mrf.mxu0
  %v1509 = vadd.f32 %v1081, %v1508
  %1510 = vmatprep.mubr.f32.mxu0 %v763
  %1511 = vmatmul.mubr.f32.gmra.mxu0 %v762
  %v1512 = vpop.f32.mrf.mxu0
  %v1513 = vadd.f32 %v1086, %v1512
  %v1514 = vpop.f32.mrf.mxu0
  %v1515 = vadd.f32 %v1086, %v1514
  %1516 = vmatprep.mubr.f32.mxu0 %v765
  %1517 = vmatmul.mubr.f32.gmra.mxu0 %v764
  %v1518 = vpop.f32.mrf.mxu0
  %v1519 = vadd.f32 %v1091, %v1518
  %v1520 = vpop.f32.mrf.mxu0
  %v1521 = vadd.f32 %v1091, %v1520
  %1522 = vmatprep.mubr.f32.mxu0 %v767
  %1523 = vmatmul.mubr.f32.gmra.mxu0 %v766
  %v1524 = vpop.f32.mrf.mxu0
  %v1525 = vadd.f32 %v1096, %v1524
  %v1526 = vpop.f32.mrf.mxu0
  %v1527 = vadd.f32 %v1096, %v1526
  %1528 = vmatprep.mubr.f32.mxu0 %v769
  %1529 = vmatmul.mubr.f32.gmra.mxu0 %v768
  %v1530 = vpop.f32.mrf.mxu0
  %v1531 = vadd.f32 %v1101, %v1530
  %v1532 = vpop.f32.mrf.mxu0
  %v1533 = vadd.f32 %v1101, %v1532
  %1534 = vmatprep.mubr.f32.mxu0 %v771
  %1535 = vmatmul.mubr.f32.gmra.mxu0 %v770
  %v1536 = vpop.f32.mrf.mxu0
  %v1537 = vadd.f32 %v1106, %v1536
  %v1538 = vpop.f32.mrf.mxu0
  %v1539 = vadd.f32 %v1106, %v1538
  %1540 = vmatprep.mubr.f32.mxu0 %v773
  %1541 = vmatmul.mubr.f32.gmra.mxu0 %v772
  %v1542 = vpop.f32.mrf.mxu0
  %v1543 = vadd.f32 %v1111, %v1542
  %v1544 = vpop.f32.mrf.mxu0
  %v1545 = vadd.f32 %v1111, %v1544
  %1546 = vmatprep.mubr.f32.mxu0 %v775
  %1547 = vmatmul.mubr.f32.gmra.mxu0 %v774
  %v1548 = vpop.f32.mrf.mxu0
  %v1549 = vadd.f32 %v1116, %v1548
  %v1550 = vpop.f32.mrf.mxu0
  %v1551 = vadd.f32 %v1116, %v1550
  %1552 = vmatprep.mubr.f32.mxu0 %v777
  %1553 = vmatmul.mubr.f32.gmra.mxu0 %v776
  %v1554 = vpop.f32.mrf.mxu0
  %v1555 = vadd.f32 %v1121, %v1554
  %v1556 = vpop.f32.mrf.mxu0
  %v1557 = vadd.f32 %v1121, %v1556
  %1558 = vmatprep.mubr.f32.mxu0 %v779
  %1559 = vmatmul.mubr.f32.gmra.mxu0 %v778
  %v1560 = vpop.f32.mrf.mxu0
  %v1561 = vadd.f32 %v1126, %v1560
  %v1562 = vpop.f32.mrf.mxu0
  %v1563 = vadd.f32 %v1126, %v1562
  %1564 = vmatprep.mubr.f32.mxu0 %v781
  %1565 = vmatmul.mubr.f32.gmra.mxu0 %v780
  %v1566 = vpop.f32.mrf.mxu0
  %v1567 = vadd.f32 %v1131, %v1566
  %v1568 = vpop.f32.mrf.mxu0
  %v1569 = vadd.f32 %v1131, %v1568
  %1570 = vmatprep.mubr.f32.mxu0 %v783
  %1571 = vmatmul.mubr.f32.gmra.mxu0 %v782
  %v1572 = vpop.f32.mrf.mxu0
  %v1573 = vadd.f32 %v1136, %v1572
  %v1574 = vpop.f32.mrf.mxu0
  %v1575 = vadd.f32 %v1136, %v1574
  %1576 = vmatprep.mubr.f32.mxu0 %v785
  %1577 = vmatmul.mubr.f32.gmra.mxu0 %v784
  %v1578 = vpop.f32.mrf.mxu0
  %v1579 = vadd.f32 %v1141, %v1578
  %v1580 = vpop.f32.mrf.mxu0
  %v1581 = vadd.f32 %v1141, %v1580
  %1582 = vmatprep.mubr.f32.mxu0 %v787
  %1583 = vmatmul.mubr.f32.gmra.mxu0 %v786
  %v1584 = vpop.f32.mrf.mxu0
  %v1585 = vadd.f32 %v1146, %v1584
  %v1586 = vpop.f32.mrf.mxu0
  %v1587 = vadd.f32 %v1146, %v1586
  %1588 = vmatprep.mubr.f32.mxu0 %v789
  %1589 = vmatmul.mubr.f32.gmra.mxu0 %v788
  %v1590 = vpop.f32.mrf.mxu0
  %v1591 = vadd.f32 %v1151, %v1590
  %v1592 = vpop.f32.mrf.mxu0
  %v1593 = vadd.f32 %v1151, %v1592
  %1594 = vmatprep.mubr.f32.mxu0 %v791
  %1595 = vmatmul.mubr.f32.gmra.mxu0 %v790
  %v1596 = vpop.f32.mrf.mxu0
  %v1597 = vadd.f32 %v1156, %v1596
  %v1598 = vpop.f32.mrf.mxu0
  %v1599 = vadd.f32 %v1156, %v1598
  %1600 = vmatprep.mubr.f32.mxu0 %v793
  %1601 = vmatmul.mubr.f32.gmra.mxu0 %v792
  %v1602 = vpop.f32.mrf.mxu0
  %v1603 = vadd.f32 %v1161, %v1602
  %v1604 = vpop.f32.mrf.mxu0
  %v1605 = vadd.f32 %v1161, %v1604
  %1606 = vmatprep.mubr.f32.mxu0 %v795
  %1607 = vmatmul.mubr.f32.gmra.mxu0 %v794
  %v1608 = vpop.f32.mrf.mxu0
  %v1609 = vadd.f32 %v1166, %v1608
  %v1610 = vpop.f32.mrf.mxu0
  %v1611 = vadd.f32 %v1166, %v1610
  %1612 = vmatprep.mubr.f32.mxu0 %v797
  %1613 = vmatmul.mubr.f32.gmra.mxu0 %v796
  %v1614 = vpop.f32.mrf.mxu0
  %v1615 = vadd.f32 %v1171, %v1614
  %v1616 = vpop.f32.mrf.mxu0
  %v1617 = vadd.f32 %v1171, %v1616
  %1618 = vmatprep.mubr.f32.mxu0 %v799
  %1619 = vmatmul.mubr.f32.gmra.mxu0 %v798
  %v1620 = vpop.f32.mrf.mxu0
  %v1621 = vadd.f32 %v1176, %v1620
  %v1622 = vpop.f32.mrf.mxu0
  %v1623 = vadd.f32 %v1176, %v1622
  %1624 = vmatprep.mubr.f32.mxu0 %v801
  %1625 = vmatmul.mubr.f32.gmra.mxu0 %v800
  %v1626 = vpop.f32.mrf.mxu0
  %v1627 = vadd.f32 %v1181, %v1626
  %v1628 = vpop.f32.mrf.mxu0
  %v1629 = vadd.f32 %v1181, %v1628
  %1630 = vmatprep.mubr.f32.mxu0 %v803
  %1631 = vmatmul.mubr.f32.gmra.mxu0 %v802
  %v1632 = vpop.f32.mrf.mxu0
  %v1633 = vadd.f32 %v1186, %v1632
  %v1634 = vpop.f32.mrf.mxu0
  %v1635 = vadd.f32 %v1186, %v1634
  %1636 = vdwg.mxu0
  %v1637 = vmax.f32 %v1255, 0.0
  %v1638 = vmax.f32 %v1257, 0.0
  %v1639 = vmax.f32 %v1261, 0.0
  %v1640 = vmax.f32 %v1263, 0.0
  %v1641 = vmax.f32 %v1267, 0.0
  %v1642 = vmax.f32 %v1269, 0.0
  %v1643 = vmax.f32 %v1273, 0.0
  %v1644 = vmax.f32 %v1275, 0.0
  %v1645 = vmax.f32 %v1279, 0.0
  %v1646 = vmax.f32 %v1281, 0.0
  %v1647 = vmax.f32 %v1285, 0.0
  %v1648 = vmax.f32 %v1287, 0.0
  %v1649 = vmax.f32 %v1291, 0.0
  %v1650 = vmax.f32 %v1293, 0.0
  %v1651 = vmax.f32 %v1297, 0.0
  %v1652 = vmax.f32 %v1299, 0.0
  %v1653 = vmax.f32 %v1303, 0.0
  %v1654 = vmax.f32 %v1305, 0.0
  %v1655 = vmax.f32 %v1309, 0.0
  %v1656 = vmax.f32 %v1311, 0.0
  %v1657 = vmax.f32 %v1315, 0.0
  %v1658 = vmax.f32 %v1317, 0.0
  %v1659 = vmax.f32 %v1321, 0.0
  %v1660 = vmax.f32 %v1323, 0.0
  %v1661 = vmax.f32 %v1327, 0.0
  %v1662 = vmax.f32 %v1329, 0.0
  %v1663 = vmax.f32 %v1333, 0.0
  %v1664 = vmax.f32 %v1335, 0.0
  %v1665 = vmax.f32 %v1339, 0.0
  %v1666 = vmax.f32 %v1341, 0.0
  %v1667 = vmax.f32 %v1345, 0.0
  %v1668 = vmax.f32 %v1347, 0.0
  %v1669 = vmax.f32 %v1351, 0.0
  %v1670 = vmax.f32 %v1353, 0.0
  %v1671 = vmax.f32 %v1357, 0.0
  %v1672 = vmax.f32 %v1359, 0.0
  %v1673 = vmax.f32 %v1363, 0.0
  %v1674 = vmax.f32 %v1365, 0.0
  %v1675 = vmax.f32 %v1369, 0.0
  %v1676 = vmax.f32 %v1371, 0.0
  %v1677 = vmax.f32 %v1375, 0.0
  %v1678 = vmax.f32 %v1377, 0.0
  %v1679 = vmax.f32 %v1381, 0.0
  %v1680 = vmax.f32 %v1383, 0.0
  %v1681 = vmax.f32 %v1387, 0.0
  %v1682 = vmax.f32 %v1389, 0.0
  %v1683 = vmax.f32 %v1393, 0.0
  %v1684 = vmax.f32 %v1395, 0.0
  %v1685 = vmax.f32 %v1399, 0.0
  %v1686 = vmax.f32 %v1401, 0.0
  %v1687 = vmax.f32 %v1405, 0.0
  %v1688 = vmax.f32 %v1407, 0.0
  %v1689 = vmax.f32 %v1411, 0.0
  %v1690 = vmax.f32 %v1413, 0.0
  %v1691 = vmax.f32 %v1417, 0.0
  %v1692 = vmax.f32 %v1419, 0.0
  %v1693 = vmax.f32 %v1423, 0.0
  %v1694 = vmax.f32 %v1425, 0.0
  %v1695 = vmax.f32 %v1429, 0.0
  %v1696 = vmax.f32 %v1431, 0.0
  %v1697 = vmax.f32 %v1435, 0.0
  %v1698 = vmax.f32 %v1437, 0.0
  %v1699 = vmax.f32 %v1441, 0.0
  %v1700 = vmax.f32 %v1443, 0.0
  %v1701 = vmax.f32 %v1447, 0.0
  %v1702 = vmax.f32 %v1449, 0.0
  %v1703 = vmax.f32 %v1453, 0.0
  %v1704 = vmax.f32 %v1455, 0.0
  %v1705 = vmax.f32 %v1459, 0.0
  %v1706 = vmax.f32 %v1461, 0.0
  %v1707 = vmax.f32 %v1465, 0.0
  %v1708 = vmax.f32 %v1467, 0.0
  %v1709 = vmax.f32 %v1471, 0.0
  %v1710 = vmax.f32 %v1473, 0.0
  %v1711 = vmax.f32 %v1477, 0.0
  %v1712 = vmax.f32 %v1479, 0.0
  %v1713 = vmax.f32 %v1483, 0.0
  %v1714 = vmax.f32 %v1485, 0.0
  %v1715 = vmax.f32 %v1489, 0.0
  %v1716 = vmax.f32 %v1491, 0.0
  %v1717 = vmax.f32 %v1495, 0.0
  %v1718 = vmax.f32 %v1497, 0.0
  %v1719 = vmax.f32 %v1501, 0.0
  %v1720 = vmax.f32 %v1503, 0.0
  %v1721 = vmax.f32 %v1507, 0.0
  %v1722 = vmax.f32 %v1509, 0.0
  %v1723 = vmax.f32 %v1513, 0.0
  %v1724 = vmax.f32 %v1515, 0.0
  %v1725 = vmax.f32 %v1519, 0.0
  %v1726 = vmax.f32 %v1521, 0.0
  %v1727 = vmax.f32 %v1525, 0.0
  %v1728 = vmax.f32 %v1527, 0.0
  %v1729 = vmax.f32 %v1531, 0.0
  %v1730 = vmax.f32 %v1533, 0.0
  %v1731 = vmax.f32 %v1537, 0.0
  %v1732 = vmax.f32 %v1539, 0.0
  %v1733 = vmax.f32 %v1543, 0.0
  %v1734 = vmax.f32 %v1545, 0.0
  %v1735 = vmax.f32 %v1549, 0.0
  %v1736 = vmax.f32 %v1551, 0.0
  %v1737 = vmax.f32 %v1555, 0.0
  %v1738 = vmax.f32 %v1557, 0.0
  %v1739 = vmax.f32 %v1561, 0.0
  %v1740 = vmax.f32 %v1563, 0.0
  %v1741 = vmax.f32 %v1567, 0.0
  %v1742 = vmax.f32 %v1569, 0.0
  %v1743 = vmax.f32 %v1573, 0.0
  %v1744 = vmax.f32 %v1575, 0.0
  %v1745 = vmax.f32 %v1579, 0.0
  %v1746 = vmax.f32 %v1581, 0.0
  %v1747 = vmax.f32 %v1585, 0.0
  %v1748 = vmax.f32 %v1587, 0.0
  %v1749 = vmax.f32 %v1591, 0.0
  %v1750 = vmax.f32 %v1593, 0.0
  %v1751 = vmax.f32 %v1597, 0.0
  %v1752 = vmax.f32 %v1599, 0.0
  %v1753 = vmax.f32 %v1603, 0.0
  %v1754 = vmax.f32 %v1605, 0.0
  %v1755 = vmax.f32 %v1609, 0.0
  %v1756 = vmax.f32 %v1611, 0.0
  %v1757 = vmax.f32 %v1615, 0.0
  %v1758 = vmax.f32 %v1617, 0.0
  %v1759 = vmax.f32 %v1621, 0.0
  %v1760 = vmax.f32 %v1623, 0.0
  %v1761 = vmax.f32 %v1627, 0.0
  %v1762 = vmax.f32 %v1629, 0.0
  %v1763 = vmax.f32 %v1633, 0.0
  %v1764 = vmax.f32 %v1635, 0.0
  %v1765 = vld [vmem:[%s5] sm:$0xff]
  %v1766 = vld [vmem:[%s5 + $0x8] sm:$0xff]
  %v1767 = vld [vmem:[%s5 + $0x10] sm:$0xff]
  %v1768 = vld [vmem:[%s5 + $0x18] sm:$0xff]
  %v1769 = vld [vmem:[%s5 + $0x20] sm:$0xff]
  %v1770 = vld [vmem:[%s5 + $0x28] sm:$0xff]
  %v1771 = vld [vmem:[%s5 + $0x30] sm:$0xff]
  %v1772 = vld [vmem:[%s5 + $0x38] sm:$0xff]
  %v1773 = vld [vmem:[%s5 + $0x40] sm:$0xff]
  %v1774 = vld [vmem:[%s5 + $0x48] sm:$0xff]
  %v1775 = vld [vmem:[%s5 + $0x50] sm:$0xff]
  %v1776 = vld [vmem:[%s5 + $0x58] sm:$0xff]
  %v1777 = vld [vmem:[%s5 + $0x60] sm:$0xff]
  %v1778 = vld [vmem:[%s5 + $0x68] sm:$0xff]
  %v1779 = vld [vmem:[%s5 + $0x70] sm:$0xff]
  %v1780 = vld [vmem:[%s5 + $0x78] sm:$0xff]
  %v1781 = vld [vmem:[%s5 + $0x80] sm:$0xff]
  %v1782 = vld [vmem:[%s5 + $0x88] sm:$0xff]
  %v1783 = vld [vmem:[%s5 + $0x90] sm:$0xff]
  %v1784 = vld [vmem:[%s5 + $0x98] sm:$0xff]
  %v1785 = vld [vmem:[%s5 + $0xa0] sm:$0xff]
  %v1786 = vld [vmem:[%s5 + $0xa8] sm:$0xff]
  %v1787 = vld [vmem:[%s5 + $0xb0] sm:$0xff]
  %v1788 = vld [vmem:[%s5 + $0xb8] sm:$0xff]
  %v1789 = vld [vmem:[%s5 + $0xc0] sm:$0xff]
  %v1790 = vld [vmem:[%s5 + $0xc8] sm:$0xff]
  %v1791 = vld [vmem:[%s5 + $0xd0] sm:$0xff]
  %v1792 = vld [vmem:[%s5 + $0xd8] sm:$0xff]
  %v1793 = vld [vmem:[%s5 + $0xe0] sm:$0xff]
  %v1794 = vld [vmem:[%s5 + $0xe8] sm:$0xff]
  %v1795 = vld [vmem:[%s5 + $0xf0] sm:$0xff]
  %v1796 = vld [vmem:[%s5 + $0xf8] sm:$0xff]
  %v1797 = vld [vmem:[%s5 + $0x100] sm:$0xff]
  %v1798 = vld [vmem:[%s5 + $0x108] sm:$0xff]
  %v1799 = vld [vmem:[%s5 + $0x110] sm:$0xff]
  %v1800 = vld [vmem:[%s5 + $0x118] sm:$0xff]
  %v1801 = vld [vmem:[%s6] sm:$0xff]
  %v1802 = vld [vmem:[%s6 + $0x8] sm:$0xff]
  %v1803 = vld [vmem:[%s6 + $0x10] sm:$0xff]
  %v1804 = vld [vmem:[%s6 + $0x18] sm:$0xff]
  %v1805 = vld [vmem:[%s6 + $0x20] sm:$0xff]
  %v1806 = vld [vmem:[%s6 + $0x28] sm:$0xff]
  %v1807 = vld [vmem:[%s6 + $0x30] sm:$0xff]
  %v1808 = vld [vmem:[%s6 + $0x38] sm:$0xff]
  %v1809 = vld [vmem:[%s6 + $0x40] sm:$0xff]
  %1811 = vset.pattern.permute.xlu0 0
  %1812 = vperm.xlu0 %1811, %v1801
  %v1813 = vpop.permute.xlu0 %1812
  %1816 = vset.pattern.permute.xlu0 0
  %1817 = vperm.xlu0 %1816, %v1802
  %v1818 = vpop.permute.xlu0 %1817
  %1821 = vset.pattern.permute.xlu0 0
  %1822 = vperm.xlu0 %1821, %v1803
  %v1823 = vpop.permute.xlu0 %1822
  %1826 = vset.pattern.permute.xlu0 0
  %1827 = vperm.xlu0 %1826, %v1804
  %v1828 = vpop.permute.xlu0 %1827
  %1831 = vset.pattern.permute.xlu0 0
  %1832 = vperm.xlu0 %1831, %v1805
  %v1833 = vpop.permute.xlu0 %1832
  %1836 = vset.pattern.permute.xlu0 0
  %1837 = vperm.xlu0 %1836, %v1806
  %v1838 = vpop.permute.xlu0 %1837
  %1841 = vset.pattern.permute.xlu0 0
  %1842 = vperm.xlu0 %1841, %v1807
  %v1843 = vpop.permute.xlu0 %1842
  %1846 = vset.pattern.permute.xlu0 0
  %1847 = vperm.xlu0 %1846, %v1808
  %v1848 = vpop.permute.xlu0 %1847
  %1851 = vset.pattern.permute.xlu0 0
  %1852 = vperm.xlu0 %1851, %v1809
  %v1853 = vpop.permute.xlu0 %1852
  %1855 = vmatprep.subr.mxu0 %v1668
  %1856 = vmatpush1.msra.mxu0 %v1667
  %1857 = vmatprep.subr.mxu0 %v1666
  %1858 = vmatpush1.msra.mxu0 %v1665
  %1859 = vmatprep.subr.mxu0 %v1664
  %1860 = vmatpush1.msra.mxu0 %v1663
  %1861 = vmatprep.subr.mxu0 %v1662
  %1862 = vmatpush1.msra.mxu0 %v1661
  %1863 = vmatprep.subr.mxu0 %v1660
  %1864 = vmatpush1.msra.mxu0 %v1659
  %1865 = vmatprep.subr.mxu0 %v1658
  %1866 = vmatpush1.msra.mxu0 %v1657
  %1867 = vmatprep.subr.mxu0 %v1656
  %1868 = vmatpush1.msra.mxu0 %v1655
  %1869 = vmatprep.subr.mxu0 %v1654
  %1870 = vmatpush1.msra.mxu0 %v1653
  %1871 = vmatprep.subr.mxu0 %v1652
  %1872 = vmatpush1.msra.mxu0 %v1651
  %1873 = vmatprep.subr.mxu0 %v1650
  %1874 = vmatpush1.msra.mxu0 %v1649
  %1875 = vmatprep.subr.mxu0 %v1648
  %1876 = vmatpush1.msra.mxu0 %v1647
  %1877 = vmatprep.subr.mxu0 %v1646
  %1878 = vmatpush1.msra.mxu0 %v1645
  %1879 = vmatprep.subr.mxu0 %v1644
  %1880 = vmatpush1.msra.mxu0 %v1643
  %1881 = vmatprep.subr.mxu0 %v1642
  %1882 = vmatpush1.msra.mxu0 %v1641
  %1883 = vmatprep.subr.mxu0 %v1640
  %1884 = vmatpush1.msra.mxu0 %v1639
  %1885 = vmatprep.subr.mxu0 %v1638
  %1886 = vmatpush1.msra.mxu0 %v1637
  %1887 = vmatprep.subr.mxu0 %v1700
  %1888 = vmatpush2.msra.mxu0 %v1699
  %1889 = vmatprep.subr.mxu0 %v1698
  %1890 = vmatpush2.msra.mxu0 %v1697
  %1891 = vmatprep.subr.mxu0 %v1696
  %1892 = vmatpush2.msra.mxu0 %v1695
  %1893 = vmatprep.subr.mxu0 %v1694
  %1894 = vmatpush2.msra.mxu0 %v1693
  %1895 = vmatprep.subr.mxu0 %v1692
  %1896 = vmatpush2.msra.mxu0 %v1691
  %1897 = vmatprep.subr.mxu0 %v1690
  %1898 = vmatpush2.msra.mxu0 %v1689
  %1899 = vmatprep.subr.mxu0 %v1688
  %1900 = vmatpush2.msra.mxu0 %v1687
  %1901 = vmatprep.subr.mxu0 %v1686
  %1902 = vmatpush2.msra.mxu0 %v1685
  %1903 = vmatprep.subr.mxu0 %v1684
  %1904 = vmatpush2.msra.mxu0 %v1683
  %1905 = vmatprep.subr.mxu0 %v1682
  %1906 = vmatpush2.msra.mxu0 %v1681
  %1907 = vmatprep.subr.mxu0 %v1680
  %1908 = vmatpush2.msra.mxu0 %v1679
  %1909 = vmatprep.subr.mxu0 %v1678
  %1910 = vmatpush2.msra.mxu0 %v1677
  %1911 = vmatprep.subr.mxu0 %v1676
  %1912 = vmatpush2.msra.mxu0 %v1675
  %1913 = vmatprep.subr.mxu0 %v1674
  %1914 = vmatpush2.msra.mxu0 %v1673
  %1915 = vmatprep.subr.mxu0 %v1672
  %1916 = vmatpush2.msra.mxu0 %v1671
  %1917 = vmatprep.subr.mxu0 %v1670
  %1918 = vmatpush2.msra.mxu0 %v1669
  %1919 = vmatprep.mubr.f32.mxu0 %v1766
  %1920 = vmatmul.mubr.f32.gmra.mxu0 %v1765
  %v1921 = vpop.f32.mrf.mxu0
  %v1922 = vadd.f32 %v1813, %v1921
  %v1923 = vpop.f32.mrf.mxu0
  %v1924 = vadd.f32 %v1813, %v1923
  %1925 = vmatprep.mubr.f32.mxu0 %v1770
  %1926 = vmatmul.mubr.f32.gmra.mxu0 %v1769
  %v1927 = vpop.f32.mrf.mxu0
  %v1928 = vadd.f32 %v1818, %v1927
  %v1929 = vpop.f32.mrf.mxu0
  %v1930 = vadd.f32 %v1818, %v1929
  %1931 = vmatprep.mubr.f32.mxu0 %v1774
  %1932 = vmatmul.mubr.f32.gmra.mxu0 %v1773
  %v1933 = vpop.f32.mrf.mxu0
  %v1934 = vadd.f32 %v1823, %v1933
  %v1935 = vpop.f32.mrf.mxu0
  %v1936 = vadd.f32 %v1823, %v1935
  %1937 = vmatprep.mubr.f32.mxu0 %v1778
  %1938 = vmatmul.mubr.f32.gmra.mxu0 %v1777
  %v1939 = vpop.f32.mrf.mxu0
  %v1940 = vadd.f32 %v1828, %v1939
  %v1941 = vpop.f32.mrf.mxu0
  %v1942 = vadd.f32 %v1828, %v1941
  %1943 = vmatprep.mubr.f32.mxu0 %v1782
  %1944 = vmatmul.mubr.f32.gmra.mxu0 %v1781
  %v1945 = vpop.f32.mrf.mxu0
  %v1946 = vadd.f32 %v1833, %v1945
  %v1947 = vpop.f32.mrf.mxu0
  %v1948 = vadd.f32 %v1833, %v1947
  %1949 = vmatprep.mubr.f32.mxu0 %v1786
  %1950 = vmatmul.mubr.f32.gmra.mxu0 %v1785
  %v1951 = vpop.f32.mrf.mxu0
  %v1952 = vadd.f32 %v1838, %v1951
  %v1953 = vpop.f32.mrf.mxu0
  %v1954 = vadd.f32 %v1838, %v1953
  %1955 = vmatprep.mubr.f32.mxu0 %v1790
  %1956 = vmatmul.mubr.f32.gmra.mxu0 %v1789
  %v1957 = vpop.f32.mrf.mxu0
  %v1958 = vadd.f32 %v1843, %v1957
  %v1959 = vpop.f32.mrf.mxu0
  %v1960 = vadd.f32 %v1843, %v1959
  %1961 = vmatprep.mubr.f32.mxu0 %v1794
  %1962 = vmatmul.mubr.f32.gmra.mxu0 %v1793
  %v1963 = vpop.f32.mrf.mxu0
  %v1964 = vadd.f32 %v1848, %v1963
  %v1965 = vpop.f32.mrf.mxu0
  %v1966 = vadd.f32 %v1848, %v1965
  %1967 = vmatprep.mubr.f32.mxu0 %v1798
  %1968 = vmatmul.mubr.f32.gmra.mxu0 %v1797
  %v1969 = vpop.f32.mrf.mxu0
  %v1970 = vadd.f32 %v1853, %v1969
  %v1971 = vpop.f32.mrf.mxu0
  %v1972 = vadd.f32 %v1853, %v1971
  %1973 = vdwg.mxu0
  %1974 = vmatprep.subr.mxu0 %v1732
  %1975 = vmatpush1.msra.mxu0 %v1731
  %1976 = vmatprep.subr.mxu0 %v1730
  %1977 = vmatpush1.msra.mxu0 %v1729
  %1978 = vmatprep.subr.mxu0 %v1728
  %1979 = vmatpush1.msra.mxu0 %v1727
  %1980 = vmatprep.subr.mxu0 %v1726
  %1981 = vmatpush1.msra.mxu0 %v1725
  %1982 = vmatprep.subr.mxu0 %v1724
  %1983 = vmatpush1.msra.mxu0 %v1723
  %1984 = vmatprep.subr.mxu0 %v1722
  %1985 = vmatpush1.msra.mxu0 %v1721
  %1986 = vmatprep.subr.mxu0 %v1720
  %1987 = vmatpush1.msra.mxu0 %v1719
  %1988 = vmatprep.subr.mxu0 %v1718
  %1989 = vmatpush1.msra.mxu0 %v1717
  %1990 = vmatprep.subr.mxu0 %v1716
  %1991 = vmatpush1.msra.mxu0 %v1715
  %1992 = vmatprep.subr.mxu0 %v1714
  %1993 = vmatpush1.msra.mxu0 %v1713
  %1994 = vmatprep.subr.mxu0 %v1712
  %1995 = vmatpush1.msra.mxu0 %v1711
  %1996 = vmatprep.subr.mxu0 %v1710
  %1997 = vmatpush1.msra.mxu0 %v1709
  %1998 = vmatprep.subr.mxu0 %v1708
  %1999 = vmatpush1.msra.mxu0 %v1707
  %2000 = vmatprep.subr.mxu0 %v1706
  %2001 = vmatpush1.msra.mxu0 %v1705
  %2002 = vmatprep.subr.mxu0 %v1704
  %2003 = vmatpush1.msra.mxu0 %v1703
  %2004 = vmatprep.subr.mxu0 %v1702
  %2005 = vmatpush1.msra.mxu0 %v1701
  %2006 = vmatprep.subr.mxu0 %v1764
  %2007 = vmatpush2.msra.mxu0 %v1763
  %2008 = vmatprep.subr.mxu0 %v1762
  %2009 = vmatpush2.msra.mxu0 %v1761
  %2010 = vmatprep.subr.mxu0 %v1760
  %2011 = vmatpush2.msra.mxu0 %v1759
  %2012 = vmatprep.subr.mxu0 %v1758
  %2013 = vmatpush2.msra.mxu0 %v1757
  %2014 = vmatprep.subr.mxu0 %v1756
  %2015 = vmatpush2.msra.mxu0 %v1755
  %2016 = vmatprep.subr.mxu0 %v1754
  %2017 = vmatpush2.msra.mxu0 %v1753
  %2018 = vmatprep.subr.mxu0 %v1752
  %2019 = vmatpush2.msra.mxu0 %v1751
  %2020 = vmatprep.subr.mxu0 %v1750
  %2021 = vmatpush2.msra.mxu0 %v1749
  %2022 = vmatprep.subr.mxu0 %v1748
  %2023 = vmatpush2.msra.mxu0 %v1747
  %2024 = vmatprep.subr.mxu0 %v1746
  %2025 = vmatpush2.msra.mxu0 %v1745
  %2026 = vmatprep.subr.mxu0 %v1744
  %2027 = vmatpush2.msra.mxu0 %v1743
  %2028 = vmatprep.subr.mxu0 %v1742
  %2029 = vmatpush2.msra.mxu0 %v1741
  %2030 = vmatprep.subr.mxu0 %v1740
  %2031 = vmatpush2.msra.mxu0 %v1739
  %2032 = vmatprep.subr.mxu0 %v1738
  %2033 = vmatpush2.msra.mxu0 %v1737
  %2034 = vmatprep.subr.mxu0 %v1736
  %2035 = vmatpush2.msra.mxu0 %v1735
  %2036 = vmatprep.subr.mxu0 %v1734
  %2037 = vmatpush2.msra.mxu0 %v1733
  %2038 = vmatprep.mubr.f32.mxu0 %v1768
  %2039 = vmatmul.mubr.f32.gmra.mxu0 %v1767
  %v2040 = vpop.f32.mrf.mxu0
  %v2041 = vadd.f32 %v1922, %v2040
  %v2042 = vpop.f32.mrf.mxu0
  %v2043 = vadd.f32 %v1924, %v2042
  %2044 = vmatprep.mubr.f32.mxu0 %v1772
  %2045 = vmatmul.mubr.f32.gmra.mxu0 %v1771
  %v2046 = vpop.f32.mrf.mxu0
  %v2047 = vadd.f32 %v1928, %v2046
  %v2048 = vpop.f32.mrf.mxu0
  %v2049 = vadd.f32 %v1930, %v2048
  %2050 = vmatprep.mubr.f32.mxu0 %v1776
  %2051 = vmatmul.mubr.f32.gmra.mxu0 %v1775
  %v2052 = vpop.f32.mrf.mxu0
  %v2053 = vadd.f32 %v1934, %v2052
  %v2054 = vpop.f32.mrf.mxu0
  %v2055 = vadd.f32 %v1936, %v2054
  %2056 = vmatprep.mubr.f32.mxu0 %v1780
  %2057 = vmatmul.mubr.f32.gmra.mxu0 %v1779
  %v2058 = vpop.f32.mrf.mxu0
  %v2059 = vadd.f32 %v1940, %v2058
  %v2060 = vpop.f32.mrf.mxu0
  %v2061 = vadd.f32 %v1942, %v2060
  %2062 = vmatprep.mubr.f32.mxu0 %v1784
  %2063 = vmatmul.mubr.f32.gmra.mxu0 %v1783
  %v2064 = vpop.f32.mrf.mxu0
  %v2065 = vadd.f32 %v1946, %v2064
  %v2066 = vpop.f32.mrf.mxu0
  %v2067 = vadd.f32 %v1948, %v2066
  %2068 = vmatprep.mubr.f32.mxu0 %v1788
  %2069 = vmatmul.mubr.f32.gmra.mxu0 %v1787
  %v2070 = vpop.f32.mrf.mxu0
  %v2071 = vadd.f32 %v1952, %v2070
  %v2072 = vpop.f32.mrf.mxu0
  %v2073 = vadd.f32 %v1954, %v2072
  %2074 = vmatprep.mubr.f32.mxu0 %v1792
  %2075 = vmatmul.mubr.f32.gmra.mxu0 %v1791
  %v2076 = vpop.f32.mrf.mxu0
  %v2077 = vadd.f32 %v1958, %v2076
  %v2078 = vpop.f32.mrf.mxu0
  %v2079 = vadd.f32 %v1960, %v2078
  %2080 = vmatprep.mubr.f32.mxu0 %v1796
  %2081 = vmatmul.mubr.f32.gmra.mxu0 %v1795
  %v2082 = vpop.f32.mrf.mxu0
  %v2083 = vadd.f32 %v1964, %v2082
  %v2084 = vpop.f32.mrf.mxu0
  %v2085 = vadd.f32 %v1966, %v2084
  %2086 = vmatprep.mubr.f32.mxu0 %v1800
  %2087 = vmatmul.mubr.f32.gmra.mxu0 %v1799
  %v2088 = vpop.f32.mrf.mxu0
  %v2089 = vadd.f32 %v1970, %v2088
  %v2090 = vpop.f32.mrf.mxu0
  %v2091 = vadd.f32 %v1972, %v2090
  %2092 = vdwg.mxu0
  %2093 = vst [vmem:[%s7] sm:$0xff] %v2041
  %2094 = vst [vmem:[%s7 + $0x8] sm:$0xff] %v2043
  %2095 = vst [vmem:[%s7 + $0x10] sm:$0xff] %v2047
  %2096 = vst [vmem:[%s7 + $0x18] sm:$0xff] %v2049
  %2097 = vst [vmem:[%s7 + $0x20] sm:$0xff] %v2053
  %2098 = vst [vmem:[%s7 + $0x28] sm:$0xff] %v2055
  %2099 = vst [vmem:[%s7 + $0x30] sm:$0xff] %v2059
  %2100 = vst [vmem:[%s7 + $0x38] sm:$0xff] %v2061
  %2101 = vst [vmem:[%s7 + $0x40] sm:$0xff] %v2065
  %2102 = vst [vmem:[%s7 + $0x48] sm:$0xff] %v2067
  %2103 = vst [vmem:[%s7 + $0x50] sm:$0xff] %v2071
  %2104 = vst [vmem:[%s7 + $0x58] sm:$0xff] %v2073
  %2105 = vst [vmem:[%s7 + $0x60] sm:$0xff] %v2077
  %2106 = vst [vmem:[%s7 + $0x68] sm:$0xff] %v2079
  %2107 = vst [vmem:[%s7 + $0x70] sm:$0xff] %v2083
  %2108 = vst [vmem:[%s7 + $0x78] sm:$0xff] %v2085
  %2109 = vst [vmem:[%s7 + $0x80] sm:$0xff] %v2089
  %2110 = vst [vmem:[%s7 + $0x88] sm:$0xff] %v2091
  %s2111 = scalar_lea.vmem %s5, 288
  %v2112 = vld [vmem:[%s2111] sm:$0xff]
  %v2113 = vld [vmem:[%s2111 + $0x8] sm:$0xff]
  %v2114 = vld [vmem:[%s2111 + $0x10] sm:$0xff]
  %v2115 = vld [vmem:[%s2111 + $0x18] sm:$0xff]
  %v2116 = vld [vmem:[%s2111 + $0x20] sm:$0xff]
  %v2117 = vld [vmem:[%s2111 + $0x28] sm:$0xff]
  %v2118 = vld [vmem:[%s2111 + $0x30] sm:$0xff]
  %v2119 = vld [vmem:[%s2111 + $0x38] sm:$0xff]
  %v2120 = vld [vmem:[%s2111 + $0x40] sm:$0xff]
  %v2121 = vld [vmem:[%s2111 + $0x48] sm:$0xff]
  %v2122 = vld [vmem:[%s2111 + $0x50] sm:$0xff]
  %v2123 = vld [vmem:[%s2111 + $0x58] sm:$0xff]
  %v2124 = vld [vmem:[%s2111 + $0x60] sm:$0xff]
  %v2125 = vld [vmem:[%s2111 + $0x68] sm:$0xff]
  %v2126 = vld [vmem:[%s2111 + $0x70] sm:$0xff]
  %v2127 = vld [vmem:[%s2111 + $0x78] sm:$0xff]
  %v2128 = vld [vmem:[%s2111 + $0x80] sm:$0xff]
  %v2129 = vld [vmem:[%s2111 + $0x88] sm:$0xff]
  %v2130 = vld [vmem:[%s2111 + $0x90] sm:$0xff]
  %v2131 = vld [vmem:[%s2111 + $0x98] sm:$0xff]
  %v2132 = vld [vmem:[%s2111 + $0xa0] sm:$0xff]
  %v2133 = vld [vmem:[%s2111 + $0xa8] sm:$0xff]
  %v2134 = vld [vmem:[%s2111 + $0xb0] sm:$0xff]
  %v2135 = vld [vmem:[%s2111 + $0xb8] sm:$0xff]
  %v2136 = vld [vmem:[%s2111 + $0xc0] sm:$0xff]
  %v2137 = vld [vmem:[%s2111 + $0xc8] sm:$0xff]
  %v2138 = vld [vmem:[%s2111 + $0xd0] sm:$0xff]
  %v2139 = vld [vmem:[%s2111 + $0xd8] sm:$0xff]
  %v2140 = vld [vmem:[%s2111 + $0xe0] sm:$0xff]
  %v2141 = vld [vmem:[%s2111 + $0xe8] sm:$0xff]
  %v2142 = vld [vmem:[%s2111 + $0xf0] sm:$0xff]
  %v2143 = vld [vmem:[%s2111 + $0xf8] sm:$0xff]
  %v2144 = vld [vmem:[%s2111 + $0x100] sm:$0xff]
  %v2145 = vld [vmem:[%s2111 + $0x108] sm:$0xff]
  %v2146 = vld [vmem:[%s2111 + $0x110] sm:$0xff]
  %v2147 = vld [vmem:[%s2111 + $0x118] sm:$0xff]
  %s2148 = scalar_lea.vmem %s6, 72
  %v2149 = vld [vmem:[%s2148] sm:$0xff]
  %v2150 = vld [vmem:[%s2148 + $0x8] sm:$0xff]
  %v2151 = vld [vmem:[%s2148 + $0x10] sm:$0xff]
  %v2152 = vld [vmem:[%s2148 + $0x18] sm:$0xff]
  %v2153 = vld [vmem:[%s2148 + $0x20] sm:$0xff]
  %v2154 = vld [vmem:[%s2148 + $0x28] sm:$0xff]
  %v2155 = vld [vmem:[%s2148 + $0x30] sm:$0xff]
  %v2156 = vld [vmem:[%s2148 + $0x38] sm:$0xff]
  %v2157 = vld [vmem:[%s2148 + $0x40] sm:$0xff]
  %2159 = vset.pattern.permute.xlu0 0
  %2160 = vperm.xlu0 %2159, %v2149
  %v2161 = vpop.permute.xlu0 %2160
  %2164 = vset.pattern.permute.xlu0 0
  %2165 = vperm.xlu0 %2164, %v2150
  %v2166 = vpop.permute.xlu0 %2165
  %2169 = vset.pattern.permute.xlu0 0
  %2170 = vperm.xlu0 %2169, %v2151
  %v2171 = vpop.permute.xlu0 %2170
  %2174 = vset.pattern.permute.xlu0 0
  %2175 = vperm.xlu0 %2174, %v2152
  %v2176 = vpop.permute.xlu0 %2175
  %2179 = vset.pattern.permute.xlu0 0
  %2180 = vperm.xlu0 %2179, %v2153
  %v2181 = vpop.permute.xlu0 %2180
  %2184 = vset.pattern.permute.xlu0 0
  %2185 = vperm.xlu0 %2184, %v2154
  %v2186 = vpop.permute.xlu0 %2185
  %2189 = vset.pattern.permute.xlu0 0
  %2190 = vperm.xlu0 %2189, %v2155
  %v2191 = vpop.permute.xlu0 %2190
  %2194 = vset.pattern.permute.xlu0 0
  %2195 = vperm.xlu0 %2194, %v2156
  %v2196 = vpop.permute.xlu0 %2195
  %2199 = vset.pattern.permute.xlu0 0
  %2200 = vperm.xlu0 %2199, %v2157
  %v2201 = vpop.permute.xlu0 %2200
  %2203 = vmatprep.subr.mxu0 %v1668
  %2204 = vmatpush1.msra.mxu0 %v1667
  %2205 = vmatprep.subr.mxu0 %v1666
  %2206 = vmatpush1.msra.mxu0 %v1665
  %2207 = vmatprep.subr.mxu0 %v1664
  %2208 = vmatpush1.msra.mxu0 %v1663
  %2209 = vmatprep.subr.mxu0 %v1662
  %2210 = vmatpush1.msra.mxu0 %v1661
  %2211 = vmatprep.subr.mxu0 %v1660
  %2212 = vmatpush1.msra.mxu0 %v1659
  %2213 = vmatprep.subr.mxu0 %v1658
  %2214 = vmatpush1.msra.mxu0 %v1657
  %2215 = vmatprep.subr.mxu0 %v1656
  %2216 = vmatpush1.msra.mxu0 %v1655
  %2217 = vmatprep.subr.mxu0 %v1654
  %2218 = vmatpush1.msra.mxu0 %v1653
  %2219 = vmatprep.subr.mxu0 %v1652
  %2220 = vmatpush1.msra.mxu0 %v1651
  %2221 = vmatprep.subr.mxu0 %v1650
  %2222 = vmatpush1.msra.mxu0 %v1649
  %2223 = vmatprep.subr.mxu0 %v1648
  %2224 = vmatpush1.msra.mxu0 %v1647
  %2225 = vmatprep.subr.mxu0 %v1646
  %2226 = vmatpush1.msra.mxu0 %v1645
  %2227 = vmatprep.subr.mxu0 %v1644
  %2228 = vmatpush1.msra.mxu0 %v1643
  %2229 = vmatprep.subr.mxu0 %v1642
  %2230 = vmatpush1.msra.mxu0 %v1641
  %2231 = vmatprep.subr.mxu0 %v1640
  %2232 = vmatpush1.msra.mxu0 %v1639
  %2233 = vmatprep.subr.mxu0 %v1638
  %2234 = vmatpush1.msra.mxu0 %v1637
  %2235 = vmatprep.subr.mxu0 %v1700
  %2236 = vmatpush2.msra.mxu0 %v1699
  %2237 = vmatprep.subr.mxu0 %v1698
  %2238 = vmatpush2.msra.mxu0 %v1697
  %2239 = vmatprep.subr.mxu0 %v1696
  %2240 = vmatpush2.msra.mxu0 %v1695
  %2241 = vmatprep.subr.mxu0 %v1694
  %2242 = vmatpush2.msra.mxu0 %v1693
  %2243 = vmatprep.subr.mxu0 %v1692
  %2244 = vmatpush2.msra.mxu0 %v1691
  %2245 = vmatprep.subr.mxu0 %v1690
  %2246 = vmatpush2.msra.mxu0 %v1689
  %2247 = vmatprep.subr.mxu0 %v1688
  %2248 = vmatpush2.msra.mxu0 %v1687
  %2249 = vmatprep.subr.mxu0 %v1686
  %2250 = vmatpush2.msra.mxu0 %v1685
  %2251 = vmatprep.subr.mxu0 %v1684
  %2252 = vmatpush2.msra.mxu0 %v1683
  %2253 = vmatprep.subr.mxu0 %v1682
  %2254 = vmatpush2.msra.mxu0 %v1681
  %2255 = vmatprep.subr.mxu0 %v1680
  %2256 = vmatpush2.msra.mxu0 %v1679
  %2257 = vmatprep.subr.mxu0 %v1678
  %2258 = vmatpush2.msra.mxu0 %v1677
  %2259 = vmatprep.subr.mxu0 %v1676
  %2260 = vmatpush2.msra.mxu0 %v1675
  %2261 = vmatprep.subr.mxu0 %v1674
  %2262 = vmatpush2.msra.mxu0 %v1673
  %2263 = vmatprep.subr.mxu0 %v1672
  %2264 = vmatpush2.msra.mxu0 %v1671
  %2265 = vmatprep.subr.mxu0 %v1670
  %2266 = vmatpush2.msra.mxu0 %v1669
  %2267 = vmatprep.mubr.f32.mxu0 %v2113
  %2268 = vmatmul.mubr.f32.gmra.mxu0 %v2112
  %v2269 = vpop.f32.mrf.mxu0
  %v2270 = vadd.f32 %v2161, %v2269
  %v2271 = vpop.f32.mrf.mxu0
  %v2272 = vadd.f32 %v2161, %v2271
  %2273 = vmatprep.mubr.f32.mxu0 %v2117
  %2274 = vmatmul.mubr.f32.gmra.mxu0 %v2116
  %v2275 = vpop.f32.mrf.mxu0
  %v2276 = vadd.f32 %v2166, %v2275
  %v2277 = vpop.f32.mrf.mxu0
  %v2278 = vadd.f32 %v2166, %v2277
  %2279 = vmatprep.mubr.f32.mxu0 %v2121
  %2280 = vmatmul.mubr.f32.gmra.mxu0 %v2120
  %v2281 = vpop.f32.mrf.mxu0
  %v2282 = vadd.f32 %v2171, %v2281
  %v2283 = vpop.f32.mrf.mxu0
  %v2284 = vadd.f32 %v2171, %v2283
  %2285 = vmatprep.mubr.f32.mxu0 %v2125
  %2286 = vmatmul.mubr.f32.gmra.mxu0 %v2124
  %v2287 = vpop.f32.mrf.mxu0
  %v2288 = vadd.f32 %v2176, %v2287
  %v2289 = vpop.f32.mrf.mxu0
  %v2290 = vadd.f32 %v2176, %v2289
  %2291 = vmatprep.mubr.f32.mxu0 %v2129
  %2292 = vmatmul.mubr.f32.gmra.mxu0 %v2128
  %v2293 = vpop.f32.mrf.mxu0
  %v2294 = vadd.f32 %v2181, %v2293
  %v2295 = vpop.f32.mrf.mxu0
  %v2296 = vadd.f32 %v2181, %v2295
  %2297 = vmatprep.mubr.f32.mxu0 %v2133
  %2298 = vmatmul.mubr.f32.gmra.mxu0 %v2132
  %v2299 = vpop.f32.mrf.mxu0
  %v2300 = vadd.f32 %v2186, %v2299
  %v2301 = vpop.f32.mrf.mxu0
  %v2302 = vadd.f32 %v2186, %v2301
  %2303 = vmatprep.mubr.f32.mxu0 %v2137
  %2304 = vmatmul.mubr.f32.gmra.mxu0 %v2136
  %v2305 = vpop.f32.mrf.mxu0
  %v2306 = vadd.f32 %v2191, %v2305
  %v2307 = vpop.f32.mrf.mxu0
  %v2308 = vadd.f32 %v2191, %v2307
  %2309 = vmatprep.mubr.f32.mxu0 %v2141
  %2310 = vmatmul.mubr.f32.gmra.mxu0 %v2140
  %v2311 = vpop.f32.mrf.mxu0
  %v2312 = vadd.f32 %v2196, %v2311
  %v2313 = vpop.f32.mrf.mxu0
  %v2314 = vadd.f32 %v2196, %v2313
  %2315 = vmatprep.mubr.f32.mxu0 %v2145
  %2316 = vmatmul.mubr.f32.gmra.mxu0 %v2144
  %v2317 = vpop.f32.mrf.mxu0
  %v2318 = vadd.f32 %v2201, %v2317
  %v2319 = vpop.f32.mrf.mxu0
  %v2320 = vadd.f32 %v2201, %v2319
  %2321 = vdwg.mxu0
  %2322 = vmatprep.subr.mxu0 %v1732
  %2323 = vmatpush1.msra.mxu0 %v1731
  %2324 = vmatprep.subr.mxu0 %v1730
  %2325 = vmatpush1.msra.mxu0 %v1729
  %2326 = vmatprep.subr.mxu0 %v1728
  %2327 = vmatpush1.msra.mxu0 %v1727
  %2328 = vmatprep.subr.mxu0 %v1726
  %2329 = vmatpush1.msra.mxu0 %v1725
  %2330 = vmatprep.subr.mxu0 %v1724
  %2331 = vmatpush1.msra.mxu0 %v1723
  %2332 = vmatprep.subr.mxu0 %v1722
  %2333 = vmatpush1.msra.mxu0 %v1721
  %2334 = vmatprep.subr.mxu0 %v1720
  %2335 = vmatpush1.msra.mxu0 %v1719
  %2336 = vmatprep.subr.mxu0 %v1718
  %2337 = vmatpush1.msra.mxu0 %v1717
  %2338 = vmatprep.subr.mxu0 %v1716
  %2339 = vmatpush1.msra.mxu0 %v1715
  %2340 = vmatprep.subr.mxu0 %v1714
  %2341 = vmatpush1.msra.mxu0 %v1713
  %2342 = vmatprep.subr.mxu0 %v1712
  %2343 = vmatpush1.msra.mxu0 %v1711
  %2344 = vmatprep.subr.mxu0 %v1710
  %2345 = vmatpush1.msra.mxu0 %v1709
  %2346 = vmatprep.subr.mxu0 %v1708
  %2347 = vmatpush1.msra.mxu0 %v1707
  %2348 = vmatprep.subr.mxu0 %v1706
  %2349 = vmatpush1.msra.mxu0 %v1705
  %2350 = vmatprep.subr.mxu0 %v1704
  %2351 = vmatpush1.msra.mxu0 %v1703
  %2352 = vmatprep.subr.mxu0 %v1702
  %2353 = vmatpush1.msra.mxu0 %v1701
  %2354 = vmatprep.subr.mxu0 %v1764
  %2355 = vmatpush2.msra.mxu0 %v1763
  %2356 = vmatprep.subr.mxu0 %v1762
  %2357 = vmatpush2.msra.mxu0 %v1761
  %2358 = vmatprep.subr.mxu0 %v1760
  %2359 = vmatpush2.msra.mxu0 %v1759
  %2360 = vmatprep.subr.mxu0 %v1758
  %2361 = vmatpush2.msra.mxu0 %v1757
  %2362 = vmatprep.subr.mxu0 %v1756
  %2363 = vmatpush2.msra.mxu0 %v1755
  %2364 = vmatprep.subr.mxu0 %v1754
  %2365 = vmatpush2.msra.mxu0 %v1753
  %2366 = vmatprep.subr.mxu0 %v1752
  %2367 = vmatpush2.msra.mxu0 %v1751
  %2368 = vmatprep.subr.mxu0 %v1750
  %2369 = vmatpush2.msra.mxu0 %v1749
  %2370 = vmatprep.subr.mxu0 %v1748
  %2371 = vmatpush2.msra.mxu0 %v1747
  %2372 = vmatprep.subr.mxu0 %v1746
  %2373 = vmatpush2.msra.mxu0 %v1745
  %2374 = vmatprep.subr.mxu0 %v1744
  %2375 = vmatpush2.msra.mxu0 %v1743
  %2376 = vmatprep.subr.mxu0 %v1742
  %2377 = vmatpush2.msra.mxu0 %v1741
  %2378 = vmatprep.subr.mxu0 %v1740
  %2379 = vmatpush2.msra.mxu0 %v1739
  %2380 = vmatprep.subr.mxu0 %v1738
  %2381 = vmatpush2.msra.mxu0 %v1737
  %2382 = vmatprep.subr.mxu0 %v1736
  %2383 = vmatpush2.msra.mxu0 %v1735
  %2384 = vmatprep.subr.mxu0 %v1734
  %2385 = vmatpush2.msra.mxu0 %v1733
  %2386 = vmatprep.mubr.f32.mxu0 %v2115
  %2387 = vmatmul.mubr.f32.gmra.mxu0 %v2114
  %v2388 = vpop.f32.mrf.mxu0
  %v2389 = vadd.f32 %v2270, %v2388
  %v2390 = vpop.f32.mrf.mxu0
  %v2391 = vadd.f32 %v2272, %v2390
  %2392 = vmatprep.mubr.f32.mxu0 %v2119
  %2393 = vmatmul.mubr.f32.gmra.mxu0 %v2118
  %v2394 = vpop.f32.mrf.mxu0
  %v2395 = vadd.f32 %v2276, %v2394
  %v2396 = vpop.f32.mrf.mxu0
  %v2397 = vadd.f32 %v2278, %v2396
  %2398 = vmatprep.mubr.f32.mxu0 %v2123
  %2399 = vmatmul.mubr.f32.gmra.mxu0 %v2122
  %v2400 = vpop.f32.mrf.mxu0
  %v2401 = vadd.f32 %v2282, %v2400
  %v2402 = vpop.f32.mrf.mxu0
  %v2403 = vadd.f32 %v2284, %v2402
  %2404 = vmatprep.mubr.f32.mxu0 %v2127
  %2405 = vmatmul.mubr.f32.gmra.mxu0 %v2126
  %v2406 = vpop.f32.mrf.mxu0
  %v2407 = vadd.f32 %v2288, %v2406
  %v2408 = vpop.f32.mrf.mxu0
  %v2409 = vadd.f32 %v2290, %v2408
  %2410 = vmatprep.mubr.f32.mxu0 %v2131
  %2411 = vmatmul.mubr.f32.gmra.mxu0 %v2130
  %v2412 = vpop.f32.mrf.mxu0
  %v2413 = vadd.f32 %v2294, %v2412
  %v2414 = vpop.f32.mrf.mxu0
  %v2415 = vadd.f32 %v2296, %v2414
  %2416 = vmatprep.mubr.f32.mxu0 %v2135
  %2417 = vmatmul.mubr.f32.gmra.mxu0 %v2134
  %v2418 = vpop.f32.mrf.mxu0
  %v2419 = vadd.f32 %v2300, %v2418
  %v2420 = vpop.f32.mrf.mxu0
  %v2421 = vadd.f32 %v2302, %v2420
  %2422 = vmatprep.mubr.f32.mxu0 %v2139
  %2423 = vmatmul.mubr.f32.gmra.mxu0 %v2138
  %v2424 = vpop.f32.mrf.mxu0
  %v2425 = vadd.f32 %v2306, %v2424
  %v2426 = vpop.f32.mrf.mxu0
  %v2427 = vadd.f32 %v2308, %v2426
  %2428 = vmatprep.mubr.f32.mxu0 %v2143
  %2429 = vmatmul.mubr.f32.gmra.mxu0 %v2142
  %v2430 = vpop.f32.mrf.mxu0
  %v2431 = vadd.f32 %v2312, %v2430
  %v2432 = vpop.f32.mrf.mxu0
  %v2433 = vadd.f32 %v2314, %v2432
  %2434 = vmatprep.mubr.f32.mxu0 %v2147
  %2435 = vmatmul.mubr.f32.gmra.mxu0 %v2146
  %v2436 = vpop.f32.mrf.mxu0
  %v2437 = vadd.f32 %v2318, %v2436
  %v2438 = vpop.f32.mrf.mxu0
  %v2439 = vadd.f32 %v2320, %v2438
  %2440 = vdwg.mxu0
  %s2441 = scalar_lea.vmem %s7, 144
  %2442 = vst [vmem:[%s2441] sm:$0xff] %v2389
  %2443 = vst [vmem:[%s2441 + $0x8] sm:$0xff] %v2391
  %2444 = vst [vmem:[%s2441 + $0x10] sm:$0xff] %v2395
  %2445 = vst [vmem:[%s2441 + $0x18] sm:$0xff] %v2397
  %2446 = vst [vmem:[%s2441 + $0x20] sm:$0xff] %v2401
  %2447 = vst [vmem:[%s2441 + $0x28] sm:$0xff] %v2403
  %2448 = vst [vmem:[%s2441 + $0x30] sm:$0xff] %v2407
  %2449 = vst [vmem:[%s2441 + $0x38] sm:$0xff] %v2409
  %2450 = vst [vmem:[%s2441 + $0x40] sm:$0xff] %v2413
  %2451 = vst [vmem:[%s2441 + $0x48] sm:$0xff] %v2415
  %2452 = vst [vmem:[%s2441 + $0x50] sm:$0xff] %v2419
  %2453 = vst [vmem:[%s2441 + $0x58] sm:$0xff] %v2421
  %2454 = vst [vmem:[%s2441 + $0x60] sm:$0xff] %v2425
  %2455 = vst [vmem:[%s2441 + $0x68] sm:$0xff] %v2427
  %2456 = vst [vmem:[%s2441 + $0x70] sm:$0xff] %v2431
  %2457 = vst [vmem:[%s2441 + $0x78] sm:$0xff] %v2433
  %2458 = vst [vmem:[%s2441 + $0x80] sm:$0xff] %v2437
  %2459 = vst [vmem:[%s2441 + $0x88] sm:$0xff] %v2439
  %s2460 = scalar_lea.vmem %s5, 576
  %v2461 = vld [vmem:[%s2460] sm:$0xff]
  %v2462 = vld [vmem:[%s2460 + $0x8] sm:$0xff]
  %v2463 = vld [vmem:[%s2460 + $0x10] sm:$0xff]
  %v2464 = vld [vmem:[%s2460 + $0x18] sm:$0xff]
  %v2465 = vld [vmem:[%s2460 + $0x20] sm:$0xff]
  %v2466 = vld [vmem:[%s2460 + $0x28] sm:$0xff]
  %v2467 = vld [vmem:[%s2460 + $0x30] sm:$0xff]
  %v2468 = vld [vmem:[%s2460 + $0x38] sm:$0xff]
  %v2469 = vld [vmem:[%s2460 + $0x40] sm:$0xff]
  %v2470 = vld [vmem:[%s2460 + $0x48] sm:$0xff]
  %v2471 = vld [vmem:[%s2460 + $0x50] sm:$0xff]
  %v2472 = vld [vmem:[%s2460 + $0x58] sm:$0xff]
  %v2473 = vld [vmem:[%s2460 + $0x60] sm:$0xff]
  %v2474 = vld [vmem:[%s2460 + $0x68] sm:$0xff]
  %v2475 = vld [vmem:[%s2460 + $0x70] sm:$0xff]
  %v2476 = vld [vmem:[%s2460 + $0x78] sm:$0xff]
  %v2477 = vld [vmem:[%s2460 + $0x80] sm:$0xff]
  %v2478 = vld [vmem:[%s2460 + $0x88] sm:$0xff]
  %v2479 = vld [vmem:[%s2460 + $0x90] sm:$0xff]
  %v2480 = vld [vmem:[%s2460 + $0x98] sm:$0xff]
  %v2481 = vld [vmem:[%s2460 + $0xa0] sm:$0xff]
  %v2482 = vld [vmem:[%s2460 + $0xa8] sm:$0xff]
  %v2483 = vld [vmem:[%s2460 + $0xb0] sm:$0xff]
  %v2484 = vld [vmem:[%s2460 + $0xb8] sm:$0xff]
  %v2485 = vld [vmem:[%s2460 + $0xc0] sm:$0xff]
  %v2486 = vld [vmem:[%s2460 + $0xc8] sm:$0xff]
  %v2487 = vld [vmem:[%s2460 + $0xd0] sm:$0xff]
  %v2488 = vld [vmem:[%s2460 + $0xd8] sm:$0xff]
  %v2489 = vld [vmem:[%s2460 + $0xe0] sm:$0xff]
  %v2490 = vld [vmem:[%s2460 + $0xe8] sm:$0xff]
  %v2491 = vld [vmem:[%s2460 + $0xf0] sm:$0xff]
  %v2492 = vld [vmem:[%s2460 + $0xf8] sm:$0xff]
  %v2493 = vld [vmem:[%s2460 + $0x100] sm:$0xff]
  %v2494 = vld [vmem:[%s2460 + $0x108] sm:$0xff]
  %v2495 = vld [vmem:[%s2460 + $0x110] sm:$0xff]
  %v2496 = vld [vmem:[%s2460 + $0x118] sm:$0xff]
  %s2497 = scalar_lea.vmem %s6, 144
  %v2498 = vld [vmem:[%s2497] sm:$0xff]
  %v2499 = vld [vmem:[%s2497 + $0x8] sm:$0xff]
  %v2500 = vld [vmem:[%s2497 + $0x10] sm:$0xff]
  %v2501 = vld [vmem:[%s2497 + $0x18] sm:$0xff]
  %v2502 = vld [vmem:[%s2497 + $0x20] sm:$0xff]
  %v2503 = vld [vmem:[%s2497 + $0x28] sm:$0xff]
  %v2504 = vld [vmem:[%s2497 + $0x30] sm:$0xff]
  %v2505 = vld [vmem:[%s2497 + $0x38] sm:$0xff]
  %v2506 = vld [vmem:[%s2497 + $0x40] sm:$0xff]
  %2508 = vset.pattern.permute.xlu0 0
  %2509 = vperm.xlu0 %2508, %v2498
  %v2510 = vpop.permute.xlu0 %2509
  %2513 = vset.pattern.permute.xlu0 0
  %2514 = vperm.xlu0 %2513, %v2499
  %v2515 = vpop.permute.xlu0 %2514
  %2518 = vset.pattern.permute.xlu0 0
  %2519 = vperm.xlu0 %2518, %v2500
  %v2520 = vpop.permute.xlu0 %2519
  %2523 = vset.pattern.permute.xlu0 0
  %2524 = vperm.xlu0 %2523, %v2501
  %v2525 = vpop.permute.xlu0 %2524
  %2528 = vset.pattern.permute.xlu0 0
  %2529 = vperm.xlu0 %2528, %v2502
  %v2530 = vpop.permute.xlu0 %2529
  %2533 = vset.pattern.permute.xlu0 0
  %2534 = vperm.xlu0 %2533, %v2503
  %v2535 = vpop.permute.xlu0 %2534
  %2538 = vset.pattern.permute.xlu0 0
  %2539 = vperm.xlu0 %2538, %v2504
  %v2540 = vpop.permute.xlu0 %2539
  %2543 = vset.pattern.permute.xlu0 0
  %2544 = vperm.xlu0 %2543, %v2505
  %v2545 = vpop.permute.xlu0 %2544
  %2548 = vset.pattern.permute.xlu0 0
  %2549 = vperm.xlu0 %2548, %v2506
  %v2550 = vpop.permute.xlu0 %2549
  %2552 = vmatprep.subr.mxu0 %v1668
  %2553 = vmatpush1.msra.mxu0 %v1667
  %2554 = vmatprep.subr.mxu0 %v1666
  %2555 = vmatpush1.msra.mxu0 %v1665
  %2556 = vmatprep.subr.mxu0 %v1664
  %2557 = vmatpush1.msra.mxu0 %v1663
  %2558 = vmatprep.subr.mxu0 %v1662
  %2559 = vmatpush1.msra.mxu0 %v1661
  %2560 = vmatprep.subr.mxu0 %v1660
  %2561 = vmatpush1.msra.mxu0 %v1659
  %2562 = vmatprep.subr.mxu0 %v1658
  %2563 = vmatpush1.msra.mxu0 %v1657
  %2564 = vmatprep.subr.mxu0 %v1656
  %2565 = vmatpush1.msra.mxu0 %v1655
  %2566 = vmatprep.subr.mxu0 %v1654
  %2567 = vmatpush1.msra.mxu0 %v1653
  %2568 = vmatprep.subr.mxu0 %v1652
  %2569 = vmatpush1.msra.mxu0 %v1651
  %2570 = vmatprep.subr.mxu0 %v1650
  %2571 = vmatpush1.msra.mxu0 %v1649
  %2572 = vmatprep.subr.mxu0 %v1648
  %2573 = vmatpush1.msra.mxu0 %v1647
  %2574 = vmatprep.subr.mxu0 %v1646
  %2575 = vmatpush1.msra.mxu0 %v1645
  %2576 = vmatprep.subr.mxu0 %v1644
  %2577 = vmatpush1.msra.mxu0 %v1643
  %2578 = vmatprep.subr.mxu0 %v1642
  %2579 = vmatpush1.msra.mxu0 %v1641
  %2580 = vmatprep.subr.mxu0 %v1640
  %2581 = vmatpush1.msra.mxu0 %v1639
  %2582 = vmatprep.subr.mxu0 %v1638
  %2583 = vmatpush1.msra.mxu0 %v1637
  %2584 = vmatprep.subr.mxu0 %v1700
  %2585 = vmatpush2.msra.mxu0 %v1699
  %2586 = vmatprep.subr.mxu0 %v1698
  %2587 = vmatpush2.msra.mxu0 %v1697
  %2588 = vmatprep.subr.mxu0 %v1696
  %2589 = vmatpush2.msra.mxu0 %v1695
  %2590 = vmatprep.subr.mxu0 %v1694
  %2591 = vmatpush2.msra.mxu0 %v1693
  %2592 = vmatprep.subr.mxu0 %v1692
  %2593 = vmatpush2.msra.mxu0 %v1691
  %2594 = vmatprep.subr.mxu0 %v1690
  %2595 = vmatpush2.msra.mxu0 %v1689
  %2596 = vmatprep.subr.mxu0 %v1688
  %2597 = vmatpush2.msra.mxu0 %v1687
  %2598 = vmatprep.subr.mxu0 %v1686
  %2599 = vmatpush2.msra.mxu0 %v1685
  %2600 = vmatprep.subr.mxu0 %v1684
  %2601 = vmatpush2.msra.mxu0 %v1683
  %2602 = vmatprep.subr.mxu0 %v1682
  %2603 = vmatpush2.msra.mxu0 %v1681
  %2604 = vmatprep.subr.mxu0 %v1680
  %2605 = vmatpush2.msra.mxu0 %v1679
  %2606 = vmatprep.subr.mxu0 %v1678
  %2607 = vmatpush2.msra.mxu0 %v1677
  %2608 = vmatprep.subr.mxu0 %v1676
  %2609 = vmatpush2.msra.mxu0 %v1675
  %2610 = vmatprep.subr.mxu0 %v1674
  %2611 = vmatpush2.msra.mxu0 %v1673
  %2612 = vmatprep.subr.mxu0 %v1672
  %2613 = vmatpush2.msra.mxu0 %v1671
  %2614 = vmatprep.subr.mxu0 %v1670
  %2615 = vmatpush2.msra.mxu0 %v1669
  %2616 = vmatprep.mubr.f32.mxu0 %v2462
  %2617 = vmatmul.mubr.f32.gmra.mxu0 %v2461
  %v2618 = vpop.f32.mrf.mxu0
  %v2619 = vadd.f32 %v2510, %v2618
  %v2620 = vpop.f32.mrf.mxu0
  %v2621 = vadd.f32 %v2510, %v2620
  %2622 = vmatprep.mubr.f32.mxu0 %v2466
  %2623 = vmatmul.mubr.f32.gmra.mxu0 %v2465
  %v2624 = vpop.f32.mrf.mxu0
  %v2625 = vadd.f32 %v2515, %v2624
  %v2626 = vpop.f32.mrf.mxu0
  %v2627 = vadd.f32 %v2515, %v2626
  %2628 = vmatprep.mubr.f32.mxu0 %v2470
  %2629 = vmatmul.mubr.f32.gmra.mxu0 %v2469
  %v2630 = vpop.f32.mrf.mxu0
  %v2631 = vadd.f32 %v2520, %v2630
  %v2632 = vpop.f32.mrf.mxu0
  %v2633 = vadd.f32 %v2520, %v2632
  %2634 = vmatprep.mubr.f32.mxu0 %v2474
  %2635 = vmatmul.mubr.f32.gmra.mxu0 %v2473
  %v2636 = vpop.f32.mrf.mxu0
  %v2637 = vadd.f32 %v2525, %v2636
  %v2638 = vpop.f32.mrf.mxu0
  %v2639 = vadd.f32 %v2525, %v2638
  %2640 = vmatprep.mubr.f32.mxu0 %v2478
  %2641 = vmatmul.mubr.f32.gmra.mxu0 %v2477
  %v2642 = vpop.f32.mrf.mxu0
  %v2643 = vadd.f32 %v2530, %v2642
  %v2644 = vpop.f32.mrf.mxu0
  %v2645 = vadd.f32 %v2530, %v2644
  %2646 = vmatprep.mubr.f32.mxu0 %v2482
  %2647 = vmatmul.mubr.f32.gmra.mxu0 %v2481
  %v2648 = vpop.f32.mrf.mxu0
  %v2649 = vadd.f32 %v2535, %v2648
  %v2650 = vpop.f32.mrf.mxu0
  %v2651 = vadd.f32 %v2535, %v2650
  %2652 = vmatprep.mubr.f32.mxu0 %v2486
  %2653 = vmatmul.mubr.f32.gmra.mxu0 %v2485
  %v2654 = vpop.f32.mrf.mxu0
  %v2655 = vadd.f32 %v2540, %v2654
  %v2656 = vpop.f32.mrf.mxu0
  %v2657 = vadd.f32 %v2540, %v2656
  %2658 = vmatprep.mubr.f32.mxu0 %v2490
  %2659 = vmatmul.mubr.f32.gmra.mxu0 %v2489
  %v2660 = vpop.f32.mrf.mxu0
  %v2661 = vadd.f32 %v2545, %v2660
  %v2662 = vpop.f32.mrf.mxu0
  %v2663 = vadd.f32 %v2545, %v2662
  %2664 = vmatprep.mubr.f32.mxu0 %v2494
  %2665 = vmatmul.mubr.f32.gmra.mxu0 %v2493
  %v2666 = vpop.f32.mrf.mxu0
  %v2667 = vadd.f32 %v2550, %v2666
  %v2668 = vpop.f32.mrf.mxu0
  %v2669 = vadd.f32 %v2550, %v2668
  %2670 = vdwg.mxu0
  %2671 = vmatprep.subr.mxu0 %v1732
  %2672 = vmatpush1.msra.mxu0 %v1731
  %2673 = vmatprep.subr.mxu0 %v1730
  %2674 = vmatpush1.msra.mxu0 %v1729
  %2675 = vmatprep.subr.mxu0 %v1728
  %2676 = vmatpush1.msra.mxu0 %v1727
  %2677 = vmatprep.subr.mxu0 %v1726
  %2678 = vmatpush1.msra.mxu0 %v1725
  %2679 = vmatprep.subr.mxu0 %v1724
  %2680 = vmatpush1.msra.mxu0 %v1723
  %2681 = vmatprep.subr.mxu0 %v1722
  %2682 = vmatpush1.msra.mxu0 %v1721
  %2683 = vmatprep.subr.mxu0 %v1720
  %2684 = vmatpush1.msra.mxu0 %v1719
  %2685 = vmatprep.subr.mxu0 %v1718
  %2686 = vmatpush1.msra.mxu0 %v1717
  %2687 = vmatprep.subr.mxu0 %v1716
  %2688 = vmatpush1.msra.mxu0 %v1715
  %2689 = vmatprep.subr.mxu0 %v1714
  %2690 = vmatpush1.msra.mxu0 %v1713
  %2691 = vmatprep.subr.mxu0 %v1712
  %2692 = vmatpush1.msra.mxu0 %v1711
  %2693 = vmatprep.subr.mxu0 %v1710
  %2694 = vmatpush1.msra.mxu0 %v1709
  %2695 = vmatprep.subr.mxu0 %v1708
  %2696 = vmatpush1.msra.mxu0 %v1707
  %2697 = vmatprep.subr.mxu0 %v1706
  %2698 = vmatpush1.msra.mxu0 %v1705
  %2699 = vmatprep.subr.mxu0 %v1704
  %2700 = vmatpush1.msra.mxu0 %v1703
  %2701 = vmatprep.subr.mxu0 %v1702
  %2702 = vmatpush1.msra.mxu0 %v1701
  %2703 = vmatprep.subr.mxu0 %v1764
  %2704 = vmatpush2.msra.mxu0 %v1763
  %2705 = vmatprep.subr.mxu0 %v1762
  %2706 = vmatpush2.msra.mxu0 %v1761
  %2707 = vmatprep.subr.mxu0 %v1760
  %2708 = vmatpush2.msra.mxu0 %v1759
  %2709 = vmatprep.subr.mxu0 %v1758
  %2710 = vmatpush2.msra.mxu0 %v1757
  %2711 = vmatprep.subr.mxu0 %v1756
  %2712 = vmatpush2.msra.mxu0 %v1755
  %2713 = vmatprep.subr.mxu0 %v1754
  %2714 = vmatpush2.msra.mxu0 %v1753
  %2715 = vmatprep.subr.mxu0 %v1752
  %2716 = vmatpush2.msra.mxu0 %v1751
  %2717 = vmatprep.subr.mxu0 %v1750
  %2718 = vmatpush2.msra.mxu0 %v1749
  %2719 = vmatprep.subr.mxu0 %v1748
  %2720 = vmatpush2.msra.mxu0 %v1747
  %2721 = vmatprep.subr.mxu0 %v1746
  %2722 = vmatpush2.msra.mxu0 %v1745
  %2723 = vmatprep.subr.mxu0 %v1744
  %2724 = vmatpush2.msra.mxu0 %v1743
  %2725 = vmatprep.subr.mxu0 %v1742
  %2726 = vmatpush2.msra.mxu0 %v1741
  %2727 = vmatprep.subr.mxu0 %v1740
  %2728 = vmatpush2.msra.mxu0 %v1739
  %2729 = vmatprep.subr.mxu0 %v1738
  %2730 = vmatpush2.msra.mxu0 %v1737
  %2731 = vmatprep.subr.mxu0 %v1736
  %2732 = vmatpush2.msra.mxu0 %v1735
  %2733 = vmatprep.subr.mxu0 %v1734
  %2734 = vmatpush2.msra.mxu0 %v1733
  %2735 = vmatprep.mubr.f32.mxu0 %v2464
  %2736 = vmatmul.mubr.f32.gmra.mxu0 %v2463
  %v2737 = vpop.f32.mrf.mxu0
  %v2738 = vadd.f32 %v2619, %v2737
  %v2739 = vpop.f32.mrf.mxu0
  %v2740 = vadd.f32 %v2621, %v2739
  %2741 = vmatprep.mubr.f32.mxu0 %v2468
  %2742 = vmatmul.mubr.f32.gmra.mxu0 %v2467
  %v2743 = vpop.f32.mrf.mxu0
  %v2744 = vadd.f32 %v2625, %v2743
  %v2745 = vpop.f32.mrf.mxu0
  %v2746 = vadd.f32 %v2627, %v2745
  %2747 = vmatprep.mubr.f32.mxu0 %v2472
  %2748 = vmatmul.mubr.f32.gmra.mxu0 %v2471
  %v2749 = vpop.f32.mrf.mxu0
  %v2750 = vadd.f32 %v2631, %v2749
  %v2751 = vpop.f32.mrf.mxu0
  %v2752 = vadd.f32 %v2633, %v2751
  %2753 = vmatprep.mubr.f32.mxu0 %v2476
  %2754 = vmatmul.mubr.f32.gmra.mxu0 %v2475
  %v2755 = vpop.f32.mrf.mxu0
  %v2756 = vadd.f32 %v2637, %v2755
  %v2757 = vpop.f32.mrf.mxu0
  %v2758 = vadd.f32 %v2639, %v2757
  %2759 = vmatprep.mubr.f32.mxu0 %v2480
  %2760 = vmatmul.mubr.f32.gmra.mxu0 %v2479
  %v2761 = vpop.f32.mrf.mxu0
  %v2762 = vadd.f32 %v2643, %v2761
  %v2763 = vpop.f32.mrf.mxu0
  %v2764 = vadd.f32 %v2645, %v2763
  %2765 = vmatprep.mubr.f32.mxu0 %v2484
  %2766 = vmatmul.mubr.f32.gmra.mxu0 %v2483
  %v2767 = vpop.f32.mrf.mxu0
  %v2768 = vadd.f32 %v2649, %v2767
  %v2769 = vpop.f32.mrf.mxu0
  %v2770 = vadd.f32 %v2651, %v2769
  %2771 = vmatprep.mubr.f32.mxu0 %v2488
  %2772 = vmatmul.mubr.f32.gmra.mxu0 %v2487
  %v2773 = vpop.f32.mrf.mxu0
  %v2774 = vadd.f32 %v2655, %v2773
  %v2775 = vpop.f32.mrf.mxu0
  %v2776 = vadd.f32 %v2657, %v2775
  %2777 = vmatprep.mubr.f32.mxu0 %v2492
  %2778 = vmatmul.mubr.f32.gmra.mxu0 %v2491
  %v2779 = vpop.f32.mrf.mxu0
  %v2780 = vadd.f32 %v2661, %v2779
  %v2781 = vpop.f32.mrf.mxu0
  %v2782 = vadd.f32 %v2663, %v2781
  %2783 = vmatprep.mubr.f32.mxu0 %v2496
  %2784 = vmatmul.mubr.f32.gmra.mxu0 %v2495
  %v2785 = vpop.f32.mrf.mxu0
  %v2786 = vadd.f32 %v2667, %v2785
  %v2787 = vpop.f32.mrf.mxu0
  %v2788 = vadd.f32 %v2669, %v2787
  %2789 = vdwg.mxu0
  %s2790 = scalar_lea.vmem %s7, 288
  %2791 = vst [vmem:[%s2790] sm:$0xff] %v2738
  %2792 = vst [vmem:[%s2790 + $0x8] sm:$0xff] %v2740
  %2793 = vst [vmem:[%s2790 + $0x10] sm:$0xff] %v2744
  %2794 = vst [vmem:[%s2790 + $0x18] sm:$0xff] %v2746
  %2795 = vst [vmem:[%s2790 + $0x20] sm:$0xff] %v2750
  %2796 = vst [vmem:[%s2790 + $0x28] sm:$0xff] %v2752
  %2797 = vst [vmem:[%s2790 + $0x30] sm:$0xff] %v2756
  %2798 = vst [vmem:[%s2790 + $0x38] sm:$0xff] %v2758
  %2799 = vst [vmem:[%s2790 + $0x40] sm:$0xff] %v2762
  %2800 = vst [vmem:[%s2790 + $0x48] sm:$0xff] %v2764
  %2801 = vst [vmem:[%s2790 + $0x50] sm:$0xff] %v2768
  %2802 = vst [vmem:[%s2790 + $0x58] sm:$0xff] %v2770
  %2803 = vst [vmem:[%s2790 + $0x60] sm:$0xff] %v2774
  %2804 = vst [vmem:[%s2790 + $0x68] sm:$0xff] %v2776
  %2805 = vst [vmem:[%s2790 + $0x70] sm:$0xff] %v2780
  %2806 = vst [vmem:[%s2790 + $0x78] sm:$0xff] %v2782
  %2807 = vst [vmem:[%s2790 + $0x80] sm:$0xff] %v2786
  %2808 = vst [vmem:[%s2790 + $0x88] sm:$0xff] %v2788
  // Predicated region
  $region30: #{metafpn1_forward.2} parent=0 // pred_check
    _
  $region31: #{metafpn1_forward.2} parent=0 // pred_check_branch
    %2810 = sbr.rel (0) target = $region33
  $region32: #{metafpn1_forward.2} parent=0 // pred_region
    _
  $region33: #{metafpn1_forward.2} parent=0 // pred_fallthru
    _
  // Predicated region
  $region34: #{metafpn1_forward.2} parent=0 // pred_check
    _
  $region35: #{metafpn1_forward.2} parent=0 // pred_check_branch
    %2812 = sbr.rel (0) target = $region37
  $region36: #{metafpn1_forward.2} parent=0 // pred_region
    _
  $region37: #{metafpn1_forward.2} parent=0 // pred_fallthru
    _

// kernel: metafpn1_forward.3
$region0: #{metafpn1_forward.3}
  #allocation0 [shape = 'u32[]', space=smem, size = 0x4, offset = 0x4, fixed_abs, tag = 'smem constant byte address 0x4 - core index']
  #allocation1 [shape = 'u32[144,128]{1,0:T(1,128)}', space=vmem, size = 0x12000, scoped, tag = 'internal scratch']
  #allocation2 [shape = 'f32[8,384]{1,0:T(8,128)}', space=vmem, size = 0x3000, scoped, tag = 'scratch operand']
  #allocation3 [shape = 'f32[8,384]{1,0:T(8,128)}', space=vmem, size = 0x3000, scoped, tag = 'scratch operand']
  #allocation4 [shape = 'f32[3,384]{1,0:T(4,128)}', space=vmem, size = 0x1800, scoped, tag = 'scratch operand']
  #allocation5 [shape = 'f32[72,384]{1,0:T(8,128)}', space=vmem, size = 0x1b000, scoped, tag = 'scratch operand']
  #allocation6 [shape = 'f32[32,384]{1,0:T(8,128)}', space=vmem, size = 0xc000, scoped, tag = 'scratch operand']
  %s0 = inlined_call_operand.vmem [shape: f32[1,384], index: 0, kind: input, shape index: {}]
  %s1 = inlined_call_operand.vmem [shape: f32[2,3,384], index: 1, kind: input, shape index: {}]
  %s2 = inlined_call_operand.vmem [shape: f32[3,72,384], index: 2, kind: input, shape index: {}]
  %s3 = inlined_call_operand.vmem [shape: f32[3,3], index: 3, kind: input, shape index: {}]
  %s4 = inlined_call_operand.vmem [shape: f32[3,1], index: 4, kind: input, shape index: {}]
  %s5 = inlined_call_operand.vmem [shape: f32[32,27], index: 5, kind: input, shape index: {}]
  %s6 = inlined_call_operand.vmem [shape: f32[32,1], index: 6, kind: input, shape index: {}]
  %s7 = inlined_call_operand.vmem [shape: f32[8,32], index: 7, kind: input, shape index: {}]
  %s8 = inlined_call_operand.vmem [shape: f32[8,1], index: 8, kind: input, shape index: {}]
  %s9 = inlined_call_operand.vmem [shape: f32[1,2], index: 9, kind: input, shape index: {}]
  %s10 = inlined_call_operand.vmem [shape: f32[8,16], index: 10, kind: input, shape index: {}]
  %s11 = inlined_call_operand.vmem [shape: f32[8,1], index: 11, kind: input, shape index: {}]
  %s12 = inlined_call_operand.vmem [shape: f32[8,32], index: 12, kind: input, shape index: {}]
  %s13 = inlined_call_operand.vmem [shape: f32[8,1], index: 13, kind: input, shape index: {}]
  %s14 = inlined_call_operand.vmem [shape: f32[40,8,72], index: 14, kind: input, shape index: {}]
  %s15 = inlined_call_operand.vmem [shape: f32[40,8,1], index: 15, kind: input, shape index: {}]
  %s16 = inlined_call_operand.vmem [shape: f32[16,8,32], index: 16, kind: input, shape index: {}]
  %s17 = inlined_call_operand.vmem [shape: f32[16,8,1], index: 17, kind: input, shape index: {}]
  %s18 = inlined_call_operand.vmem [shape: f32[3,3], index: 18, kind: input, shape index: {}]
  %s19 = inlined_call_operand.vmem [shape: f32[3,1], index: 19, kind: input, shape index: {}]
  %s20 = inlined_call_operand.vmem [shape: f32[2,4,3,384], index: 20, kind: output, shape index: {}]
  %s21 = sld [smem:[#allocation0]]
  $region124: #{metafpn1_forward.3} parent=0
    _
  %s23 = ssub.s32 1, %s21
  %s24 = scalar_select 0, %s23, %s21
  loop: start=0, step=1, limit=10
  $region2: #{metafpn1_forward.3} parent=0 // loop_pre_header
    _
  $region3: #{metafpn1_forward.3} parent=0 // loop_header
    %s26 = sphi 0, %s30
    %p27 = scmp.ge.s32.totalorder %s26, 10
    %s33 = sphi 0, %s45
    %s34 = sphi 0, %s41
    %s35 = sphi 0, %s33
    %s36 = sphi 0, %s34
    %s37 = sphi 0, %s35
    %s38 = sphi 0, %s36
    %s46 = sphi 0, %s46
    %s48 = sphi 0, %s46
    %s49 = sphi 0, %s48
    %s63 = sphi 0, %s49
    %s69 = sphi 0, %s71
    %s72 = sphi 0, %s69
    %s73 = sphi 0, %s72
    %s89 = sphi 0, %s73
    %s93 = sphi 0, %s93
    %s95 = sphi 0, %s93
    %s96 = sphi 0, %s95
    %s110 = sphi 0, %s96
    %s114 = sphi 0, %s114
    %s116 = sphi 0, %s114
    %s117 = sphi 0, %s116
    %s131 = sphi 0, %s117
    %s135 = sphi 0, %s135
    %s137 = sphi 0, %s135
    %s138 = sphi 0, %s137
    %s152 = sphi 0, %s138
    %s156 = sphi 0, %s156
    %s158 = sphi 0, %s156
    %s159 = sphi 0, %s158
    %s173 = sphi 0, %s159
    %s177 = sphi 0, %s177
    %s179 = sphi 0, %s177
    %s180 = sphi 0, %s179
    %s194 = sphi 0, %s180
    %s198 = sphi 0, %s198
    %s200 = sphi 0, %s198
    %s201 = sphi 0, %s200
    %s215 = sphi 0, %s201
    %s219 = sphi 0, %s219
    %s221 = sphi 0, %s219
    %s222 = sphi 0, %s221
    %s236 = sphi 0, %s222
    %s240 = sphi 0, %s240
    %s242 = sphi 0, %s240
    %s243 = sphi 0, %s242
    %s257 = sphi 0, %s243
    %s261 = sphi 0, %s261
    %s263 = sphi 0, %s261
    %s264 = sphi 0, %s263
    %s278 = sphi 0, %s264
    %s282 = sphi 0, %s282
    %s284 = sphi 0, %s282
    %s285 = sphi 0, %s284
    %s299 = sphi 0, %s285
    %s303 = sphi 0, %s303
    %s305 = sphi 0, %s303
    %s306 = sphi 0, %s305
    %s320 = sphi 0, %s306
    %s324 = sphi 0, %s324
    %s326 = sphi 0, %s324
    %s327 = sphi 0, %s326
    %s341 = sphi 0, %s327
    %s345 = sphi 0, %s345
    %s347 = sphi 0, %s345
    %s348 = sphi 0, %s347
    %s362 = sphi 0, %s348
    %s366 = sphi 0, %s366
    %s368 = sphi 0, %s366
    %s369 = sphi 0, %s368
    %s383 = sphi 0, %s369
    %s387 = sphi 0, %s387
    %s389 = sphi 0, %s387
    %s390 = sphi 0, %s389
    %s404 = sphi 0, %s390
    %s408 = sphi 0, %s408
    %s410 = sphi 0, %s408
    %s411 = sphi 0, %s410
    %s425 = sphi 0, %s411
    %s429 = sphi 0, %s429
    %s431 = sphi 0, %s429
    %s432 = sphi 0, %s431
    %s446 = sphi 0, %s432
    %s450 = sphi 0, %s450
    %s452 = sphi 0, %s450
    %s453 = sphi 0, %s452
    %s467 = sphi 0, %s453
    %s475 = sphi 0, %s477
    %s478 = sphi 0, %s475
    %s479 = sphi 0, %s478
    %s495 = sphi 0, %s479
  $region4: #{metafpn1_forward.3} parent=0 // loop_header_branch
    %29 = sbr.rel (%p27) target = $region8
  $region5: #{metafpn1_forward.3} parent=0 // loop_body
    %s31 = ssub.s32 %s26, 1
    %s32 = ssub.s32 %s26, 2
    %s39 = sadd.s32 1, %s34
    %p40 = scmp.ge.s32.totalorder %s39, 4
    %s41 = scalar_select %p40, 0, %s39
    %s42 = sadd.s32 1, %s33
    %s43 = scalar_select %p40, %s42, %s33
    %p44 = scmp.ge.s32.totalorder %s43, 2
    %s45 = scalar_select %p44, 0, %s43
    %s47 = sadd.s32 %s46, 1
    %p50 = scmp.eq.s32.totalorder %s26, 7
    %p51 = scmp.ne.s32.totalorder %s46, %s48
    %p52 = scmp.eq.s32.totalorder %s26, 0
    %p53 = por %p51, %p52
    %p54 = scmp.ne.s32.totalorder %s46, %s48
    %p55 = scmp.eq.s32.totalorder %s31, 7
    %p56 = por %p54, %p55
    %p57 = scmp.ne.s32.totalorder %s48, %s49
    %p58 = scmp.eq.s32.totalorder %s31, 0
    %p59 = por %p57, %p58
    %p60 = scmp.ne.s32.totalorder %s48, %s49
    %p61 = scmp.eq.s32.totalorder %s32, 7
    %p62 = por %p60, %p61
    %p64 = scmp.ne.s32.totalorder %s49, %s63
    %p65 = scmp.eq.s32.totalorder %s32, 0
    %p66 = por %p64, %p65
    %s67 = ssub.s32 %s33, %s45
    %p68 = scmp.eq.s32.totalorder %s67, 0
    %s70 = sadd.s32 %s69, 1
    %s71 = scalar_select %p68, %s69, %s70
    %p74 = pneg %p68
    %p75 = scmp.eq.s32.totalorder %s26, 7
    %p76 = por %p74, %p75
    %p77 = scmp.ne.s32.totalorder %s69, %s72
    %p78 = scmp.eq.s32.totalorder %s26, 0
    %p79 = por %p77, %p78
    %p80 = scmp.ne.s32.totalorder %s69, %s72
    %p81 = scmp.eq.s32.totalorder %s31, 7
    %p82 = por %p80, %p81
    %p83 = scmp.ne.s32.totalorder %s72, %s73
    %p84 = scmp.eq.s32.totalorder %s31, 0
    %p85 = por %p83, %p84
    %p86 = scmp.ne.s32.totalorder %s72, %s73
    %p87 = scmp.eq.s32.totalorder %s32, 7
    %p88 = por %p86, %p87
    %p90 = scmp.ne.s32.totalorder %s73, %s89
    %p91 = scmp.eq.s32.totalorder %s32, 0
    %p92 = por %p90, %p91
    %s94 = sadd.s32 %s93, 1
    %p97 = scmp.eq.s32.totalorder %s26, 7
    %p98 = scmp.ne.s32.totalorder %s93, %s95
    %p99 = scmp.eq.s32.totalorder %s26, 0
    %p100 = por %p98, %p99
    %p101 = scmp.ne.s32.totalorder %s93, %s95
    %p102 = scmp.eq.s32.totalorder %s31, 7
    %p103 = por %p101, %p102
    %p104 = scmp.ne.s32.totalorder %s95, %s96
    %p105 = scmp.eq.s32.totalorder %s31, 0
    %p106 = por %p104, %p105
    %p107 = scmp.ne.s32.totalorder %s95, %s96
    %p108 = scmp.eq.s32.totalorder %s32, 7
    %p109 = por %p107, %p108
    %p111 = scmp.ne.s32.totalorder %s96, %s110
    %p112 = scmp.eq.s32.totalorder %s32, 0
    %p113 = por %p111, %p112
    %s115 = sadd.s32 %s114, 1
    %p118 = scmp.eq.s32.totalorder %s26, 7
    %p119 = scmp.ne.s32.totalorder %s114, %s116
    %p120 = scmp.eq.s32.totalorder %s26, 0
    %p121 = por %p119, %p120
    %p122 = scmp.ne.s32.totalorder %s114, %s116
    %p123 = scmp.eq.s32.totalorder %s31, 7
    %p124 = por %p122, %p123
    %p125 = scmp.ne.s32.totalorder %s116, %s117
    %p126 = scmp.eq.s32.totalorder %s31, 0
    %p127 = por %p125, %p126
    %p128 = scmp.ne.s32.totalorder %s116, %s117
    %p129 = scmp.eq.s32.totalorder %s32, 7
    %p130 = por %p128, %p129
    %p132 = scmp.ne.s32.totalorder %s117, %s131
    %p133 = scmp.eq.s32.totalorder %s32, 0
    %p134 = por %p132, %p133
    %s136 = sadd.s32 %s135, 1
    %p139 = scmp.eq.s32.totalorder %s26, 7
    %p140 = scmp.ne.s32.totalorder %s135, %s137
    %p141 = scmp.eq.s32.totalorder %s26, 0
    %p142 = por %p140, %p141
    %p143 = scmp.ne.s32.totalorder %s135, %s137
    %p144 = scmp.eq.s32.totalorder %s31, 7
    %p145 = por %p143, %p144
    %p146 = scmp.ne.s32.totalorder %s137, %s138
    %p147 = scmp.eq.s32.totalorder %s31, 0
    %p148 = por %p146, %p147
    %p149 = scmp.ne.s32.totalorder %s137, %s138
    %p150 = scmp.eq.s32.totalorder %s32, 7
    %p151 = por %p149, %p150
    %p153 = scmp.ne.s32.totalorder %s138, %s152
    %p154 = scmp.eq.s32.totalorder %s32, 0
    %p155 = por %p153, %p154
    %s157 = sadd.s32 %s156, 1
    %p160 = scmp.eq.s32.totalorder %s26, 7
    %p161 = scmp.ne.s32.totalorder %s156, %s158
    %p162 = scmp.eq.s32.totalorder %s26, 0
    %p163 = por %p161, %p162
    %p164 = scmp.ne.s32.totalorder %s156, %s158
    %p165 = scmp.eq.s32.totalorder %s31, 7
    %p166 = por %p164, %p165
    %p167 = scmp.ne.s32.totalorder %s158, %s159
    %p168 = scmp.eq.s32.totalorder %s31, 0
    %p169 = por %p167, %p168
    %p170 = scmp.ne.s32.totalorder %s158, %s159
    %p171 = scmp.eq.s32.totalorder %s32, 7
    %p172 = por %p170, %p171
    %p174 = scmp.ne.s32.totalorder %s159, %s173
    %p175 = scmp.eq.s32.totalorder %s32, 0
    %p176 = por %p174, %p175
    %s178 = sadd.s32 %s177, 1
    %p181 = scmp.eq.s32.totalorder %s26, 7
    %p182 = scmp.ne.s32.totalorder %s177, %s179
    %p183 = scmp.eq.s32.totalorder %s26, 0
    %p184 = por %p182, %p183
    %p185 = scmp.ne.s32.totalorder %s177, %s179
    %p186 = scmp.eq.s32.totalorder %s31, 7
    %p187 = por %p185, %p186
    %p188 = scmp.ne.s32.totalorder %s179, %s180
    %p189 = scmp.eq.s32.totalorder %s31, 0
    %p190 = por %p188, %p189
    %p191 = scmp.ne.s32.totalorder %s179, %s180
    %p192 = scmp.eq.s32.totalorder %s32, 7
    %p193 = por %p191, %p192
    %p195 = scmp.ne.s32.totalorder %s180, %s194
    %p196 = scmp.eq.s32.totalorder %s32, 0
    %p197 = por %p195, %p196
    %s199 = sadd.s32 %s198, 1
    %p202 = scmp.eq.s32.totalorder %s26, 7
    %p203 = scmp.ne.s32.totalorder %s198, %s200
    %p204 = scmp.eq.s32.totalorder %s26, 0
    %p205 = por %p203, %p204
    %p206 = scmp.ne.s32.totalorder %s198, %s200
    %p207 = scmp.eq.s32.totalorder %s31, 7
    %p208 = por %p206, %p207
    %p209 = scmp.ne.s32.totalorder %s200, %s201
    %p210 = scmp.eq.s32.totalorder %s31, 0
    %p211 = por %p209, %p210
    %p212 = scmp.ne.s32.totalorder %s200, %s201
    %p213 = scmp.eq.s32.totalorder %s32, 7
    %p214 = por %p212, %p213
    %p216 = scmp.ne.s32.totalorder %s201, %s215
    %p217 = scmp.eq.s32.totalorder %s32, 0
    %p218 = por %p216, %p217
    %s220 = sadd.s32 %s219, 1
    %p223 = scmp.eq.s32.totalorder %s26, 7
    %p224 = scmp.ne.s32.totalorder %s219, %s221
    %p225 = scmp.eq.s32.totalorder %s26, 0
    %p226 = por %p224, %p225
    %p227 = scmp.ne.s32.totalorder %s219, %s221
    %p228 = scmp.eq.s32.totalorder %s31, 7
    %p229 = por %p227, %p228
    %p230 = scmp.ne.s32.totalorder %s221, %s222
    %p231 = scmp.eq.s32.totalorder %s31, 0
    %p232 = por %p230, %p231
    %p233 = scmp.ne.s32.totalorder %s221, %s222
    %p234 = scmp.eq.s32.totalorder %s32, 7
    %p235 = por %p233, %p234
    %p237 = scmp.ne.s32.totalorder %s222, %s236
    %p238 = scmp.eq.s32.totalorder %s32, 0
    %p239 = por %p237, %p238
    %s241 = sadd.s32 %s240, 1
    %p244 = scmp.eq.s32.totalorder %s26, 7
    %p245 = scmp.ne.s32.totalorder %s240, %s242
    %p246 = scmp.eq.s32.totalorder %s26, 0
    %p247 = por %p245, %p246
    %p248 = scmp.ne.s32.totalorder %s240, %s242
    %p249 = scmp.eq.s32.totalorder %s31, 7
    %p250 = por %p248, %p249
    %p251 = scmp.ne.s32.totalorder %s242, %s243
    %p252 = scmp.eq.s32.totalorder %s31, 0
    %p253 = por %p251, %p252
    %p254 = scmp.ne.s32.totalorder %s242, %s243
    %p255 = scmp.eq.s32.totalorder %s32, 7
    %p256 = por %p254, %p255
    %p258 = scmp.ne.s32.totalorder %s243, %s257
    %p259 = scmp.eq.s32.totalorder %s32, 0
    %p260 = por %p258, %p259
    %s262 = sadd.s32 %s261, 1
    %p265 = scmp.eq.s32.totalorder %s26, 7
    %p266 = scmp.ne.s32.totalorder %s261, %s263
    %p267 = scmp.eq.s32.totalorder %s26, 0
    %p268 = por %p266, %p267
    %p269 = scmp.ne.s32.totalorder %s261, %s263
    %p270 = scmp.eq.s32.totalorder %s31, 7
    %p271 = por %p269, %p270
    %p272 = scmp.ne.s32.totalorder %s263, %s264
    %p273 = scmp.eq.s32.totalorder %s31, 0
    %p274 = por %p272, %p273
    %p275 = scmp.ne.s32.totalorder %s263, %s264
    %p276 = scmp.eq.s32.totalorder %s32, 7
    %p277 = por %p275, %p276
    %p279 = scmp.ne.s32.totalorder %s264, %s278
    %p280 = scmp.eq.s32.totalorder %s32, 0
    %p281 = por %p279, %p280
    %s283 = sadd.s32 %s282, 1
    %p286 = scmp.eq.s32.totalorder %s26, 7
    %p287 = scmp.ne.s32.totalorder %s282, %s284
    %p288 = scmp.eq.s32.totalorder %s26, 0
    %p289 = por %p287, %p288
    %p290 = scmp.ne.s32.totalorder %s282, %s284
    %p291 = scmp.eq.s32.totalorder %s31, 7
    %p292 = por %p290, %p291
    %p293 = scmp.ne.s32.totalorder %s284, %s285
    %p294 = scmp.eq.s32.totalorder %s31, 0
    %p295 = por %p293, %p294
    %p296 = scmp.ne.s32.totalorder %s284, %s285
    %p297 = scmp.eq.s32.totalorder %s32, 7
    %p298 = por %p296, %p297
    %p300 = scmp.ne.s32.totalorder %s285, %s299
    %p301 = scmp.eq.s32.totalorder %s32, 0
    %p302 = por %p300, %p301
    %s304 = sadd.s32 %s303, 1
    %p307 = scmp.eq.s32.totalorder %s26, 7
    %p308 = scmp.ne.s32.totalorder %s303, %s305
    %p309 = scmp.eq.s32.totalorder %s26, 0
    %p310 = por %p308, %p309
    %p311 = scmp.ne.s32.totalorder %s303, %s305
    %p312 = scmp.eq.s32.totalorder %s31, 7
    %p313 = por %p311, %p312
    %p314 = scmp.ne.s32.totalorder %s305, %s306
    %p315 = scmp.eq.s32.totalorder %s31, 0
    %p316 = por %p314, %p315
    %p317 = scmp.ne.s32.totalorder %s305, %s306
    %p318 = scmp.eq.s32.totalorder %s32, 7
    %p319 = por %p317, %p318
    %p321 = scmp.ne.s32.totalorder %s306, %s320
    %p322 = scmp.eq.s32.totalorder %s32, 0
    %p323 = por %p321, %p322
    %s325 = sadd.s32 %s324, 1
    %p328 = scmp.eq.s32.totalorder %s26, 7
    %p329 = scmp.ne.s32.totalorder %s324, %s326
    %p330 = scmp.eq.s32.totalorder %s26, 0
    %p331 = por %p329, %p330
    %p332 = scmp.ne.s32.totalorder %s324, %s326
    %p333 = scmp.eq.s32.totalorder %s31, 7
    %p334 = por %p332, %p333
    %p335 = scmp.ne.s32.totalorder %s326, %s327
    %p336 = scmp.eq.s32.totalorder %s31, 0
    %p337 = por %p335, %p336
    %p338 = scmp.ne.s32.totalorder %s326, %s327
    %p339 = scmp.eq.s32.totalorder %s32, 7
    %p340 = por %p338, %p339
    %p342 = scmp.ne.s32.totalorder %s327, %s341
    %p343 = scmp.eq.s32.totalorder %s32, 0
    %p344 = por %p342, %p343
    %s346 = sadd.s32 %s345, 1
    %p349 = scmp.eq.s32.totalorder %s26, 7
    %p350 = scmp.ne.s32.totalorder %s345, %s347
    %p351 = scmp.eq.s32.totalorder %s26, 0
    %p352 = por %p350, %p351
    %p353 = scmp.ne.s32.totalorder %s345, %s347
    %p354 = scmp.eq.s32.totalorder %s31, 7
    %p355 = por %p353, %p354
    %p356 = scmp.ne.s32.totalorder %s347, %s348
    %p357 = scmp.eq.s32.totalorder %s31, 0
    %p358 = por %p356, %p357
    %p359 = scmp.ne.s32.totalorder %s347, %s348
    %p360 = scmp.eq.s32.totalorder %s32, 7
    %p361 = por %p359, %p360
    %p363 = scmp.ne.s32.totalorder %s348, %s362
    %p364 = scmp.eq.s32.totalorder %s32, 0
    %p365 = por %p363, %p364
    %s367 = sadd.s32 %s366, 1
    %p370 = scmp.eq.s32.totalorder %s26, 7
    %p371 = scmp.ne.s32.totalorder %s366, %s368
    %p372 = scmp.eq.s32.totalorder %s26, 0
    %p373 = por %p371, %p372
    %p374 = scmp.ne.s32.totalorder %s366, %s368
    %p375 = scmp.eq.s32.totalorder %s31, 7
    %p376 = por %p374, %p375
    %p377 = scmp.ne.s32.totalorder %s368, %s369
    %p378 = scmp.eq.s32.totalorder %s31, 0
    %p379 = por %p377, %p378
    %p380 = scmp.ne.s32.totalorder %s368, %s369
    %p381 = scmp.eq.s32.totalorder %s32, 7
    %p382 = por %p380, %p381
    %p384 = scmp.ne.s32.totalorder %s369, %s383
    %p385 = scmp.eq.s32.totalorder %s32, 0
    %p386 = por %p384, %p385
    %s388 = sadd.s32 %s387, 1
    %p391 = scmp.eq.s32.totalorder %s26, 7
    %p392 = scmp.ne.s32.totalorder %s387, %s389
    %p393 = scmp.eq.s32.totalorder %s26, 0
    %p394 = por %p392, %p393
    %p395 = scmp.ne.s32.totalorder %s387, %s389
    %p396 = scmp.eq.s32.totalorder %s31, 7
    %p397 = por %p395, %p396
    %p398 = scmp.ne.s32.totalorder %s389, %s390
    %p399 = scmp.eq.s32.totalorder %s31, 0
    %p400 = por %p398, %p399
    %p401 = scmp.ne.s32.totalorder %s389, %s390
    %p402 = scmp.eq.s32.totalorder %s32, 7
    %p403 = por %p401, %p402
    %p405 = scmp.ne.s32.totalorder %s390, %s404
    %p406 = scmp.eq.s32.totalorder %s32, 0
    %p407 = por %p405, %p406
    %s409 = sadd.s32 %s408, 1
    %p412 = scmp.eq.s32.totalorder %s26, 7
    %p413 = scmp.ne.s32.totalorder %s408, %s410
    %p414 = scmp.eq.s32.totalorder %s26, 0
    %p415 = por %p413, %p414
    %p416 = scmp.ne.s32.totalorder %s408, %s410
    %p417 = scmp.eq.s32.totalorder %s31, 7
    %p418 = por %p416, %p417
    %p419 = scmp.ne.s32.totalorder %s410, %s411
    %p420 = scmp.eq.s32.totalorder %s31, 0
    %p421 = por %p419, %p420
    %p422 = scmp.ne.s32.totalorder %s410, %s411
    %p423 = scmp.eq.s32.totalorder %s32, 7
    %p424 = por %p422, %p423
    %p426 = scmp.ne.s32.totalorder %s411, %s425
    %p427 = scmp.eq.s32.totalorder %s32, 0
    %p428 = por %p426, %p427
    %s430 = sadd.s32 %s429, 1
    %p433 = scmp.eq.s32.totalorder %s26, 7
    %p434 = scmp.ne.s32.totalorder %s429, %s431
    %p435 = scmp.eq.s32.totalorder %s26, 0
    %p436 = por %p434, %p435
    %p437 = scmp.ne.s32.totalorder %s429, %s431
    %p438 = scmp.eq.s32.totalorder %s31, 7
    %p439 = por %p437, %p438
    %p440 = scmp.ne.s32.totalorder %s431, %s432
    %p441 = scmp.eq.s32.totalorder %s31, 0
    %p442 = por %p440, %p441
    %p443 = scmp.ne.s32.totalorder %s431, %s432
    %p444 = scmp.eq.s32.totalorder %s32, 7
    %p445 = por %p443, %p444
    %p447 = scmp.ne.s32.totalorder %s432, %s446
    %p448 = scmp.eq.s32.totalorder %s32, 0
    %p449 = por %p447, %p448
    %s451 = sadd.s32 %s450, 1
    %p454 = scmp.eq.s32.totalorder %s26, 7
    %p455 = scmp.ne.s32.totalorder %s450, %s452
    %p456 = scmp.eq.s32.totalorder %s26, 0
    %p457 = por %p455, %p456
    %p458 = scmp.ne.s32.totalorder %s450, %s452
    %p459 = scmp.eq.s32.totalorder %s31, 7
    %p460 = por %p458, %p459
    %p461 = scmp.ne.s32.totalorder %s452, %s453
    %p462 = scmp.eq.s32.totalorder %s31, 0
    %p463 = por %p461, %p462
    %p464 = scmp.ne.s32.totalorder %s452, %s453
    %p465 = scmp.eq.s32.totalorder %s32, 7
    %p466 = por %p464, %p465
    %p468 = scmp.ne.s32.totalorder %s453, %s467
    %p469 = scmp.eq.s32.totalorder %s32, 0
    %p470 = por %p468, %p469
    %s471 = ssub.s32 %s33, %s45
    %s472 = ssub.s32 %s34, %s41
    %s473 = sor.u32 %s471, %s472
    %p474 = scmp.eq.s32.totalorder %s473, 0
    %s476 = sadd.s32 %s475, 1
    %s477 = scalar_select %p474, %s475, %s476
    %p480 = pneg %p474
    %p481 = scmp.eq.s32.totalorder %s26, 7
    %p482 = por %p480, %p481
    %p483 = scmp.ne.s32.totalorder %s475, %s478
    %p484 = scmp.eq.s32.totalorder %s26, 0
    %p485 = por %p483, %p484
    %p486 = scmp.ne.s32.totalorder %s475, %s478
    %p487 = scmp.eq.s32.totalorder %s31, 7
    %p488 = por %p486, %p487
    %p489 = scmp.ne.s32.totalorder %s478, %s479
    %p490 = scmp.eq.s32.totalorder %s31, 0
    %p491 = por %p489, %p490
    %p492 = scmp.ne.s32.totalorder %s478, %s479
    %p493 = scmp.eq.s32.totalorder %s32, 7
    %p494 = por %p492, %p493
    %p496 = scmp.ne.s32.totalorder %s479, %s495
    %p497 = scmp.eq.s32.totalorder %s32, 0
    %p498 = por %p496, %p497
    %p499 = scmp.le.s32.totalorder 1, %s26
    %p500 = scmp.lt.s32.totalorder %s26, 9
    %p501 = pnand %p499, %p500
    %p502 = pneg %p501
    // Predicated region
    $region9: #{metafpn1_forward.3} parent=5 // pred_check
      _
    $region10: #{metafpn1_forward.3} parent=5 // pred_check_branch
      %504 = sbr.rel (%p501) target = $region12
    $region11: #{metafpn1_forward.3} parent=5 // pred_region
      %s505 = ssub.s32 %s26, 1
      // Predicated region
      $region13: #{metafpn1_forward.3} parent=11 // pred_check
        %p506 = pneg %p59
      $region14: #{metafpn1_forward.3} parent=11 // pred_check_branch
        %508 = sbr.rel (%p506) target = $region16
      $region15: #{metafpn1_forward.3} parent=11 // pred_region
        _
      $region16: #{metafpn1_forward.3} parent=11 // pred_fallthru
        _
      // Predicated region
      $region17: #{metafpn1_forward.3} parent=11 // pred_check
        %p509 = pneg %p106
      $region18: #{metafpn1_forward.3} parent=11 // pred_check_branch
        %511 = sbr.rel (%p509) target = $region20
      $region19: #{metafpn1_forward.3} parent=11 // pred_region
        _
      $region20: #{metafpn1_forward.3} parent=11 // pred_fallthru
        _
      // Predicated region
      $region21: #{metafpn1_forward.3} parent=11 // pred_check
        %p512 = pneg %p127
      $region22: #{metafpn1_forward.3} parent=11 // pred_check_branch
        %514 = sbr.rel (%p512) target = $region24
      $region23: #{metafpn1_forward.3} parent=11 // pred_region
        _
      $region24: #{metafpn1_forward.3} parent=11 // pred_fallthru
        _
      // Predicated region
      $region25: #{metafpn1_forward.3} parent=11 // pred_check
        %p515 = pneg %p148
      $region26: #{metafpn1_forward.3} parent=11 // pred_check_branch
        %517 = sbr.rel (%p515) target = $region28
      $region27: #{metafpn1_forward.3} parent=11 // pred_region
        _
      $region28: #{metafpn1_forward.3} parent=11 // pred_fallthru
        _
      // Predicated region
      $region29: #{metafpn1_forward.3} parent=11 // pred_check
        %p518 = pneg %p169
      $region30: #{metafpn1_forward.3} parent=11 // pred_check_branch
        %520 = sbr.rel (%p518) target = $region32
      $region31: #{metafpn1_forward.3} parent=11 // pred_region
        _
      $region32: #{metafpn1_forward.3} parent=11 // pred_fallthru
        _
      // Predicated region
      $region33: #{metafpn1_forward.3} parent=11 // pred_check
        %p521 = pneg %p190
      $region34: #{metafpn1_forward.3} parent=11 // pred_check_branch
        %523 = sbr.rel (%p521) target = $region36
      $region35: #{metafpn1_forward.3} parent=11 // pred_region
        _
      $region36: #{metafpn1_forward.3} parent=11 // pred_fallthru
        _
      // Predicated region
      $region37: #{metafpn1_forward.3} parent=11 // pred_check
        %p524 = pneg %p211
      $region38: #{metafpn1_forward.3} parent=11 // pred_check_branch
        %526 = sbr.rel (%p524) target = $region40
      $region39: #{metafpn1_forward.3} parent=11 // pred_region
        _
      $region40: #{metafpn1_forward.3} parent=11 // pred_fallthru
        _
      // Predicated region
      $region41: #{metafpn1_forward.3} parent=11 // pred_check
        %p527 = pneg %p232
      $region42: #{metafpn1_forward.3} parent=11 // pred_check_branch
        %529 = sbr.rel (%p527) target = $region44
      $region43: #{metafpn1_forward.3} parent=11 // pred_region
        _
      $region44: #{metafpn1_forward.3} parent=11 // pred_fallthru
        _
      // Predicated region
      $region45: #{metafpn1_forward.3} parent=11 // pred_check
        %p530 = pneg %p253
      $region46: #{metafpn1_forward.3} parent=11 // pred_check_branch
        %532 = sbr.rel (%p530) target = $region48
      $region47: #{metafpn1_forward.3} parent=11 // pred_region
        _
      $region48: #{metafpn1_forward.3} parent=11 // pred_fallthru
        _
      // Predicated region
      $region49: #{metafpn1_forward.3} parent=11 // pred_check
        %p533 = pneg %p274
      $region50: #{metafpn1_forward.3} parent=11 // pred_check_branch
        %535 = sbr.rel (%p533) target = $region52
      $region51: #{metafpn1_forward.3} parent=11 // pred_region
        _
      $region52: #{metafpn1_forward.3} parent=11 // pred_fallthru
        _
      // Predicated region
      $region53: #{metafpn1_forward.3} parent=11 // pred_check
        %p536 = pneg %p295
      $region54: #{metafpn1_forward.3} parent=11 // pred_check_branch
        %538 = sbr.rel (%p536) target = $region56
      $region55: #{metafpn1_forward.3} parent=11 // pred_region
        _
      $region56: #{metafpn1_forward.3} parent=11 // pred_fallthru
        _
      // Predicated region
      $region57: #{metafpn1_forward.3} parent=11 // pred_check
        %p539 = pneg %p316
      $region58: #{metafpn1_forward.3} parent=11 // pred_check_branch
        %541 = sbr.rel (%p539) target = $region60
      $region59: #{metafpn1_forward.3} parent=11 // pred_region
        _
      $region60: #{metafpn1_forward.3} parent=11 // pred_fallthru
        _
      // Predicated region
      $region61: #{metafpn1_forward.3} parent=11 // pred_check
        %p542 = pneg %p337
      $region62: #{metafpn1_forward.3} parent=11 // pred_check_branch
        %544 = sbr.rel (%p542) target = $region64
      $region63: #{metafpn1_forward.3} parent=11 // pred_region
        _
      $region64: #{metafpn1_forward.3} parent=11 // pred_fallthru
        _
      // Predicated region
      $region65: #{metafpn1_forward.3} parent=11 // pred_check
        %p545 = pneg %p358
      $region66: #{metafpn1_forward.3} parent=11 // pred_check_branch
        %547 = sbr.rel (%p545) target = $region68
      $region67: #{metafpn1_forward.3} parent=11 // pred_region
        _
      $region68: #{metafpn1_forward.3} parent=11 // pred_fallthru
        _
      // Predicated region
      $region69: #{metafpn1_forward.3} parent=11 // pred_check
        %p548 = pneg %p379
      $region70: #{metafpn1_forward.3} parent=11 // pred_check_branch
        %550 = sbr.rel (%p548) target = $region72
      $region71: #{metafpn1_forward.3} parent=11 // pred_region
        _
      $region72: #{metafpn1_forward.3} parent=11 // pred_fallthru
        _
      // Predicated region
      $region73: #{metafpn1_forward.3} parent=11 // pred_check
        %p551 = pneg %p400
      $region74: #{metafpn1_forward.3} parent=11 // pred_check_branch
        %553 = sbr.rel (%p551) target = $region76
      $region75: #{metafpn1_forward.3} parent=11 // pred_region
        _
      $region76: #{metafpn1_forward.3} parent=11 // pred_fallthru
        _
      // Predicated region
      $region77: #{metafpn1_forward.3} parent=11 // pred_check
        %p554 = pneg %p421
      $region78: #{metafpn1_forward.3} parent=11 // pred_check_branch
        %556 = sbr.rel (%p554) target = $region80
      $region79: #{metafpn1_forward.3} parent=11 // pred_region
        _
      $region80: #{metafpn1_forward.3} parent=11 // pred_fallthru
        _
      // Predicated region
      $region81: #{metafpn1_forward.3} parent=11 // pred_check
        %p557 = pneg %p442
      $region82: #{metafpn1_forward.3} parent=11 // pred_check_branch
        %559 = sbr.rel (%p557) target = $region84
      $region83: #{metafpn1_forward.3} parent=11 // pred_region
        _
      $region84: #{metafpn1_forward.3} parent=11 // pred_fallthru
        _
      // Predicated region
      $region85: #{metafpn1_forward.3} parent=11 // pred_check
        %p560 = pneg %p463
      $region86: #{metafpn1_forward.3} parent=11 // pred_check_branch
        %562 = sbr.rel (%p560) target = $region88
      $region87: #{metafpn1_forward.3} parent=11 // pred_region
        _
      $region88: #{metafpn1_forward.3} parent=11 // pred_fallthru
        _
    $region12: #{metafpn1_forward.3} parent=5 // pred_fallthru
      _
    %p563 = scmp.lt.s32.totalorder %s26, 8
    // Predicated region
    $region89: #{metafpn1_forward.3} parent=5 // pred_check
      %p564 = pneg %p563
    $region90: #{metafpn1_forward.3} parent=5 // pred_check_branch
      %566 = sbr.rel (%p564) target = $region92
    $region91: #{metafpn1_forward.3} parent=5 // pred_region
      // Predicated region
      $region93: #{metafpn1_forward.3} parent=91 // pred_check
        %p567 = pneg %p79
      $region94: #{metafpn1_forward.3} parent=91 // pred_check_branch
        %569 = sbr.rel (%p567) target = $region96
      $region95: #{metafpn1_forward.3} parent=91 // pred_region
        %p570 = scmp.lt.s32.totalorder %s33, 1
        %s571 = scalar_select %p570, %s33, 1
        %s572 = smul.addr %s571, 3
        %s573 = smul.addr %s572, 4
        %s574 = scalar_lea.vmem %s1, %s573
      $region96: #{metafpn1_forward.3} parent=91 // pred_fallthru
        _
    $region92: #{metafpn1_forward.3} parent=5 // pred_fallthru
      _
    %p575 = scmp.le.s32.totalorder 1, %s26
    %p576 = scmp.lt.s32.totalorder %s26, 9
    %p577 = pnand %p575, %p576
    %p578 = pneg %p577
    // Predicated region
    $region97: #{metafpn1_forward.3} parent=5 // pred_check
      _
    $region98: #{metafpn1_forward.3} parent=5 // pred_check_branch
      %580 = sbr.rel (%p577) target = $region100
    $region99: #{metafpn1_forward.3} parent=5 // pred_region
      %s581 = ssub.s32 %s26, 1
      %p582 = pneg %p59
      %p583 = pneg %p56
      %p584 = scmp.lt.s32.totalorder %s35, 1
      %s585 = scalar_select %p584, %s35, 1
      %s586 = smul.addr %s585, 3
      %s587 = smul.addr %s586, 4
      %s588 = scalar_lea.vmem %s1, %s587
      %p589 = pneg %p85
      %p590 = pneg %p82
      %p591 = pneg %p106
      %p592 = pneg %p103
      %p593 = pneg %p127
      %p594 = pneg %p124
      %p595 = pneg %p148
      %p596 = pneg %p145
      %p597 = pneg %p169
      %p598 = pneg %p166
      %p599 = pneg %p190
      %p600 = pneg %p187
      %p601 = pneg %p211
      %p602 = pneg %p208
      %p603 = pneg %p232
      %p604 = pneg %p229
      %p605 = pneg %p253
      %p606 = pneg %p250
      %p607 = pneg %p274
      %p608 = pneg %p271
      %p609 = pneg %p295
      %p610 = pneg %p292
      %p611 = pneg %p316
      %p612 = pneg %p313
      %p613 = pneg %p337
      %p614 = pneg %p334
      %p615 = pneg %p358
      %p616 = pneg %p355
      %p617 = pneg %p379
      %p618 = pneg %p376
      %p619 = pneg %p400
      %p620 = pneg %p397
      %p621 = pneg %p421
      %p622 = pneg %p418
      %p623 = pneg %p442
      %p624 = pneg %p439
      %p625 = pneg %p463
      %p626 = pneg %p460
      %p627 = pneg %p491
      %p628 = pneg %p488
      %p629 = scmp.lt.s32.totalorder %s35, 1
      %s630 = scalar_select %p629, %s35, 1
      %p631 = scmp.lt.s32.totalorder %s36, 3
      %s632 = scalar_select %p631, %s36, 3
      %s633 = smul.addr %s632, 3
      %s634 = smul.addr %s630, 12
      %s635 = sadd.s32 %s633, %s634
      %s636 = smul.addr %s635, 4
      %s637 = scalar_lea.vmem %s20, %s636
      %p638 = scmp.lt.s32.totalorder %s35, 1
      %s639 = scalar_select %p638, %s35, 1
      %s640 = smul.addr %s639, 3
      %s641 = smul.addr %s640, 4
      %s642 = scalar_lea.vmem %s1, %s641
      %p643 = scmp.lt.s32.totalorder %s35, 1
      %s644 = scalar_select %p643, %s35, 1
      %p645 = scmp.lt.s32.totalorder %s36, 3
      %s646 = scalar_select %p645, %s36, 3
      %s647 = smul.addr %s646, 3
      %s648 = smul.addr %s644, 12
      %s649 = sadd.s32 %s647, %s648
      %s650 = smul.addr %s649, 4
      %s651 = scalar_lea.vmem %s20, %s650
      %v653 = vld [vmem:[%s0] sm:$0x7]
      %v655 = vlaneseq
      %v656 = vshrl.u32 %v655, 7
      %v657 = vsub.s32 0, %v656
      %v658 = vrot.slane %v653, %v657
      %v659 = vlaneseq
      %v660 = vshrl.u32 %v659, 7
      %v661 = vsub.s32 1, %v660
      %v662 = vrot.slane %v653, %v661
      %v663 = vlaneseq
      %v664 = vshrl.u32 %v663, 7
      %v665 = vsub.s32 2, %v664
      %v666 = vrot.slane %v653, %v665
      %p670 = scmp.eq.s32.totalorder %s36, 0
      // Predicated region
      $region101: #{metafpn1_forward.3} parent=99 // pred_check
        %p671 = pneg %p670
      $region102: #{metafpn1_forward.3} parent=99 // pred_check_branch
        %673 = sbr.rel (%p671) target = $region104
      $region103: #{metafpn1_forward.3} parent=99 // pred_region
        %v674 = vld [vmem:[%s642] sm:$0x77]
        %v675 = vld [vmem:[%s642 + $0x8] sm:$0x7]
        %v676 = vld [vmem:[%s3] sm:$0x7]
        %v677 = vld [vmem:[%s4] sm:$0x7]
        %679 = vset.pattern.permute.xlu0 0
        %680 = vperm.xlu0 %679, %v677
        %v681 = vpop.permute.xlu0 %680
        %v685 = vcombine.high %v674, %v674
        %vm686 = vcmask 23552
        %v688 = vsel %vm686, %v676, 0
        %vm690 = vcmask 1042432
        %v691 = vsel %vm690, %v674, 0
        %v693 = vsel %vm690, %v685, 0
        %v695 = vsel %vm690, %v675, 0
        %697 = vmatprep.subr.mxu0 0.0
        %698 = vmatpush1.msra.mxu0 0.0
        %699 = vmatprep.subr.mxu0 0.0
        %700 = vmatpush1.msra.mxu0 0.0
        %701 = vmatprep.subr.mxu0 0.0
        %702 = vmatpush1.msra.mxu0 0.0
        %703 = vmatprep.subr.mxu0 0.0
        %704 = vmatpush1.msra.mxu0 0.0
        %705 = vmatprep.subr.mxu0 0.0
        %706 = vmatpush1.msra.mxu0 0.0
        %707 = vmatprep.subr.mxu0 0.0
        %708 = vmatpush1.msra.mxu0 0.0
        %709 = vmatprep.subr.mxu0 0.0
        %710 = vmatpush1.msra.mxu0 0.0
        %711 = vmatprep.subr.mxu0 0.0
        %712 = vmatpush1.msra.mxu0 0.0
        %713 = vmatprep.subr.mxu0 0.0
        %714 = vmatpush1.msra.mxu0 0.0
        %715 = vmatprep.subr.mxu0 0.0
        %716 = vmatpush1.msra.mxu0 0.0
        %717 = vmatprep.subr.mxu0 0.0
        %718 = vmatpush1.msra.mxu0 0.0
        %719 = vmatprep.subr.mxu0 0.0
        %720 = vmatpush1.msra.mxu0 0.0
        %721 = vmatprep.subr.mxu0 0.0
        %722 = vmatpush1.msra.mxu0 0.0
        %723 = vmatprep.subr.mxu0 0.0
        %724 = vmatpush1.msra.mxu0 0.0
        %725 = vmatprep.subr.mxu0 0.0
        %726 = vmatpush1.msra.mxu0 0.0
        %727 = vmatprep.subr.mxu0 %v693
        %728 = vmatpush1.msra.mxu0 %v691
        %729 = vmatprep.subr.mxu0 0.0
        %730 = vmatpush2.msra.mxu0 0.0
        %731 = vmatprep.subr.mxu0 0.0
        %732 = vmatpush2.msra.mxu0 0.0
        %733 = vmatprep.subr.mxu0 0.0
        %734 = vmatpush2.msra.mxu0 0.0
        %735 = vmatprep.subr.mxu0 0.0
        %736 = vmatpush2.msra.mxu0 0.0
        %737 = vmatprep.subr.mxu0 0.0
        %738 = vmatpush2.msra.mxu0 0.0
        %739 = vmatprep.subr.mxu0 0.0
        %740 = vmatpush2.msra.mxu0 0.0
        %741 = vmatprep.subr.mxu0 0.0
        %742 = vmatpush2.msra.mxu0 0.0
        %743 = vmatprep.subr.mxu0 0.0
        %744 = vmatpush2.msra.mxu0 0.0
        %745 = vmatprep.subr.mxu0 0.0
        %746 = vmatpush2.msra.mxu0 0.0
        %747 = vmatprep.subr.mxu0 0.0
        %748 = vmatpush2.msra.mxu0 0.0
        %749 = vmatprep.subr.mxu0 0.0
        %750 = vmatpush2.msra.mxu0 0.0
        %751 = vmatprep.subr.mxu0 0.0
        %752 = vmatpush2.msra.mxu0 0.0
        %753 = vmatprep.subr.mxu0 0.0
        %754 = vmatpush2.msra.mxu0 0.0
        %755 = vmatprep.subr.mxu0 0.0
        %756 = vmatpush2.msra.mxu0 0.0
        %757 = vmatprep.subr.mxu0 0.0
        %758 = vmatpush2.msra.mxu0 0.0
        %759 = vmatprep.subr.mxu0 0.0
        %760 = vmatpush2.msra.mxu0 0.0
        %761 = vmatprep.mubr.f32.mxu0 0.0
        %762 = vmatmul.mubr.f32.gmra.mxu0 %v688
        %v763 = vpop.f32.mrf.mxu0
        %v764 = vadd.f32 %v681, %v763
        %v765 = vpop.f32.mrf.mxu0
        %v766 = vadd.f32 %v681, %v765
        %767 = vdwg.mxu0
        %768 = vmatprep.subr.mxu0 0.0
        %769 = vmatpush1.msra.mxu0 0.0
        %770 = vmatprep.subr.mxu0 0.0
        %771 = vmatpush1.msra.mxu0 0.0
        %772 = vmatprep.subr.mxu0 0.0
        %773 = vmatpush1.msra.mxu0 0.0
        %774 = vmatprep.subr.mxu0 0.0
        %775 = vmatpush1.msra.mxu0 0.0
        %776 = vmatprep.subr.mxu0 0.0
        %777 = vmatpush1.msra.mxu0 0.0
        %778 = vmatprep.subr.mxu0 0.0
        %779 = vmatpush1.msra.mxu0 0.0
        %780 = vmatprep.subr.mxu0 0.0
        %781 = vmatpush1.msra.mxu0 0.0
        %782 = vmatprep.subr.mxu0 0.0
        %783 = vmatpush1.msra.mxu0 0.0
        %784 = vmatprep.subr.mxu0 0.0
        %785 = vmatpush1.msra.mxu0 0.0
        %786 = vmatprep.subr.mxu0 0.0
        %787 = vmatpush1.msra.mxu0 0.0
        %788 = vmatprep.subr.mxu0 0.0
        %789 = vmatpush1.msra.mxu0 0.0
        %790 = vmatprep.subr.mxu0 0.0
        %791 = vmatpush1.msra.mxu0 0.0
        %792 = vmatprep.subr.mxu0 0.0
        %793 = vmatpush1.msra.mxu0 0.0
        %794 = vmatprep.subr.mxu0 0.0
        %795 = vmatpush1.msra.mxu0 0.0
        %796 = vmatprep.subr.mxu0 0.0
        %797 = vmatpush1.msra.mxu0 0.0
        %798 = vmatprep.subr.mxu0 0.0
        %799 = vmatpush1.msra.mxu0 %v695
        %800 = vmatprep.subr.mxu0 0.0
        %801 = vmatpush2.msra.mxu0 0.0
        %802 = vmatprep.subr.mxu0 0.0
        %803 = vmatpush2.msra.mxu0 0.0
        %804 = vmatprep.subr.mxu0 0.0
        %805 = vmatpush2.msra.mxu0 0.0
        %806 = vmatprep.subr.mxu0 0.0
        %807 = vmatpush2.msra.mxu0 0.0
        %808 = vmatprep.subr.mxu0 0.0
        %809 = vmatpush2.msra.mxu0 0.0
        %810 = vmatprep.subr.mxu0 0.0
        %811 = vmatpush2.msra.mxu0 0.0
        %812 = vmatprep.subr.mxu0 0.0
        %813 = vmatpush2.msra.mxu0 0.0
        %814 = vmatprep.subr.mxu0 0.0
        %815 = vmatpush2.msra.mxu0 0.0
        %816 = vmatprep.subr.mxu0 0.0
        %817 = vmatpush2.msra.mxu0 0.0
        %818 = vmatprep.subr.mxu0 0.0
        %819 = vmatpush2.msra.mxu0 0.0
        %820 = vmatprep.subr.mxu0 0.0
        %821 = vmatpush2.msra.mxu0 0.0
        %822 = vmatprep.subr.mxu0 0.0
        %823 = vmatpush2.msra.mxu0 0.0
        %824 = vmatprep.subr.mxu0 0.0
        %825 = vmatpush2.msra.mxu0 0.0
        %826 = vmatprep.subr.mxu0 0.0
        %827 = vmatpush2.msra.mxu0 0.0
        %828 = vmatprep.subr.mxu0 0.0
        %829 = vmatpush2.msra.mxu0 0.0
        %830 = vmatprep.subr.mxu0 0.0
        %831 = vmatpush2.msra.mxu0 0.0
        %832 = vmatprep.mubr.f32.mxu0 0.0
        %833 = vmatmul.mubr.f32.gmra.mxu0 %v688
        %v834 = vpop.f32.mrf.mxu0
        %v835 = vadd.f32 %v681, %v834
        %v836 = vpop.f32.mrf.mxu0
        %837 = vdwg.mxu0
        %v838 = vmul.f32 %v764, %v658
        %v839 = vmul.f32 %v766, %v662
        %v840 = vmul.f32 %v835, %v666
        %v844 = vcombine.low %v838, %v839
        %846 = vst [vmem:[#allocation4] sm:$0x77] %v844
        %847 = vst [vmem:[#allocation4 + $0x8] sm:$0x7] %v840
        %v848 = vld [vmem:[%s9] sm:$0x1]
        %849 = vrot.lane.b32.xlu0 %v838, 19
        %v850 = vpop.permute.xlu0 %849
        %851 = vrot.lane.b32.xlu0 %v839, 19
        %v852 = vpop.permute.xlu0 %851
        %853 = vrot.lane.b32.xlu0 %v840, 19
        %v854 = vpop.permute.xlu0 %853
        %v855 = vlaneseq
        %v856 = vand.u32 %v855, 127
        %vm857 = vcmp.lt.s32.totalorder %v856, 19
        %v858 = vsel %vm857, %v852, %v854
        %v859 = vsel %vm857, %v850, %v852
        %v860 = vsel %vm857, %v854, %v850
        %861 = vrot.lane.b32.xlu0 %v838, 18
        %v862 = vpop.permute.xlu0 %861
        %863 = vrot.lane.b32.xlu0 %v839, 18
        %v864 = vpop.permute.xlu0 %863
        %865 = vrot.lane.b32.xlu0 %v840, 18
        %v866 = vpop.permute.xlu0 %865
        %vm867 = vcmp.lt.s32.totalorder %v856, 18
        %v868 = vsel %vm867, %v864, %v866
        %v869 = vsel %vm867, %v862, %v864
        %v870 = vsel %vm867, %v866, %v862
        %871 = vrot.lane.b32.xlu0 %v838, 17
        %v872 = vpop.permute.xlu0 %871
        %873 = vrot.lane.b32.xlu0 %v839, 17
        %v874 = vpop.permute.xlu0 %873
        %875 = vrot.lane.b32.xlu0 %v840, 17
        %v876 = vpop.permute.xlu0 %875
        %vm877 = vcmp.lt.s32.totalorder %v856, 17
        %v878 = vsel %vm877, %v874, %v876
        %v879 = vsel %vm877, %v872, %v874
        %v880 = vsel %vm877, %v876, %v872
        %881 = vrot.lane.b32.xlu0 %v838, 1
        %v882 = vpop.permute.xlu0 %881
        %883 = vrot.lane.b32.xlu0 %v839, 1
        %v884 = vpop.permute.xlu0 %883
        %885 = vrot.lane.b32.xlu0 %v840, 1
        %v886 = vpop.permute.xlu0 %885
        %vm887 = vcmp.lt.s32.totalorder %v856, 1
        %v888 = vsel %vm887, %v884, %v886
        %v889 = vsel %vm887, %v882, %v884
        %v890 = vsel %vm887, %v886, %v882
        %891 = vrot.lane.b32.xlu0 %v838, 127
        %v892 = vpop.permute.xlu0 %891
        %893 = vrot.lane.b32.xlu0 %v839, 127
        %v894 = vpop.permute.xlu0 %893
        %895 = vrot.lane.b32.xlu0 %v840, 127
        %v896 = vpop.permute.xlu0 %895
        %vm897 = vcmp.lt.s32.totalorder %v856, 127
        %v898 = vsel %vm897, %v894, %v896
        %v899 = vsel %vm897, %v892, %v894
        %v900 = vsel %vm897, %v896, %v892
        %901 = vrot.lane.b32.xlu0 %v838, 111
        %v902 = vpop.permute.xlu0 %901
        %903 = vrot.lane.b32.xlu0 %v839, 111
        %v904 = vpop.permute.xlu0 %903
        %905 = vrot.lane.b32.xlu0 %v840, 111
        %v906 = vpop.permute.xlu0 %905
        %vm907 = vcmp.lt.s32.totalorder %v856, 111
        %v908 = vsel %vm907, %v904, %v906
        %v909 = vsel %vm907, %v902, %v904
        %v910 = vsel %vm907, %v906, %v902
        %911 = vrot.lane.b32.xlu0 %v838, 110
        %v912 = vpop.permute.xlu0 %911
        %913 = vrot.lane.b32.xlu0 %v839, 110
        %v914 = vpop.permute.xlu0 %913
        %915 = vrot.lane.b32.xlu0 %v840, 110
        %v916 = vpop.permute.xlu0 %915
        %vm917 = vcmp.lt.s32.totalorder %v856, 110
        %v918 = vsel %vm917, %v914, %v916
        %v919 = vsel %vm917, %v912, %v914
        %v920 = vsel %vm917, %v916, %v912
        %921 = vrot.lane.b32.xlu0 %v838, 109
        %v922 = vpop.permute.xlu0 %921
        %923 = vrot.lane.b32.xlu0 %v839, 109
        %v924 = vpop.permute.xlu0 %923
        %925 = vrot.lane.b32.xlu0 %v840, 109
        %v926 = vpop.permute.xlu0 %925
        %vm927 = vcmp.lt.s32.totalorder %v856, 109
        %v928 = vsel %vm927, %v924, %v926
        %v929 = vsel %vm927, %v922, %v924
        %v930 = vsel %vm927, %v926, %v922
        %v934 = vrot.slane %v870, 5
        %v935 = vrot.slane %v869, 5
        %v936 = vrot.slane %v868, 5
        %v943 = vrot.slane %v880, 2
        %v944 = vrot.slane %v879, 2
        %v945 = vrot.slane %v878, 2
        %v952 = vrot.slane %v890, 7
        %v953 = vrot.slane %v889, 7
        %v954 = vrot.slane %v888, 7
        %v958 = vrot.slane %v838, 4
        %v959 = vrot.slane %v839, 4
        %v960 = vrot.slane %v840, 4
        %v967 = vrot.slane %v899, 1
        %v968 = vrot.slane %v898, 1
        %v969 = vrot.slane %v900, 1
        %v976 = vrot.slane %v909, 6
        %v977 = vrot.slane %v908, 6
        %v978 = vrot.slane %v910, 6
        %v985 = vrot.slane %v919, 3
        %v986 = vrot.slane %v918, 3
        %v987 = vrot.slane %v920, 3
        %v991 = vsel %vm690, %v860, %v934
        %v992 = vsel %vm690, %v859, %v935
        %v993 = vsel %vm690, %v858, %v936
        %vm994 = vcmask 1045504
        %v995 = vsel %vm994, %v991, %v943
        %v996 = vsel %vm994, %v992, %v944
        %v997 = vsel %vm994, %v993, %v945
        %vm998 = vcmask 1040384
        %v999 = vsel %vm998, %v943, %v952
        %v1000 = vsel %vm998, %v944, %v953
        %v1001 = vsel %vm998, %v945, %v954
        %vm1002 = vcmask 1043456
        %v1003 = vsel %vm1002, %v999, %v958
        %v1004 = vsel %vm1002, %v1000, %v959
        %v1005 = vsel %vm1002, %v1001, %v960
        %vm1006 = vcmask 1046528
        %v1007 = vsel %vm1006, %v1003, %v967
        %v1008 = vsel %vm1006, %v1004, %v968
        %v1009 = vsel %vm1006, %v1005, %v969
        %vm1010 = vcmask 1041408
        %v1011 = vsel %vm1010, %v967, %v976
        %v1012 = vsel %vm1010, %v968, %v977
        %v1013 = vsel %vm1010, %v969, %v978
        %vm1014 = vcmask 1044480
        %v1015 = vsel %vm1014, %v1011, %v985
        %v1016 = vsel %vm1014, %v1012, %v986
        %v1017 = vsel %vm1014, %v1013, %v987
        %v1018 = vpack.c.bf16 %v1007, %v995
        %v1019 = vpack.c.bf16 %v1008, %v996
        %v1020 = vpack.c.bf16 %v1009, %v997
        %v1021 = vpack.c.bf16 %v929, %v1015
        %v1022 = vpack.c.bf16 %v928, %v1016
        %v1023 = vpack.c.bf16 %v930, %v1017
        %v1024 = vld [vmem:[%s5] sm:$0xff]
        %v1025 = vld [vmem:[%s5 + $0x8] sm:$0xff]
        %v1026 = vld [vmem:[%s5 + $0x10] sm:$0xff]
        %v1027 = vld [vmem:[%s5 + $0x18] sm:$0xff]
        %v1028 = vpack.c.bf16 %v1025, %v1024
        %v1029 = vpack.c.bf16 %v1027, %v1026
        %v1030 = vld [vmem:[%s6] sm:$0xff]
        %v1031 = vld [vmem:[%s6 + $0x8] sm:$0xff]
        %v1032 = vld [vmem:[%s6 + $0x10] sm:$0xff]
        %v1033 = vld [vmem:[%s6 + $0x18] sm:$0xff]
        %1035 = vset.pattern.permute.xlu0 0
        %1036 = vperm.xlu0 %1035, %v1030
        %v1037 = vpop.permute.xlu0 %1036
        %1040 = vset.pattern.permute.xlu0 0
        %1041 = vperm.xlu0 %1040, %v1031
        %v1042 = vpop.permute.xlu0 %1041
        %1045 = vset.pattern.permute.xlu0 0
        %1046 = vperm.xlu0 %1045, %v1032
        %v1047 = vpop.permute.xlu0 %1046
        %1050 = vset.pattern.permute.xlu0 0
        %1051 = vperm.xlu0 %1050, %v1033
        %v1052 = vpop.permute.xlu0 %1051
        %vm1054 = vcmask 220160
        %v1056 = vsel %vm1054, %v1028, 0
        %v1059 = vsel %vm1054, %v1029, 0
        %v1061 = vsel %vm1014, 4294967295, 65535
        %v1062 = vsel %vm994, %v1061, 0
        %v1064 = vand.u32 %v1021, %v1062
        %v1067 = vand.u32 %v1022, %v1062
        %v1070 = vand.u32 %v1023, %v1062
        %1072 = vmatprep.subr.bf16.mxu0 0
        %1073 = vmatpush1.bf16.msra.mxu0 0
        %1074 = vmatprep.subr.bf16.mxu0 0
        %1075 = vmatpush1.bf16.msra.mxu0 0
        %1076 = vmatprep.subr.bf16.mxu0 0
        %1077 = vmatpush1.bf16.msra.mxu0 0
        %1078 = vmatprep.subr.bf16.mxu0 0
        %1079 = vmatpush1.bf16.msra.mxu0 0
        %1080 = vmatprep.subr.bf16.mxu0 0
        %1081 = vmatpush1.bf16.msra.mxu0 0
        %1082 = vmatprep.subr.bf16.mxu0 0
        %1083 = vmatpush1.bf16.msra.mxu0 0
        %1084 = vmatprep.subr.bf16.mxu0 %v1067
        %1085 = vmatpush1.bf16.msra.mxu0 %v1064
        %1086 = vmatprep.subr.bf16.mxu0 %v1019
        %1087 = vmatpush1.bf16.msra.mxu0 %v1018
        %1088 = vmatprep.subr.bf16.mxu0 0
        %1089 = vmatpush2.bf16.msra.mxu0 0
        %1090 = vmatprep.subr.bf16.mxu0 0
        %1091 = vmatpush2.bf16.msra.mxu0 0
        %1092 = vmatprep.subr.bf16.mxu0 0
        %1093 = vmatpush2.bf16.msra.mxu0 0
        %1094 = vmatprep.subr.bf16.mxu0 0
        %1095 = vmatpush2.bf16.msra.mxu0 0
        %1096 = vmatprep.subr.bf16.mxu0 0
        %1097 = vmatpush2.bf16.msra.mxu0 0
        %1098 = vmatprep.subr.bf16.mxu0 0
        %1099 = vmatpush2.bf16.msra.mxu0 0
        %1100 = vmatprep.subr.bf16.mxu0 0
        %1101 = vmatpush2.bf16.msra.mxu0 0
        %1102 = vmatprep.subr.bf16.mxu0 0
        %1103 = vmatpush2.bf16.msra.mxu0 0
        %1104 = vmatprep.mubr.bf16.mxu0 0
        %1105 = vmatmul.mubr.bf16.gmra.mxu0 %v1056
        %v1106 = vpop.f32.mrf.mxu0
        %v1107 = vadd.f32 %v1037, %v1106
        %v1108 = vpop.f32.mrf.mxu0
        %v1109 = vadd.f32 %v1037, %v1108
        %v1110 = vpop.f32.mrf.mxu0
        %v1111 = vadd.f32 %v1042, %v1110
        %v1112 = vpop.f32.mrf.mxu0
        %v1113 = vadd.f32 %v1042, %v1112
        %1114 = vmatprep.mubr.bf16.mxu0 0
        %1115 = vmatmul.mubr.bf16.gmra.mxu0 %v1059
        %v1116 = vpop.f32.mrf.mxu0
        %v1117 = vadd.f32 %v1047, %v1116
        %v1118 = vpop.f32.mrf.mxu0
        %v1119 = vadd.f32 %v1047, %v1118
        %v1120 = vpop.f32.mrf.mxu0
        %v1121 = vadd.f32 %v1052, %v1120
        %v1122 = vpop.f32.mrf.mxu0
        %v1123 = vadd.f32 %v1052, %v1122
        %1124 = vdwg.mxu0
        %1125 = vmatprep.subr.bf16.mxu0 0
        %1126 = vmatpush1.bf16.msra.mxu0 0
        %1127 = vmatprep.subr.bf16.mxu0 0
        %1128 = vmatpush1.bf16.msra.mxu0 0
        %1129 = vmatprep.subr.bf16.mxu0 0
        %1130 = vmatpush1.bf16.msra.mxu0 0
        %1131 = vmatprep.subr.bf16.mxu0 0
        %1132 = vmatpush1.bf16.msra.mxu0 0
        %1133 = vmatprep.subr.bf16.mxu0 0
        %1134 = vmatpush1.bf16.msra.mxu0 0
        %1135 = vmatprep.subr.bf16.mxu0 0
        %1136 = vmatpush1.bf16.msra.mxu0 0
        %1137 = vmatprep.subr.bf16.mxu0 0
        %1138 = vmatpush1.bf16.msra.mxu0 %v1070
        %1139 = vmatprep.subr.bf16.mxu0 0
        %1140 = vmatpush1.bf16.msra.mxu0 %v1020
        %1141 = vmatprep.subr.bf16.mxu0 0
        %1142 = vmatpush2.bf16.msra.mxu0 0
        %1143 = vmatprep.subr.bf16.mxu0 0
        %1144 = vmatpush2.bf16.msra.mxu0 0
        %1145 = vmatprep.subr.bf16.mxu0 0
        %1146 = vmatpush2.bf16.msra.mxu0 0
        %1147 = vmatprep.subr.bf16.mxu0 0
        %1148 = vmatpush2.bf16.msra.mxu0 0
        %1149 = vmatprep.subr.bf16.mxu0 0
        %1150 = vmatpush2.bf16.msra.mxu0 0
        %1151 = vmatprep.subr.bf16.mxu0 0
        %1152 = vmatpush2.bf16.msra.mxu0 0
        %1153 = vmatprep.subr.bf16.mxu0 0
        %1154 = vmatpush2.bf16.msra.mxu0 0
        %1155 = vmatprep.subr.bf16.mxu0 0
        %1156 = vmatpush2.bf16.msra.mxu0 0
        %1157 = vmatprep.mubr.bf16.mxu0 0
        %1158 = vmatmul.mubr.bf16.gmra.mxu0 %v1056
        %v1159 = vpop.f32.mrf.mxu0
        %v1160 = vadd.f32 %v1037, %v1159
        %v1161 = vpop.f32.mrf.mxu0
        %v1162 = vpop.f32.mrf.mxu0
        %v1163 = vadd.f32 %v1042, %v1162
        %v1164 = vpop.f32.mrf.mxu0
        %1165 = vmatprep.mubr.bf16.mxu0 0
        %1166 = vmatmul.mubr.bf16.gmra.mxu0 %v1059
        %v1167 = vpop.f32.mrf.mxu0
        %v1168 = vadd.f32 %v1047, %v1167
        %v1169 = vpop.f32.mrf.mxu0
        %v1170 = vpop.f32.mrf.mxu0
        %v1171 = vadd.f32 %v1052, %v1170
        %v1172 = vpop.f32.mrf.mxu0
        %1173 = vdwg.mxu0
        %v1174 = vmax.f32 %v1107, 0.0
        %v1175 = vmax.f32 %v1109, 0.0
        %v1176 = vmax.f32 %v1160, 0.0
        %v1177 = vmax.f32 %v1111, 0.0
        %v1178 = vmax.f32 %v1113, 0.0
        %v1179 = vmax.f32 %v1163, 0.0
        %v1180 = vmax.f32 %v1117, 0.0
        %v1181 = vmax.f32 %v1119, 0.0
        %v1182 = vmax.f32 %v1168, 0.0
        %v1183 = vmax.f32 %v1121, 0.0
        %v1184 = vmax.f32 %v1123, 0.0
        %v1185 = vmax.f32 %v1171, 0.0
        %v1186 = vmin.f32 %v1107, 0.0
        %v1187 = vmin.f32 %v1109, 0.0
        %v1188 = vmin.f32 %v1160, 0.0
        %v1189 = vmin.f32 %v1111, 0.0
        %v1190 = vmin.f32 %v1113, 0.0
        %v1191 = vmin.f32 %v1163, 0.0
        %v1192 = vmin.f32 %v1117, 0.0
        %v1193 = vmin.f32 %v1119, 0.0
        %v1194 = vmin.f32 %v1168, 0.0
        %v1195 = vmin.f32 %v1121, 0.0
        %v1196 = vmin.f32 %v1123, 0.0
        %v1197 = vmin.f32 %v1171, 0.0
        %v1199 = vlaneseq
        %v1200 = vshrl.u32 %v1199, 7
        %v1201 = vsub.s32 0, %v1200
        %v1202 = vrot.slane %v848, %v1201
        %1203 = vset.pattern.permute.xlu0 0
        %1204 = vperm.xlu0 %1203, %v1202
        %v1205 = vpop.permute.xlu0 %1204
        %v1207 = vmul.f32 %v1205, %v1186
        %v1208 = vmul.f32 %v1205, %v1187
        %v1209 = vmul.f32 %v1205, %v1188
        %v1210 = vmul.f32 %v1205, %v1189
        %v1211 = vmul.f32 %v1205, %v1190
        %v1212 = vmul.f32 %v1205, %v1191
        %v1213 = vmul.f32 %v1205, %v1192
        %v1214 = vmul.f32 %v1205, %v1193
        %v1215 = vmul.f32 %v1205, %v1194
        %v1216 = vmul.f32 %v1205, %v1195
        %v1217 = vmul.f32 %v1205, %v1196
        %v1218 = vmul.f32 %v1205, %v1197
        %v1219 = vadd.f32 %v1174, %v1207
        %v1220 = vadd.f32 %v1175, %v1208
        %v1221 = vadd.f32 %v1176, %v1209
        %v1222 = vadd.f32 %v1177, %v1210
        %v1223 = vadd.f32 %v1178, %v1211
        %v1224 = vadd.f32 %v1179, %v1212
        %v1225 = vadd.f32 %v1180, %v1213
        %v1226 = vadd.f32 %v1181, %v1214
        %v1227 = vadd.f32 %v1182, %v1215
        %v1228 = vadd.f32 %v1183, %v1216
        %v1229 = vadd.f32 %v1184, %v1217
        %v1230 = vadd.f32 %v1185, %v1218
        %v1231 = vld [vmem:[%s7] sm:$0xff]
        %v1232 = vld [vmem:[%s8] sm:$0xff]
        %1234 = vset.pattern.permute.xlu0 0
        %1235 = vperm.xlu0 %1234, %v1232
        %v1236 = vpop.permute.xlu0 %1235
        %vm1238 = vcmask 261120
        %v1240 = vsel %vm1238, %v1231, 0
        %1242 = vmatprep.subr.mxu0 0.0
        %1243 = vmatpush1.msra.mxu0 0.0
        %1244 = vmatprep.subr.mxu0 0.0
        %1245 = vmatpush1.msra.mxu0 0.0
        %1246 = vmatprep.subr.mxu0 0.0
        %1247 = vmatpush1.msra.mxu0 0.0
        %1248 = vmatprep.subr.mxu0 0.0
        %1249 = vmatpush1.msra.mxu0 0.0
        %1250 = vmatprep.subr.mxu0 0.0
        %1251 = vmatpush1.msra.mxu0 0.0
        %1252 = vmatprep.subr.mxu0 0.0
        %1253 = vmatpush1.msra.mxu0 0.0
        %1254 = vmatprep.subr.mxu0 0.0
        %1255 = vmatpush1.msra.mxu0 0.0
        %1256 = vmatprep.subr.mxu0 0.0
        %1257 = vmatpush1.msra.mxu0 0.0
        %1258 = vmatprep.subr.mxu0 0.0
        %1259 = vmatpush1.msra.mxu0 0.0
        %1260 = vmatprep.subr.mxu0 0.0
        %1261 = vmatpush1.msra.mxu0 0.0
        %1262 = vmatprep.subr.mxu0 0.0
        %1263 = vmatpush1.msra.mxu0 0.0
        %1264 = vmatprep.subr.mxu0 0.0
        %1265 = vmatpush1.msra.mxu0 0.0
        %1266 = vmatprep.subr.mxu0 %v1229
        %1267 = vmatpush1.msra.mxu0 %v1228
        %1268 = vmatprep.subr.mxu0 %v1226
        %1269 = vmatpush1.msra.mxu0 %v1225
        %1270 = vmatprep.subr.mxu0 %v1223
        %1271 = vmatpush1.msra.mxu0 %v1222
        %1272 = vmatprep.subr.mxu0 %v1220
        %1273 = vmatpush1.msra.mxu0 %v1219
        %1274 = vmatprep.subr.mxu0 0.0
        %1275 = vmatpush2.msra.mxu0 0.0
        %1276 = vmatprep.subr.mxu0 0.0
        %1277 = vmatpush2.msra.mxu0 0.0
        %1278 = vmatprep.subr.mxu0 0.0
        %1279 = vmatpush2.msra.mxu0 0.0
        %1280 = vmatprep.subr.mxu0 0.0
        %1281 = vmatpush2.msra.mxu0 0.0
        %1282 = vmatprep.subr.mxu0 0.0
        %1283 = vmatpush2.msra.mxu0 0.0
        %1284 = vmatprep.subr.mxu0 0.0
        %1285 = vmatpush2.msra.mxu0 0.0
        %1286 = vmatprep.subr.mxu0 0.0
        %1287 = vmatpush2.msra.mxu0 0.0
        %1288 = vmatprep.subr.mxu0 0.0
        %1289 = vmatpush2.msra.mxu0 0.0
        %1290 = vmatprep.subr.mxu0 0.0
        %1291 = vmatpush2.msra.mxu0 0.0
        %1292 = vmatprep.subr.mxu0 0.0
        %1293 = vmatpush2.msra.mxu0 0.0
        %1294 = vmatprep.subr.mxu0 0.0
        %1295 = vmatpush2.msra.mxu0 0.0
        %1296 = vmatprep.subr.mxu0 0.0
        %1297 = vmatpush2.msra.mxu0 0.0
        %1298 = vmatprep.subr.mxu0 0.0
        %1299 = vmatpush2.msra.mxu0 0.0
        %1300 = vmatprep.subr.mxu0 0.0
        %1301 = vmatpush2.msra.mxu0 0.0
        %1302 = vmatprep.subr.mxu0 0.0
        %1303 = vmatpush2.msra.mxu0 0.0
        %1304 = vmatprep.subr.mxu0 0.0
        %1305 = vmatpush2.msra.mxu0 0.0
        %1306 = vmatprep.mubr.f32.mxu0 0.0
        %1307 = vmatmul.mubr.f32.gmra.mxu0 %v1240
        %v1308 = vpop.f32.mrf.mxu0
        %v1309 = vadd.f32 %v1236, %v1308
        %v1310 = vpop.f32.mrf.mxu0
        %v1311 = vadd.f32 %v1236, %v1310
        %1312 = vdwg.mxu0
        %1313 = vmatprep.subr.mxu0 0.0
        %1314 = vmatpush1.msra.mxu0 0.0
        %1315 = vmatprep.subr.mxu0 0.0
        %1316 = vmatpush1.msra.mxu0 0.0
        %1317 = vmatprep.subr.mxu0 0.0
        %1318 = vmatpush1.msra.mxu0 0.0
        %1319 = vmatprep.subr.mxu0 0.0
        %1320 = vmatpush1.msra.mxu0 0.0
        %1321 = vmatprep.subr.mxu0 0.0
        %1322 = vmatpush1.msra.mxu0 0.0
        %1323 = vmatprep.subr.mxu0 0.0
        %1324 = vmatpush1.msra.mxu0 0.0
        %1325 = vmatprep.subr.mxu0 0.0
        %1326 = vmatpush1.msra.mxu0 0.0
        %1327 = vmatprep.subr.mxu0 0.0
        %1328 = vmatpush1.msra.mxu0 0.0
        %1329 = vmatprep.subr.mxu0 0.0
        %1330 = vmatpush1.msra.mxu0 0.0
        %1331 = vmatprep.subr.mxu0 0.0
        %1332 = vmatpush1.msra.mxu0 0.0
        %1333 = vmatprep.subr.mxu0 0.0
        %1334 = vmatpush1.msra.mxu0 0.0
        %1335 = vmatprep.subr.mxu0 0.0
        %1336 = vmatpush1.msra.mxu0 0.0
        %1337 = vmatprep.subr.mxu0 0.0
        %1338 = vmatpush1.msra.mxu0 %v1230
        %1339 = vmatprep.subr.mxu0 0.0
        %1340 = vmatpush1.msra.mxu0 %v1227
        %1341 = vmatprep.subr.mxu0 0.0
        %1342 = vmatpush1.msra.mxu0 %v1224
        %1343 = vmatprep.subr.mxu0 0.0
        %1344 = vmatpush1.msra.mxu0 %v1221
        %1345 = vmatprep.subr.mxu0 0.0
        %1346 = vmatpush2.msra.mxu0 0.0
        %1347 = vmatprep.subr.mxu0 0.0
        %1348 = vmatpush2.msra.mxu0 0.0
        %1349 = vmatprep.subr.mxu0 0.0
        %1350 = vmatpush2.msra.mxu0 0.0
        %1351 = vmatprep.subr.mxu0 0.0
        %1352 = vmatpush2.msra.mxu0 0.0
        %1353 = vmatprep.subr.mxu0 0.0
        %1354 = vmatpush2.msra.mxu0 0.0
        %1355 = vmatprep.subr.mxu0 0.0
        %1356 = vmatpush2.msra.mxu0 0.0
        %1357 = vmatprep.subr.mxu0 0.0
        %1358 = vmatpush2.msra.mxu0 0.0
        %1359 = vmatprep.subr.mxu0 0.0
        %1360 = vmatpush2.msra.mxu0 0.0
        %1361 = vmatprep.subr.mxu0 0.0
        %1362 = vmatpush2.msra.mxu0 0.0
        %1363 = vmatprep.subr.mxu0 0.0
        %1364 = vmatpush2.msra.mxu0 0.0
        %1365 = vmatprep.subr.mxu0 0.0
        %1366 = vmatpush2.msra.mxu0 0.0
        %1367 = vmatprep.subr.mxu0 0.0
        %1368 = vmatpush2.msra.mxu0 0.0
        %1369 = vmatprep.subr.mxu0 0.0
        %1370 = vmatpush2.msra.mxu0 0.0
        %1371 = vmatprep.subr.mxu0 0.0
        %1372 = vmatpush2.msra.mxu0 0.0
        %1373 = vmatprep.subr.mxu0 0.0
        %1374 = vmatpush2.msra.mxu0 0.0
        %1375 = vmatprep.subr.mxu0 0.0
        %1376 = vmatpush2.msra.mxu0 0.0
        %1377 = vmatprep.mubr.f32.mxu0 0.0
        %1378 = vmatmul.mubr.f32.gmra.mxu0 %v1240
        %v1379 = vpop.f32.mrf.mxu0
        %v1380 = vadd.f32 %v1236, %v1379
        %v1381 = vpop.f32.mrf.mxu0
        %1382 = vdwg.mxu0
        %v1383 = vmax.f32 %v1309, 0.0
        %v1384 = vmax.f32 %v1311, 0.0
        %v1385 = vmax.f32 %v1380, 0.0
        %v1386 = vmin.f32 %v1309, 0.0
        %v1387 = vmin.f32 %v1311, 0.0
        %v1388 = vmin.f32 %v1380, 0.0
        %1389 = vset.pattern.permute.xlu0 1
        %1390 = vperm.xlu0 %1389, %v1202
        %v1391 = vpop.permute.xlu0 %1390
        %v1393 = vmul.f32 %v1391, %v1386
        %v1394 = vmul.f32 %v1391, %v1387
        %v1395 = vmul.f32 %v1391, %v1388
        %v1396 = vadd.f32 %v1383, %v1393
        %v1397 = vadd.f32 %v1384, %v1394
        %v1398 = vadd.f32 %v1385, %v1395
        %1399 = vst [vmem:[#allocation2] sm:$0xff] %v1396
        %1400 = vst [vmem:[#allocation2 + $0x8] sm:$0xff] %v1397
        %1401 = vst [vmem:[#allocation2 + $0x10] sm:$0xff] %v1398
        %1402 = vst [vmem:[#allocation3] sm:$0xff] %v1396
        %1403 = vst [vmem:[#allocation3 + $0x8] sm:$0xff] %v1397
        %1404 = vst [vmem:[#allocation3 + $0x10] sm:$0xff] %v1398
      $region104: #{metafpn1_forward.3} parent=99 // pred_fallthru
        _
      %v1405 = vld [vmem:[#allocation2] sm:$0xff]
      %v1406 = vld [vmem:[#allocation2 + $0x8] sm:$0xff]
      %v1407 = vld [vmem:[#allocation2 + $0x10] sm:$0xff]
      %v1408 = vld [vmem:[#allocation3] sm:$0xff]
      %v1409 = vld [vmem:[#allocation3 + $0x8] sm:$0xff]
      %v1410 = vld [vmem:[#allocation3 + $0x10] sm:$0xff]
      %v1411 = vld [vmem:[%s10] sm:$0xff]
      %v1412 = vld [vmem:[%s11] sm:$0xff]
      %1414 = vset.pattern.permute.xlu0 0
      %1415 = vperm.xlu0 %1414, %v1412
      %v1416 = vpop.permute.xlu0 %1415
      %vm1418 = vcmask 130048
      %v1420 = vsel %vm1418, %v1411, 0
      %1422 = vmatprep.subr.mxu0 0.0
      %1423 = vmatpush1.msra.mxu0 0.0
      %1424 = vmatprep.subr.mxu0 0.0
      %1425 = vmatpush1.msra.mxu0 0.0
      %1426 = vmatprep.subr.mxu0 0.0
      %1427 = vmatpush1.msra.mxu0 0.0
      %1428 = vmatprep.subr.mxu0 0.0
      %1429 = vmatpush1.msra.mxu0 0.0
      %1430 = vmatprep.subr.mxu0 0.0
      %1431 = vmatpush1.msra.mxu0 0.0
      %1432 = vmatprep.subr.mxu0 0.0
      %1433 = vmatpush1.msra.mxu0 0.0
      %1434 = vmatprep.subr.mxu0 0.0
      %1435 = vmatpush1.msra.mxu0 0.0
      %1436 = vmatprep.subr.mxu0 0.0
      %1437 = vmatpush1.msra.mxu0 0.0
      %1438 = vmatprep.subr.mxu0 0.0
      %1439 = vmatpush1.msra.mxu0 0.0
      %1440 = vmatprep.subr.mxu0 0.0
      %1441 = vmatpush1.msra.mxu0 0.0
      %1442 = vmatprep.subr.mxu0 0.0
      %1443 = vmatpush1.msra.mxu0 0.0
      %1444 = vmatprep.subr.mxu0 0.0
      %1445 = vmatpush1.msra.mxu0 0.0
      %1446 = vmatprep.subr.mxu0 0.0
      %1447 = vmatpush1.msra.mxu0 0.0
      %1448 = vmatprep.subr.mxu0 0.0
      %1449 = vmatpush1.msra.mxu0 0.0
      %1450 = vmatprep.subr.mxu0 %v1409
      %1451 = vmatpush1.msra.mxu0 %v1408
      %1452 = vmatprep.subr.mxu0 %v1406
      %1453 = vmatpush1.msra.mxu0 %v1405
      %1454 = vmatprep.subr.mxu0 0.0
      %1455 = vmatpush2.msra.mxu0 0.0
      %1456 = vmatprep.subr.mxu0 0.0
      %1457 = vmatpush2.msra.mxu0 0.0
      %1458 = vmatprep.subr.mxu0 0.0
      %1459 = vmatpush2.msra.mxu0 0.0
      %1460 = vmatprep.subr.mxu0 0.0
      %1461 = vmatpush2.msra.mxu0 0.0
      %1462 = vmatprep.subr.mxu0 0.0
      %1463 = vmatpush2.msra.mxu0 0.0
      %1464 = vmatprep.subr.mxu0 0.0
      %1465 = vmatpush2.msra.mxu0 0.0
      %1466 = vmatprep.subr.mxu0 0.0
      %1467 = vmatpush2.msra.mxu0 0.0
      %1468 = vmatprep.subr.mxu0 0.0
      %1469 = vmatpush2.msra.mxu0 0.0
      %1470 = vmatprep.subr.mxu0 0.0
      %1471 = vmatpush2.msra.mxu0 0.0
      %1472 = vmatprep.subr.mxu0 0.0
      %1473 = vmatpush2.msra.mxu0 0.0
      %1474 = vmatprep.subr.mxu0 0.0
      %1475 = vmatpush2.msra.mxu0 0.0
      %1476 = vmatprep.subr.mxu0 0.0
      %1477 = vmatpush2.msra.mxu0 0.0
      %1478 = vmatprep.subr.mxu0 0.0
      %1479 = vmatpush2.msra.mxu0 0.0
      %1480 = vmatprep.subr.mxu0 0.0
      %1481 = vmatpush2.msra.mxu0 0.0
      %1482 = vmatprep.subr.mxu0 0.0
      %1483 = vmatpush2.msra.mxu0 0.0
      %1484 = vmatprep.subr.mxu0 0.0
      %1485 = vmatpush2.msra.mxu0 0.0
      %1486 = vmatprep.mubr.f32.mxu0 0.0
      %1487 = vmatmul.mubr.f32.gmra.mxu0 %v1420
      %v1488 = vpop.f32.mrf.mxu0
      %v1489 = vadd.f32 %v1416, %v1488
      %v1490 = vpop.f32.mrf.mxu0
      %v1491 = vadd.f32 %v1416, %v1490
      %1492 = vdwg.mxu0
      %1493 = vmatprep.subr.mxu0 0.0
      %1494 = vmatpush1.msra.mxu0 0.0
      %1495 = vmatprep.subr.mxu0 0.0
      %1496 = vmatpush1.msra.mxu0 0.0
      %1497 = vmatprep.subr.mxu0 0.0
      %1498 = vmatpush1.msra.mxu0 0.0
      %1499 = vmatprep.subr.mxu0 0.0
      %1500 = vmatpush1.msra.mxu0 0.0
      %1501 = vmatprep.subr.mxu0 0.0
      %1502 = vmatpush1.msra.mxu0 0.0
      %1503 = vmatprep.subr.mxu0 0.0
      %1504 = vmatpush1.msra.mxu0 0.0
      %1505 = vmatprep.subr.mxu0 0.0
      %1506 = vmatpush1.msra.mxu0 0.0
      %1507 = vmatprep.subr.mxu0 0.0
      %1508 = vmatpush1.msra.mxu0 0.0
      %1509 = vmatprep.subr.mxu0 0.0
      %1510 = vmatpush1.msra.mxu0 0.0
      %1511 = vmatprep.subr.mxu0 0.0
      %1512 = vmatpush1.msra.mxu0 0.0
      %1513 = vmatprep.subr.mxu0 0.0
      %1514 = vmatpush1.msra.mxu0 0.0
      %1515 = vmatprep.subr.mxu0 0.0
      %1516 = vmatpush1.msra.mxu0 0.0
      %1517 = vmatprep.subr.mxu0 0.0
      %1518 = vmatpush1.msra.mxu0 0.0
      %1519 = vmatprep.subr.mxu0 0.0
      %1520 = vmatpush1.msra.mxu0 0.0
      %1521 = vmatprep.subr.mxu0 0.0
      %1522 = vmatpush1.msra.mxu0 %v1410
      %1523 = vmatprep.subr.mxu0 0.0
      %1524 = vmatpush1.msra.mxu0 %v1407
      %1525 = vmatprep.subr.mxu0 0.0
      %1526 = vmatpush2.msra.mxu0 0.0
      %1527 = vmatprep.subr.mxu0 0.0
      %1528 = vmatpush2.msra.mxu0 0.0
      %1529 = vmatprep.subr.mxu0 0.0
      %1530 = vmatpush2.msra.mxu0 0.0
      %1531 = vmatprep.subr.mxu0 0.0
      %1532 = vmatpush2.msra.mxu0 0.0
      %1533 = vmatprep.subr.mxu0 0.0
      %1534 = vmatpush2.msra.mxu0 0.0
      %1535 = vmatprep.subr.mxu0 0.0
      %1536 = vmatpush2.msra.mxu0 0.0
      %1537 = vmatprep.subr.mxu0 0.0
      %1538 = vmatpush2.msra.mxu0 0.0
      %1539 = vmatprep.subr.mxu0 0.0
      %1540 = vmatpush2.msra.mxu0 0.0
      %1541 = vmatprep.subr.mxu0 0.0
      %1542 = vmatpush2.msra.mxu0 0.0
      %1543 = vmatprep.subr.mxu0 0.0
      %1544 = vmatpush2.msra.mxu0 0.0
      %1545 = vmatprep.subr.mxu0 0.0
      %1546 = vmatpush2.msra.mxu0 0.0
      %1547 = vmatprep.subr.mxu0 0.0
      %1548 = vmatpush2.msra.mxu0 0.0
      %1549 = vmatprep.subr.mxu0 0.0
      %1550 = vmatpush2.msra.mxu0 0.0
      %1551 = vmatprep.subr.mxu0 0.0
      %1552 = vmatpush2.msra.mxu0 0.0
      %1553 = vmatprep.subr.mxu0 0.0
      %1554 = vmatpush2.msra.mxu0 0.0
      %1555 = vmatprep.subr.mxu0 0.0
      %1556 = vmatpush2.msra.mxu0 0.0
      %1557 = vmatprep.mubr.f32.mxu0 0.0
      %1558 = vmatmul.mubr.f32.gmra.mxu0 %v1420
      %v1559 = vpop.f32.mrf.mxu0
      %v1560 = vadd.f32 %v1416, %v1559
      %v1561 = vpop.f32.mrf.mxu0
      %1562 = vdwg.mxu0
      %v1563 = vmul.f32 %v1489, %v658
      %v1564 = vmul.f32 %v1491, %v662
      %v1565 = vmul.f32 %v1560, %v666
      loop: start=0, step=1, limit=4
      $region105: #{metafpn1_forward.3} parent=99 // loop_pre_header
        _
      $region106: #{metafpn1_forward.3} parent=99 // loop_header
        %s1567 = sphi 0, %s1571
        %p1568 = scmp.ge.s32.totalorder %s1567, 4
        %v1572 = vphi %v1563, %v4741
        %v1573 = vphi %v1564, %v4742
        %v1574 = vphi %v1565, %v4743
      $region107: #{metafpn1_forward.3} parent=99 // loop_header_branch
        %1570 = sbr.rel (%p1568) target = $region111
      $region108: #{metafpn1_forward.3} parent=99 // loop_body
        %s1575 = smul.u32 %s1567, 10
        %s1576 = smul.u32 %s1567, 4
        %s1577 = smul.u32 %s1575, 8
        %s1578 = scalar_lea.vmem %s14, %s1577
        %v1579 = vld [vmem:[%s1578] sm:$0xff]
        %s1580 = scalar_lea.vmem %s15, %s1577
        %v1581 = vld [vmem:[%s1580] sm:$0xff]
        %1582 = vrot.lane.b32.xlu0 %v1572, 19
        %v1583 = vpop.permute.xlu0 %1582
        %1584 = vrot.lane.b32.xlu0 %v1573, 19
        %v1585 = vpop.permute.xlu0 %1584
        %1586 = vrot.lane.b32.xlu0 %v1574, 19
        %v1587 = vpop.permute.xlu0 %1586
        %v1588 = vlaneseq
        %v1589 = vand.u32 %v1588, 127
        %vm1590 = vcmp.lt.s32.totalorder %v1589, 19
        %v1591 = vsel %vm1590, %v1585, %v1587
        %v1592 = vsel %vm1590, %v1583, %v1585
        %v1593 = vsel %vm1590, %v1587, %v1583
        %1594 = vst [vmem:[#allocation5] sm:$0xff] %v1593
        %1595 = vst [vmem:[#allocation5 + $0x8] sm:$0xff] %v1592
        %1596 = vst [vmem:[#allocation5 + $0x10] sm:$0xff] %v1591
        %1597 = vrot.lane.b32.xlu0 %v1572, 18
        %v1598 = vpop.permute.xlu0 %1597
        %1599 = vrot.lane.b32.xlu0 %v1573, 18
        %v1600 = vpop.permute.xlu0 %1599
        %1601 = vrot.lane.b32.xlu0 %v1574, 18
        %v1602 = vpop.permute.xlu0 %1601
        %vm1603 = vcmp.lt.s32.totalorder %v1589, 18
        %v1604 = vsel %vm1603, %v1600, %v1602
        %v1605 = vsel %vm1603, %v1598, %v1600
        %v1606 = vsel %vm1603, %v1602, %v1598
        %1607 = vst [vmem:[#allocation5 + $0x18] sm:$0xff] %v1606
        %1608 = vst [vmem:[#allocation5 + $0x20] sm:$0xff] %v1605
        %1609 = vst [vmem:[#allocation5 + $0x28] sm:$0xff] %v1604
        %1610 = vrot.lane.b32.xlu0 %v1572, 17
        %v1611 = vpop.permute.xlu0 %1610
        %1612 = vrot.lane.b32.xlu0 %v1573, 17
        %v1613 = vpop.permute.xlu0 %1612
        %1614 = vrot.lane.b32.xlu0 %v1574, 17
        %v1615 = vpop.permute.xlu0 %1614
        %vm1616 = vcmp.lt.s32.totalorder %v1589, 17
        %v1617 = vsel %vm1616, %v1613, %v1615
        %v1618 = vsel %vm1616, %v1611, %v1613
        %v1619 = vsel %vm1616, %v1615, %v1611
        %1620 = vst [vmem:[#allocation5 + $0x30] sm:$0xff] %v1619
        %1621 = vst [vmem:[#allocation5 + $0x38] sm:$0xff] %v1618
        %1622 = vst [vmem:[#allocation5 + $0x40] sm:$0xff] %v1617
        %1623 = vrot.lane.b32.xlu0 %v1572, 1
        %v1624 = vpop.permute.xlu0 %1623
        %1625 = vrot.lane.b32.xlu0 %v1573, 1
        %v1626 = vpop.permute.xlu0 %1625
        %1627 = vrot.lane.b32.xlu0 %v1574, 1
        %v1628 = vpop.permute.xlu0 %1627
        %vm1629 = vcmp.lt.s32.totalorder %v1589, 1
        %v1630 = vsel %vm1629, %v1626, %v1628
        %v1631 = vsel %vm1629, %v1624, %v1626
        %v1632 = vsel %vm1629, %v1628, %v1624
        %1633 = vst [vmem:[#allocation5 + $0x48] sm:$0xff] %v1632
        %1634 = vst [vmem:[#allocation5 + $0x50] sm:$0xff] %v1631
        %1635 = vst [vmem:[#allocation5 + $0x58] sm:$0xff] %v1630
        %1636 = vst [vmem:[#allocation5 + $0x60] sm:$0xff] %v1572
        %1637 = vst [vmem:[#allocation5 + $0x68] sm:$0xff] %v1573
        %1638 = vst [vmem:[#allocation5 + $0x70] sm:$0xff] %v1574
        %1639 = vrot.lane.b32.xlu0 %v1572, 127
        %v1640 = vpop.permute.xlu0 %1639
        %1641 = vrot.lane.b32.xlu0 %v1573, 127
        %v1642 = vpop.permute.xlu0 %1641
        %1643 = vrot.lane.b32.xlu0 %v1574, 127
        %v1644 = vpop.permute.xlu0 %1643
        %vm1645 = vcmp.lt.s32.totalorder %v1589, 127
        %v1646 = vsel %vm1645, %v1642, %v1644
        %v1647 = vsel %vm1645, %v1640, %v1642
        %v1648 = vsel %vm1645, %v1644, %v1640
        %1649 = vst [vmem:[#allocation5 + $0x78] sm:$0xff] %v1647
        %1650 = vst [vmem:[#allocation5 + $0x80] sm:$0xff] %v1646
        %1651 = vst [vmem:[#allocation5 + $0x88] sm:$0xff] %v1648
        %1652 = vrot.lane.b32.xlu0 %v1572, 111
        %v1653 = vpop.permute.xlu0 %1652
        %1654 = vrot.lane.b32.xlu0 %v1573, 111
        %v1655 = vpop.permute.xlu0 %1654
        %1656 = vrot.lane.b32.xlu0 %v1574, 111
        %v1657 = vpop.permute.xlu0 %1656
        %vm1658 = vcmp.lt.s32.totalorder %v1589, 111
        %v1659 = vsel %vm1658, %v1655, %v1657
        %v1660 = vsel %vm1658, %v1653, %v1655
        %v1661 = vsel %vm1658, %v1657, %v1653
        %1662 = vst [vmem:[#allocation5 + $0x90] sm:$0xff] %v1660
        %1663 = vst [vmem:[#allocation5 + $0x98] sm:$0xff] %v1659
        %1664 = vst [vmem:[#allocation5 + $0xa0] sm:$0xff] %v1661
        %1665 = vrot.lane.b32.xlu0 %v1572, 110
        %v1666 = vpop.permute.xlu0 %1665
        %1667 = vrot.lane.b32.xlu0 %v1573, 110
        %v1668 = vpop.permute.xlu0 %1667
        %1669 = vrot.lane.b32.xlu0 %v1574, 110
        %v1670 = vpop.permute.xlu0 %1669
        %vm1671 = vcmp.lt.s32.totalorder %v1589, 110
        %v1672 = vsel %vm1671, %v1668, %v1670
        %v1673 = vsel %vm1671, %v1666, %v1668
        %v1674 = vsel %vm1671, %v1670, %v1666
        %1675 = vst [vmem:[#allocation5 + $0xa8] sm:$0xff] %v1673
        %1676 = vst [vmem:[#allocation5 + $0xb0] sm:$0xff] %v1672
        %1677 = vst [vmem:[#allocation5 + $0xb8] sm:$0xff] %v1674
        %1678 = vrot.lane.b32.xlu0 %v1572, 109
        %v1679 = vpop.permute.xlu0 %1678
        %1680 = vrot.lane.b32.xlu0 %v1573, 109
        %v1681 = vpop.permute.xlu0 %1680
        %1682 = vrot.lane.b32.xlu0 %v1574, 109
        %v1683 = vpop.permute.xlu0 %1682
        %vm1684 = vcmp.lt.s32.totalorder %v1589, 109
        %v1685 = vsel %vm1684, %v1681, %v1683
        %v1686 = vsel %vm1684, %v1679, %v1681
        %v1687 = vsel %vm1684, %v1683, %v1679
        %1688 = vst [vmem:[#allocation5 + $0xc0] sm:$0xff] %v1686
        %1689 = vst [vmem:[#allocation5 + $0xc8] sm:$0xff] %v1685
        %1690 = vst [vmem:[#allocation5 + $0xd0] sm:$0xff] %v1687
        %v1691 = vpack.c.bf16 %v1579, %v1579
        %v1692 = vld [vmem:[#allocation5] sm:$0xff]
        %v1693 = vld [vmem:[#allocation5 + $0x8] sm:$0xff]
        %v1694 = vld [vmem:[#allocation5 + $0x10] sm:$0xff]
        %v1695 = vld [vmem:[#allocation5 + $0x18] sm:$0xff]
        %v1696 = vld [vmem:[#allocation5 + $0x20] sm:$0xff]
        %v1697 = vld [vmem:[#allocation5 + $0x28] sm:$0xff]
        %v1698 = vld [vmem:[#allocation5 + $0x30] sm:$0xff]
        %v1699 = vld [vmem:[#allocation5 + $0x38] sm:$0xff]
        %v1700 = vld [vmem:[#allocation5 + $0x40] sm:$0xff]
        %v1701 = vld [vmem:[#allocation5 + $0x48] sm:$0xff]
        %v1702 = vld [vmem:[#allocation5 + $0x50] sm:$0xff]
        %v1703 = vld [vmem:[#allocation5 + $0x58] sm:$0xff]
        %v1704 = vld [vmem:[#allocation5 + $0x60] sm:$0xff]
        %v1705 = vld [vmem:[#allocation5 + $0x68] sm:$0xff]
        %v1706 = vld [vmem:[#allocation5 + $0x70] sm:$0xff]
        %v1707 = vld [vmem:[#allocation5 + $0x78] sm:$0xff]
        %v1708 = vld [vmem:[#allocation5 + $0x80] sm:$0xff]
        %v1709 = vld [vmem:[#allocation5 + $0x88] sm:$0xff]
        %v1710 = vld [vmem:[#allocation5 + $0x90] sm:$0xff]
        %v1711 = vld [vmem:[#allocation5 + $0x98] sm:$0xff]
        %v1712 = vld [vmem:[#allocation5 + $0xa0] sm:$0xff]
        %v1713 = vld [vmem:[#allocation5 + $0xa8] sm:$0xff]
        %v1714 = vld [vmem:[#allocation5 + $0xb0] sm:$0xff]
        %v1715 = vld [vmem:[#allocation5 + $0xb8] sm:$0xff]
        %v1716 = vld [vmem:[#allocation5 + $0xc0] sm:$0xff]
        %v1717 = vld [vmem:[#allocation5 + $0xc8] sm:$0xff]
        %v1718 = vld [vmem:[#allocation5 + $0xd0] sm:$0xff]
        %v1719 = vpack.c.bf16 %v1695, %v1692
        %v1720 = vpack.c.bf16 %v1696, %v1693
        %v1721 = vpack.c.bf16 %v1697, %v1694
        %v1722 = vpack.c.bf16 %v1701, %v1698
        %v1723 = vpack.c.bf16 %v1702, %v1699
        %v1724 = vpack.c.bf16 %v1703, %v1700
        %v1725 = vpack.c.bf16 %v1707, %v1704
        %v1726 = vpack.c.bf16 %v1708, %v1705
        %v1727 = vpack.c.bf16 %v1709, %v1706
        %v1728 = vpack.c.bf16 %v1713, %v1710
        %v1729 = vpack.c.bf16 %v1714, %v1711
        %v1730 = vpack.c.bf16 %v1715, %v1712
        %v1731 = vpack.c.bf16 %v1716, %v1716
        %v1732 = vpack.c.bf16 %v1717, %v1717
        %v1733 = vpack.c.bf16 %v1718, %v1718
        %1735 = vset.pattern.permute.xlu0 0
        %1736 = vperm.xlu0 %1735, %v1581
        %v1737 = vpop.permute.xlu0 %1736
        %vm1739 = vcmask 588800
        %v1741 = vsel %vm1739, %v1691, 0
        %vm1743 = vcmask 1043456
        %v1745 = vsel %vm1743, %v1731, 0
        %v1748 = vsel %vm1743, %v1732, 0
        %v1751 = vsel %vm1743, %v1733, 0
        %1753 = vmatprep.subr.bf16.mxu0 0
        %1754 = vmatpush1.bf16.msra.mxu0 0
        %1755 = vmatprep.subr.bf16.mxu0 0
        %1756 = vmatpush1.bf16.msra.mxu0 0
        %1757 = vmatprep.subr.bf16.mxu0 0
        %1758 = vmatpush1.bf16.msra.mxu0 0
        %1759 = vmatprep.subr.bf16.mxu0 %v1748
        %1760 = vmatpush1.bf16.msra.mxu0 %v1745
        %1761 = vmatprep.subr.bf16.mxu0 %v1729
        %1762 = vmatpush1.bf16.msra.mxu0 %v1728
        %1763 = vmatprep.subr.bf16.mxu0 %v1726
        %1764 = vmatpush1.bf16.msra.mxu0 %v1725
        %1765 = vmatprep.subr.bf16.mxu0 %v1723
        %1766 = vmatpush1.bf16.msra.mxu0 %v1722
        %1767 = vmatprep.subr.bf16.mxu0 %v1720
        %1768 = vmatpush1.bf16.msra.mxu0 %v1719
        %1769 = vmatprep.subr.bf16.mxu0 0
        %1770 = vmatpush2.bf16.msra.mxu0 0
        %1771 = vmatprep.subr.bf16.mxu0 0
        %1772 = vmatpush2.bf16.msra.mxu0 0
        %1773 = vmatprep.subr.bf16.mxu0 0
        %1774 = vmatpush2.bf16.msra.mxu0 0
        %1775 = vmatprep.subr.bf16.mxu0 0
        %1776 = vmatpush2.bf16.msra.mxu0 0
        %1777 = vmatprep.subr.bf16.mxu0 0
        %1778 = vmatpush2.bf16.msra.mxu0 0
        %1779 = vmatprep.subr.bf16.mxu0 0
        %1780 = vmatpush2.bf16.msra.mxu0 0
        %1781 = vmatprep.subr.bf16.mxu0 0
        %1782 = vmatpush2.bf16.msra.mxu0 0
        %1783 = vmatprep.subr.bf16.mxu0 0
        %1784 = vmatpush2.bf16.msra.mxu0 0
        %1785 = vmatprep.mubr.bf16.mxu0 0
        %1786 = vmatmul.mubr.bf16.gmra.mxu0 %v1741
        %v1787 = vpop.f32.mrf.mxu0
        %v1788 = vadd.f32 %v1737, %v1787
        %v1789 = vpop.f32.mrf.mxu0
        %v1790 = vadd.f32 %v1737, %v1789
        %v1791 = vpop.f32.mrf.mxu0
        %v1792 = vpop.f32.mrf.mxu0
        %1793 = vdwg.mxu0
        %1794 = vmatprep.subr.bf16.mxu0 0
        %1795 = vmatpush1.bf16.msra.mxu0 0
        %1796 = vmatprep.subr.bf16.mxu0 0
        %1797 = vmatpush1.bf16.msra.mxu0 0
        %1798 = vmatprep.subr.bf16.mxu0 0
        %1799 = vmatpush1.bf16.msra.mxu0 0
        %1800 = vmatprep.subr.bf16.mxu0 0
        %1801 = vmatpush1.bf16.msra.mxu0 %v1751
        %1802 = vmatprep.subr.bf16.mxu0 0
        %1803 = vmatpush1.bf16.msra.mxu0 %v1730
        %1804 = vmatprep.subr.bf16.mxu0 0
        %1805 = vmatpush1.bf16.msra.mxu0 %v1727
        %1806 = vmatprep.subr.bf16.mxu0 0
        %1807 = vmatpush1.bf16.msra.mxu0 %v1724
        %1808 = vmatprep.subr.bf16.mxu0 0
        %1809 = vmatpush1.bf16.msra.mxu0 %v1721
        %1810 = vmatprep.subr.bf16.mxu0 0
        %1811 = vmatpush2.bf16.msra.mxu0 0
        %1812 = vmatprep.subr.bf16.mxu0 0
        %1813 = vmatpush2.bf16.msra.mxu0 0
        %1814 = vmatprep.subr.bf16.mxu0 0
        %1815 = vmatpush2.bf16.msra.mxu0 0
        %1816 = vmatprep.subr.bf16.mxu0 0
        %1817 = vmatpush2.bf16.msra.mxu0 0
        %1818 = vmatprep.subr.bf16.mxu0 0
        %1819 = vmatpush2.bf16.msra.mxu0 0
        %1820 = vmatprep.subr.bf16.mxu0 0
        %1821 = vmatpush2.bf16.msra.mxu0 0
        %1822 = vmatprep.subr.bf16.mxu0 0
        %1823 = vmatpush2.bf16.msra.mxu0 0
        %1824 = vmatprep.subr.bf16.mxu0 0
        %1825 = vmatpush2.bf16.msra.mxu0 0
        %1826 = vmatprep.mubr.bf16.mxu0 0
        %1827 = vmatmul.mubr.bf16.gmra.mxu0 %v1741
        %v1828 = vpop.f32.mrf.mxu0
        %v1829 = vadd.f32 %v1737, %v1828
        %v1830 = vpop.f32.mrf.mxu0
        %v1831 = vpop.f32.mrf.mxu0
        %v1832 = vpop.f32.mrf.mxu0
        %1833 = vdwg.mxu0
        %v1834 = vmax.f32 %v1788, 0.0
        %v1835 = vmax.f32 %v1790, 0.0
        %v1836 = vmax.f32 %v1829, 0.0
        %v1837 = vmul.f32 %v1834, %v658
        %v1838 = vmul.f32 %v1835, %v662
        %v1839 = vmul.f32 %v1836, %v666
        %s1840 = sadd.s32 %s1575, 1
        %s1841 = smul.u32 %s1840, 8
        %s1842 = scalar_lea.vmem %s14, %s1841
        %v1843 = vld [vmem:[%s1842] sm:$0xff]
        %s1844 = scalar_lea.vmem %s15, %s1841
        %v1845 = vld [vmem:[%s1844] sm:$0xff]
        %1846 = vrot.lane.b32.xlu0 %v1837, 19
        %v1847 = vpop.permute.xlu0 %1846
        %1848 = vrot.lane.b32.xlu0 %v1838, 19
        %v1849 = vpop.permute.xlu0 %1848
        %1850 = vrot.lane.b32.xlu0 %v1839, 19
        %v1851 = vpop.permute.xlu0 %1850
        %v1852 = vsel %vm1590, %v1849, %v1851
        %v1853 = vsel %vm1590, %v1847, %v1849
        %v1854 = vsel %vm1590, %v1851, %v1847
        %1855 = vst [vmem:[#allocation5] sm:$0xff] %v1854
        %1856 = vst [vmem:[#allocation5 + $0x8] sm:$0xff] %v1853
        %1857 = vst [vmem:[#allocation5 + $0x10] sm:$0xff] %v1852
        %1858 = vrot.lane.b32.xlu0 %v1837, 18
        %v1859 = vpop.permute.xlu0 %1858
        %1860 = vrot.lane.b32.xlu0 %v1838, 18
        %v1861 = vpop.permute.xlu0 %1860
        %1862 = vrot.lane.b32.xlu0 %v1839, 18
        %v1863 = vpop.permute.xlu0 %1862
        %v1864 = vsel %vm1603, %v1861, %v1863
        %v1865 = vsel %vm1603, %v1859, %v1861
        %v1866 = vsel %vm1603, %v1863, %v1859
        %1867 = vst [vmem:[#allocation5 + $0x18] sm:$0xff] %v1866
        %1868 = vst [vmem:[#allocation5 + $0x20] sm:$0xff] %v1865
        %1869 = vst [vmem:[#allocation5 + $0x28] sm:$0xff] %v1864
        %1870 = vrot.lane.b32.xlu0 %v1837, 17
        %v1871 = vpop.permute.xlu0 %1870
        %1872 = vrot.lane.b32.xlu0 %v1838, 17
        %v1873 = vpop.permute.xlu0 %1872
        %1874 = vrot.lane.b32.xlu0 %v1839, 17
        %v1875 = vpop.permute.xlu0 %1874
        %v1876 = vsel %vm1616, %v1873, %v1875
        %v1877 = vsel %vm1616, %v1871, %v1873
        %v1878 = vsel %vm1616, %v1875, %v1871
        %1879 = vst [vmem:[#allocation5 + $0x30] sm:$0xff] %v1878
        %1880 = vst [vmem:[#allocation5 + $0x38] sm:$0xff] %v1877
        %1881 = vst [vmem:[#allocation5 + $0x40] sm:$0xff] %v1876
        %1882 = vrot.lane.b32.xlu0 %v1837, 1
        %v1883 = vpop.permute.xlu0 %1882
        %1884 = vrot.lane.b32.xlu0 %v1838, 1
        %v1885 = vpop.permute.xlu0 %1884
        %1886 = vrot.lane.b32.xlu0 %v1839, 1
        %v1887 = vpop.permute.xlu0 %1886
        %v1888 = vsel %vm1629, %v1885, %v1887
        %v1889 = vsel %vm1629, %v1883, %v1885
        %v1890 = vsel %vm1629, %v1887, %v1883
        %1891 = vst [vmem:[#allocation5 + $0x48] sm:$0xff] %v1890
        %1892 = vst [vmem:[#allocation5 + $0x50] sm:$0xff] %v1889
        %1893 = vst [vmem:[#allocation5 + $0x58] sm:$0xff] %v1888
        %1894 = vst [vmem:[#allocation5 + $0x60] sm:$0xff] %v1837
        %1895 = vst [vmem:[#allocation5 + $0x68] sm:$0xff] %v1838
        %1896 = vst [vmem:[#allocation5 + $0x70] sm:$0xff] %v1839
        %1897 = vrot.lane.b32.xlu0 %v1837, 127
        %v1898 = vpop.permute.xlu0 %1897
        %1899 = vrot.lane.b32.xlu0 %v1838, 127
        %v1900 = vpop.permute.xlu0 %1899
        %1901 = vrot.lane.b32.xlu0 %v1839, 127
        %v1902 = vpop.permute.xlu0 %1901
        %v1903 = vsel %vm1645, %v1900, %v1902
        %v1904 = vsel %vm1645, %v1898, %v1900
        %v1905 = vsel %vm1645, %v1902, %v1898
        %1906 = vst [vmem:[#allocation5 + $0x78] sm:$0xff] %v1904
        %1907 = vst [vmem:[#allocation5 + $0x80] sm:$0xff] %v1903
        %1908 = vst [vmem:[#allocation5 + $0x88] sm:$0xff] %v1905
        %1909 = vrot.lane.b32.xlu0 %v1837, 111
        %v1910 = vpop.permute.xlu0 %1909
        %1911 = vrot.lane.b32.xlu0 %v1838, 111
        %v1912 = vpop.permute.xlu0 %1911
        %1913 = vrot.lane.b32.xlu0 %v1839, 111
        %v1914 = vpop.permute.xlu0 %1913
        %v1915 = vsel %vm1658, %v1912, %v1914
        %v1916 = vsel %vm1658, %v1910, %v1912
        %v1917 = vsel %vm1658, %v1914, %v1910
        %1918 = vst [vmem:[#allocation5 + $0x90] sm:$0xff] %v1916
        %1919 = vst [vmem:[#allocation5 + $0x98] sm:$0xff] %v1915
        %1920 = vst [vmem:[#allocation5 + $0xa0] sm:$0xff] %v1917
        %1921 = vrot.lane.b32.xlu0 %v1837, 110
        %v1922 = vpop.permute.xlu0 %1921
        %1923 = vrot.lane.b32.xlu0 %v1838, 110
        %v1924 = vpop.permute.xlu0 %1923
        %1925 = vrot.lane.b32.xlu0 %v1839, 110
        %v1926 = vpop.permute.xlu0 %1925
        %v1927 = vsel %vm1671, %v1924, %v1926
        %v1928 = vsel %vm1671, %v1922, %v1924
        %v1929 = vsel %vm1671, %v1926, %v1922
        %1930 = vst [vmem:[#allocation5 + $0xa8] sm:$0xff] %v1928
        %1931 = vst [vmem:[#allocation5 + $0xb0] sm:$0xff] %v1927
        %1932 = vst [vmem:[#allocation5 + $0xb8] sm:$0xff] %v1929
        %1933 = vrot.lane.b32.xlu0 %v1837, 109
        %v1934 = vpop.permute.xlu0 %1933
        %1935 = vrot.lane.b32.xlu0 %v1838, 109
        %v1936 = vpop.permute.xlu0 %1935
        %1937 = vrot.lane.b32.xlu0 %v1839, 109
        %v1938 = vpop.permute.xlu0 %1937
        %v1939 = vsel %vm1684, %v1936, %v1938
        %v1940 = vsel %vm1684, %v1934, %v1936
        %v1941 = vsel %vm1684, %v1938, %v1934
        %1942 = vst [vmem:[#allocation5 + $0xc0] sm:$0xff] %v1940
        %1943 = vst [vmem:[#allocation5 + $0xc8] sm:$0xff] %v1939
        %1944 = vst [vmem:[#allocation5 + $0xd0] sm:$0xff] %v1941
        %v1945 = vpack.c.bf16 %v1843, %v1843
        %v1946 = vld [vmem:[#allocation5] sm:$0xff]
        %v1947 = vld [vmem:[#allocation5 + $0x8] sm:$0xff]
        %v1948 = vld [vmem:[#allocation5 + $0x10] sm:$0xff]
        %v1949 = vld [vmem:[#allocation5 + $0x18] sm:$0xff]
        %v1950 = vld [vmem:[#allocation5 + $0x20] sm:$0xff]
        %v1951 = vld [vmem:[#allocation5 + $0x28] sm:$0xff]
        %v1952 = vld [vmem:[#allocation5 + $0x30] sm:$0xff]
        %v1953 = vld [vmem:[#allocation5 + $0x38] sm:$0xff]
        %v1954 = vld [vmem:[#allocation5 + $0x40] sm:$0xff]
        %v1955 = vld [vmem:[#allocation5 + $0x48] sm:$0xff]
        %v1956 = vld [vmem:[#allocation5 + $0x50] sm:$0xff]
        %v1957 = vld [vmem:[#allocation5 + $0x58] sm:$0xff]
        %v1958 = vld [vmem:[#allocation5 + $0x60] sm:$0xff]
        %v1959 = vld [vmem:[#allocation5 + $0x68] sm:$0xff]
        %v1960 = vld [vmem:[#allocation5 + $0x70] sm:$0xff]
        %v1961 = vld [vmem:[#allocation5 + $0x78] sm:$0xff]
        %v1962 = vld [vmem:[#allocation5 + $0x80] sm:$0xff]
        %v1963 = vld [vmem:[#allocation5 + $0x88] sm:$0xff]
        %v1964 = vld [vmem:[#allocation5 + $0x90] sm:$0xff]
        %v1965 = vld [vmem:[#allocation5 + $0x98] sm:$0xff]
        %v1966 = vld [vmem:[#allocation5 + $0xa0] sm:$0xff]
        %v1967 = vld [vmem:[#allocation5 + $0xa8] sm:$0xff]
        %v1968 = vld [vmem:[#allocation5 + $0xb0] sm:$0xff]
        %v1969 = vld [vmem:[#allocation5 + $0xb8] sm:$0xff]
        %v1970 = vld [vmem:[#allocation5 + $0xc0] sm:$0xff]
        %v1971 = vld [vmem:[#allocation5 + $0xc8] sm:$0xff]
        %v1972 = vld [vmem:[#allocation5 + $0xd0] sm:$0xff]
        %v1973 = vpack.c.bf16 %v1949, %v1946
        %v1974 = vpack.c.bf16 %v1950, %v1947
        %v1975 = vpack.c.bf16 %v1951, %v1948
        %v1976 = vpack.c.bf16 %v1955, %v1952
        %v1977 = vpack.c.bf16 %v1956, %v1953
        %v1978 = vpack.c.bf16 %v1957, %v1954
        %v1979 = vpack.c.bf16 %v1961, %v1958
        %v1980 = vpack.c.bf16 %v1962, %v1959
        %v1981 = vpack.c.bf16 %v1963, %v1960
        %v1982 = vpack.c.bf16 %v1967, %v1964
        %v1983 = vpack.c.bf16 %v1968, %v1965
        %v1984 = vpack.c.bf16 %v1969, %v1966
        %v1985 = vpack.c.bf16 %v1970, %v1970
        %v1986 = vpack.c.bf16 %v1971, %v1971
        %v1987 = vpack.c.bf16 %v1972, %v1972
        %1989 = vset.pattern.permute.xlu0 0
        %1990 = vperm.xlu0 %1989, %v1845
        %v1991 = vpop.permute.xlu0 %1990
        %v1994 = vsel %vm1739, %v1945, 0
        %v1997 = vsel %vm1743, %v1985, 0
        %v2000 = vsel %vm1743, %v1986, 0
        %v2003 = vsel %vm1743, %v1987, 0
        %2005 = vmatprep.subr.bf16.mxu0 0
        %2006 = vmatpush1.bf16.msra.mxu0 0
        %2007 = vmatprep.subr.bf16.mxu0 0
        %2008 = vmatpush1.bf16.msra.mxu0 0
        %2009 = vmatprep.subr.bf16.mxu0 0
        %2010 = vmatpush1.bf16.msra.mxu0 0
        %2011 = vmatprep.subr.bf16.mxu0 %v2000
        %2012 = vmatpush1.bf16.msra.mxu0 %v1997
        %2013 = vmatprep.subr.bf16.mxu0 %v1983
        %2014 = vmatpush1.bf16.msra.mxu0 %v1982
        %2015 = vmatprep.subr.bf16.mxu0 %v1980
        %2016 = vmatpush1.bf16.msra.mxu0 %v1979
        %2017 = vmatprep.subr.bf16.mxu0 %v1977
        %2018 = vmatpush1.bf16.msra.mxu0 %v1976
        %2019 = vmatprep.subr.bf16.mxu0 %v1974
        %2020 = vmatpush1.bf16.msra.mxu0 %v1973
        %2021 = vmatprep.subr.bf16.mxu0 0
        %2022 = vmatpush2.bf16.msra.mxu0 0
        %2023 = vmatprep.subr.bf16.mxu0 0
        %2024 = vmatpush2.bf16.msra.mxu0 0
        %2025 = vmatprep.subr.bf16.mxu0 0
        %2026 = vmatpush2.bf16.msra.mxu0 0
        %2027 = vmatprep.subr.bf16.mxu0 0
        %2028 = vmatpush2.bf16.msra.mxu0 0
        %2029 = vmatprep.subr.bf16.mxu0 0
        %2030 = vmatpush2.bf16.msra.mxu0 0
        %2031 = vmatprep.subr.bf16.mxu0 0
        %2032 = vmatpush2.bf16.msra.mxu0 0
        %2033 = vmatprep.subr.bf16.mxu0 0
        %2034 = vmatpush2.bf16.msra.mxu0 0
        %2035 = vmatprep.subr.bf16.mxu0 0
        %2036 = vmatpush2.bf16.msra.mxu0 0
        %2037 = vmatprep.mubr.bf16.mxu0 0
        %2038 = vmatmul.mubr.bf16.gmra.mxu0 %v1994
        %v2039 = vpop.f32.mrf.mxu0
        %v2040 = vadd.f32 %v1991, %v2039
        %v2041 = vpop.f32.mrf.mxu0
        %v2042 = vadd.f32 %v1991, %v2041
        %v2043 = vpop.f32.mrf.mxu0
        %v2044 = vpop.f32.mrf.mxu0
        %2045 = vdwg.mxu0
        %2046 = vmatprep.subr.bf16.mxu0 0
        %2047 = vmatpush1.bf16.msra.mxu0 0
        %2048 = vmatprep.subr.bf16.mxu0 0
        %2049 = vmatpush1.bf16.msra.mxu0 0
        %2050 = vmatprep.subr.bf16.mxu0 0
        %2051 = vmatpush1.bf16.msra.mxu0 0
        %2052 = vmatprep.subr.bf16.mxu0 0
        %2053 = vmatpush1.bf16.msra.mxu0 %v2003
        %2054 = vmatprep.subr.bf16.mxu0 0
        %2055 = vmatpush1.bf16.msra.mxu0 %v1984
        %2056 = vmatprep.subr.bf16.mxu0 0
        %2057 = vmatpush1.bf16.msra.mxu0 %v1981
        %2058 = vmatprep.subr.bf16.mxu0 0
        %2059 = vmatpush1.bf16.msra.mxu0 %v1978
        %2060 = vmatprep.subr.bf16.mxu0 0
        %2061 = vmatpush1.bf16.msra.mxu0 %v1975
        %2062 = vmatprep.subr.bf16.mxu0 0
        %2063 = vmatpush2.bf16.msra.mxu0 0
        %2064 = vmatprep.subr.bf16.mxu0 0
        %2065 = vmatpush2.bf16.msra.mxu0 0
        %2066 = vmatprep.subr.bf16.mxu0 0
        %2067 = vmatpush2.bf16.msra.mxu0 0
        %2068 = vmatprep.subr.bf16.mxu0 0
        %2069 = vmatpush2.bf16.msra.mxu0 0
        %2070 = vmatprep.subr.bf16.mxu0 0
        %2071 = vmatpush2.bf16.msra.mxu0 0
        %2072 = vmatprep.subr.bf16.mxu0 0
        %2073 = vmatpush2.bf16.msra.mxu0 0
        %2074 = vmatprep.subr.bf16.mxu0 0
        %2075 = vmatpush2.bf16.msra.mxu0 0
        %2076 = vmatprep.subr.bf16.mxu0 0
        %2077 = vmatpush2.bf16.msra.mxu0 0
        %2078 = vmatprep.mubr.bf16.mxu0 0
        %2079 = vmatmul.mubr.bf16.gmra.mxu0 %v1994
        %v2080 = vpop.f32.mrf.mxu0
        %v2081 = vadd.f32 %v1991, %v2080
        %v2082 = vpop.f32.mrf.mxu0
        %v2083 = vpop.f32.mrf.mxu0
        %v2084 = vpop.f32.mrf.mxu0
        %2085 = vdwg.mxu0
        %v2086 = vmax.f32 %v2040, 0.0
        %v2087 = vmax.f32 %v2042, 0.0
        %v2088 = vmax.f32 %v2081, 0.0
        %v2089 = vmul.f32 %v2086, %v658
        %v2090 = vmul.f32 %v2087, %v662
        %v2091 = vmul.f32 %v2088, %v666
        %s2092 = sadd.s32 %s1575, 2
        %s2093 = smul.u32 %s2092, 8
        %s2094 = scalar_lea.vmem %s14, %s2093
        %v2095 = vld [vmem:[%s2094] sm:$0xff]
        %s2096 = scalar_lea.vmem %s15, %s2093
        %v2097 = vld [vmem:[%s2096] sm:$0xff]
        %2098 = vrot.lane.b32.xlu0 %v2089, 19
        %v2099 = vpop.permute.xlu0 %2098
        %2100 = vrot.lane.b32.xlu0 %v2090, 19
        %v2101 = vpop.permute.xlu0 %2100
        %2102 = vrot.lane.b32.xlu0 %v2091, 19
        %v2103 = vpop.permute.xlu0 %2102
        %v2104 = vsel %vm1590, %v2101, %v2103
        %v2105 = vsel %vm1590, %v2099, %v2101
        %v2106 = vsel %vm1590, %v2103, %v2099
        %2107 = vst [vmem:[#allocation5] sm:$0xff] %v2106
        %2108 = vst [vmem:[#allocation5 + $0x8] sm:$0xff] %v2105
        %2109 = vst [vmem:[#allocation5 + $0x10] sm:$0xff] %v2104
        %2110 = vrot.lane.b32.xlu0 %v2089, 18
        %v2111 = vpop.permute.xlu0 %2110
        %2112 = vrot.lane.b32.xlu0 %v2090, 18
        %v2113 = vpop.permute.xlu0 %2112
        %2114 = vrot.lane.b32.xlu0 %v2091, 18
        %v2115 = vpop.permute.xlu0 %2114
        %v2116 = vsel %vm1603, %v2113, %v2115
        %v2117 = vsel %vm1603, %v2111, %v2113
        %v2118 = vsel %vm1603, %v2115, %v2111
        %2119 = vst [vmem:[#allocation5 + $0x18] sm:$0xff] %v2118
        %2120 = vst [vmem:[#allocation5 + $0x20] sm:$0xff] %v2117
        %2121 = vst [vmem:[#allocation5 + $0x28] sm:$0xff] %v2116
        %2122 = vrot.lane.b32.xlu0 %v2089, 17
        %v2123 = vpop.permute.xlu0 %2122
        %2124 = vrot.lane.b32.xlu0 %v2090, 17
        %v2125 = vpop.permute.xlu0 %2124
        %2126 = vrot.lane.b32.xlu0 %v2091, 17
        %v2127 = vpop.permute.xlu0 %2126
        %v2128 = vsel %vm1616, %v2125, %v2127
        %v2129 = vsel %vm1616, %v2123, %v2125
        %v2130 = vsel %vm1616, %v2127, %v2123
        %2131 = vst [vmem:[#allocation5 + $0x30] sm:$0xff] %v2130
        %2132 = vst [vmem:[#allocation5 + $0x38] sm:$0xff] %v2129
        %2133 = vst [vmem:[#allocation5 + $0x40] sm:$0xff] %v2128
        %2134 = vrot.lane.b32.xlu0 %v2089, 1
        %v2135 = vpop.permute.xlu0 %2134
        %2136 = vrot.lane.b32.xlu0 %v2090, 1
        %v2137 = vpop.permute.xlu0 %2136
        %2138 = vrot.lane.b32.xlu0 %v2091, 1
        %v2139 = vpop.permute.xlu0 %2138
        %v2140 = vsel %vm1629, %v2137, %v2139
        %v2141 = vsel %vm1629, %v2135, %v2137
        %v2142 = vsel %vm1629, %v2139, %v2135
        %2143 = vst [vmem:[#allocation5 + $0x48] sm:$0xff] %v2142
        %2144 = vst [vmem:[#allocation5 + $0x50] sm:$0xff] %v2141
        %2145 = vst [vmem:[#allocation5 + $0x58] sm:$0xff] %v2140
        %2146 = vst [vmem:[#allocation5 + $0x60] sm:$0xff] %v2089
        %2147 = vst [vmem:[#allocation5 + $0x68] sm:$0xff] %v2090
        %2148 = vst [vmem:[#allocation5 + $0x70] sm:$0xff] %v2091
        %2149 = vrot.lane.b32.xlu0 %v2089, 127
        %v2150 = vpop.permute.xlu0 %2149
        %2151 = vrot.lane.b32.xlu0 %v2090, 127
        %v2152 = vpop.permute.xlu0 %2151
        %2153 = vrot.lane.b32.xlu0 %v2091, 127
        %v2154 = vpop.permute.xlu0 %2153
        %v2155 = vsel %vm1645, %v2152, %v2154
        %v2156 = vsel %vm1645, %v2150, %v2152
        %v2157 = vsel %vm1645, %v2154, %v2150
        %2158 = vst [vmem:[#allocation5 + $0x78] sm:$0xff] %v2156
        %2159 = vst [vmem:[#allocation5 + $0x80] sm:$0xff] %v2155
        %2160 = vst [vmem:[#allocation5 + $0x88] sm:$0xff] %v2157
        %2161 = vrot.lane.b32.xlu0 %v2089, 111
        %v2162 = vpop.permute.xlu0 %2161
        %2163 = vrot.lane.b32.xlu0 %v2090, 111
        %v2164 = vpop.permute.xlu0 %2163
        %2165 = vrot.lane.b32.xlu0 %v2091, 111
        %v2166 = vpop.permute.xlu0 %2165
        %v2167 = vsel %vm1658, %v2164, %v2166
        %v2168 = vsel %vm1658, %v2162, %v2164
        %v2169 = vsel %vm1658, %v2166, %v2162
        %2170 = vst [vmem:[#allocation5 + $0x90] sm:$0xff] %v2168
        %2171 = vst [vmem:[#allocation5 + $0x98] sm:$0xff] %v2167
        %2172 = vst [vmem:[#allocation5 + $0xa0] sm:$0xff] %v2169
        %2173 = vrot.lane.b32.xlu0 %v2089, 110
        %v2174 = vpop.permute.xlu0 %2173
        %2175 = vrot.lane.b32.xlu0 %v2090, 110
        %v2176 = vpop.permute.xlu0 %2175
        %2177 = vrot.lane.b32.xlu0 %v2091, 110
        %v2178 = vpop.permute.xlu0 %2177
        %v2179 = vsel %vm1671, %v2176, %v2178
        %v2180 = vsel %vm1671, %v2174, %v2176
        %v2181 = vsel %vm1671, %v2178, %v2174
        %2182 = vst [vmem:[#allocation5 + $0xa8] sm:$0xff] %v2180
        %2183 = vst [vmem:[#allocation5 + $0xb0] sm:$0xff] %v2179
        %2184 = vst [vmem:[#allocation5 + $0xb8] sm:$0xff] %v2181
        %2185 = vrot.lane.b32.xlu0 %v2089, 109
        %v2186 = vpop.permute.xlu0 %2185
        %2187 = vrot.lane.b32.xlu0 %v2090, 109
        %v2188 = vpop.permute.xlu0 %2187
        %2189 = vrot.lane.b32.xlu0 %v2091, 109
        %v2190 = vpop.permute.xlu0 %2189
        %v2191 = vsel %vm1684, %v2188, %v2190
        %v2192 = vsel %vm1684, %v2186, %v2188
        %v2193 = vsel %vm1684, %v2190, %v2186
        %2194 = vst [vmem:[#allocation5 + $0xc0] sm:$0xff] %v2192
        %2195 = vst [vmem:[#allocation5 + $0xc8] sm:$0xff] %v2191
        %2196 = vst [vmem:[#allocation5 + $0xd0] sm:$0xff] %v2193
        %v2197 = vpack.c.bf16 %v2095, %v2095
        %v2198 = vld [vmem:[#allocation5] sm:$0xff]
        %v2199 = vld [vmem:[#allocation5 + $0x8] sm:$0xff]
        %v2200 = vld [vmem:[#allocation5 + $0x10] sm:$0xff]
        %v2201 = vld [vmem:[#allocation5 + $0x18] sm:$0xff]
        %v2202 = vld [vmem:[#allocation5 + $0x20] sm:$0xff]
        %v2203 = vld [vmem:[#allocation5 + $0x28] sm:$0xff]
        %v2204 = vld [vmem:[#allocation5 + $0x30] sm:$0xff]
        %v2205 = vld [vmem:[#allocation5 + $0x38] sm:$0xff]
        %v2206 = vld [vmem:[#allocation5 + $0x40] sm:$0xff]
        %v2207 = vld [vmem:[#allocation5 + $0x48] sm:$0xff]
        %v2208 = vld [vmem:[#allocation5 + $0x50] sm:$0xff]
        %v2209 = vld [vmem:[#allocation5 + $0x58] sm:$0xff]
        %v2210 = vld [vmem:[#allocation5 + $0x60] sm:$0xff]
        %v2211 = vld [vmem:[#allocation5 + $0x68] sm:$0xff]
        %v2212 = vld [vmem:[#allocation5 + $0x70] sm:$0xff]
        %v2213 = vld [vmem:[#allocation5 + $0x78] sm:$0xff]
        %v2214 = vld [vmem:[#allocation5 + $0x80] sm:$0xff]
        %v2215 = vld [vmem:[#allocation5 + $0x88] sm:$0xff]
        %v2216 = vld [vmem:[#allocation5 + $0x90] sm:$0xff]
        %v2217 = vld [vmem:[#allocation5 + $0x98] sm:$0xff]
        %v2218 = vld [vmem:[#allocation5 + $0xa0] sm:$0xff]
        %v2219 = vld [vmem:[#allocation5 + $0xa8] sm:$0xff]
        %v2220 = vld [vmem:[#allocation5 + $0xb0] sm:$0xff]
        %v2221 = vld [vmem:[#allocation5 + $0xb8] sm:$0xff]
        %v2222 = vld [vmem:[#allocation5 + $0xc0] sm:$0xff]
        %v2223 = vld [vmem:[#allocation5 + $0xc8] sm:$0xff]
        %v2224 = vld [vmem:[#allocation5 + $0xd0] sm:$0xff]
        %v2225 = vpack.c.bf16 %v2201, %v2198
        %v2226 = vpack.c.bf16 %v2202, %v2199
        %v2227 = vpack.c.bf16 %v2203, %v2200
        %v2228 = vpack.c.bf16 %v2207, %v2204
        %v2229 = vpack.c.bf16 %v2208, %v2205
        %v2230 = vpack.c.bf16 %v2209, %v2206
        %v2231 = vpack.c.bf16 %v2213, %v2210
        %v2232 = vpack.c.bf16 %v2214, %v2211
        %v2233 = vpack.c.bf16 %v2215, %v2212
        %v2234 = vpack.c.bf16 %v2219, %v2216
        %v2235 = vpack.c.bf16 %v2220, %v2217
        %v2236 = vpack.c.bf16 %v2221, %v2218
        %v2237 = vpack.c.bf16 %v2222, %v2222
        %v2238 = vpack.c.bf16 %v2223, %v2223
        %v2239 = vpack.c.bf16 %v2224, %v2224
        %2241 = vset.pattern.permute.xlu0 0
        %2242 = vperm.xlu0 %2241, %v2097
        %v2243 = vpop.permute.xlu0 %2242
        %v2246 = vsel %vm1739, %v2197, 0
        %v2249 = vsel %vm1743, %v2237, 0
        %v2252 = vsel %vm1743, %v2238, 0
        %v2255 = vsel %vm1743, %v2239, 0
        %2257 = vmatprep.subr.bf16.mxu0 0
        %2258 = vmatpush1.bf16.msra.mxu0 0
        %2259 = vmatprep.subr.bf16.mxu0 0
        %2260 = vmatpush1.bf16.msra.mxu0 0
        %2261 = vmatprep.subr.bf16.mxu0 0
        %2262 = vmatpush1.bf16.msra.mxu0 0
        %2263 = vmatprep.subr.bf16.mxu0 %v2252
        %2264 = vmatpush1.bf16.msra.mxu0 %v2249
        %2265 = vmatprep.subr.bf16.mxu0 %v2235
        %2266 = vmatpush1.bf16.msra.mxu0 %v2234
        %2267 = vmatprep.subr.bf16.mxu0 %v2232
        %2268 = vmatpush1.bf16.msra.mxu0 %v2231
        %2269 = vmatprep.subr.bf16.mxu0 %v2229
        %2270 = vmatpush1.bf16.msra.mxu0 %v2228
        %2271 = vmatprep.subr.bf16.mxu0 %v2226
        %2272 = vmatpush1.bf16.msra.mxu0 %v2225
        %2273 = vmatprep.subr.bf16.mxu0 0
        %2274 = vmatpush2.bf16.msra.mxu0 0
        %2275 = vmatprep.subr.bf16.mxu0 0
        %2276 = vmatpush2.bf16.msra.mxu0 0
        %2277 = vmatprep.subr.bf16.mxu0 0
        %2278 = vmatpush2.bf16.msra.mxu0 0
        %2279 = vmatprep.subr.bf16.mxu0 0
        %2280 = vmatpush2.bf16.msra.mxu0 0
        %2281 = vmatprep.subr.bf16.mxu0 0
        %2282 = vmatpush2.bf16.msra.mxu0 0
        %2283 = vmatprep.subr.bf16.mxu0 0
        %2284 = vmatpush2.bf16.msra.mxu0 0
        %2285 = vmatprep.subr.bf16.mxu0 0
        %2286 = vmatpush2.bf16.msra.mxu0 0
        %2287 = vmatprep.subr.bf16.mxu0 0
        %2288 = vmatpush2.bf16.msra.mxu0 0
        %2289 = vmatprep.mubr.bf16.mxu0 0
        %2290 = vmatmul.mubr.bf16.gmra.mxu0 %v2246
        %v2291 = vpop.f32.mrf.mxu0
        %v2292 = vadd.f32 %v2243, %v2291
        %v2293 = vpop.f32.mrf.mxu0
        %v2294 = vadd.f32 %v2243, %v2293
        %v2295 = vpop.f32.mrf.mxu0
        %v2296 = vpop.f32.mrf.mxu0
        %2297 = vdwg.mxu0
        %2298 = vmatprep.subr.bf16.mxu0 0
        %2299 = vmatpush1.bf16.msra.mxu0 0
        %2300 = vmatprep.subr.bf16.mxu0 0
        %2301 = vmatpush1.bf16.msra.mxu0 0
        %2302 = vmatprep.subr.bf16.mxu0 0
        %2303 = vmatpush1.bf16.msra.mxu0 0
        %2304 = vmatprep.subr.bf16.mxu0 0
        %2305 = vmatpush1.bf16.msra.mxu0 %v2255
        %2306 = vmatprep.subr.bf16.mxu0 0
        %2307 = vmatpush1.bf16.msra.mxu0 %v2236
        %2308 = vmatprep.subr.bf16.mxu0 0
        %2309 = vmatpush1.bf16.msra.mxu0 %v2233
        %2310 = vmatprep.subr.bf16.mxu0 0
        %2311 = vmatpush1.bf16.msra.mxu0 %v2230
        %2312 = vmatprep.subr.bf16.mxu0 0
        %2313 = vmatpush1.bf16.msra.mxu0 %v2227
        %2314 = vmatprep.subr.bf16.mxu0 0
        %2315 = vmatpush2.bf16.msra.mxu0 0
        %2316 = vmatprep.subr.bf16.mxu0 0
        %2317 = vmatpush2.bf16.msra.mxu0 0
        %2318 = vmatprep.subr.bf16.mxu0 0
        %2319 = vmatpush2.bf16.msra.mxu0 0
        %2320 = vmatprep.subr.bf16.mxu0 0
        %2321 = vmatpush2.bf16.msra.mxu0 0
        %2322 = vmatprep.subr.bf16.mxu0 0
        %2323 = vmatpush2.bf16.msra.mxu0 0
        %2324 = vmatprep.subr.bf16.mxu0 0
        %2325 = vmatpush2.bf16.msra.mxu0 0
        %2326 = vmatprep.subr.bf16.mxu0 0
        %2327 = vmatpush2.bf16.msra.mxu0 0
        %2328 = vmatprep.subr.bf16.mxu0 0
        %2329 = vmatpush2.bf16.msra.mxu0 0
        %2330 = vmatprep.mubr.bf16.mxu0 0
        %2331 = vmatmul.mubr.bf16.gmra.mxu0 %v2246
        %v2332 = vpop.f32.mrf.mxu0
        %v2333 = vadd.f32 %v2243, %v2332
        %v2334 = vpop.f32.mrf.mxu0
        %v2335 = vpop.f32.mrf.mxu0
        %v2336 = vpop.f32.mrf.mxu0
        %2337 = vdwg.mxu0
        %v2338 = vmax.f32 %v2292, 0.0
        %v2339 = vmax.f32 %v2294, 0.0
        %v2340 = vmax.f32 %v2333, 0.0
        %v2341 = vmul.f32 %v2338, %v658
        %v2342 = vmul.f32 %v2339, %v662
        %v2343 = vmul.f32 %v2340, %v666
        %s2344 = sadd.s32 %s1575, 3
        %s2345 = smul.u32 %s2344, 8
        %s2346 = scalar_lea.vmem %s14, %s2345
        %v2347 = vld [vmem:[%s2346] sm:$0xff]
        %s2348 = scalar_lea.vmem %s15, %s2345
        %v2349 = vld [vmem:[%s2348] sm:$0xff]
        %2350 = vrot.lane.b32.xlu0 %v2341, 19
        %v2351 = vpop.permute.xlu0 %2350
        %2352 = vrot.lane.b32.xlu0 %v2342, 19
        %v2353 = vpop.permute.xlu0 %2352
        %2354 = vrot.lane.b32.xlu0 %v2343, 19
        %v2355 = vpop.permute.xlu0 %2354
        %v2356 = vsel %vm1590, %v2353, %v2355
        %v2357 = vsel %vm1590, %v2351, %v2353
        %v2358 = vsel %vm1590, %v2355, %v2351
        %2359 = vst [vmem:[#allocation5] sm:$0xff] %v2358
        %2360 = vst [vmem:[#allocation5 + $0x8] sm:$0xff] %v2357
        %2361 = vst [vmem:[#allocation5 + $0x10] sm:$0xff] %v2356
        %2362 = vrot.lane.b32.xlu0 %v2341, 18
        %v2363 = vpop.permute.xlu0 %2362
        %2364 = vrot.lane.b32.xlu0 %v2342, 18
        %v2365 = vpop.permute.xlu0 %2364
        %2366 = vrot.lane.b32.xlu0 %v2343, 18
        %v2367 = vpop.permute.xlu0 %2366
        %v2368 = vsel %vm1603, %v2365, %v2367
        %v2369 = vsel %vm1603, %v2363, %v2365
        %v2370 = vsel %vm1603, %v2367, %v2363
        %2371 = vst [vmem:[#allocation5 + $0x18] sm:$0xff] %v2370
        %2372 = vst [vmem:[#allocation5 + $0x20] sm:$0xff] %v2369
        %2373 = vst [vmem:[#allocation5 + $0x28] sm:$0xff] %v2368
        %2374 = vrot.lane.b32.xlu0 %v2341, 17
        %v2375 = vpop.permute.xlu0 %2374
        %2376 = vrot.lane.b32.xlu0 %v2342, 17
        %v2377 = vpop.permute.xlu0 %2376
        %2378 = vrot.lane.b32.xlu0 %v2343, 17
        %v2379 = vpop.permute.xlu0 %2378
        %v2380 = vsel %vm1616, %v2377, %v2379
        %v2381 = vsel %vm1616, %v2375, %v2377
        %v2382 = vsel %vm1616, %v2379, %v2375
        %2383 = vst [vmem:[#allocation5 + $0x30] sm:$0xff] %v2382
        %2384 = vst [vmem:[#allocation5 + $0x38] sm:$0xff] %v2381
        %2385 = vst [vmem:[#allocation5 + $0x40] sm:$0xff] %v2380
        %2386 = vrot.lane.b32.xlu0 %v2341, 1
        %v2387 = vpop.permute.xlu0 %2386
        %2388 = vrot.lane.b32.xlu0 %v2342, 1
        %v2389 = vpop.permute.xlu0 %2388
        %2390 = vrot.lane.b32.xlu0 %v2343, 1
        %v2391 = vpop.permute.xlu0 %2390
        %v2392 = vsel %vm1629, %v2389, %v2391
        %v2393 = vsel %vm1629, %v2387, %v2389
        %v2394 = vsel %vm1629, %v2391, %v2387
        %2395 = vst [vmem:[#allocation5 + $0x48] sm:$0xff] %v2394
        %2396 = vst [vmem:[#allocation5 + $0x50] sm:$0xff] %v2393
        %2397 = vst [vmem:[#allocation5 + $0x58] sm:$0xff] %v2392
        %2398 = vst [vmem:[#allocation5 + $0x60] sm:$0xff] %v2341
        %2399 = vst [vmem:[#allocation5 + $0x68] sm:$0xff] %v2342
        %2400 = vst [vmem:[#allocation5 + $0x70] sm:$0xff] %v2343
        %2401 = vrot.lane.b32.xlu0 %v2341, 127
        %v2402 = vpop.permute.xlu0 %2401
        %2403 = vrot.lane.b32.xlu0 %v2342, 127
        %v2404 = vpop.permute.xlu0 %2403
        %2405 = vrot.lane.b32.xlu0 %v2343, 127
        %v2406 = vpop.permute.xlu0 %2405
        %v2407 = vsel %vm1645, %v2404, %v2406
        %v2408 = vsel %vm1645, %v2402, %v2404
        %v2409 = vsel %vm1645, %v2406, %v2402
        %2410 = vst [vmem:[#allocation5 + $0x78] sm:$0xff] %v2408
        %2411 = vst [vmem:[#allocation5 + $0x80] sm:$0xff] %v2407
        %2412 = vst [vmem:[#allocation5 + $0x88] sm:$0xff] %v2409
        %2413 = vrot.lane.b32.xlu0 %v2341, 111
        %v2414 = vpop.permute.xlu0 %2413
        %2415 = vrot.lane.b32.xlu0 %v2342, 111
        %v2416 = vpop.permute.xlu0 %2415
        %2417 = vrot.lane.b32.xlu0 %v2343, 111
        %v2418 = vpop.permute.xlu0 %2417
        %v2419 = vsel %vm1658, %v2416, %v2418
        %v2420 = vsel %vm1658, %v2414, %v2416
        %v2421 = vsel %vm1658, %v2418, %v2414
        %2422 = vst [vmem:[#allocation5 + $0x90] sm:$0xff] %v2420
        %2423 = vst [vmem:[#allocation5 + $0x98] sm:$0xff] %v2419
        %2424 = vst [vmem:[#allocation5 + $0xa0] sm:$0xff] %v2421
        %2425 = vrot.lane.b32.xlu0 %v2341, 110
        %v2426 = vpop.permute.xlu0 %2425
        %2427 = vrot.lane.b32.xlu0 %v2342, 110
        %v2428 = vpop.permute.xlu0 %2427
        %2429 = vrot.lane.b32.xlu0 %v2343, 110
        %v2430 = vpop.permute.xlu0 %2429
        %v2431 = vsel %vm1671, %v2428, %v2430
        %v2432 = vsel %vm1671, %v2426, %v2428
        %v2433 = vsel %vm1671, %v2430, %v2426
        %2434 = vst [vmem:[#allocation5 + $0xa8] sm:$0xff] %v2432
        %2435 = vst [vmem:[#allocation5 + $0xb0] sm:$0xff] %v2431
        %2436 = vst [vmem:[#allocation5 + $0xb8] sm:$0xff] %v2433
        %2437 = vrot.lane.b32.xlu0 %v2341, 109
        %v2438 = vpop.permute.xlu0 %2437
        %2439 = vrot.lane.b32.xlu0 %v2342, 109
        %v2440 = vpop.permute.xlu0 %2439
        %2441 = vrot.lane.b32.xlu0 %v2343, 109
        %v2442 = vpop.permute.xlu0 %2441
        %v2443 = vsel %vm1684, %v2440, %v2442
        %v2444 = vsel %vm1684, %v2438, %v2440
        %v2445 = vsel %vm1684, %v2442, %v2438
        %2446 = vst [vmem:[#allocation5 + $0xc0] sm:$0xff] %v2444
        %2447 = vst [vmem:[#allocation5 + $0xc8] sm:$0xff] %v2443
        %2448 = vst [vmem:[#allocation5 + $0xd0] sm:$0xff] %v2445
        %v2449 = vpack.c.bf16 %v2347, %v2347
        %v2450 = vld [vmem:[#allocation5] sm:$0xff]
        %v2451 = vld [vmem:[#allocation5 + $0x8] sm:$0xff]
        %v2452 = vld [vmem:[#allocation5 + $0x10] sm:$0xff]
        %v2453 = vld [vmem:[#allocation5 + $0x18] sm:$0xff]
        %v2454 = vld [vmem:[#allocation5 + $0x20] sm:$0xff]
        %v2455 = vld [vmem:[#allocation5 + $0x28] sm:$0xff]
        %v2456 = vld [vmem:[#allocation5 + $0x30] sm:$0xff]
        %v2457 = vld [vmem:[#allocation5 + $0x38] sm:$0xff]
        %v2458 = vld [vmem:[#allocation5 + $0x40] sm:$0xff]
        %v2459 = vld [vmem:[#allocation5 + $0x48] sm:$0xff]
        %v2460 = vld [vmem:[#allocation5 + $0x50] sm:$0xff]
        %v2461 = vld [vmem:[#allocation5 + $0x58] sm:$0xff]
        %v2462 = vld [vmem:[#allocation5 + $0x60] sm:$0xff]
        %v2463 = vld [vmem:[#allocation5 + $0x68] sm:$0xff]
        %v2464 = vld [vmem:[#allocation5 + $0x70] sm:$0xff]
        %v2465 = vld [vmem:[#allocation5 + $0x78] sm:$0xff]
        %v2466 = vld [vmem:[#allocation5 + $0x80] sm:$0xff]
        %v2467 = vld [vmem:[#allocation5 + $0x88] sm:$0xff]
        %v2468 = vld [vmem:[#allocation5 + $0x90] sm:$0xff]
        %v2469 = vld [vmem:[#allocation5 + $0x98] sm:$0xff]
        %v2470 = vld [vmem:[#allocation5 + $0xa0] sm:$0xff]
        %v2471 = vld [vmem:[#allocation5 + $0xa8] sm:$0xff]
        %v2472 = vld [vmem:[#allocation5 + $0xb0] sm:$0xff]
        %v2473 = vld [vmem:[#allocation5 + $0xb8] sm:$0xff]
        %v2474 = vld [vmem:[#allocation5 + $0xc0] sm:$0xff]
        %v2475 = vld [vmem:[#allocation5 + $0xc8] sm:$0xff]
        %v2476 = vld [vmem:[#allocation5 + $0xd0] sm:$0xff]
        %v2477 = vpack.c.bf16 %v2453, %v2450
        %v2478 = vpack.c.bf16 %v2454, %v2451
        %v2479 = vpack.c.bf16 %v2455, %v2452
        %v2480 = vpack.c.bf16 %v2459, %v2456
        %v2481 = vpack.c.bf16 %v2460, %v2457
        %v2482 = vpack.c.bf16 %v2461, %v2458
        %v2483 = vpack.c.bf16 %v2465, %v2462
        %v2484 = vpack.c.bf16 %v2466, %v2463
        %v2485 = vpack.c.bf16 %v2467, %v2464
        %v2486 = vpack.c.bf16 %v2471, %v2468
        %v2487 = vpack.c.bf16 %v2472, %v2469
        %v2488 = vpack.c.bf16 %v2473, %v2470
        %v2489 = vpack.c.bf16 %v2474, %v2474
        %v2490 = vpack.c.bf16 %v2475, %v2475
        %v2491 = vpack.c.bf16 %v2476, %v2476
        %2493 = vset.pattern.permute.xlu0 0
        %2494 = vperm.xlu0 %2493, %v2349
        %v2495 = vpop.permute.xlu0 %2494
        %v2498 = vsel %vm1739, %v2449, 0
        %v2501 = vsel %vm1743, %v2489, 0
        %v2504 = vsel %vm1743, %v2490, 0
        %v2507 = vsel %vm1743, %v2491, 0
        %2509 = vmatprep.subr.bf16.mxu0 0
        %2510 = vmatpush1.bf16.msra.mxu0 0
        %2511 = vmatprep.subr.bf16.mxu0 0
        %2512 = vmatpush1.bf16.msra.mxu0 0
        %2513 = vmatprep.subr.bf16.mxu0 0
        %2514 = vmatpush1.bf16.msra.mxu0 0
        %2515 = vmatprep.subr.bf16.mxu0 %v2504
        %2516 = vmatpush1.bf16.msra.mxu0 %v2501
        %2517 = vmatprep.subr.bf16.mxu0 %v2487
        %2518 = vmatpush1.bf16.msra.mxu0 %v2486
        %2519 = vmatprep.subr.bf16.mxu0 %v2484
        %2520 = vmatpush1.bf16.msra.mxu0 %v2483
        %2521 = vmatprep.subr.bf16.mxu0 %v2481
        %2522 = vmatpush1.bf16.msra.mxu0 %v2480
        %2523 = vmatprep.subr.bf16.mxu0 %v2478
        %2524 = vmatpush1.bf16.msra.mxu0 %v2477
        %2525 = vmatprep.subr.bf16.mxu0 0
        %2526 = vmatpush2.bf16.msra.mxu0 0
        %2527 = vmatprep.subr.bf16.mxu0 0
        %2528 = vmatpush2.bf16.msra.mxu0 0
        %2529 = vmatprep.subr.bf16.mxu0 0
        %2530 = vmatpush2.bf16.msra.mxu0 0
        %2531 = vmatprep.subr.bf16.mxu0 0
        %2532 = vmatpush2.bf16.msra.mxu0 0
        %2533 = vmatprep.subr.bf16.mxu0 0
        %2534 = vmatpush2.bf16.msra.mxu0 0
        %2535 = vmatprep.subr.bf16.mxu0 0
        %2536 = vmatpush2.bf16.msra.mxu0 0
        %2537 = vmatprep.subr.bf16.mxu0 0
        %2538 = vmatpush2.bf16.msra.mxu0 0
        %2539 = vmatprep.subr.bf16.mxu0 0
        %2540 = vmatpush2.bf16.msra.mxu0 0
        %2541 = vmatprep.mubr.bf16.mxu0 0
        %2542 = vmatmul.mubr.bf16.gmra.mxu0 %v2498
        %v2543 = vpop.f32.mrf.mxu0
        %v2544 = vadd.f32 %v2495, %v2543
        %v2545 = vpop.f32.mrf.mxu0
        %v2546 = vadd.f32 %v2495, %v2545
        %v2547 = vpop.f32.mrf.mxu0
        %v2548 = vpop.f32.mrf.mxu0
        %2549 = vdwg.mxu0
        %2550 = vmatprep.subr.bf16.mxu0 0
        %2551 = vmatpush1.bf16.msra.mxu0 0
        %2552 = vmatprep.subr.bf16.mxu0 0
        %2553 = vmatpush1.bf16.msra.mxu0 0
        %2554 = vmatprep.subr.bf16.mxu0 0
        %2555 = vmatpush1.bf16.msra.mxu0 0
        %2556 = vmatprep.subr.bf16.mxu0 0
        %2557 = vmatpush1.bf16.msra.mxu0 %v2507
        %2558 = vmatprep.subr.bf16.mxu0 0
        %2559 = vmatpush1.bf16.msra.mxu0 %v2488
        %2560 = vmatprep.subr.bf16.mxu0 0
        %2561 = vmatpush1.bf16.msra.mxu0 %v2485
        %2562 = vmatprep.subr.bf16.mxu0 0
        %2563 = vmatpush1.bf16.msra.mxu0 %v2482
        %2564 = vmatprep.subr.bf16.mxu0 0
        %2565 = vmatpush1.bf16.msra.mxu0 %v2479
        %2566 = vmatprep.subr.bf16.mxu0 0
        %2567 = vmatpush2.bf16.msra.mxu0 0
        %2568 = vmatprep.subr.bf16.mxu0 0
        %2569 = vmatpush2.bf16.msra.mxu0 0
        %2570 = vmatprep.subr.bf16.mxu0 0
        %2571 = vmatpush2.bf16.msra.mxu0 0
        %2572 = vmatprep.subr.bf16.mxu0 0
        %2573 = vmatpush2.bf16.msra.mxu0 0
        %2574 = vmatprep.subr.bf16.mxu0 0
        %2575 = vmatpush2.bf16.msra.mxu0 0
        %2576 = vmatprep.subr.bf16.mxu0 0
        %2577 = vmatpush2.bf16.msra.mxu0 0
        %2578 = vmatprep.subr.bf16.mxu0 0
        %2579 = vmatpush2.bf16.msra.mxu0 0
        %2580 = vmatprep.subr.bf16.mxu0 0
        %2581 = vmatpush2.bf16.msra.mxu0 0
        %2582 = vmatprep.mubr.bf16.mxu0 0
        %2583 = vmatmul.mubr.bf16.gmra.mxu0 %v2498
        %v2584 = vpop.f32.mrf.mxu0
        %v2585 = vadd.f32 %v2495, %v2584
        %v2586 = vpop.f32.mrf.mxu0
        %v2587 = vpop.f32.mrf.mxu0
        %v2588 = vpop.f32.mrf.mxu0
        %2589 = vdwg.mxu0
        %v2590 = vmax.f32 %v2544, 0.0
        %v2591 = vmax.f32 %v2546, 0.0
        %v2592 = vmax.f32 %v2585, 0.0
        %v2593 = vadd.f32 %v1572, %v2590
        %v2594 = vadd.f32 %v1573, %v2591
        %v2595 = vadd.f32 %v1574, %v2592
        %s2596 = smul.u32 %s1576, 8
        %s2597 = scalar_lea.vmem %s16, %s2596
        %v2598 = vld [vmem:[%s2597] sm:$0xff]
        %s2599 = scalar_lea.vmem %s17, %s2596
        %v2600 = vld [vmem:[%s2599] sm:$0xff]
        %2602 = vset.pattern.permute.xlu0 0
        %2603 = vperm.xlu0 %2602, %v2600
        %v2604 = vpop.permute.xlu0 %2603
        %vm2606 = vcmask 261120
        %v2608 = vsel %vm2606, %v2598, 0
        %2610 = vmatprep.subr.mxu0 0.0
        %2611 = vmatpush1.msra.mxu0 0.0
        %2612 = vmatprep.subr.mxu0 0.0
        %2613 = vmatpush1.msra.mxu0 0.0
        %2614 = vmatprep.subr.mxu0 0.0
        %2615 = vmatpush1.msra.mxu0 0.0
        %2616 = vmatprep.subr.mxu0 0.0
        %2617 = vmatpush1.msra.mxu0 0.0
        %2618 = vmatprep.subr.mxu0 0.0
        %2619 = vmatpush1.msra.mxu0 0.0
        %2620 = vmatprep.subr.mxu0 0.0
        %2621 = vmatpush1.msra.mxu0 0.0
        %2622 = vmatprep.subr.mxu0 0.0
        %2623 = vmatpush1.msra.mxu0 0.0
        %2624 = vmatprep.subr.mxu0 0.0
        %2625 = vmatpush1.msra.mxu0 0.0
        %2626 = vmatprep.subr.mxu0 0.0
        %2627 = vmatpush1.msra.mxu0 0.0
        %2628 = vmatprep.subr.mxu0 0.0
        %2629 = vmatpush1.msra.mxu0 0.0
        %2630 = vmatprep.subr.mxu0 0.0
        %2631 = vmatpush1.msra.mxu0 0.0
        %2632 = vmatprep.subr.mxu0 0.0
        %2633 = vmatpush1.msra.mxu0 0.0
        %2634 = vmatprep.subr.mxu0 %v2591
        %2635 = vmatpush1.msra.mxu0 %v2590
        %2636 = vmatprep.subr.mxu0 %v2342
        %2637 = vmatpush1.msra.mxu0 %v2341
        %2638 = vmatprep.subr.mxu0 %v2090
        %2639 = vmatpush1.msra.mxu0 %v2089
        %2640 = vmatprep.subr.mxu0 %v1838
        %2641 = vmatpush1.msra.mxu0 %v1837
        %2642 = vmatprep.subr.mxu0 0.0
        %2643 = vmatpush2.msra.mxu0 0.0
        %2644 = vmatprep.subr.mxu0 0.0
        %2645 = vmatpush2.msra.mxu0 0.0
        %2646 = vmatprep.subr.mxu0 0.0
        %2647 = vmatpush2.msra.mxu0 0.0
        %2648 = vmatprep.subr.mxu0 0.0
        %2649 = vmatpush2.msra.mxu0 0.0
        %2650 = vmatprep.subr.mxu0 0.0
        %2651 = vmatpush2.msra.mxu0 0.0
        %2652 = vmatprep.subr.mxu0 0.0
        %2653 = vmatpush2.msra.mxu0 0.0
        %2654 = vmatprep.subr.mxu0 0.0
        %2655 = vmatpush2.msra.mxu0 0.0
        %2656 = vmatprep.subr.mxu0 0.0
        %2657 = vmatpush2.msra.mxu0 0.0
        %2658 = vmatprep.subr.mxu0 0.0
        %2659 = vmatpush2.msra.mxu0 0.0
        %2660 = vmatprep.subr.mxu0 0.0
        %2661 = vmatpush2.msra.mxu0 0.0
        %2662 = vmatprep.subr.mxu0 0.0
        %2663 = vmatpush2.msra.mxu0 0.0
        %2664 = vmatprep.subr.mxu0 0.0
        %2665 = vmatpush2.msra.mxu0 0.0
        %2666 = vmatprep.subr.mxu0 0.0
        %2667 = vmatpush2.msra.mxu0 0.0
        %2668 = vmatprep.subr.mxu0 0.0
        %2669 = vmatpush2.msra.mxu0 0.0
        %2670 = vmatprep.subr.mxu0 0.0
        %2671 = vmatpush2.msra.mxu0 0.0
        %2672 = vmatprep.subr.mxu0 0.0
        %2673 = vmatpush2.msra.mxu0 0.0
        %2674 = vmatprep.mubr.f32.mxu0 0.0
        %2675 = vmatmul.mubr.f32.gmra.mxu0 %v2608
        %v2676 = vpop.f32.mrf.mxu0
        %v2677 = vadd.f32 %v2604, %v2676
        %v2678 = vpop.f32.mrf.mxu0
        %v2679 = vadd.f32 %v2604, %v2678
        %2680 = vdwg.mxu0
        %2681 = vmatprep.subr.mxu0 0.0
        %2682 = vmatpush1.msra.mxu0 0.0
        %2683 = vmatprep.subr.mxu0 0.0
        %2684 = vmatpush1.msra.mxu0 0.0
        %2685 = vmatprep.subr.mxu0 0.0
        %2686 = vmatpush1.msra.mxu0 0.0
        %2687 = vmatprep.subr.mxu0 0.0
        %2688 = vmatpush1.msra.mxu0 0.0
        %2689 = vmatprep.subr.mxu0 0.0
        %2690 = vmatpush1.msra.mxu0 0.0
        %2691 = vmatprep.subr.mxu0 0.0
        %2692 = vmatpush1.msra.mxu0 0.0
        %2693 = vmatprep.subr.mxu0 0.0
        %2694 = vmatpush1.msra.mxu0 0.0
        %2695 = vmatprep.subr.mxu0 0.0
        %2696 = vmatpush1.msra.mxu0 0.0
        %2697 = vmatprep.subr.mxu0 0.0
        %2698 = vmatpush1.msra.mxu0 0.0
        %2699 = vmatprep.subr.mxu0 0.0
        %2700 = vmatpush1.msra.mxu0 0.0
        %2701 = vmatprep.subr.mxu0 0.0
        %2702 = vmatpush1.msra.mxu0 0.0
        %2703 = vmatprep.subr.mxu0 0.0
        %2704 = vmatpush1.msra.mxu0 0.0
        %2705 = vmatprep.subr.mxu0 0.0
        %2706 = vmatpush1.msra.mxu0 %v2592
        %2707 = vmatprep.subr.mxu0 0.0
        %2708 = vmatpush1.msra.mxu0 %v2343
        %2709 = vmatprep.subr.mxu0 0.0
        %2710 = vmatpush1.msra.mxu0 %v2091
        %2711 = vmatprep.subr.mxu0 0.0
        %2712 = vmatpush1.msra.mxu0 %v1839
        %2713 = vmatprep.subr.mxu0 0.0
        %2714 = vmatpush2.msra.mxu0 0.0
        %2715 = vmatprep.subr.mxu0 0.0
        %2716 = vmatpush2.msra.mxu0 0.0
        %2717 = vmatprep.subr.mxu0 0.0
        %2718 = vmatpush2.msra.mxu0 0.0
        %2719 = vmatprep.subr.mxu0 0.0
        %2720 = vmatpush2.msra.mxu0 0.0
        %2721 = vmatprep.subr.mxu0 0.0
        %2722 = vmatpush2.msra.mxu0 0.0
        %2723 = vmatprep.subr.mxu0 0.0
        %2724 = vmatpush2.msra.mxu0 0.0
        %2725 = vmatprep.subr.mxu0 0.0
        %2726 = vmatpush2.msra.mxu0 0.0
        %2727 = vmatprep.subr.mxu0 0.0
        %2728 = vmatpush2.msra.mxu0 0.0
        %2729 = vmatprep.subr.mxu0 0.0
        %2730 = vmatpush2.msra.mxu0 0.0
        %2731 = vmatprep.subr.mxu0 0.0
        %2732 = vmatpush2.msra.mxu0 0.0
        %2733 = vmatprep.subr.mxu0 0.0
        %2734 = vmatpush2.msra.mxu0 0.0
        %2735 = vmatprep.subr.mxu0 0.0
        %2736 = vmatpush2.msra.mxu0 0.0
        %2737 = vmatprep.subr.mxu0 0.0
        %2738 = vmatpush2.msra.mxu0 0.0
        %2739 = vmatprep.subr.mxu0 0.0
        %2740 = vmatpush2.msra.mxu0 0.0
        %2741 = vmatprep.subr.mxu0 0.0
        %2742 = vmatpush2.msra.mxu0 0.0
        %2743 = vmatprep.subr.mxu0 0.0
        %2744 = vmatpush2.msra.mxu0 0.0
        %2745 = vmatprep.mubr.f32.mxu0 0.0
        %2746 = vmatmul.mubr.f32.gmra.mxu0 %v2608
        %v2747 = vpop.f32.mrf.mxu0
        %v2748 = vadd.f32 %v2604, %v2747
        %v2749 = vpop.f32.mrf.mxu0
        %2750 = vdwg.mxu0
        %v2751 = vmul.f32 %v2677, %v658
        %v2752 = vmul.f32 %v2679, %v662
        %v2753 = vmul.f32 %v2748, %v666
        %s2754 = sadd.s32 %s1575, 4
        %s2755 = smul.u32 %s2754, 8
        %s2756 = scalar_lea.vmem %s14, %s2755
        %v2757 = vld [vmem:[%s2756] sm:$0xff]
        %s2758 = scalar_lea.vmem %s15, %s2755
        %v2759 = vld [vmem:[%s2758] sm:$0xff]
        %2760 = vrot.lane.b32.xlu0 %v2751, 19
        %v2761 = vpop.permute.xlu0 %2760
        %2762 = vrot.lane.b32.xlu0 %v2752, 19
        %v2763 = vpop.permute.xlu0 %2762
        %2764 = vrot.lane.b32.xlu0 %v2753, 19
        %v2765 = vpop.permute.xlu0 %2764
        %v2766 = vsel %vm1590, %v2763, %v2765
        %v2767 = vsel %vm1590, %v2761, %v2763
        %v2768 = vsel %vm1590, %v2765, %v2761
        %2769 = vst [vmem:[#allocation5] sm:$0xff] %v2768
        %2770 = vst [vmem:[#allocation5 + $0x8] sm:$0xff] %v2767
        %2771 = vst [vmem:[#allocation5 + $0x10] sm:$0xff] %v2766
        %2772 = vrot.lane.b32.xlu0 %v2751, 18
        %v2773 = vpop.permute.xlu0 %2772
        %2774 = vrot.lane.b32.xlu0 %v2752, 18
        %v2775 = vpop.permute.xlu0 %2774
        %2776 = vrot.lane.b32.xlu0 %v2753, 18
        %v2777 = vpop.permute.xlu0 %2776
        %v2778 = vsel %vm1603, %v2775, %v2777
        %v2779 = vsel %vm1603, %v2773, %v2775
        %v2780 = vsel %vm1603, %v2777, %v2773
        %2781 = vst [vmem:[#allocation5 + $0x18] sm:$0xff] %v2780
        %2782 = vst [vmem:[#allocation5 + $0x20] sm:$0xff] %v2779
        %2783 = vst [vmem:[#allocation5 + $0x28] sm:$0xff] %v2778
        %2784 = vrot.lane.b32.xlu0 %v2751, 17
        %v2785 = vpop.permute.xlu0 %2784
        %2786 = vrot.lane.b32.xlu0 %v2752, 17
        %v2787 = vpop.permute.xlu0 %2786
        %2788 = vrot.lane.b32.xlu0 %v2753, 17
        %v2789 = vpop.permute.xlu0 %2788
        %v2790 = vsel %vm1616, %v2787, %v2789
        %v2791 = vsel %vm1616, %v2785, %v2787
        %v2792 = vsel %vm1616, %v2789, %v2785
        %2793 = vst [vmem:[#allocation5 + $0x30] sm:$0xff] %v2792
        %2794 = vst [vmem:[#allocation5 + $0x38] sm:$0xff] %v2791
        %2795 = vst [vmem:[#allocation5 + $0x40] sm:$0xff] %v2790
        %2796 = vrot.lane.b32.xlu0 %v2751, 1
        %v2797 = vpop.permute.xlu0 %2796
        %2798 = vrot.lane.b32.xlu0 %v2752, 1
        %v2799 = vpop.permute.xlu0 %2798
        %2800 = vrot.lane.b32.xlu0 %v2753, 1
        %v2801 = vpop.permute.xlu0 %2800
        %v2802 = vsel %vm1629, %v2799, %v2801
        %v2803 = vsel %vm1629, %v2797, %v2799
        %v2804 = vsel %vm1629, %v2801, %v2797
        %2805 = vst [vmem:[#allocation5 + $0x48] sm:$0xff] %v2804
        %2806 = vst [vmem:[#allocation5 + $0x50] sm:$0xff] %v2803
        %2807 = vst [vmem:[#allocation5 + $0x58] sm:$0xff] %v2802
        %2808 = vst [vmem:[#allocation5 + $0x60] sm:$0xff] %v2751
        %2809 = vst [vmem:[#allocation5 + $0x68] sm:$0xff] %v2752
        %2810 = vst [vmem:[#allocation5 + $0x70] sm:$0xff] %v2753
        %2811 = vrot.lane.b32.xlu0 %v2751, 127
        %v2812 = vpop.permute.xlu0 %2811
        %2813 = vrot.lane.b32.xlu0 %v2752, 127
        %v2814 = vpop.permute.xlu0 %2813
        %2815 = vrot.lane.b32.xlu0 %v2753, 127
        %v2816 = vpop.permute.xlu0 %2815
        %v2817 = vsel %vm1645, %v2814, %v2816
        %v2818 = vsel %vm1645, %v2812, %v2814
        %v2819 = vsel %vm1645, %v2816, %v2812
        %2820 = vst [vmem:[#allocation5 + $0x78] sm:$0xff] %v2818
        %2821 = vst [vmem:[#allocation5 + $0x80] sm:$0xff] %v2817
        %2822 = vst [vmem:[#allocation5 + $0x88] sm:$0xff] %v2819
        %2823 = vrot.lane.b32.xlu0 %v2751, 111
        %v2824 = vpop.permute.xlu0 %2823
        %2825 = vrot.lane.b32.xlu0 %v2752, 111
        %v2826 = vpop.permute.xlu0 %2825
        %2827 = vrot.lane.b32.xlu0 %v2753, 111
        %v2828 = vpop.permute.xlu0 %2827
        %v2829 = vsel %vm1658, %v2826, %v2828
        %v2830 = vsel %vm1658, %v2824, %v2826
        %v2831 = vsel %vm1658, %v2828, %v2824
        %2832 = vst [vmem:[#allocation5 + $0x90] sm:$0xff] %v2830
        %2833 = vst [vmem:[#allocation5 + $0x98] sm:$0xff] %v2829
        %2834 = vst [vmem:[#allocation5 + $0xa0] sm:$0xff] %v2831
        %2835 = vrot.lane.b32.xlu0 %v2751, 110
        %v2836 = vpop.permute.xlu0 %2835
        %2837 = vrot.lane.b32.xlu0 %v2752, 110
        %v2838 = vpop.permute.xlu0 %2837
        %2839 = vrot.lane.b32.xlu0 %v2753, 110
        %v2840 = vpop.permute.xlu0 %2839
        %v2841 = vsel %vm1671, %v2838, %v2840
        %v2842 = vsel %vm1671, %v2836, %v2838
        %v2843 = vsel %vm1671, %v2840, %v2836
        %2844 = vst [vmem:[#allocation5 + $0xa8] sm:$0xff] %v2842
        %2845 = vst [vmem:[#allocation5 + $0xb0] sm:$0xff] %v2841
        %2846 = vst [vmem:[#allocation5 + $0xb8] sm:$0xff] %v2843
        %2847 = vrot.lane.b32.xlu0 %v2751, 109
        %v2848 = vpop.permute.xlu0 %2847
        %2849 = vrot.lane.b32.xlu0 %v2752, 109
        %v2850 = vpop.permute.xlu0 %2849
        %2851 = vrot.lane.b32.xlu0 %v2753, 109
        %v2852 = vpop.permute.xlu0 %2851
        %v2853 = vsel %vm1684, %v2850, %v2852
        %v2854 = vsel %vm1684, %v2848, %v2850
        %v2855 = vsel %vm1684, %v2852, %v2848
        %2856 = vst [vmem:[#allocation5 + $0xc0] sm:$0xff] %v2854
        %2857 = vst [vmem:[#allocation5 + $0xc8] sm:$0xff] %v2853
        %2858 = vst [vmem:[#allocation5 + $0xd0] sm:$0xff] %v2855
        %v2859 = vpack.c.bf16 %v2757, %v2757
        %v2860 = vld [vmem:[#allocation5] sm:$0xff]
        %v2861 = vld [vmem:[#allocation5 + $0x8] sm:$0xff]
        %v2862 = vld [vmem:[#allocation5 + $0x10] sm:$0xff]
        %v2863 = vld [vmem:[#allocation5 + $0x18] sm:$0xff]
        %v2864 = vld [vmem:[#allocation5 + $0x20] sm:$0xff]
        %v2865 = vld [vmem:[#allocation5 + $0x28] sm:$0xff]
        %v2866 = vld [vmem:[#allocation5 + $0x30] sm:$0xff]
        %v2867 = vld [vmem:[#allocation5 + $0x38] sm:$0xff]
        %v2868 = vld [vmem:[#allocation5 + $0x40] sm:$0xff]
        %v2869 = vld [vmem:[#allocation5 + $0x48] sm:$0xff]
        %v2870 = vld [vmem:[#allocation5 + $0x50] sm:$0xff]
        %v2871 = vld [vmem:[#allocation5 + $0x58] sm:$0xff]
        %v2872 = vld [vmem:[#allocation5 + $0x60] sm:$0xff]
        %v2873 = vld [vmem:[#allocation5 + $0x68] sm:$0xff]
        %v2874 = vld [vmem:[#allocation5 + $0x70] sm:$0xff]
        %v2875 = vld [vmem:[#allocation5 + $0x78] sm:$0xff]
        %v2876 = vld [vmem:[#allocation5 + $0x80] sm:$0xff]
        %v2877 = vld [vmem:[#allocation5 + $0x88] sm:$0xff]
        %v2878 = vld [vmem:[#allocation5 + $0x90] sm:$0xff]
        %v2879 = vld [vmem:[#allocation5 + $0x98] sm:$0xff]
        %v2880 = vld [vmem:[#allocation5 + $0xa0] sm:$0xff]
        %v2881 = vld [vmem:[#allocation5 + $0xa8] sm:$0xff]
        %v2882 = vld [vmem:[#allocation5 + $0xb0] sm:$0xff]
        %v2883 = vld [vmem:[#allocation5 + $0xb8] sm:$0xff]
        %v2884 = vld [vmem:[#allocation5 + $0xc0] sm:$0xff]
        %v2885 = vld [vmem:[#allocation5 + $0xc8] sm:$0xff]
        %v2886 = vld [vmem:[#allocation5 + $0xd0] sm:$0xff]
        %v2887 = vpack.c.bf16 %v2863, %v2860
        %v2888 = vpack.c.bf16 %v2864, %v2861
        %v2889 = vpack.c.bf16 %v2865, %v2862
        %v2890 = vpack.c.bf16 %v2869, %v2866
        %v2891 = vpack.c.bf16 %v2870, %v2867
        %v2892 = vpack.c.bf16 %v2871, %v2868
        %v2893 = vpack.c.bf16 %v2875, %v2872
        %v2894 = vpack.c.bf16 %v2876, %v2873
        %v2895 = vpack.c.bf16 %v2877, %v2874
        %v2896 = vpack.c.bf16 %v2881, %v2878
        %v2897 = vpack.c.bf16 %v2882, %v2879
        %v2898 = vpack.c.bf16 %v2883, %v2880
        %v2899 = vpack.c.bf16 %v2884, %v2884
        %v2900 = vpack.c.bf16 %v2885, %v2885
        %v2901 = vpack.c.bf16 %v2886, %v2886
        %2903 = vset.pattern.permute.xlu0 0
        %2904 = vperm.xlu0 %2903, %v2759
        %v2905 = vpop.permute.xlu0 %2904
        %v2908 = vsel %vm1739, %v2859, 0
        %v2911 = vsel %vm1743, %v2899, 0
        %v2914 = vsel %vm1743, %v2900, 0
        %v2917 = vsel %vm1743, %v2901, 0
        %2919 = vmatprep.subr.bf16.mxu0 0
        %2920 = vmatpush1.bf16.msra.mxu0 0
        %2921 = vmatprep.subr.bf16.mxu0 0
        %2922 = vmatpush1.bf16.msra.mxu0 0
        %2923 = vmatprep.subr.bf16.mxu0 0
        %2924 = vmatpush1.bf16.msra.mxu0 0
        %2925 = vmatprep.subr.bf16.mxu0 %v2914
        %2926 = vmatpush1.bf16.msra.mxu0 %v2911
        %2927 = vmatprep.subr.bf16.mxu0 %v2897
        %2928 = vmatpush1.bf16.msra.mxu0 %v2896
        %2929 = vmatprep.subr.bf16.mxu0 %v2894
        %2930 = vmatpush1.bf16.msra.mxu0 %v2893
        %2931 = vmatprep.subr.bf16.mxu0 %v2891
        %2932 = vmatpush1.bf16.msra.mxu0 %v2890
        %2933 = vmatprep.subr.bf16.mxu0 %v2888
        %2934 = vmatpush1.bf16.msra.mxu0 %v2887
        %2935 = vmatprep.subr.bf16.mxu0 0
        %2936 = vmatpush2.bf16.msra.mxu0 0
        %2937 = vmatprep.subr.bf16.mxu0 0
        %2938 = vmatpush2.bf16.msra.mxu0 0
        %2939 = vmatprep.subr.bf16.mxu0 0
        %2940 = vmatpush2.bf16.msra.mxu0 0
        %2941 = vmatprep.subr.bf16.mxu0 0
        %2942 = vmatpush2.bf16.msra.mxu0 0
        %2943 = vmatprep.subr.bf16.mxu0 0
        %2944 = vmatpush2.bf16.msra.mxu0 0
        %2945 = vmatprep.subr.bf16.mxu0 0
        %2946 = vmatpush2.bf16.msra.mxu0 0
        %2947 = vmatprep.subr.bf16.mxu0 0
        %2948 = vmatpush2.bf16.msra.mxu0 0
        %2949 = vmatprep.subr.bf16.mxu0 0
        %2950 = vmatpush2.bf16.msra.mxu0 0
        %2951 = vmatprep.mubr.bf16.mxu0 0
        %2952 = vmatmul.mubr.bf16.gmra.mxu0 %v2908
        %v2953 = vpop.f32.mrf.mxu0
        %v2954 = vadd.f32 %v2905, %v2953
        %v2955 = vpop.f32.mrf.mxu0
        %v2956 = vadd.f32 %v2905, %v2955
        %v2957 = vpop.f32.mrf.mxu0
        %v2958 = vpop.f32.mrf.mxu0
        %2959 = vdwg.mxu0
        %2960 = vmatprep.subr.bf16.mxu0 0
        %2961 = vmatpush1.bf16.msra.mxu0 0
        %2962 = vmatprep.subr.bf16.mxu0 0
        %2963 = vmatpush1.bf16.msra.mxu0 0
        %2964 = vmatprep.subr.bf16.mxu0 0
        %2965 = vmatpush1.bf16.msra.mxu0 0
        %2966 = vmatprep.subr.bf16.mxu0 0
        %2967 = vmatpush1.bf16.msra.mxu0 %v2917
        %2968 = vmatprep.subr.bf16.mxu0 0
        %2969 = vmatpush1.bf16.msra.mxu0 %v2898
        %2970 = vmatprep.subr.bf16.mxu0 0
        %2971 = vmatpush1.bf16.msra.mxu0 %v2895
        %2972 = vmatprep.subr.bf16.mxu0 0
        %2973 = vmatpush1.bf16.msra.mxu0 %v2892
        %2974 = vmatprep.subr.bf16.mxu0 0
        %2975 = vmatpush1.bf16.msra.mxu0 %v2889
        %2976 = vmatprep.subr.bf16.mxu0 0
        %2977 = vmatpush2.bf16.msra.mxu0 0
        %2978 = vmatprep.subr.bf16.mxu0 0
        %2979 = vmatpush2.bf16.msra.mxu0 0
        %2980 = vmatprep.subr.bf16.mxu0 0
        %2981 = vmatpush2.bf16.msra.mxu0 0
        %2982 = vmatprep.subr.bf16.mxu0 0
        %2983 = vmatpush2.bf16.msra.mxu0 0
        %2984 = vmatprep.subr.bf16.mxu0 0
        %2985 = vmatpush2.bf16.msra.mxu0 0
        %2986 = vmatprep.subr.bf16.mxu0 0
        %2987 = vmatpush2.bf16.msra.mxu0 0
        %2988 = vmatprep.subr.bf16.mxu0 0
        %2989 = vmatpush2.bf16.msra.mxu0 0
        %2990 = vmatprep.subr.bf16.mxu0 0
        %2991 = vmatpush2.bf16.msra.mxu0 0
        %2992 = vmatprep.mubr.bf16.mxu0 0
        %2993 = vmatmul.mubr.bf16.gmra.mxu0 %v2908
        %v2994 = vpop.f32.mrf.mxu0
        %v2995 = vadd.f32 %v2905, %v2994
        %v2996 = vpop.f32.mrf.mxu0
        %v2997 = vpop.f32.mrf.mxu0
        %v2998 = vpop.f32.mrf.mxu0
        %2999 = vdwg.mxu0
        %v3000 = vmax.f32 %v2954, 0.0
        %v3001 = vmax.f32 %v2956, 0.0
        %v3002 = vmax.f32 %v2995, 0.0
        %v3003 = vmul.f32 %v3000, %v658
        %v3004 = vmul.f32 %v3001, %v662
        %v3005 = vmul.f32 %v3002, %v666
        %s3006 = sadd.s32 %s1575, 5
        %s3007 = smul.u32 %s3006, 8
        %s3008 = scalar_lea.vmem %s14, %s3007
        %v3009 = vld [vmem:[%s3008] sm:$0xff]
        %s3010 = scalar_lea.vmem %s15, %s3007
        %v3011 = vld [vmem:[%s3010] sm:$0xff]
        %3012 = vrot.lane.b32.xlu0 %v3003, 19
        %v3013 = vpop.permute.xlu0 %3012
        %3014 = vrot.lane.b32.xlu0 %v3004, 19
        %v3015 = vpop.permute.xlu0 %3014
        %3016 = vrot.lane.b32.xlu0 %v3005, 19
        %v3017 = vpop.permute.xlu0 %3016
        %v3018 = vsel %vm1590, %v3015, %v3017
        %v3019 = vsel %vm1590, %v3013, %v3015
        %v3020 = vsel %vm1590, %v3017, %v3013
        %3021 = vst [vmem:[#allocation5] sm:$0xff] %v3020
        %3022 = vst [vmem:[#allocation5 + $0x8] sm:$0xff] %v3019
        %3023 = vst [vmem:[#allocation5 + $0x10] sm:$0xff] %v3018
        %3024 = vrot.lane.b32.xlu0 %v3003, 18
        %v3025 = vpop.permute.xlu0 %3024
        %3026 = vrot.lane.b32.xlu0 %v3004, 18
        %v3027 = vpop.permute.xlu0 %3026
        %3028 = vrot.lane.b32.xlu0 %v3005, 18
        %v3029 = vpop.permute.xlu0 %3028
        %v3030 = vsel %vm1603, %v3027, %v3029
        %v3031 = vsel %vm1603, %v3025, %v3027
        %v3032 = vsel %vm1603, %v3029, %v3025
        %3033 = vst [vmem:[#allocation5 + $0x18] sm:$0xff] %v3032
        %3034 = vst [vmem:[#allocation5 + $0x20] sm:$0xff] %v3031
        %3035 = vst [vmem:[#allocation5 + $0x28] sm:$0xff] %v3030
        %3036 = vrot.lane.b32.xlu0 %v3003, 17
        %v3037 = vpop.permute.xlu0 %3036
        %3038 = vrot.lane.b32.xlu0 %v3004, 17
        %v3039 = vpop.permute.xlu0 %3038
        %3040 = vrot.lane.b32.xlu0 %v3005, 17
        %v3041 = vpop.permute.xlu0 %3040
        %v3042 = vsel %vm1616, %v3039, %v3041
        %v3043 = vsel %vm1616, %v3037, %v3039
        %v3044 = vsel %vm1616, %v3041, %v3037
        %3045 = vst [vmem:[#allocation5 + $0x30] sm:$0xff] %v3044
        %3046 = vst [vmem:[#allocation5 + $0x38] sm:$0xff] %v3043
        %3047 = vst [vmem:[#allocation5 + $0x40] sm:$0xff] %v3042
        %3048 = vrot.lane.b32.xlu0 %v3003, 1
        %v3049 = vpop.permute.xlu0 %3048
        %3050 = vrot.lane.b32.xlu0 %v3004, 1
        %v3051 = vpop.permute.xlu0 %3050
        %3052 = vrot.lane.b32.xlu0 %v3005, 1
        %v3053 = vpop.permute.xlu0 %3052
        %v3054 = vsel %vm1629, %v3051, %v3053
        %v3055 = vsel %vm1629, %v3049, %v3051
        %v3056 = vsel %vm1629, %v3053, %v3049
        %3057 = vst [vmem:[#allocation5 + $0x48] sm:$0xff] %v3056
        %3058 = vst [vmem:[#allocation5 + $0x50] sm:$0xff] %v3055
        %3059 = vst [vmem:[#allocation5 + $0x58] sm:$0xff] %v3054
        %3060 = vst [vmem:[#allocation5 + $0x60] sm:$0xff] %v3003
        %3061 = vst [vmem:[#allocation5 + $0x68] sm:$0xff] %v3004
        %3062 = vst [vmem:[#allocation5 + $0x70] sm:$0xff] %v3005
        %3063 = vrot.lane.b32.xlu0 %v3003, 127
        %v3064 = vpop.permute.xlu0 %3063
        %3065 = vrot.lane.b32.xlu0 %v3004, 127
        %v3066 = vpop.permute.xlu0 %3065
        %3067 = vrot.lane.b32.xlu0 %v3005, 127
        %v3068 = vpop.permute.xlu0 %3067
        %v3069 = vsel %vm1645, %v3066, %v3068
        %v3070 = vsel %vm1645, %v3064, %v3066
        %v3071 = vsel %vm1645, %v3068, %v3064
        %3072 = vst [vmem:[#allocation5 + $0x78] sm:$0xff] %v3070
        %3073 = vst [vmem:[#allocation5 + $0x80] sm:$0xff] %v3069
        %3074 = vst [vmem:[#allocation5 + $0x88] sm:$0xff] %v3071
        %3075 = vrot.lane.b32.xlu0 %v3003, 111
        %v3076 = vpop.permute.xlu0 %3075
        %3077 = vrot.lane.b32.xlu0 %v3004, 111
        %v3078 = vpop.permute.xlu0 %3077
        %3079 = vrot.lane.b32.xlu0 %v3005, 111
        %v3080 = vpop.permute.xlu0 %3079
        %v3081 = vsel %vm1658, %v3078, %v3080
        %v3082 = vsel %vm1658, %v3076, %v3078
        %v3083 = vsel %vm1658, %v3080, %v3076
        %3084 = vst [vmem:[#allocation5 + $0x90] sm:$0xff] %v3082
        %3085 = vst [vmem:[#allocation5 + $0x98] sm:$0xff] %v3081
        %3086 = vst [vmem:[#allocation5 + $0xa0] sm:$0xff] %v3083
        %3087 = vrot.lane.b32.xlu0 %v3003, 110
        %v3088 = vpop.permute.xlu0 %3087
        %3089 = vrot.lane.b32.xlu0 %v3004, 110
        %v3090 = vpop.permute.xlu0 %3089
        %3091 = vrot.lane.b32.xlu0 %v3005, 110
        %v3092 = vpop.permute.xlu0 %3091
        %v3093 = vsel %vm1671, %v3090, %v3092
        %v3094 = vsel %vm1671, %v3088, %v3090
        %v3095 = vsel %vm1671, %v3092, %v3088
        %3096 = vst [vmem:[#allocation5 + $0xa8] sm:$0xff] %v3094
        %3097 = vst [vmem:[#allocation5 + $0xb0] sm:$0xff] %v3093
        %3098 = vst [vmem:[#allocation5 + $0xb8] sm:$0xff] %v3095
        %3099 = vrot.lane.b32.xlu0 %v3003, 109
        %v3100 = vpop.permute.xlu0 %3099
        %3101 = vrot.lane.b32.xlu0 %v3004, 109
        %v3102 = vpop.permute.xlu0 %3101
        %3103 = vrot.lane.b32.xlu0 %v3005, 109
        %v3104 = vpop.permute.xlu0 %3103
        %v3105 = vsel %vm1684, %v3102, %v3104
        %v3106 = vsel %vm1684, %v3100, %v3102
        %v3107 = vsel %vm1684, %v3104, %v3100
        %3108 = vst [vmem:[#allocation5 + $0xc0] sm:$0xff] %v3106
        %3109 = vst [vmem:[#allocation5 + $0xc8] sm:$0xff] %v3105
        %3110 = vst [vmem:[#allocation5 + $0xd0] sm:$0xff] %v3107
        %v3111 = vpack.c.bf16 %v3009, %v3009
        %v3112 = vld [vmem:[#allocation5] sm:$0xff]
        %v3113 = vld [vmem:[#allocation5 + $0x8] sm:$0xff]
        %v3114 = vld [vmem:[#allocation5 + $0x10] sm:$0xff]
        %v3115 = vld [vmem:[#allocation5 + $0x18] sm:$0xff]
        %v3116 = vld [vmem:[#allocation5 + $0x20] sm:$0xff]
        %v3117 = vld [vmem:[#allocation5 + $0x28] sm:$0xff]
        %v3118 = vld [vmem:[#allocation5 + $0x30] sm:$0xff]
        %v3119 = vld [vmem:[#allocation5 + $0x38] sm:$0xff]
        %v3120 = vld [vmem:[#allocation5 + $0x40] sm:$0xff]
        %v3121 = vld [vmem:[#allocation5 + $0x48] sm:$0xff]
        %v3122 = vld [vmem:[#allocation5 + $0x50] sm:$0xff]
        %v3123 = vld [vmem:[#allocation5 + $0x58] sm:$0xff]
        %v3124 = vld [vmem:[#allocation5 + $0x60] sm:$0xff]
        %v3125 = vld [vmem:[#allocation5 + $0x68] sm:$0xff]
        %v3126 = vld [vmem:[#allocation5 + $0x70] sm:$0xff]
        %v3127 = vld [vmem:[#allocation5 + $0x78] sm:$0xff]
        %v3128 = vld [vmem:[#allocation5 + $0x80] sm:$0xff]
        %v3129 = vld [vmem:[#allocation5 + $0x88] sm:$0xff]
        %v3130 = vld [vmem:[#allocation5 + $0x90] sm:$0xff]
        %v3131 = vld [vmem:[#allocation5 + $0x98] sm:$0xff]
        %v3132 = vld [vmem:[#allocation5 + $0xa0] sm:$0xff]
        %v3133 = vld [vmem:[#allocation5 + $0xa8] sm:$0xff]
        %v3134 = vld [vmem:[#allocation5 + $0xb0] sm:$0xff]
        %v3135 = vld [vmem:[#allocation5 + $0xb8] sm:$0xff]
        %v3136 = vld [vmem:[#allocation5 + $0xc0] sm:$0xff]
        %v3137 = vld [vmem:[#allocation5 + $0xc8] sm:$0xff]
        %v3138 = vld [vmem:[#allocation5 + $0xd0] sm:$0xff]
        %v3139 = vpack.c.bf16 %v3115, %v3112
        %v3140 = vpack.c.bf16 %v3116, %v3113
        %v3141 = vpack.c.bf16 %v3117, %v3114
        %v3142 = vpack.c.bf16 %v3121, %v3118
        %v3143 = vpack.c.bf16 %v3122, %v3119
        %v3144 = vpack.c.bf16 %v3123, %v3120
        %v3145 = vpack.c.bf16 %v3127, %v3124
        %v3146 = vpack.c.bf16 %v3128, %v3125
        %v3147 = vpack.c.bf16 %v3129, %v3126
        %v3148 = vpack.c.bf16 %v3133, %v3130
        %v3149 = vpack.c.bf16 %v3134, %v3131
        %v3150 = vpack.c.bf16 %v3135, %v3132
        %v3151 = vpack.c.bf16 %v3136, %v3136
        %v3152 = vpack.c.bf16 %v3137, %v3137
        %v3153 = vpack.c.bf16 %v3138, %v3138
        %3155 = vset.pattern.permute.xlu0 0
        %3156 = vperm.xlu0 %3155, %v3011
        %v3157 = vpop.permute.xlu0 %3156
        %v3160 = vsel %vm1739, %v3111, 0
        %v3163 = vsel %vm1743, %v3151, 0
        %v3166 = vsel %vm1743, %v3152, 0
        %v3169 = vsel %vm1743, %v3153, 0
        %3171 = vmatprep.subr.bf16.mxu0 0
        %3172 = vmatpush1.bf16.msra.mxu0 0
        %3173 = vmatprep.subr.bf16.mxu0 0
        %3174 = vmatpush1.bf16.msra.mxu0 0
        %3175 = vmatprep.subr.bf16.mxu0 0
        %3176 = vmatpush1.bf16.msra.mxu0 0
        %3177 = vmatprep.subr.bf16.mxu0 %v3166
        %3178 = vmatpush1.bf16.msra.mxu0 %v3163
        %3179 = vmatprep.subr.bf16.mxu0 %v3149
        %3180 = vmatpush1.bf16.msra.mxu0 %v3148
        %3181 = vmatprep.subr.bf16.mxu0 %v3146
        %3182 = vmatpush1.bf16.msra.mxu0 %v3145
        %3183 = vmatprep.subr.bf16.mxu0 %v3143
        %3184 = vmatpush1.bf16.msra.mxu0 %v3142
        %3185 = vmatprep.subr.bf16.mxu0 %v3140
        %3186 = vmatpush1.bf16.msra.mxu0 %v3139
        %3187 = vmatprep.subr.bf16.mxu0 0
        %3188 = vmatpush2.bf16.msra.mxu0 0
        %3189 = vmatprep.subr.bf16.mxu0 0
        %3190 = vmatpush2.bf16.msra.mxu0 0
        %3191 = vmatprep.subr.bf16.mxu0 0
        %3192 = vmatpush2.bf16.msra.mxu0 0
        %3193 = vmatprep.subr.bf16.mxu0 0
        %3194 = vmatpush2.bf16.msra.mxu0 0
        %3195 = vmatprep.subr.bf16.mxu0 0
        %3196 = vmatpush2.bf16.msra.mxu0 0
        %3197 = vmatprep.subr.bf16.mxu0 0
        %3198 = vmatpush2.bf16.msra.mxu0 0
        %3199 = vmatprep.subr.bf16.mxu0 0
        %3200 = vmatpush2.bf16.msra.mxu0 0
        %3201 = vmatprep.subr.bf16.mxu0 0
        %3202 = vmatpush2.bf16.msra.mxu0 0
        %3203 = vmatprep.mubr.bf16.mxu0 0
        %3204 = vmatmul.mubr.bf16.gmra.mxu0 %v3160
        %v3205 = vpop.f32.mrf.mxu0
        %v3206 = vadd.f32 %v3157, %v3205
        %v3207 = vpop.f32.mrf.mxu0
        %v3208 = vadd.f32 %v3157, %v3207
        %v3209 = vpop.f32.mrf.mxu0
        %v3210 = vpop.f32.mrf.mxu0
        %3211 = vdwg.mxu0
        %3212 = vmatprep.subr.bf16.mxu0 0
        %3213 = vmatpush1.bf16.msra.mxu0 0
        %3214 = vmatprep.subr.bf16.mxu0 0
        %3215 = vmatpush1.bf16.msra.mxu0 0
        %3216 = vmatprep.subr.bf16.mxu0 0
        %3217 = vmatpush1.bf16.msra.mxu0 0
        %3218 = vmatprep.subr.bf16.mxu0 0
        %3219 = vmatpush1.bf16.msra.mxu0 %v3169
        %3220 = vmatprep.subr.bf16.mxu0 0
        %3221 = vmatpush1.bf16.msra.mxu0 %v3150
        %3222 = vmatprep.subr.bf16.mxu0 0
        %3223 = vmatpush1.bf16.msra.mxu0 %v3147
        %3224 = vmatprep.subr.bf16.mxu0 0
        %3225 = vmatpush1.bf16.msra.mxu0 %v3144
        %3226 = vmatprep.subr.bf16.mxu0 0
        %3227 = vmatpush1.bf16.msra.mxu0 %v3141
        %3228 = vmatprep.subr.bf16.mxu0 0
        %3229 = vmatpush2.bf16.msra.mxu0 0
        %3230 = vmatprep.subr.bf16.mxu0 0
        %3231 = vmatpush2.bf16.msra.mxu0 0
        %3232 = vmatprep.subr.bf16.mxu0 0
        %3233 = vmatpush2.bf16.msra.mxu0 0
        %3234 = vmatprep.subr.bf16.mxu0 0
        %3235 = vmatpush2.bf16.msra.mxu0 0
        %3236 = vmatprep.subr.bf16.mxu0 0
        %3237 = vmatpush2.bf16.msra.mxu0 0
        %3238 = vmatprep.subr.bf16.mxu0 0
        %3239 = vmatpush2.bf16.msra.mxu0 0
        %3240 = vmatprep.subr.bf16.mxu0 0
        %3241 = vmatpush2.bf16.msra.mxu0 0
        %3242 = vmatprep.subr.bf16.mxu0 0
        %3243 = vmatpush2.bf16.msra.mxu0 0
        %3244 = vmatprep.mubr.bf16.mxu0 0
        %3245 = vmatmul.mubr.bf16.gmra.mxu0 %v3160
        %v3246 = vpop.f32.mrf.mxu0
        %v3247 = vadd.f32 %v3157, %v3246
        %v3248 = vpop.f32.mrf.mxu0
        %v3249 = vpop.f32.mrf.mxu0
        %v3250 = vpop.f32.mrf.mxu0
        %3251 = vdwg.mxu0
        %v3252 = vmax.f32 %v3206, 0.0
        %v3253 = vmax.f32 %v3208, 0.0
        %v3254 = vmax.f32 %v3247, 0.0
        %v3255 = vmul.f32 %v3252, %v658
        %v3256 = vmul.f32 %v3253, %v662
        %v3257 = vmul.f32 %v3254, %v666
        %s3258 = sadd.s32 %s1575, 6
        %s3259 = smul.u32 %s3258, 8
        %s3260 = scalar_lea.vmem %s14, %s3259
        %v3261 = vld [vmem:[%s3260] sm:$0xff]
        %s3262 = scalar_lea.vmem %s15, %s3259
        %v3263 = vld [vmem:[%s3262] sm:$0xff]
        %3264 = vrot.lane.b32.xlu0 %v3255, 19
        %v3265 = vpop.permute.xlu0 %3264
        %3266 = vrot.lane.b32.xlu0 %v3256, 19
        %v3267 = vpop.permute.xlu0 %3266
        %3268 = vrot.lane.b32.xlu0 %v3257, 19
        %v3269 = vpop.permute.xlu0 %3268
        %v3270 = vsel %vm1590, %v3267, %v3269
        %v3271 = vsel %vm1590, %v3265, %v3267
        %v3272 = vsel %vm1590, %v3269, %v3265
        %3273 = vst [vmem:[#allocation5] sm:$0xff] %v3272
        %3274 = vst [vmem:[#allocation5 + $0x8] sm:$0xff] %v3271
        %3275 = vst [vmem:[#allocation5 + $0x10] sm:$0xff] %v3270
        %3276 = vrot.lane.b32.xlu0 %v3255, 18
        %v3277 = vpop.permute.xlu0 %3276
        %3278 = vrot.lane.b32.xlu0 %v3256, 18
        %v3279 = vpop.permute.xlu0 %3278
        %3280 = vrot.lane.b32.xlu0 %v3257, 18
        %v3281 = vpop.permute.xlu0 %3280
        %v3282 = vsel %vm1603, %v3279, %v3281
        %v3283 = vsel %vm1603, %v3277, %v3279
        %v3284 = vsel %vm1603, %v3281, %v3277
        %3285 = vst [vmem:[#allocation5 + $0x18] sm:$0xff] %v3284
        %3286 = vst [vmem:[#allocation5 + $0x20] sm:$0xff] %v3283
        %3287 = vst [vmem:[#allocation5 + $0x28] sm:$0xff] %v3282
        %3288 = vrot.lane.b32.xlu0 %v3255, 17
        %v3289 = vpop.permute.xlu0 %3288
        %3290 = vrot.lane.b32.xlu0 %v3256, 17
        %v3291 = vpop.permute.xlu0 %3290
        %3292 = vrot.lane.b32.xlu0 %v3257, 17
        %v3293 = vpop.permute.xlu0 %3292
        %v3294 = vsel %vm1616, %v3291, %v3293
        %v3295 = vsel %vm1616, %v3289, %v3291
        %v3296 = vsel %vm1616, %v3293, %v3289
        %3297 = vst [vmem:[#allocation5 + $0x30] sm:$0xff] %v3296
        %3298 = vst [vmem:[#allocation5 + $0x38] sm:$0xff] %v3295
        %3299 = vst [vmem:[#allocation5 + $0x40] sm:$0xff] %v3294
        %3300 = vrot.lane.b32.xlu0 %v3255, 1
        %v3301 = vpop.permute.xlu0 %3300
        %3302 = vrot.lane.b32.xlu0 %v3256, 1
        %v3303 = vpop.permute.xlu0 %3302
        %3304 = vrot.lane.b32.xlu0 %v3257, 1
        %v3305 = vpop.permute.xlu0 %3304
        %v3306 = vsel %vm1629, %v3303, %v3305
        %v3307 = vsel %vm1629, %v3301, %v3303
        %v3308 = vsel %vm1629, %v3305, %v3301
        %3309 = vst [vmem:[#allocation5 + $0x48] sm:$0xff] %v3308
        %3310 = vst [vmem:[#allocation5 + $0x50] sm:$0xff] %v3307
        %3311 = vst [vmem:[#allocation5 + $0x58] sm:$0xff] %v3306
        %3312 = vst [vmem:[#allocation5 + $0x60] sm:$0xff] %v3255
        %3313 = vst [vmem:[#allocation5 + $0x68] sm:$0xff] %v3256
        %3314 = vst [vmem:[#allocation5 + $0x70] sm:$0xff] %v3257
        %3315 = vrot.lane.b32.xlu0 %v3255, 127
        %v3316 = vpop.permute.xlu0 %3315
        %3317 = vrot.lane.b32.xlu0 %v3256, 127
        %v3318 = vpop.permute.xlu0 %3317
        %3319 = vrot.lane.b32.xlu0 %v3257, 127
        %v3320 = vpop.permute.xlu0 %3319
        %v3321 = vsel %vm1645, %v3318, %v3320
        %v3322 = vsel %vm1645, %v3316, %v3318
        %v3323 = vsel %vm1645, %v3320, %v3316
        %3324 = vst [vmem:[#allocation5 + $0x78] sm:$0xff] %v3322
        %3325 = vst [vmem:[#allocation5 + $0x80] sm:$0xff] %v3321
        %3326 = vst [vmem:[#allocation5 + $0x88] sm:$0xff] %v3323
        %3327 = vrot.lane.b32.xlu0 %v3255, 111
        %v3328 = vpop.permute.xlu0 %3327
        %3329 = vrot.lane.b32.xlu0 %v3256, 111
        %v3330 = vpop.permute.xlu0 %3329
        %3331 = vrot.lane.b32.xlu0 %v3257, 111
        %v3332 = vpop.permute.xlu0 %3331
        %v3333 = vsel %vm1658, %v3330, %v3332
        %v3334 = vsel %vm1658, %v3328, %v3330
        %v3335 = vsel %vm1658, %v3332, %v3328
        %3336 = vst [vmem:[#allocation5 + $0x90] sm:$0xff] %v3334
        %3337 = vst [vmem:[#allocation5 + $0x98] sm:$0xff] %v3333
        %3338 = vst [vmem:[#allocation5 + $0xa0] sm:$0xff] %v3335
        %3339 = vrot.lane.b32.xlu0 %v3255, 110
        %v3340 = vpop.permute.xlu0 %3339
        %3341 = vrot.lane.b32.xlu0 %v3256, 110
        %v3342 = vpop.permute.xlu0 %3341
        %3343 = vrot.lane.b32.xlu0 %v3257, 110
        %v3344 = vpop.permute.xlu0 %3343
        %v3345 = vsel %vm1671, %v3342, %v3344
        %v3346 = vsel %vm1671, %v3340, %v3342
        %v3347 = vsel %vm1671, %v3344, %v3340
        %3348 = vst [vmem:[#allocation5 + $0xa8] sm:$0xff] %v3346
        %3349 = vst [vmem:[#allocation5 + $0xb0] sm:$0xff] %v3345
        %3350 = vst [vmem:[#allocation5 + $0xb8] sm:$0xff] %v3347
        %3351 = vrot.lane.b32.xlu0 %v3255, 109
        %v3352 = vpop.permute.xlu0 %3351
        %3353 = vrot.lane.b32.xlu0 %v3256, 109
        %v3354 = vpop.permute.xlu0 %3353
        %3355 = vrot.lane.b32.xlu0 %v3257, 109
        %v3356 = vpop.permute.xlu0 %3355
        %v3357 = vsel %vm1684, %v3354, %v3356
        %v3358 = vsel %vm1684, %v3352, %v3354
        %v3359 = vsel %vm1684, %v3356, %v3352
        %3360 = vst [vmem:[#allocation5 + $0xc0] sm:$0xff] %v3358
        %3361 = vst [vmem:[#allocation5 + $0xc8] sm:$0xff] %v3357
        %3362 = vst [vmem:[#allocation5 + $0xd0] sm:$0xff] %v3359
        %v3363 = vpack.c.bf16 %v3261, %v3261
        %v3364 = vld [vmem:[#allocation5] sm:$0xff]
        %v3365 = vld [vmem:[#allocation5 + $0x8] sm:$0xff]
        %v3366 = vld [vmem:[#allocation5 + $0x10] sm:$0xff]
        %v3367 = vld [vmem:[#allocation5 + $0x18] sm:$0xff]
        %v3368 = vld [vmem:[#allocation5 + $0x20] sm:$0xff]
        %v3369 = vld [vmem:[#allocation5 + $0x28] sm:$0xff]
        %v3370 = vld [vmem:[#allocation5 + $0x30] sm:$0xff]
        %v3371 = vld [vmem:[#allocation5 + $0x38] sm:$0xff]
        %v3372 = vld [vmem:[#allocation5 + $0x40] sm:$0xff]
        %v3373 = vld [vmem:[#allocation5 + $0x48] sm:$0xff]
        %v3374 = vld [vmem:[#allocation5 + $0x50] sm:$0xff]
        %v3375 = vld [vmem:[#allocation5 + $0x58] sm:$0xff]
        %v3376 = vld [vmem:[#allocation5 + $0x60] sm:$0xff]
        %v3377 = vld [vmem:[#allocation5 + $0x68] sm:$0xff]
        %v3378 = vld [vmem:[#allocation5 + $0x70] sm:$0xff]
        %v3379 = vld [vmem:[#allocation5 + $0x78] sm:$0xff]
        %v3380 = vld [vmem:[#allocation5 + $0x80] sm:$0xff]
        %v3381 = vld [vmem:[#allocation5 + $0x88] sm:$0xff]
        %v3382 = vld [vmem:[#allocation5 + $0x90] sm:$0xff]
        %v3383 = vld [vmem:[#allocation5 + $0x98] sm:$0xff]
        %v3384 = vld [vmem:[#allocation5 + $0xa0] sm:$0xff]
        %v3385 = vld [vmem:[#allocation5 + $0xa8] sm:$0xff]
        %v3386 = vld [vmem:[#allocation5 + $0xb0] sm:$0xff]
        %v3387 = vld [vmem:[#allocation5 + $0xb8] sm:$0xff]
        %v3388 = vld [vmem:[#allocation5 + $0xc0] sm:$0xff]
        %v3389 = vld [vmem:[#allocation5 + $0xc8] sm:$0xff]
        %v3390 = vld [vmem:[#allocation5 + $0xd0] sm:$0xff]
        %v3391 = vpack.c.bf16 %v3367, %v3364
        %v3392 = vpack.c.bf16 %v3368, %v3365
        %v3393 = vpack.c.bf16 %v3369, %v3366
        %v3394 = vpack.c.bf16 %v3373, %v3370
        %v3395 = vpack.c.bf16 %v3374, %v3371
        %v3396 = vpack.c.bf16 %v3375, %v3372
        %v3397 = vpack.c.bf16 %v3379, %v3376
        %v3398 = vpack.c.bf16 %v3380, %v3377
        %v3399 = vpack.c.bf16 %v3381, %v3378
        %v3400 = vpack.c.bf16 %v3385, %v3382
        %v3401 = vpack.c.bf16 %v3386, %v3383
        %v3402 = vpack.c.bf16 %v3387, %v3384
        %v3403 = vpack.c.bf16 %v3388, %v3388
        %v3404 = vpack.c.bf16 %v3389, %v3389
        %v3405 = vpack.c.bf16 %v3390, %v3390
        %3407 = vset.pattern.permute.xlu0 0
        %3408 = vperm.xlu0 %3407, %v3263
        %v3409 = vpop.permute.xlu0 %3408
        %v3412 = vsel %vm1739, %v3363, 0
        %v3415 = vsel %vm1743, %v3403, 0
        %v3418 = vsel %vm1743, %v3404, 0
        %v3421 = vsel %vm1743, %v3405, 0
        %3423 = vmatprep.subr.bf16.mxu0 0
        %3424 = vmatpush1.bf16.msra.mxu0 0
        %3425 = vmatprep.subr.bf16.mxu0 0
        %3426 = vmatpush1.bf16.msra.mxu0 0
        %3427 = vmatprep.subr.bf16.mxu0 0
        %3428 = vmatpush1.bf16.msra.mxu0 0
        %3429 = vmatprep.subr.bf16.mxu0 %v3418
        %3430 = vmatpush1.bf16.msra.mxu0 %v3415
        %3431 = vmatprep.subr.bf16.mxu0 %v3401
        %3432 = vmatpush1.bf16.msra.mxu0 %v3400
        %3433 = vmatprep.subr.bf16.mxu0 %v3398
        %3434 = vmatpush1.bf16.msra.mxu0 %v3397
        %3435 = vmatprep.subr.bf16.mxu0 %v3395
        %3436 = vmatpush1.bf16.msra.mxu0 %v3394
        %3437 = vmatprep.subr.bf16.mxu0 %v3392
        %3438 = vmatpush1.bf16.msra.mxu0 %v3391
        %3439 = vmatprep.subr.bf16.mxu0 0
        %3440 = vmatpush2.bf16.msra.mxu0 0
        %3441 = vmatprep.subr.bf16.mxu0 0
        %3442 = vmatpush2.bf16.msra.mxu0 0
        %3443 = vmatprep.subr.bf16.mxu0 0
        %3444 = vmatpush2.bf16.msra.mxu0 0
        %3445 = vmatprep.subr.bf16.mxu0 0
        %3446 = vmatpush2.bf16.msra.mxu0 0
        %3447 = vmatprep.subr.bf16.mxu0 0
        %3448 = vmatpush2.bf16.msra.mxu0 0
        %3449 = vmatprep.subr.bf16.mxu0 0
        %3450 = vmatpush2.bf16.msra.mxu0 0
        %3451 = vmatprep.subr.bf16.mxu0 0
        %3452 = vmatpush2.bf16.msra.mxu0 0
        %3453 = vmatprep.subr.bf16.mxu0 0
        %3454 = vmatpush2.bf16.msra.mxu0 0
        %3455 = vmatprep.mubr.bf16.mxu0 0
        %3456 = vmatmul.mubr.bf16.gmra.mxu0 %v3412
        %v3457 = vpop.f32.mrf.mxu0
        %v3458 = vadd.f32 %v3409, %v3457
        %v3459 = vpop.f32.mrf.mxu0
        %v3460 = vadd.f32 %v3409, %v3459
        %v3461 = vpop.f32.mrf.mxu0
        %v3462 = vpop.f32.mrf.mxu0
        %3463 = vdwg.mxu0
        %3464 = vmatprep.subr.bf16.mxu0 0
        %3465 = vmatpush1.bf16.msra.mxu0 0
        %3466 = vmatprep.subr.bf16.mxu0 0
        %3467 = vmatpush1.bf16.msra.mxu0 0
        %3468 = vmatprep.subr.bf16.mxu0 0
        %3469 = vmatpush1.bf16.msra.mxu0 0
        %3470 = vmatprep.subr.bf16.mxu0 0
        %3471 = vmatpush1.bf16.msra.mxu0 %v3421
        %3472 = vmatprep.subr.bf16.mxu0 0
        %3473 = vmatpush1.bf16.msra.mxu0 %v3402
        %3474 = vmatprep.subr.bf16.mxu0 0
        %3475 = vmatpush1.bf16.msra.mxu0 %v3399
        %3476 = vmatprep.subr.bf16.mxu0 0
        %3477 = vmatpush1.bf16.msra.mxu0 %v3396
        %3478 = vmatprep.subr.bf16.mxu0 0
        %3479 = vmatpush1.bf16.msra.mxu0 %v3393
        %3480 = vmatprep.subr.bf16.mxu0 0
        %3481 = vmatpush2.bf16.msra.mxu0 0
        %3482 = vmatprep.subr.bf16.mxu0 0
        %3483 = vmatpush2.bf16.msra.mxu0 0
        %3484 = vmatprep.subr.bf16.mxu0 0
        %3485 = vmatpush2.bf16.msra.mxu0 0
        %3486 = vmatprep.subr.bf16.mxu0 0
        %3487 = vmatpush2.bf16.msra.mxu0 0
        %3488 = vmatprep.subr.bf16.mxu0 0
        %3489 = vmatpush2.bf16.msra.mxu0 0
        %3490 = vmatprep.subr.bf16.mxu0 0
        %3491 = vmatpush2.bf16.msra.mxu0 0
        %3492 = vmatprep.subr.bf16.mxu0 0
        %3493 = vmatpush2.bf16.msra.mxu0 0
        %3494 = vmatprep.subr.bf16.mxu0 0
        %3495 = vmatpush2.bf16.msra.mxu0 0
        %3496 = vmatprep.mubr.bf16.mxu0 0
        %3497 = vmatmul.mubr.bf16.gmra.mxu0 %v3412
        %v3498 = vpop.f32.mrf.mxu0
        %v3499 = vadd.f32 %v3409, %v3498
        %v3500 = vpop.f32.mrf.mxu0
        %v3501 = vpop.f32.mrf.mxu0
        %v3502 = vpop.f32.mrf.mxu0
        %3503 = vdwg.mxu0
        %v3504 = vmax.f32 %v3458, 0.0
        %v3505 = vmax.f32 %v3460, 0.0
        %v3506 = vmax.f32 %v3499, 0.0
        %v3507 = vadd.f32 %v2751, %v3504
        %v3508 = vadd.f32 %v2752, %v3505
        %v3509 = vadd.f32 %v2753, %v3506
        %s3510 = sadd.s32 %s1576, 1
        %s3511 = smul.u32 %s3510, 8
        %s3512 = scalar_lea.vmem %s16, %s3511
        %v3513 = vld [vmem:[%s3512] sm:$0xff]
        %s3514 = scalar_lea.vmem %s17, %s3511
        %v3515 = vld [vmem:[%s3514] sm:$0xff]
        %3517 = vset.pattern.permute.xlu0 0
        %3518 = vperm.xlu0 %3517, %v3515
        %v3519 = vpop.permute.xlu0 %3518
        %vm3521 = vcmask 195584
        %v3523 = vsel %vm3521, %v3513, 0
        %3525 = vmatprep.subr.mxu0 0.0
        %3526 = vmatpush1.msra.mxu0 0.0
        %3527 = vmatprep.subr.mxu0 0.0
        %3528 = vmatpush1.msra.mxu0 0.0
        %3529 = vmatprep.subr.mxu0 0.0
        %3530 = vmatpush1.msra.mxu0 0.0
        %3531 = vmatprep.subr.mxu0 0.0
        %3532 = vmatpush1.msra.mxu0 0.0
        %3533 = vmatprep.subr.mxu0 0.0
        %3534 = vmatpush1.msra.mxu0 0.0
        %3535 = vmatprep.subr.mxu0 0.0
        %3536 = vmatpush1.msra.mxu0 0.0
        %3537 = vmatprep.subr.mxu0 0.0
        %3538 = vmatpush1.msra.mxu0 0.0
        %3539 = vmatprep.subr.mxu0 0.0
        %3540 = vmatpush1.msra.mxu0 0.0
        %3541 = vmatprep.subr.mxu0 0.0
        %3542 = vmatpush1.msra.mxu0 0.0
        %3543 = vmatprep.subr.mxu0 0.0
        %3544 = vmatpush1.msra.mxu0 0.0
        %3545 = vmatprep.subr.mxu0 0.0
        %3546 = vmatpush1.msra.mxu0 0.0
        %3547 = vmatprep.subr.mxu0 0.0
        %3548 = vmatpush1.msra.mxu0 0.0
        %3549 = vmatprep.subr.mxu0 0.0
        %3550 = vmatpush1.msra.mxu0 0.0
        %3551 = vmatprep.subr.mxu0 %v3505
        %3552 = vmatpush1.msra.mxu0 %v3504
        %3553 = vmatprep.subr.mxu0 %v3256
        %3554 = vmatpush1.msra.mxu0 %v3255
        %3555 = vmatprep.subr.mxu0 %v3004
        %3556 = vmatpush1.msra.mxu0 %v3003
        %3557 = vmatprep.subr.mxu0 0.0
        %3558 = vmatpush2.msra.mxu0 0.0
        %3559 = vmatprep.subr.mxu0 0.0
        %3560 = vmatpush2.msra.mxu0 0.0
        %3561 = vmatprep.subr.mxu0 0.0
        %3562 = vmatpush2.msra.mxu0 0.0
        %3563 = vmatprep.subr.mxu0 0.0
        %3564 = vmatpush2.msra.mxu0 0.0
        %3565 = vmatprep.subr.mxu0 0.0
        %3566 = vmatpush2.msra.mxu0 0.0
        %3567 = vmatprep.subr.mxu0 0.0
        %3568 = vmatpush2.msra.mxu0 0.0
        %3569 = vmatprep.subr.mxu0 0.0
        %3570 = vmatpush2.msra.mxu0 0.0
        %3571 = vmatprep.subr.mxu0 0.0
        %3572 = vmatpush2.msra.mxu0 0.0
        %3573 = vmatprep.subr.mxu0 0.0
        %3574 = vmatpush2.msra.mxu0 0.0
        %3575 = vmatprep.subr.mxu0 0.0
        %3576 = vmatpush2.msra.mxu0 0.0
        %3577 = vmatprep.subr.mxu0 0.0
        %3578 = vmatpush2.msra.mxu0 0.0
        %3579 = vmatprep.subr.mxu0 0.0
        %3580 = vmatpush2.msra.mxu0 0.0
        %3581 = vmatprep.subr.mxu0 0.0
        %3582 = vmatpush2.msra.mxu0 0.0
        %3583 = vmatprep.subr.mxu0 0.0
        %3584 = vmatpush2.msra.mxu0 0.0
        %3585 = vmatprep.subr.mxu0 0.0
        %3586 = vmatpush2.msra.mxu0 0.0
        %3587 = vmatprep.subr.mxu0 0.0
        %3588 = vmatpush2.msra.mxu0 0.0
        %3589 = vmatprep.mubr.f32.mxu0 0.0
        %3590 = vmatmul.mubr.f32.gmra.mxu0 %v3523
        %v3591 = vpop.f32.mrf.mxu0
        %v3592 = vadd.f32 %v3519, %v3591
        %v3593 = vpop.f32.mrf.mxu0
        %v3594 = vadd.f32 %v3519, %v3593
        %3595 = vdwg.mxu0
        %3596 = vmatprep.subr.mxu0 0.0
        %3597 = vmatpush1.msra.mxu0 0.0
        %3598 = vmatprep.subr.mxu0 0.0
        %3599 = vmatpush1.msra.mxu0 0.0
        %3600 = vmatprep.subr.mxu0 0.0
        %3601 = vmatpush1.msra.mxu0 0.0
        %3602 = vmatprep.subr.mxu0 0.0
        %3603 = vmatpush1.msra.mxu0 0.0
        %3604 = vmatprep.subr.mxu0 0.0
        %3605 = vmatpush1.msra.mxu0 0.0
        %3606 = vmatprep.subr.mxu0 0.0
        %3607 = vmatpush1.msra.mxu0 0.0
        %3608 = vmatprep.subr.mxu0 0.0
        %3609 = vmatpush1.msra.mxu0 0.0
        %3610 = vmatprep.subr.mxu0 0.0
        %3611 = vmatpush1.msra.mxu0 0.0
        %3612 = vmatprep.subr.mxu0 0.0
        %3613 = vmatpush1.msra.mxu0 0.0
        %3614 = vmatprep.subr.mxu0 0.0
        %3615 = vmatpush1.msra.mxu0 0.0
        %3616 = vmatprep.subr.mxu0 0.0
        %3617 = vmatpush1.msra.mxu0 0.0
        %3618 = vmatprep.subr.mxu0 0.0
        %3619 = vmatpush1.msra.mxu0 0.0
        %3620 = vmatprep.subr.mxu0 0.0
        %3621 = vmatpush1.msra.mxu0 0.0
        %3622 = vmatprep.subr.mxu0 0.0
        %3623 = vmatpush1.msra.mxu0 %v3506
        %3624 = vmatprep.subr.mxu0 0.0
        %3625 = vmatpush1.msra.mxu0 %v3257
        %3626 = vmatprep.subr.mxu0 0.0
        %3627 = vmatpush1.msra.mxu0 %v3005
        %3628 = vmatprep.subr.mxu0 0.0
        %3629 = vmatpush2.msra.mxu0 0.0
        %3630 = vmatprep.subr.mxu0 0.0
        %3631 = vmatpush2.msra.mxu0 0.0
        %3632 = vmatprep.subr.mxu0 0.0
        %3633 = vmatpush2.msra.mxu0 0.0
        %3634 = vmatprep.subr.mxu0 0.0
        %3635 = vmatpush2.msra.mxu0 0.0
        %3636 = vmatprep.subr.mxu0 0.0
        %3637 = vmatpush2.msra.mxu0 0.0
        %3638 = vmatprep.subr.mxu0 0.0
        %3639 = vmatpush2.msra.mxu0 0.0
        %3640 = vmatprep.subr.mxu0 0.0
        %3641 = vmatpush2.msra.mxu0 0.0
        %3642 = vmatprep.subr.mxu0 0.0
        %3643 = vmatpush2.msra.mxu0 0.0
        %3644 = vmatprep.subr.mxu0 0.0
        %3645 = vmatpush2.msra.mxu0 0.0
        %3646 = vmatprep.subr.mxu0 0.0
        %3647 = vmatpush2.msra.mxu0 0.0
        %3648 = vmatprep.subr.mxu0 0.0
        %3649 = vmatpush2.msra.mxu0 0.0
        %3650 = vmatprep.subr.mxu0 0.0
        %3651 = vmatpush2.msra.mxu0 0.0
        %3652 = vmatprep.subr.mxu0 0.0
        %3653 = vmatpush2.msra.mxu0 0.0
        %3654 = vmatprep.subr.mxu0 0.0
        %3655 = vmatpush2.msra.mxu0 0.0
        %3656 = vmatprep.subr.mxu0 0.0
        %3657 = vmatpush2.msra.mxu0 0.0
        %3658 = vmatprep.subr.mxu0 0.0
        %3659 = vmatpush2.msra.mxu0 0.0
        %3660 = vmatprep.mubr.f32.mxu0 0.0
        %3661 = vmatmul.mubr.f32.gmra.mxu0 %v3523
        %v3662 = vpop.f32.mrf.mxu0
        %v3663 = vadd.f32 %v3519, %v3662
        %v3664 = vpop.f32.mrf.mxu0
        %3665 = vdwg.mxu0
        %v3666 = vmul.f32 %v3592, %v658
        %v3667 = vmul.f32 %v3594, %v662
        %v3668 = vmul.f32 %v3663, %v666
        %s3669 = sadd.s32 %s1575, 7
        %s3670 = smul.u32 %s3669, 8
        %s3671 = scalar_lea.vmem %s14, %s3670
        %v3672 = vld [vmem:[%s3671] sm:$0xff]
        %s3673 = scalar_lea.vmem %s15, %s3670
        %v3674 = vld [vmem:[%s3673] sm:$0xff]
        %3675 = vrot.lane.b32.xlu0 %v3666, 19
        %v3676 = vpop.permute.xlu0 %3675
        %3677 = vrot.lane.b32.xlu0 %v3667, 19
        %v3678 = vpop.permute.xlu0 %3677
        %3679 = vrot.lane.b32.xlu0 %v3668, 19
        %v3680 = vpop.permute.xlu0 %3679
        %v3681 = vsel %vm1590, %v3678, %v3680
        %v3682 = vsel %vm1590, %v3676, %v3678
        %v3683 = vsel %vm1590, %v3680, %v3676
        %3684 = vst [vmem:[#allocation5] sm:$0xff] %v3683
        %3685 = vst [vmem:[#allocation5 + $0x8] sm:$0xff] %v3682
        %3686 = vst [vmem:[#allocation5 + $0x10] sm:$0xff] %v3681
        %3687 = vrot.lane.b32.xlu0 %v3666, 18
        %v3688 = vpop.permute.xlu0 %3687
        %3689 = vrot.lane.b32.xlu0 %v3667, 18
        %v3690 = vpop.permute.xlu0 %3689
        %3691 = vrot.lane.b32.xlu0 %v3668, 18
        %v3692 = vpop.permute.xlu0 %3691
        %v3693 = vsel %vm1603, %v3690, %v3692
        %v3694 = vsel %vm1603, %v3688, %v3690
        %v3695 = vsel %vm1603, %v3692, %v3688
        %3696 = vst [vmem:[#allocation5 + $0x18] sm:$0xff] %v3695
        %3697 = vst [vmem:[#allocation5 + $0x20] sm:$0xff] %v3694
        %3698 = vst [vmem:[#allocation5 + $0x28] sm:$0xff] %v3693
        %3699 = vrot.lane.b32.xlu0 %v3666, 17
        %v3700 = vpop.permute.xlu0 %3699
        %3701 = vrot.lane.b32.xlu0 %v3667, 17
        %v3702 = vpop.permute.xlu0 %3701
        %3703 = vrot.lane.b32.xlu0 %v3668, 17
        %v3704 = vpop.permute.xlu0 %3703
        %v3705 = vsel %vm1616, %v3702, %v3704
        %v3706 = vsel %vm1616, %v3700, %v3702
        %v3707 = vsel %vm1616, %v3704, %v3700
        %3708 = vst [vmem:[#allocation5 + $0x30] sm:$0xff] %v3707
        %3709 = vst [vmem:[#allocation5 + $0x38] sm:$0xff] %v3706
        %3710 = vst [vmem:[#allocation5 + $0x40] sm:$0xff] %v3705
        %3711 = vrot.lane.b32.xlu0 %v3666, 1
        %v3712 = vpop.permute.xlu0 %3711
        %3713 = vrot.lane.b32.xlu0 %v3667, 1
        %v3714 = vpop.permute.xlu0 %3713
        %3715 = vrot.lane.b32.xlu0 %v3668, 1
        %v3716 = vpop.permute.xlu0 %3715
        %v3717 = vsel %vm1629, %v3714, %v3716
        %v3718 = vsel %vm1629, %v3712, %v3714
        %v3719 = vsel %vm1629, %v3716, %v3712
        %3720 = vst [vmem:[#allocation5 + $0x48] sm:$0xff] %v3719
        %3721 = vst [vmem:[#allocation5 + $0x50] sm:$0xff] %v3718
        %3722 = vst [vmem:[#allocation5 + $0x58] sm:$0xff] %v3717
        %3723 = vst [vmem:[#allocation5 + $0x60] sm:$0xff] %v3666
        %3724 = vst [vmem:[#allocation5 + $0x68] sm:$0xff] %v3667
        %3725 = vst [vmem:[#allocation5 + $0x70] sm:$0xff] %v3668
        %3726 = vrot.lane.b32.xlu0 %v3666, 127
        %v3727 = vpop.permute.xlu0 %3726
        %3728 = vrot.lane.b32.xlu0 %v3667, 127
        %v3729 = vpop.permute.xlu0 %3728
        %3730 = vrot.lane.b32.xlu0 %v3668, 127
        %v3731 = vpop.permute.xlu0 %3730
        %v3732 = vsel %vm1645, %v3729, %v3731
        %v3733 = vsel %vm1645, %v3727, %v3729
        %v3734 = vsel %vm1645, %v3731, %v3727
        %3735 = vst [vmem:[#allocation5 + $0x78] sm:$0xff] %v3733
        %3736 = vst [vmem:[#allocation5 + $0x80] sm:$0xff] %v3732
        %3737 = vst [vmem:[#allocation5 + $0x88] sm:$0xff] %v3734
        %3738 = vrot.lane.b32.xlu0 %v3666, 111
        %v3739 = vpop.permute.xlu0 %3738
        %3740 = vrot.lane.b32.xlu0 %v3667, 111
        %v3741 = vpop.permute.xlu0 %3740
        %3742 = vrot.lane.b32.xlu0 %v3668, 111
        %v3743 = vpop.permute.xlu0 %3742
        %v3744 = vsel %vm1658, %v3741, %v3743
        %v3745 = vsel %vm1658, %v3739, %v3741
        %v3746 = vsel %vm1658, %v3743, %v3739
        %3747 = vst [vmem:[#allocation5 + $0x90] sm:$0xff] %v3745
        %3748 = vst [vmem:[#allocation5 + $0x98] sm:$0xff] %v3744
        %3749 = vst [vmem:[#allocation5 + $0xa0] sm:$0xff] %v3746
        %3750 = vrot.lane.b32.xlu0 %v3666, 110
        %v3751 = vpop.permute.xlu0 %3750
        %3752 = vrot.lane.b32.xlu0 %v3667, 110
        %v3753 = vpop.permute.xlu0 %3752
        %3754 = vrot.lane.b32.xlu0 %v3668, 110
        %v3755 = vpop.permute.xlu0 %3754
        %v3756 = vsel %vm1671, %v3753, %v3755
        %v3757 = vsel %vm1671, %v3751, %v3753
        %v3758 = vsel %vm1671, %v3755, %v3751
        %3759 = vst [vmem:[#allocation5 + $0xa8] sm:$0xff] %v3757
        %3760 = vst [vmem:[#allocation5 + $0xb0] sm:$0xff] %v3756
        %3761 = vst [vmem:[#allocation5 + $0xb8] sm:$0xff] %v3758
        %3762 = vrot.lane.b32.xlu0 %v3666, 109
        %v3763 = vpop.permute.xlu0 %3762
        %3764 = vrot.lane.b32.xlu0 %v3667, 109
        %v3765 = vpop.permute.xlu0 %3764
        %3766 = vrot.lane.b32.xlu0 %v3668, 109
        %v3767 = vpop.permute.xlu0 %3766
        %v3768 = vsel %vm1684, %v3765, %v3767
        %v3769 = vsel %vm1684, %v3763, %v3765
        %v3770 = vsel %vm1684, %v3767, %v3763
        %3771 = vst [vmem:[#allocation5 + $0xc0] sm:$0xff] %v3769
        %3772 = vst [vmem:[#allocation5 + $0xc8] sm:$0xff] %v3768
        %3773 = vst [vmem:[#allocation5 + $0xd0] sm:$0xff] %v3770
        %v3774 = vpack.c.bf16 %v3672, %v3672
        %v3775 = vld [vmem:[#allocation5] sm:$0xff]
        %v3776 = vld [vmem:[#allocation5 + $0x8] sm:$0xff]
        %v3777 = vld [vmem:[#allocation5 + $0x10] sm:$0xff]
        %v3778 = vld [vmem:[#allocation5 + $0x18] sm:$0xff]
        %v3779 = vld [vmem:[#allocation5 + $0x20] sm:$0xff]
        %v3780 = vld [vmem:[#allocation5 + $0x28] sm:$0xff]
        %v3781 = vld [vmem:[#allocation5 + $0x30] sm:$0xff]
        %v3782 = vld [vmem:[#allocation5 + $0x38] sm:$0xff]
        %v3783 = vld [vmem:[#allocation5 + $0x40] sm:$0xff]
        %v3784 = vld [vmem:[#allocation5 + $0x48] sm:$0xff]
        %v3785 = vld [vmem:[#allocation5 + $0x50] sm:$0xff]
        %v3786 = vld [vmem:[#allocation5 + $0x58] sm:$0xff]
        %v3787 = vld [vmem:[#allocation5 + $0x60] sm:$0xff]
        %v3788 = vld [vmem:[#allocation5 + $0x68] sm:$0xff]
        %v3789 = vld [vmem:[#allocation5 + $0x70] sm:$0xff]
        %v3790 = vld [vmem:[#allocation5 + $0x78] sm:$0xff]
        %v3791 = vld [vmem:[#allocation5 + $0x80] sm:$0xff]
        %v3792 = vld [vmem:[#allocation5 + $0x88] sm:$0xff]
        %v3793 = vld [vmem:[#allocation5 + $0x90] sm:$0xff]
        %v3794 = vld [vmem:[#allocation5 + $0x98] sm:$0xff]
        %v3795 = vld [vmem:[#allocation5 + $0xa0] sm:$0xff]
        %v3796 = vld [vmem:[#allocation5 + $0xa8] sm:$0xff]
        %v3797 = vld [vmem:[#allocation5 + $0xb0] sm:$0xff]
        %v3798 = vld [vmem:[#allocation5 + $0xb8] sm:$0xff]
        %v3799 = vld [vmem:[#allocation5 + $0xc0] sm:$0xff]
        %v3800 = vld [vmem:[#allocation5 + $0xc8] sm:$0xff]
        %v3801 = vld [vmem:[#allocation5 + $0xd0] sm:$0xff]
        %v3802 = vpack.c.bf16 %v3778, %v3775
        %v3803 = vpack.c.bf16 %v3779, %v3776
        %v3804 = vpack.c.bf16 %v3780, %v3777
        %v3805 = vpack.c.bf16 %v3784, %v3781
        %v3806 = vpack.c.bf16 %v3785, %v3782
        %v3807 = vpack.c.bf16 %v3786, %v3783
        %v3808 = vpack.c.bf16 %v3790, %v3787
        %v3809 = vpack.c.bf16 %v3791, %v3788
        %v3810 = vpack.c.bf16 %v3792, %v3789
        %v3811 = vpack.c.bf16 %v3796, %v3793
        %v3812 = vpack.c.bf16 %v3797, %v3794
        %v3813 = vpack.c.bf16 %v3798, %v3795
        %v3814 = vpack.c.bf16 %v3799, %v3799
        %v3815 = vpack.c.bf16 %v3800, %v3800
        %v3816 = vpack.c.bf16 %v3801, %v3801
        %3818 = vset.pattern.permute.xlu0 0
        %3819 = vperm.xlu0 %3818, %v3674
        %v3820 = vpop.permute.xlu0 %3819
        %v3823 = vsel %vm1739, %v3774, 0
        %v3826 = vsel %vm1743, %v3814, 0
        %v3829 = vsel %vm1743, %v3815, 0
        %v3832 = vsel %vm1743, %v3816, 0
        %3834 = vmatprep.subr.bf16.mxu0 0
        %3835 = vmatpush1.bf16.msra.mxu0 0
        %3836 = vmatprep.subr.bf16.mxu0 0
        %3837 = vmatpush1.bf16.msra.mxu0 0
        %3838 = vmatprep.subr.bf16.mxu0 0
        %3839 = vmatpush1.bf16.msra.mxu0 0
        %3840 = vmatprep.subr.bf16.mxu0 %v3829
        %3841 = vmatpush1.bf16.msra.mxu0 %v3826
        %3842 = vmatprep.subr.bf16.mxu0 %v3812
        %3843 = vmatpush1.bf16.msra.mxu0 %v3811
        %3844 = vmatprep.subr.bf16.mxu0 %v3809
        %3845 = vmatpush1.bf16.msra.mxu0 %v3808
        %3846 = vmatprep.subr.bf16.mxu0 %v3806
        %3847 = vmatpush1.bf16.msra.mxu0 %v3805
        %3848 = vmatprep.subr.bf16.mxu0 %v3803
        %3849 = vmatpush1.bf16.msra.mxu0 %v3802
        %3850 = vmatprep.subr.bf16.mxu0 0
        %3851 = vmatpush2.bf16.msra.mxu0 0
        %3852 = vmatprep.subr.bf16.mxu0 0
        %3853 = vmatpush2.bf16.msra.mxu0 0
        %3854 = vmatprep.subr.bf16.mxu0 0
        %3855 = vmatpush2.bf16.msra.mxu0 0
        %3856 = vmatprep.subr.bf16.mxu0 0
        %3857 = vmatpush2.bf16.msra.mxu0 0
        %3858 = vmatprep.subr.bf16.mxu0 0
        %3859 = vmatpush2.bf16.msra.mxu0 0
        %3860 = vmatprep.subr.bf16.mxu0 0
        %3861 = vmatpush2.bf16.msra.mxu0 0
        %3862 = vmatprep.subr.bf16.mxu0 0
        %3863 = vmatpush2.bf16.msra.mxu0 0
        %3864 = vmatprep.subr.bf16.mxu0 0
        %3865 = vmatpush2.bf16.msra.mxu0 0
        %3866 = vmatprep.mubr.bf16.mxu0 0
        %3867 = vmatmul.mubr.bf16.gmra.mxu0 %v3823
        %v3868 = vpop.f32.mrf.mxu0
        %v3869 = vadd.f32 %v3820, %v3868
        %v3870 = vpop.f32.mrf.mxu0
        %v3871 = vadd.f32 %v3820, %v3870
        %v3872 = vpop.f32.mrf.mxu0
        %v3873 = vpop.f32.mrf.mxu0
        %3874 = vdwg.mxu0
        %3875 = vmatprep.subr.bf16.mxu0 0
        %3876 = vmatpush1.bf16.msra.mxu0 0
        %3877 = vmatprep.subr.bf16.mxu0 0
        %3878 = vmatpush1.bf16.msra.mxu0 0
        %3879 = vmatprep.subr.bf16.mxu0 0
        %3880 = vmatpush1.bf16.msra.mxu0 0
        %3881 = vmatprep.subr.bf16.mxu0 0
        %3882 = vmatpush1.bf16.msra.mxu0 %v3832
        %3883 = vmatprep.subr.bf16.mxu0 0
        %3884 = vmatpush1.bf16.msra.mxu0 %v3813
        %3885 = vmatprep.subr.bf16.mxu0 0
        %3886 = vmatpush1.bf16.msra.mxu0 %v3810
        %3887 = vmatprep.subr.bf16.mxu0 0
        %3888 = vmatpush1.bf16.msra.mxu0 %v3807
        %3889 = vmatprep.subr.bf16.mxu0 0
        %3890 = vmatpush1.bf16.msra.mxu0 %v3804
        %3891 = vmatprep.subr.bf16.mxu0 0
        %3892 = vmatpush2.bf16.msra.mxu0 0
        %3893 = vmatprep.subr.bf16.mxu0 0
        %3894 = vmatpush2.bf16.msra.mxu0 0
        %3895 = vmatprep.subr.bf16.mxu0 0
        %3896 = vmatpush2.bf16.msra.mxu0 0
        %3897 = vmatprep.subr.bf16.mxu0 0
        %3898 = vmatpush2.bf16.msra.mxu0 0
        %3899 = vmatprep.subr.bf16.mxu0 0
        %3900 = vmatpush2.bf16.msra.mxu0 0
        %3901 = vmatprep.subr.bf16.mxu0 0
        %3902 = vmatpush2.bf16.msra.mxu0 0
        %3903 = vmatprep.subr.bf16.mxu0 0
        %3904 = vmatpush2.bf16.msra.mxu0 0
        %3905 = vmatprep.subr.bf16.mxu0 0
        %3906 = vmatpush2.bf16.msra.mxu0 0
        %3907 = vmatprep.mubr.bf16.mxu0 0
        %3908 = vmatmul.mubr.bf16.gmra.mxu0 %v3823
        %v3909 = vpop.f32.mrf.mxu0
        %v3910 = vadd.f32 %v3820, %v3909
        %v3911 = vpop.f32.mrf.mxu0
        %v3912 = vpop.f32.mrf.mxu0
        %v3913 = vpop.f32.mrf.mxu0
        %3914 = vdwg.mxu0
        %v3915 = vmax.f32 %v3869, 0.0
        %v3916 = vmax.f32 %v3871, 0.0
        %v3917 = vmax.f32 %v3910, 0.0
        %v3918 = vmul.f32 %v3915, %v658
        %v3919 = vmul.f32 %v3916, %v662
        %v3920 = vmul.f32 %v3917, %v666
        %s3921 = sadd.s32 %s1575, 8
        %s3922 = smul.u32 %s3921, 8
        %s3923 = scalar_lea.vmem %s14, %s3922
        %v3924 = vld [vmem:[%s3923] sm:$0xff]
        %s3925 = scalar_lea.vmem %s15, %s3922
        %v3926 = vld [vmem:[%s3925] sm:$0xff]
        %3927 = vrot.lane.b32.xlu0 %v3918, 19
        %v3928 = vpop.permute.xlu0 %3927
        %3929 = vrot.lane.b32.xlu0 %v3919, 19
        %v3930 = vpop.permute.xlu0 %3929
        %3931 = vrot.lane.b32.xlu0 %v3920, 19
        %v3932 = vpop.permute.xlu0 %3931
        %v3933 = vsel %vm1590, %v3930, %v3932
        %v3934 = vsel %vm1590, %v3928, %v3930
        %v3935 = vsel %vm1590, %v3932, %v3928
        %3936 = vst [vmem:[#allocation5] sm:$0xff] %v3935
        %3937 = vst [vmem:[#allocation5 + $0x8] sm:$0xff] %v3934
        %3938 = vst [vmem:[#allocation5 + $0x10] sm:$0xff] %v3933
        %3939 = vrot.lane.b32.xlu0 %v3918, 18
        %v3940 = vpop.permute.xlu0 %3939
        %3941 = vrot.lane.b32.xlu0 %v3919, 18
        %v3942 = vpop.permute.xlu0 %3941
        %3943 = vrot.lane.b32.xlu0 %v3920, 18
        %v3944 = vpop.permute.xlu0 %3943
        %v3945 = vsel %vm1603, %v3942, %v3944
        %v3946 = vsel %vm1603, %v3940, %v3942
        %v3947 = vsel %vm1603, %v3944, %v3940
        %3948 = vst [vmem:[#allocation5 + $0x18] sm:$0xff] %v3947
        %3949 = vst [vmem:[#allocation5 + $0x20] sm:$0xff] %v3946
        %3950 = vst [vmem:[#allocation5 + $0x28] sm:$0xff] %v3945
        %3951 = vrot.lane.b32.xlu0 %v3918, 17
        %v3952 = vpop.permute.xlu0 %3951
        %3953 = vrot.lane.b32.xlu0 %v3919, 17
        %v3954 = vpop.permute.xlu0 %3953
        %3955 = vrot.lane.b32.xlu0 %v3920, 17
        %v3956 = vpop.permute.xlu0 %3955
        %v3957 = vsel %vm1616, %v3954, %v3956
        %v3958 = vsel %vm1616, %v3952, %v3954
        %v3959 = vsel %vm1616, %v3956, %v3952
        %3960 = vst [vmem:[#allocation5 + $0x30] sm:$0xff] %v3959
        %3961 = vst [vmem:[#allocation5 + $0x38] sm:$0xff] %v3958
        %3962 = vst [vmem:[#allocation5 + $0x40] sm:$0xff] %v3957
        %3963 = vrot.lane.b32.xlu0 %v3918, 1
        %v3964 = vpop.permute.xlu0 %3963
        %3965 = vrot.lane.b32.xlu0 %v3919, 1
        %v3966 = vpop.permute.xlu0 %3965
        %3967 = vrot.lane.b32.xlu0 %v3920, 1
        %v3968 = vpop.permute.xlu0 %3967
        %v3969 = vsel %vm1629, %v3966, %v3968
        %v3970 = vsel %vm1629, %v3964, %v3966
        %v3971 = vsel %vm1629, %v3968, %v3964
        %3972 = vst [vmem:[#allocation5 + $0x48] sm:$0xff] %v3971
        %3973 = vst [vmem:[#allocation5 + $0x50] sm:$0xff] %v3970
        %3974 = vst [vmem:[#allocation5 + $0x58] sm:$0xff] %v3969
        %3975 = vst [vmem:[#allocation5 + $0x60] sm:$0xff] %v3918
        %3976 = vst [vmem:[#allocation5 + $0x68] sm:$0xff] %v3919
        %3977 = vst [vmem:[#allocation5 + $0x70] sm:$0xff] %v3920
        %3978 = vrot.lane.b32.xlu0 %v3918, 127
        %v3979 = vpop.permute.xlu0 %3978
        %3980 = vrot.lane.b32.xlu0 %v3919, 127
        %v3981 = vpop.permute.xlu0 %3980
        %3982 = vrot.lane.b32.xlu0 %v3920, 127
        %v3983 = vpop.permute.xlu0 %3982
        %v3984 = vsel %vm1645, %v3981, %v3983
        %v3985 = vsel %vm1645, %v3979, %v3981
        %v3986 = vsel %vm1645, %v3983, %v3979
        %3987 = vst [vmem:[#allocation5 + $0x78] sm:$0xff] %v3985
        %3988 = vst [vmem:[#allocation5 + $0x80] sm:$0xff] %v3984
        %3989 = vst [vmem:[#allocation5 + $0x88] sm:$0xff] %v3986
        %3990 = vrot.lane.b32.xlu0 %v3918, 111
        %v3991 = vpop.permute.xlu0 %3990
        %3992 = vrot.lane.b32.xlu0 %v3919, 111
        %v3993 = vpop.permute.xlu0 %3992
        %3994 = vrot.lane.b32.xlu0 %v3920, 111
        %v3995 = vpop.permute.xlu0 %3994
        %v3996 = vsel %vm1658, %v3993, %v3995
        %v3997 = vsel %vm1658, %v3991, %v3993
        %v3998 = vsel %vm1658, %v3995, %v3991
        %3999 = vst [vmem:[#allocation5 + $0x90] sm:$0xff] %v3997
        %4000 = vst [vmem:[#allocation5 + $0x98] sm:$0xff] %v3996
        %4001 = vst [vmem:[#allocation5 + $0xa0] sm:$0xff] %v3998
        %4002 = vrot.lane.b32.xlu0 %v3918, 110
        %v4003 = vpop.permute.xlu0 %4002
        %4004 = vrot.lane.b32.xlu0 %v3919, 110
        %v4005 = vpop.permute.xlu0 %4004
        %4006 = vrot.lane.b32.xlu0 %v3920, 110
        %v4007 = vpop.permute.xlu0 %4006
        %v4008 = vsel %vm1671, %v4005, %v4007
        %v4009 = vsel %vm1671, %v4003, %v4005
        %v4010 = vsel %vm1671, %v4007, %v4003
        %4011 = vst [vmem:[#allocation5 + $0xa8] sm:$0xff] %v4009
        %4012 = vst [vmem:[#allocation5 + $0xb0] sm:$0xff] %v4008
        %4013 = vst [vmem:[#allocation5 + $0xb8] sm:$0xff] %v4010
        %4014 = vrot.lane.b32.xlu0 %v3918, 109
        %v4015 = vpop.permute.xlu0 %4014
        %4016 = vrot.lane.b32.xlu0 %v3919, 109
        %v4017 = vpop.permute.xlu0 %4016
        %4018 = vrot.lane.b32.xlu0 %v3920, 109
        %v4019 = vpop.permute.xlu0 %4018
        %v4020 = vsel %vm1684, %v4017, %v4019
        %v4021 = vsel %vm1684, %v4015, %v4017
        %v4022 = vsel %vm1684, %v4019, %v4015
        %4023 = vst [vmem:[#allocation5 + $0xc0] sm:$0xff] %v4021
        %4024 = vst [vmem:[#allocation5 + $0xc8] sm:$0xff] %v4020
        %4025 = vst [vmem:[#allocation5 + $0xd0] sm:$0xff] %v4022
        %v4026 = vpack.c.bf16 %v3924, %v3924
        %v4027 = vld [vmem:[#allocation5] sm:$0xff]
        %v4028 = vld [vmem:[#allocation5 + $0x8] sm:$0xff]
        %v4029 = vld [vmem:[#allocation5 + $0x10] sm:$0xff]
        %v4030 = vld [vmem:[#allocation5 + $0x18] sm:$0xff]
        %v4031 = vld [vmem:[#allocation5 + $0x20] sm:$0xff]
        %v4032 = vld [vmem:[#allocation5 + $0x28] sm:$0xff]
        %v4033 = vld [vmem:[#allocation5 + $0x30] sm:$0xff]
        %v4034 = vld [vmem:[#allocation5 + $0x38] sm:$0xff]
        %v4035 = vld [vmem:[#allocation5 + $0x40] sm:$0xff]
        %v4036 = vld [vmem:[#allocation5 + $0x48] sm:$0xff]
        %v4037 = vld [vmem:[#allocation5 + $0x50] sm:$0xff]
        %v4038 = vld [vmem:[#allocation5 + $0x58] sm:$0xff]
        %v4039 = vld [vmem:[#allocation5 + $0x60] sm:$0xff]
        %v4040 = vld [vmem:[#allocation5 + $0x68] sm:$0xff]
        %v4041 = vld [vmem:[#allocation5 + $0x70] sm:$0xff]
        %v4042 = vld [vmem:[#allocation5 + $0x78] sm:$0xff]
        %v4043 = vld [vmem:[#allocation5 + $0x80] sm:$0xff]
        %v4044 = vld [vmem:[#allocation5 + $0x88] sm:$0xff]
        %v4045 = vld [vmem:[#allocation5 + $0x90] sm:$0xff]
        %v4046 = vld [vmem:[#allocation5 + $0x98] sm:$0xff]
        %v4047 = vld [vmem:[#allocation5 + $0xa0] sm:$0xff]
        %v4048 = vld [vmem:[#allocation5 + $0xa8] sm:$0xff]
        %v4049 = vld [vmem:[#allocation5 + $0xb0] sm:$0xff]
        %v4050 = vld [vmem:[#allocation5 + $0xb8] sm:$0xff]
        %v4051 = vld [vmem:[#allocation5 + $0xc0] sm:$0xff]
        %v4052 = vld [vmem:[#allocation5 + $0xc8] sm:$0xff]
        %v4053 = vld [vmem:[#allocation5 + $0xd0] sm:$0xff]
        %v4054 = vpack.c.bf16 %v4030, %v4027
        %v4055 = vpack.c.bf16 %v4031, %v4028
        %v4056 = vpack.c.bf16 %v4032, %v4029
        %v4057 = vpack.c.bf16 %v4036, %v4033
        %v4058 = vpack.c.bf16 %v4037, %v4034
        %v4059 = vpack.c.bf16 %v4038, %v4035
        %v4060 = vpack.c.bf16 %v4042, %v4039
        %v4061 = vpack.c.bf16 %v4043, %v4040
        %v4062 = vpack.c.bf16 %v4044, %v4041
        %v4063 = vpack.c.bf16 %v4048, %v4045
        %v4064 = vpack.c.bf16 %v4049, %v4046
        %v4065 = vpack.c.bf16 %v4050, %v4047
        %v4066 = vpack.c.bf16 %v4051, %v4051
        %v4067 = vpack.c.bf16 %v4052, %v4052
        %v4068 = vpack.c.bf16 %v4053, %v4053
        %4070 = vset.pattern.permute.xlu0 0
        %4071 = vperm.xlu0 %4070, %v3926
        %v4072 = vpop.permute.xlu0 %4071
        %v4075 = vsel %vm1739, %v4026, 0
        %v4078 = vsel %vm1743, %v4066, 0
        %v4081 = vsel %vm1743, %v4067, 0
        %v4084 = vsel %vm1743, %v4068, 0
        %4086 = vmatprep.subr.bf16.mxu0 0
        %4087 = vmatpush1.bf16.msra.mxu0 0
        %4088 = vmatprep.subr.bf16.mxu0 0
        %4089 = vmatpush1.bf16.msra.mxu0 0
        %4090 = vmatprep.subr.bf16.mxu0 0
        %4091 = vmatpush1.bf16.msra.mxu0 0
        %4092 = vmatprep.subr.bf16.mxu0 %v4081
        %4093 = vmatpush1.bf16.msra.mxu0 %v4078
        %4094 = vmatprep.subr.bf16.mxu0 %v4064
        %4095 = vmatpush1.bf16.msra.mxu0 %v4063
        %4096 = vmatprep.subr.bf16.mxu0 %v4061
        %4097 = vmatpush1.bf16.msra.mxu0 %v4060
        %4098 = vmatprep.subr.bf16.mxu0 %v4058
        %4099 = vmatpush1.bf16.msra.mxu0 %v4057
        %4100 = vmatprep.subr.bf16.mxu0 %v4055
        %4101 = vmatpush1.bf16.msra.mxu0 %v4054
        %4102 = vmatprep.subr.bf16.mxu0 0
        %4103 = vmatpush2.bf16.msra.mxu0 0
        %4104 = vmatprep.subr.bf16.mxu0 0
        %4105 = vmatpush2.bf16.msra.mxu0 0
        %4106 = vmatprep.subr.bf16.mxu0 0
        %4107 = vmatpush2.bf16.msra.mxu0 0
        %4108 = vmatprep.subr.bf16.mxu0 0
        %4109 = vmatpush2.bf16.msra.mxu0 0
        %4110 = vmatprep.subr.bf16.mxu0 0
        %4111 = vmatpush2.bf16.msra.mxu0 0
        %4112 = vmatprep.subr.bf16.mxu0 0
        %4113 = vmatpush2.bf16.msra.mxu0 0
        %4114 = vmatprep.subr.bf16.mxu0 0
        %4115 = vmatpush2.bf16.msra.mxu0 0
        %4116 = vmatprep.subr.bf16.mxu0 0
        %4117 = vmatpush2.bf16.msra.mxu0 0
        %4118 = vmatprep.mubr.bf16.mxu0 0
        %4119 = vmatmul.mubr.bf16.gmra.mxu0 %v4075
        %v4120 = vpop.f32.mrf.mxu0
        %v4121 = vadd.f32 %v4072, %v4120
        %v4122 = vpop.f32.mrf.mxu0
        %v4123 = vadd.f32 %v4072, %v4122
        %v4124 = vpop.f32.mrf.mxu0
        %v4125 = vpop.f32.mrf.mxu0
        %4126 = vdwg.mxu0
        %4127 = vmatprep.subr.bf16.mxu0 0
        %4128 = vmatpush1.bf16.msra.mxu0 0
        %4129 = vmatprep.subr.bf16.mxu0 0
        %4130 = vmatpush1.bf16.msra.mxu0 0
        %4131 = vmatprep.subr.bf16.mxu0 0
        %4132 = vmatpush1.bf16.msra.mxu0 0
        %4133 = vmatprep.subr.bf16.mxu0 0
        %4134 = vmatpush1.bf16.msra.mxu0 %v4084
        %4135 = vmatprep.subr.bf16.mxu0 0
        %4136 = vmatpush1.bf16.msra.mxu0 %v4065
        %4137 = vmatprep.subr.bf16.mxu0 0
        %4138 = vmatpush1.bf16.msra.mxu0 %v4062
        %4139 = vmatprep.subr.bf16.mxu0 0
        %4140 = vmatpush1.bf16.msra.mxu0 %v4059
        %4141 = vmatprep.subr.bf16.mxu0 0
        %4142 = vmatpush1.bf16.msra.mxu0 %v4056
        %4143 = vmatprep.subr.bf16.mxu0 0
        %4144 = vmatpush2.bf16.msra.mxu0 0
        %4145 = vmatprep.subr.bf16.mxu0 0
        %4146 = vmatpush2.bf16.msra.mxu0 0
        %4147 = vmatprep.subr.bf16.mxu0 0
        %4148 = vmatpush2.bf16.msra.mxu0 0
        %4149 = vmatprep.subr.bf16.mxu0 0
        %4150 = vmatpush2.bf16.msra.mxu0 0
        %4151 = vmatprep.subr.bf16.mxu0 0
        %4152 = vmatpush2.bf16.msra.mxu0 0
        %4153 = vmatprep.subr.bf16.mxu0 0
        %4154 = vmatpush2.bf16.msra.mxu0 0
        %4155 = vmatprep.subr.bf16.mxu0 0
        %4156 = vmatpush2.bf16.msra.mxu0 0
        %4157 = vmatprep.subr.bf16.mxu0 0
        %4158 = vmatpush2.bf16.msra.mxu0 0
        %4159 = vmatprep.mubr.bf16.mxu0 0
        %4160 = vmatmul.mubr.bf16.gmra.mxu0 %v4075
        %v4161 = vpop.f32.mrf.mxu0
        %v4162 = vadd.f32 %v4072, %v4161
        %v4163 = vpop.f32.mrf.mxu0
        %v4164 = vpop.f32.mrf.mxu0
        %v4165 = vpop.f32.mrf.mxu0
        %4166 = vdwg.mxu0
        %v4167 = vmax.f32 %v4121, 0.0
        %v4168 = vmax.f32 %v4123, 0.0
        %v4169 = vmax.f32 %v4162, 0.0
        %v4170 = vadd.f32 %v3666, %v4167
        %v4171 = vadd.f32 %v3667, %v4168
        %v4172 = vadd.f32 %v3668, %v4169
        %s4173 = sadd.s32 %s1576, 2
        %s4174 = smul.u32 %s4173, 8
        %s4175 = scalar_lea.vmem %s16, %s4174
        %v4176 = vld [vmem:[%s4175] sm:$0xff]
        %s4177 = scalar_lea.vmem %s17, %s4174
        %v4178 = vld [vmem:[%s4177] sm:$0xff]
        %4180 = vset.pattern.permute.xlu0 0
        %4181 = vperm.xlu0 %4180, %v4178
        %v4182 = vpop.permute.xlu0 %4181
        %v4185 = vsel %vm1418, %v4176, 0
        %4187 = vmatprep.subr.mxu0 0.0
        %4188 = vmatpush1.msra.mxu0 0.0
        %4189 = vmatprep.subr.mxu0 0.0
        %4190 = vmatpush1.msra.mxu0 0.0
        %4191 = vmatprep.subr.mxu0 0.0
        %4192 = vmatpush1.msra.mxu0 0.0
        %4193 = vmatprep.subr.mxu0 0.0
        %4194 = vmatpush1.msra.mxu0 0.0
        %4195 = vmatprep.subr.mxu0 0.0
        %4196 = vmatpush1.msra.mxu0 0.0
        %4197 = vmatprep.subr.mxu0 0.0
        %4198 = vmatpush1.msra.mxu0 0.0
        %4199 = vmatprep.subr.mxu0 0.0
        %4200 = vmatpush1.msra.mxu0 0.0
        %4201 = vmatprep.subr.mxu0 0.0
        %4202 = vmatpush1.msra.mxu0 0.0
        %4203 = vmatprep.subr.mxu0 0.0
        %4204 = vmatpush1.msra.mxu0 0.0
        %4205 = vmatprep.subr.mxu0 0.0
        %4206 = vmatpush1.msra.mxu0 0.0
        %4207 = vmatprep.subr.mxu0 0.0
        %4208 = vmatpush1.msra.mxu0 0.0
        %4209 = vmatprep.subr.mxu0 0.0
        %4210 = vmatpush1.msra.mxu0 0.0
        %4211 = vmatprep.subr.mxu0 0.0
        %4212 = vmatpush1.msra.mxu0 0.0
        %4213 = vmatprep.subr.mxu0 0.0
        %4214 = vmatpush1.msra.mxu0 0.0
        %4215 = vmatprep.subr.mxu0 %v4168
        %4216 = vmatpush1.msra.mxu0 %v4167
        %4217 = vmatprep.subr.mxu0 %v3919
        %4218 = vmatpush1.msra.mxu0 %v3918
        %4219 = vmatprep.subr.mxu0 0.0
        %4220 = vmatpush2.msra.mxu0 0.0
        %4221 = vmatprep.subr.mxu0 0.0
        %4222 = vmatpush2.msra.mxu0 0.0
        %4223 = vmatprep.subr.mxu0 0.0
        %4224 = vmatpush2.msra.mxu0 0.0
        %4225 = vmatprep.subr.mxu0 0.0
        %4226 = vmatpush2.msra.mxu0 0.0
        %4227 = vmatprep.subr.mxu0 0.0
        %4228 = vmatpush2.msra.mxu0 0.0
        %4229 = vmatprep.subr.mxu0 0.0
        %4230 = vmatpush2.msra.mxu0 0.0
        %4231 = vmatprep.subr.mxu0 0.0
        %4232 = vmatpush2.msra.mxu0 0.0
        %4233 = vmatprep.subr.mxu0 0.0
        %4234 = vmatpush2.msra.mxu0 0.0
        %4235 = vmatprep.subr.mxu0 0.0
        %4236 = vmatpush2.msra.mxu0 0.0
        %4237 = vmatprep.subr.mxu0 0.0
        %4238 = vmatpush2.msra.mxu0 0.0
        %4239 = vmatprep.subr.mxu0 0.0
        %4240 = vmatpush2.msra.mxu0 0.0
        %4241 = vmatprep.subr.mxu0 0.0
        %4242 = vmatpush2.msra.mxu0 0.0
        %4243 = vmatprep.subr.mxu0 0.0
        %4244 = vmatpush2.msra.mxu0 0.0
        %4245 = vmatprep.subr.mxu0 0.0
        %4246 = vmatpush2.msra.mxu0 0.0
        %4247 = vmatprep.subr.mxu0 0.0
        %4248 = vmatpush2.msra.mxu0 0.0
        %4249 = vmatprep.subr.mxu0 0.0
        %4250 = vmatpush2.msra.mxu0 0.0
        %4251 = vmatprep.mubr.f32.mxu0 0.0
        %4252 = vmatmul.mubr.f32.gmra.mxu0 %v4185
        %v4253 = vpop.f32.mrf.mxu0
        %v4254 = vadd.f32 %v4182, %v4253
        %v4255 = vpop.f32.mrf.mxu0
        %v4256 = vadd.f32 %v4182, %v4255
        %4257 = vdwg.mxu0
        %4258 = vmatprep.subr.mxu0 0.0
        %4259 = vmatpush1.msra.mxu0 0.0
        %4260 = vmatprep.subr.mxu0 0.0
        %4261 = vmatpush1.msra.mxu0 0.0
        %4262 = vmatprep.subr.mxu0 0.0
        %4263 = vmatpush1.msra.mxu0 0.0
        %4264 = vmatprep.subr.mxu0 0.0
        %4265 = vmatpush1.msra.mxu0 0.0
        %4266 = vmatprep.subr.mxu0 0.0
        %4267 = vmatpush1.msra.mxu0 0.0
        %4268 = vmatprep.subr.mxu0 0.0
        %4269 = vmatpush1.msra.mxu0 0.0
        %4270 = vmatprep.subr.mxu0 0.0
        %4271 = vmatpush1.msra.mxu0 0.0
        %4272 = vmatprep.subr.mxu0 0.0
        %4273 = vmatpush1.msra.mxu0 0.0
        %4274 = vmatprep.subr.mxu0 0.0
        %4275 = vmatpush1.msra.mxu0 0.0
        %4276 = vmatprep.subr.mxu0 0.0
        %4277 = vmatpush1.msra.mxu0 0.0
        %4278 = vmatprep.subr.mxu0 0.0
        %4279 = vmatpush1.msra.mxu0 0.0
        %4280 = vmatprep.subr.mxu0 0.0
        %4281 = vmatpush1.msra.mxu0 0.0
        %4282 = vmatprep.subr.mxu0 0.0
        %4283 = vmatpush1.msra.mxu0 0.0
        %4284 = vmatprep.subr.mxu0 0.0
        %4285 = vmatpush1.msra.mxu0 0.0
        %4286 = vmatprep.subr.mxu0 0.0
        %4287 = vmatpush1.msra.mxu0 %v4169
        %4288 = vmatprep.subr.mxu0 0.0
        %4289 = vmatpush1.msra.mxu0 %v3920
        %4290 = vmatprep.subr.mxu0 0.0
        %4291 = vmatpush2.msra.mxu0 0.0
        %4292 = vmatprep.subr.mxu0 0.0
        %4293 = vmatpush2.msra.mxu0 0.0
        %4294 = vmatprep.subr.mxu0 0.0
        %4295 = vmatpush2.msra.mxu0 0.0
        %4296 = vmatprep.subr.mxu0 0.0
        %4297 = vmatpush2.msra.mxu0 0.0
        %4298 = vmatprep.subr.mxu0 0.0
        %4299 = vmatpush2.msra.mxu0 0.0
        %4300 = vmatprep.subr.mxu0 0.0
        %4301 = vmatpush2.msra.mxu0 0.0
        %4302 = vmatprep.subr.mxu0 0.0
        %4303 = vmatpush2.msra.mxu0 0.0
        %4304 = vmatprep.subr.mxu0 0.0
        %4305 = vmatpush2.msra.mxu0 0.0
        %4306 = vmatprep.subr.mxu0 0.0
        %4307 = vmatpush2.msra.mxu0 0.0
        %4308 = vmatprep.subr.mxu0 0.0
        %4309 = vmatpush2.msra.mxu0 0.0
        %4310 = vmatprep.subr.mxu0 0.0
        %4311 = vmatpush2.msra.mxu0 0.0
        %4312 = vmatprep.subr.mxu0 0.0
        %4313 = vmatpush2.msra.mxu0 0.0
        %4314 = vmatprep.subr.mxu0 0.0
        %4315 = vmatpush2.msra.mxu0 0.0
        %4316 = vmatprep.subr.mxu0 0.0
        %4317 = vmatpush2.msra.mxu0 0.0
        %4318 = vmatprep.subr.mxu0 0.0
        %4319 = vmatpush2.msra.mxu0 0.0
        %4320 = vmatprep.subr.mxu0 0.0
        %4321 = vmatpush2.msra.mxu0 0.0
        %4322 = vmatprep.mubr.f32.mxu0 0.0
        %4323 = vmatmul.mubr.f32.gmra.mxu0 %v4185
        %v4324 = vpop.f32.mrf.mxu0
        %v4325 = vadd.f32 %v4182, %v4324
        %v4326 = vpop.f32.mrf.mxu0
        %4327 = vdwg.mxu0
        %v4328 = vmul.f32 %v4254, %v658
        %v4329 = vmul.f32 %v4256, %v662
        %v4330 = vmul.f32 %v4325, %v666
        %s4331 = sadd.s32 %s1575, 9
        %s4332 = smul.u32 %s4331, 8
        %s4333 = scalar_lea.vmem %s14, %s4332
        %v4334 = vld [vmem:[%s4333] sm:$0xff]
        %s4335 = scalar_lea.vmem %s15, %s4332
        %v4336 = vld [vmem:[%s4335] sm:$0xff]
        %4337 = vrot.lane.b32.xlu0 %v4328, 19
        %v4338 = vpop.permute.xlu0 %4337
        %4339 = vrot.lane.b32.xlu0 %v4329, 19
        %v4340 = vpop.permute.xlu0 %4339
        %4341 = vrot.lane.b32.xlu0 %v4330, 19
        %v4342 = vpop.permute.xlu0 %4341
        %v4343 = vsel %vm1590, %v4340, %v4342
        %v4344 = vsel %vm1590, %v4338, %v4340
        %v4345 = vsel %vm1590, %v4342, %v4338
        %4346 = vst [vmem:[#allocation5] sm:$0xff] %v4345
        %4347 = vst [vmem:[#allocation5 + $0x8] sm:$0xff] %v4344
        %4348 = vst [vmem:[#allocation5 + $0x10] sm:$0xff] %v4343
        %4349 = vrot.lane.b32.xlu0 %v4328, 18
        %v4350 = vpop.permute.xlu0 %4349
        %4351 = vrot.lane.b32.xlu0 %v4329, 18
        %v4352 = vpop.permute.xlu0 %4351
        %4353 = vrot.lane.b32.xlu0 %v4330, 18
        %v4354 = vpop.permute.xlu0 %4353
        %v4355 = vsel %vm1603, %v4352, %v4354
        %v4356 = vsel %vm1603, %v4350, %v4352
        %v4357 = vsel %vm1603, %v4354, %v4350
        %4358 = vst [vmem:[#allocation5 + $0x18] sm:$0xff] %v4357
        %4359 = vst [vmem:[#allocation5 + $0x20] sm:$0xff] %v4356
        %4360 = vst [vmem:[#allocation5 + $0x28] sm:$0xff] %v4355
        %4361 = vrot.lane.b32.xlu0 %v4328, 17
        %v4362 = vpop.permute.xlu0 %4361
        %4363 = vrot.lane.b32.xlu0 %v4329, 17
        %v4364 = vpop.permute.xlu0 %4363
        %4365 = vrot.lane.b32.xlu0 %v4330, 17
        %v4366 = vpop.permute.xlu0 %4365
        %v4367 = vsel %vm1616, %v4364, %v4366
        %v4368 = vsel %vm1616, %v4362, %v4364
        %v4369 = vsel %vm1616, %v4366, %v4362
        %4370 = vst [vmem:[#allocation5 + $0x30] sm:$0xff] %v4369
        %4371 = vst [vmem:[#allocation5 + $0x38] sm:$0xff] %v4368
        %4372 = vst [vmem:[#allocation5 + $0x40] sm:$0xff] %v4367
        %4373 = vrot.lane.b32.xlu0 %v4328, 1
        %v4374 = vpop.permute.xlu0 %4373
        %4375 = vrot.lane.b32.xlu0 %v4329, 1
        %v4376 = vpop.permute.xlu0 %4375
        %4377 = vrot.lane.b32.xlu0 %v4330, 1
        %v4378 = vpop.permute.xlu0 %4377
        %v4379 = vsel %vm1629, %v4376, %v4378
        %v4380 = vsel %vm1629, %v4374, %v4376
        %v4381 = vsel %vm1629, %v4378, %v4374
        %4382 = vst [vmem:[#allocation5 + $0x48] sm:$0xff] %v4381
        %4383 = vst [vmem:[#allocation5 + $0x50] sm:$0xff] %v4380
        %4384 = vst [vmem:[#allocation5 + $0x58] sm:$0xff] %v4379
        %4385 = vst [vmem:[#allocation5 + $0x60] sm:$0xff] %v4328
        %4386 = vst [vmem:[#allocation5 + $0x68] sm:$0xff] %v4329
        %4387 = vst [vmem:[#allocation5 + $0x70] sm:$0xff] %v4330
        %4388 = vrot.lane.b32.xlu0 %v4328, 127
        %v4389 = vpop.permute.xlu0 %4388
        %4390 = vrot.lane.b32.xlu0 %v4329, 127
        %v4391 = vpop.permute.xlu0 %4390
        %4392 = vrot.lane.b32.xlu0 %v4330, 127
        %v4393 = vpop.permute.xlu0 %4392
        %v4394 = vsel %vm1645, %v4391, %v4393
        %v4395 = vsel %vm1645, %v4389, %v4391
        %v4396 = vsel %vm1645, %v4393, %v4389
        %4397 = vst [vmem:[#allocation5 + $0x78] sm:$0xff] %v4395
        %4398 = vst [vmem:[#allocation5 + $0x80] sm:$0xff] %v4394
        %4399 = vst [vmem:[#allocation5 + $0x88] sm:$0xff] %v4396
        %4400 = vrot.lane.b32.xlu0 %v4328, 111
        %v4401 = vpop.permute.xlu0 %4400
        %4402 = vrot.lane.b32.xlu0 %v4329, 111
        %v4403 = vpop.permute.xlu0 %4402
        %4404 = vrot.lane.b32.xlu0 %v4330, 111
        %v4405 = vpop.permute.xlu0 %4404
        %v4406 = vsel %vm1658, %v4403, %v4405
        %v4407 = vsel %vm1658, %v4401, %v4403
        %v4408 = vsel %vm1658, %v4405, %v4401
        %4409 = vst [vmem:[#allocation5 + $0x90] sm:$0xff] %v4407
        %4410 = vst [vmem:[#allocation5 + $0x98] sm:$0xff] %v4406
        %4411 = vst [vmem:[#allocation5 + $0xa0] sm:$0xff] %v4408
        %4412 = vrot.lane.b32.xlu0 %v4328, 110
        %v4413 = vpop.permute.xlu0 %4412
        %4414 = vrot.lane.b32.xlu0 %v4329, 110
        %v4415 = vpop.permute.xlu0 %4414
        %4416 = vrot.lane.b32.xlu0 %v4330, 110
        %v4417 = vpop.permute.xlu0 %4416
        %v4418 = vsel %vm1671, %v4415, %v4417
        %v4419 = vsel %vm1671, %v4413, %v4415
        %v4420 = vsel %vm1671, %v4417, %v4413
        %4421 = vst [vmem:[#allocation5 + $0xa8] sm:$0xff] %v4419
        %4422 = vst [vmem:[#allocation5 + $0xb0] sm:$0xff] %v4418
        %4423 = vst [vmem:[#allocation5 + $0xb8] sm:$0xff] %v4420
        %4424 = vrot.lane.b32.xlu0 %v4328, 109
        %v4425 = vpop.permute.xlu0 %4424
        %4426 = vrot.lane.b32.xlu0 %v4329, 109
        %v4427 = vpop.permute.xlu0 %4426
        %4428 = vrot.lane.b32.xlu0 %v4330, 109
        %v4429 = vpop.permute.xlu0 %4428
        %v4430 = vsel %vm1684, %v4427, %v4429
        %v4431 = vsel %vm1684, %v4425, %v4427
        %v4432 = vsel %vm1684, %v4429, %v4425
        %4433 = vst [vmem:[#allocation5 + $0xc0] sm:$0xff] %v4431
        %4434 = vst [vmem:[#allocation5 + $0xc8] sm:$0xff] %v4430
        %4435 = vst [vmem:[#allocation5 + $0xd0] sm:$0xff] %v4432
        %v4436 = vpack.c.bf16 %v4334, %v4334
        %v4437 = vld [vmem:[#allocation5] sm:$0xff]
        %v4438 = vld [vmem:[#allocation5 + $0x8] sm:$0xff]
        %v4439 = vld [vmem:[#allocation5 + $0x10] sm:$0xff]
        %v4440 = vld [vmem:[#allocation5 + $0x18] sm:$0xff]
        %v4441 = vld [vmem:[#allocation5 + $0x20] sm:$0xff]
        %v4442 = vld [vmem:[#allocation5 + $0x28] sm:$0xff]
        %v4443 = vld [vmem:[#allocation5 + $0x30] sm:$0xff]
        %v4444 = vld [vmem:[#allocation5 + $0x38] sm:$0xff]
        %v4445 = vld [vmem:[#allocation5 + $0x40] sm:$0xff]
        %v4446 = vld [vmem:[#allocation5 + $0x48] sm:$0xff]
        %v4447 = vld [vmem:[#allocation5 + $0x50] sm:$0xff]
        %v4448 = vld [vmem:[#allocation5 + $0x58] sm:$0xff]
        %v4449 = vld [vmem:[#allocation5 + $0x60] sm:$0xff]
        %v4450 = vld [vmem:[#allocation5 + $0x68] sm:$0xff]
        %v4451 = vld [vmem:[#allocation5 + $0x70] sm:$0xff]
        %v4452 = vld [vmem:[#allocation5 + $0x78] sm:$0xff]
        %v4453 = vld [vmem:[#allocation5 + $0x80] sm:$0xff]
        %v4454 = vld [vmem:[#allocation5 + $0x88] sm:$0xff]
        %v4455 = vld [vmem:[#allocation5 + $0x90] sm:$0xff]
        %v4456 = vld [vmem:[#allocation5 + $0x98] sm:$0xff]
        %v4457 = vld [vmem:[#allocation5 + $0xa0] sm:$0xff]
        %v4458 = vld [vmem:[#allocation5 + $0xa8] sm:$0xff]
        %v4459 = vld [vmem:[#allocation5 + $0xb0] sm:$0xff]
        %v4460 = vld [vmem:[#allocation5 + $0xb8] sm:$0xff]
        %v4461 = vld [vmem:[#allocation5 + $0xc0] sm:$0xff]
        %v4462 = vld [vmem:[#allocation5 + $0xc8] sm:$0xff]
        %v4463 = vld [vmem:[#allocation5 + $0xd0] sm:$0xff]
        %v4464 = vpack.c.bf16 %v4440, %v4437
        %v4465 = vpack.c.bf16 %v4441, %v4438
        %v4466 = vpack.c.bf16 %v4442, %v4439
        %v4467 = vpack.c.bf16 %v4446, %v4443
        %v4468 = vpack.c.bf16 %v4447, %v4444
        %v4469 = vpack.c.bf16 %v4448, %v4445
        %v4470 = vpack.c.bf16 %v4452, %v4449
        %v4471 = vpack.c.bf16 %v4453, %v4450
        %v4472 = vpack.c.bf16 %v4454, %v4451
        %v4473 = vpack.c.bf16 %v4458, %v4455
        %v4474 = vpack.c.bf16 %v4459, %v4456
        %v4475 = vpack.c.bf16 %v4460, %v4457
        %v4476 = vpack.c.bf16 %v4461, %v4461
        %v4477 = vpack.c.bf16 %v4462, %v4462
        %v4478 = vpack.c.bf16 %v4463, %v4463
        %4480 = vset.pattern.permute.xlu0 0
        %4481 = vperm.xlu0 %4480, %v4336
        %v4482 = vpop.permute.xlu0 %4481
        %v4485 = vsel %vm1739, %v4436, 0
        %v4488 = vsel %vm1743, %v4476, 0
        %v4491 = vsel %vm1743, %v4477, 0
        %v4494 = vsel %vm1743, %v4478, 0
        %4496 = vmatprep.subr.bf16.mxu0 0
        %4497 = vmatpush1.bf16.msra.mxu0 0
        %4498 = vmatprep.subr.bf16.mxu0 0
        %4499 = vmatpush1.bf16.msra.mxu0 0
        %4500 = vmatprep.subr.bf16.mxu0 0
        %4501 = vmatpush1.bf16.msra.mxu0 0
        %4502 = vmatprep.subr.bf16.mxu0 %v4491
        %4503 = vmatpush1.bf16.msra.mxu0 %v4488
        %4504 = vmatprep.subr.bf16.mxu0 %v4474
        %4505 = vmatpush1.bf16.msra.mxu0 %v4473
        %4506 = vmatprep.subr.bf16.mxu0 %v4471
        %4507 = vmatpush1.bf16.msra.mxu0 %v4470
        %4508 = vmatprep.subr.bf16.mxu0 %v4468
        %4509 = vmatpush1.bf16.msra.mxu0 %v4467
        %4510 = vmatprep.subr.bf16.mxu0 %v4465
        %4511 = vmatpush1.bf16.msra.mxu0 %v4464
        %4512 = vmatprep.subr.bf16.mxu0 0
        %4513 = vmatpush2.bf16.msra.mxu0 0
        %4514 = vmatprep.subr.bf16.mxu0 0
        %4515 = vmatpush2.bf16.msra.mxu0 0
        %4516 = vmatprep.subr.bf16.mxu0 0
        %4517 = vmatpush2.bf16.msra.mxu0 0
        %4518 = vmatprep.subr.bf16.mxu0 0
        %4519 = vmatpush2.bf16.msra.mxu0 0
        %4520 = vmatprep.subr.bf16.mxu0 0
        %4521 = vmatpush2.bf16.msra.mxu0 0
        %4522 = vmatprep.subr.bf16.mxu0 0
        %4523 = vmatpush2.bf16.msra.mxu0 0
        %4524 = vmatprep.subr.bf16.mxu0 0
        %4525 = vmatpush2.bf16.msra.mxu0 0
        %4526 = vmatprep.subr.bf16.mxu0 0
        %4527 = vmatpush2.bf16.msra.mxu0 0
        %4528 = vmatprep.mubr.bf16.mxu0 0
        %4529 = vmatmul.mubr.bf16.gmra.mxu0 %v4485
        %v4530 = vpop.f32.mrf.mxu0
        %v4531 = vadd.f32 %v4482, %v4530
        %v4532 = vpop.f32.mrf.mxu0
        %v4533 = vadd.f32 %v4482, %v4532
        %v4534 = vpop.f32.mrf.mxu0
        %v4535 = vpop.f32.mrf.mxu0
        %4536 = vdwg.mxu0
        %4537 = vmatprep.subr.bf16.mxu0 0
        %4538 = vmatpush1.bf16.msra.mxu0 0
        %4539 = vmatprep.subr.bf16.mxu0 0
        %4540 = vmatpush1.bf16.msra.mxu0 0
        %4541 = vmatprep.subr.bf16.mxu0 0
        %4542 = vmatpush1.bf16.msra.mxu0 0
        %4543 = vmatprep.subr.bf16.mxu0 0
        %4544 = vmatpush1.bf16.msra.mxu0 %v4494
        %4545 = vmatprep.subr.bf16.mxu0 0
        %4546 = vmatpush1.bf16.msra.mxu0 %v4475
        %4547 = vmatprep.subr.bf16.mxu0 0
        %4548 = vmatpush1.bf16.msra.mxu0 %v4472
        %4549 = vmatprep.subr.bf16.mxu0 0
        %4550 = vmatpush1.bf16.msra.mxu0 %v4469
        %4551 = vmatprep.subr.bf16.mxu0 0
        %4552 = vmatpush1.bf16.msra.mxu0 %v4466
        %4553 = vmatprep.subr.bf16.mxu0 0
        %4554 = vmatpush2.bf16.msra.mxu0 0
        %4555 = vmatprep.subr.bf16.mxu0 0
        %4556 = vmatpush2.bf16.msra.mxu0 0
        %4557 = vmatprep.subr.bf16.mxu0 0
        %4558 = vmatpush2.bf16.msra.mxu0 0
        %4559 = vmatprep.subr.bf16.mxu0 0
        %4560 = vmatpush2.bf16.msra.mxu0 0
        %4561 = vmatprep.subr.bf16.mxu0 0
        %4562 = vmatpush2.bf16.msra.mxu0 0
        %4563 = vmatprep.subr.bf16.mxu0 0
        %4564 = vmatpush2.bf16.msra.mxu0 0
        %4565 = vmatprep.subr.bf16.mxu0 0
        %4566 = vmatpush2.bf16.msra.mxu0 0
        %4567 = vmatprep.subr.bf16.mxu0 0
        %4568 = vmatpush2.bf16.msra.mxu0 0
        %4569 = vmatprep.mubr.bf16.mxu0 0
        %4570 = vmatmul.mubr.bf16.gmra.mxu0 %v4485
        %v4571 = vpop.f32.mrf.mxu0
        %v4572 = vadd.f32 %v4482, %v4571
        %v4573 = vpop.f32.mrf.mxu0
        %v4574 = vpop.f32.mrf.mxu0
        %v4575 = vpop.f32.mrf.mxu0
        %4576 = vdwg.mxu0
        %v4577 = vmax.f32 %v4531, 0.0
        %v4578 = vmax.f32 %v4533, 0.0
        %v4579 = vmax.f32 %v4572, 0.0
        %v4580 = vadd.f32 %v4328, %v4577
        %v4581 = vadd.f32 %v4329, %v4578
        %v4582 = vadd.f32 %v4330, %v4579
        %s4583 = sadd.s32 %s1576, 3
        %s4584 = smul.u32 %s4583, 8
        %s4585 = scalar_lea.vmem %s16, %s4584
        %v4586 = vld [vmem:[%s4585] sm:$0xff]
        %s4587 = scalar_lea.vmem %s17, %s4584
        %v4588 = vld [vmem:[%s4587] sm:$0xff]
        %4590 = vset.pattern.permute.xlu0 0
        %4591 = vperm.xlu0 %4590, %v4588
        %v4592 = vpop.permute.xlu0 %4591
        %v4595 = vsel %vm2606, %v4586, 0
        %4597 = vmatprep.subr.mxu0 0.0
        %4598 = vmatpush1.msra.mxu0 0.0
        %4599 = vmatprep.subr.mxu0 0.0
        %4600 = vmatpush1.msra.mxu0 0.0
        %4601 = vmatprep.subr.mxu0 0.0
        %4602 = vmatpush1.msra.mxu0 0.0
        %4603 = vmatprep.subr.mxu0 0.0
        %4604 = vmatpush1.msra.mxu0 0.0
        %4605 = vmatprep.subr.mxu0 0.0
        %4606 = vmatpush1.msra.mxu0 0.0
        %4607 = vmatprep.subr.mxu0 0.0
        %4608 = vmatpush1.msra.mxu0 0.0
        %4609 = vmatprep.subr.mxu0 0.0
        %4610 = vmatpush1.msra.mxu0 0.0
        %4611 = vmatprep.subr.mxu0 0.0
        %4612 = vmatpush1.msra.mxu0 0.0
        %4613 = vmatprep.subr.mxu0 0.0
        %4614 = vmatpush1.msra.mxu0 0.0
        %4615 = vmatprep.subr.mxu0 0.0
        %4616 = vmatpush1.msra.mxu0 0.0
        %4617 = vmatprep.subr.mxu0 0.0
        %4618 = vmatpush1.msra.mxu0 0.0
        %4619 = vmatprep.subr.mxu0 0.0
        %4620 = vmatpush1.msra.mxu0 0.0
        %4621 = vmatprep.subr.mxu0 %v4581
        %4622 = vmatpush1.msra.mxu0 %v4580
        %4623 = vmatprep.subr.mxu0 %v4171
        %4624 = vmatpush1.msra.mxu0 %v4170
        %4625 = vmatprep.subr.mxu0 %v3508
        %4626 = vmatpush1.msra.mxu0 %v3507
        %4627 = vmatprep.subr.mxu0 %v2594
        %4628 = vmatpush1.msra.mxu0 %v2593
        %4629 = vmatprep.subr.mxu0 0.0
        %4630 = vmatpush2.msra.mxu0 0.0
        %4631 = vmatprep.subr.mxu0 0.0
        %4632 = vmatpush2.msra.mxu0 0.0
        %4633 = vmatprep.subr.mxu0 0.0
        %4634 = vmatpush2.msra.mxu0 0.0
        %4635 = vmatprep.subr.mxu0 0.0
        %4636 = vmatpush2.msra.mxu0 0.0
        %4637 = vmatprep.subr.mxu0 0.0
        %4638 = vmatpush2.msra.mxu0 0.0
        %4639 = vmatprep.subr.mxu0 0.0
        %4640 = vmatpush2.msra.mxu0 0.0
        %4641 = vmatprep.subr.mxu0 0.0
        %4642 = vmatpush2.msra.mxu0 0.0
        %4643 = vmatprep.subr.mxu0 0.0
        %4644 = vmatpush2.msra.mxu0 0.0
        %4645 = vmatprep.subr.mxu0 0.0
        %4646 = vmatpush2.msra.mxu0 0.0
        %4647 = vmatprep.subr.mxu0 0.0
        %4648 = vmatpush2.msra.mxu0 0.0
        %4649 = vmatprep.subr.mxu0 0.0
        %4650 = vmatpush2.msra.mxu0 0.0
        %4651 = vmatprep.subr.mxu0 0.0
        %4652 = vmatpush2.msra.mxu0 0.0
        %4653 = vmatprep.subr.mxu0 0.0
        %4654 = vmatpush2.msra.mxu0 0.0
        %4655 = vmatprep.subr.mxu0 0.0
        %4656 = vmatpush2.msra.mxu0 0.0
        %4657 = vmatprep.subr.mxu0 0.0
        %4658 = vmatpush2.msra.mxu0 0.0
        %4659 = vmatprep.subr.mxu0 0.0
        %4660 = vmatpush2.msra.mxu0 0.0
        %4661 = vmatprep.mubr.f32.mxu0 0.0
        %4662 = vmatmul.mubr.f32.gmra.mxu0 %v4595
        %v4663 = vpop.f32.mrf.mxu0
        %v4664 = vadd.f32 %v4592, %v4663
        %v4665 = vpop.f32.mrf.mxu0
        %v4666 = vadd.f32 %v4592, %v4665
        %4667 = vdwg.mxu0
        %4668 = vmatprep.subr.mxu0 0.0
        %4669 = vmatpush1.msra.mxu0 0.0
        %4670 = vmatprep.subr.mxu0 0.0
        %4671 = vmatpush1.msra.mxu0 0.0
        %4672 = vmatprep.subr.mxu0 0.0
        %4673 = vmatpush1.msra.mxu0 0.0
        %4674 = vmatprep.subr.mxu0 0.0
        %4675 = vmatpush1.msra.mxu0 0.0
        %4676 = vmatprep.subr.mxu0 0.0
        %4677 = vmatpush1.msra.mxu0 0.0
        %4678 = vmatprep.subr.mxu0 0.0
        %4679 = vmatpush1.msra.mxu0 0.0
        %4680 = vmatprep.subr.mxu0 0.0
        %4681 = vmatpush1.msra.mxu0 0.0
        %4682 = vmatprep.subr.mxu0 0.0
        %4683 = vmatpush1.msra.mxu0 0.0
        %4684 = vmatprep.subr.mxu0 0.0
        %4685 = vmatpush1.msra.mxu0 0.0
        %4686 = vmatprep.subr.mxu0 0.0
        %4687 = vmatpush1.msra.mxu0 0.0
        %4688 = vmatprep.subr.mxu0 0.0
        %4689 = vmatpush1.msra.mxu0 0.0
        %4690 = vmatprep.subr.mxu0 0.0
        %4691 = vmatpush1.msra.mxu0 0.0
        %4692 = vmatprep.subr.mxu0 0.0
        %4693 = vmatpush1.msra.mxu0 %v4582
        %4694 = vmatprep.subr.mxu0 0.0
        %4695 = vmatpush1.msra.mxu0 %v4172
        %4696 = vmatprep.subr.mxu0 0.0
        %4697 = vmatpush1.msra.mxu0 %v3509
        %4698 = vmatprep.subr.mxu0 0.0
        %4699 = vmatpush1.msra.mxu0 %v2595
        %4700 = vmatprep.subr.mxu0 0.0
        %4701 = vmatpush2.msra.mxu0 0.0
        %4702 = vmatprep.subr.mxu0 0.0
        %4703 = vmatpush2.msra.mxu0 0.0
        %4704 = vmatprep.subr.mxu0 0.0
        %4705 = vmatpush2.msra.mxu0 0.0
        %4706 = vmatprep.subr.mxu0 0.0
        %4707 = vmatpush2.msra.mxu0 0.0
        %4708 = vmatprep.subr.mxu0 0.0
        %4709 = vmatpush2.msra.mxu0 0.0
        %4710 = vmatprep.subr.mxu0 0.0
        %4711 = vmatpush2.msra.mxu0 0.0
        %4712 = vmatprep.subr.mxu0 0.0
        %4713 = vmatpush2.msra.mxu0 0.0
        %4714 = vmatprep.subr.mxu0 0.0
        %4715 = vmatpush2.msra.mxu0 0.0
        %4716 = vmatprep.subr.mxu0 0.0
        %4717 = vmatpush2.msra.mxu0 0.0
        %4718 = vmatprep.subr.mxu0 0.0
        %4719 = vmatpush2.msra.mxu0 0.0
        %4720 = vmatprep.subr.mxu0 0.0
        %4721 = vmatpush2.msra.mxu0 0.0
        %4722 = vmatprep.subr.mxu0 0.0
        %4723 = vmatpush2.msra.mxu0 0.0
        %4724 = vmatprep.subr.mxu0 0.0
        %4725 = vmatpush2.msra.mxu0 0.0
        %4726 = vmatprep.subr.mxu0 0.0
        %4727 = vmatpush2.msra.mxu0 0.0
        %4728 = vmatprep.subr.mxu0 0.0
        %4729 = vmatpush2.msra.mxu0 0.0
        %4730 = vmatprep.subr.mxu0 0.0
        %4731 = vmatpush2.msra.mxu0 0.0
        %4732 = vmatprep.mubr.f32.mxu0 0.0
        %4733 = vmatmul.mubr.f32.gmra.mxu0 %v4595
        %v4734 = vpop.f32.mrf.mxu0
        %v4735 = vadd.f32 %v4592, %v4734
        %v4736 = vpop.f32.mrf.mxu0
        %4737 = vdwg.mxu0
        %v4738 = vmul.f32 %v4664, %v658
        %v4739 = vmul.f32 %v4666, %v662
        %v4740 = vmul.f32 %v4735, %v666
        %v4741 = vadd.f32 %v4738, %v1572
        %v4742 = vadd.f32 %v4739, %v1573
        %v4743 = vadd.f32 %v4740, %v1574
        %s4744 = smul.u32 %s1567, 8
        %s4745 = sshra.s32 %s4744, 3
        %s4746 = sand.u32 %s4744, 7
        %s4747 = smul.u32 %s4745, 3
        %s4748 = smul.addr %s4747, 8
        %s4749 = scalar_lea.vmem [#allocation6], %s4748
        %4750 = vst [vmem:[%s4749] sm:$0xff] %v4741
        %4751 = vst [vmem:[%s4749 + $0x8] sm:$0xff] %v4742
        %4752 = vst [vmem:[%s4749 + $0x10] sm:$0xff] %v4743
      $region109: #{metafpn1_forward.3} parent=99 // loop_footer
        %s1571 = sadd.s32 1, %s1567
      $region110: #{metafpn1_forward.3} parent=99 // loop_footer_branch
        %1566 = sbr.rel target = $region106
      $region111: #{metafpn1_forward.3} parent=99 // loop_exit
        _
      %v4753 = vld [vmem:[%s12] sm:$0xff]
      %v4754 = vld [vmem:[#allocation6] sm:$0xff]
      %v4755 = vld [vmem:[#allocation6 + $0x8] sm:$0xff]
      %v4756 = vld [vmem:[#allocation6 + $0x10] sm:$0xff]
      %v4757 = vld [vmem:[#allocation6 + $0x18] sm:$0xff]
      %v4758 = vld [vmem:[#allocation6 + $0x20] sm:$0xff]
      %v4759 = vld [vmem:[#allocation6 + $0x28] sm:$0xff]
      %v4760 = vld [vmem:[#allocation6 + $0x30] sm:$0xff]
      %v4761 = vld [vmem:[#allocation6 + $0x38] sm:$0xff]
      %v4762 = vld [vmem:[#allocation6 + $0x40] sm:$0xff]
      %v4763 = vld [vmem:[#allocation6 + $0x48] sm:$0xff]
      %v4764 = vld [vmem:[#allocation6 + $0x50] sm:$0xff]
      %v4765 = vld [vmem:[#allocation6 + $0x58] sm:$0xff]
      %v4766 = vld [vmem:[%s13] sm:$0xff]
      %4768 = vset.pattern.permute.xlu0 0
      %4769 = vperm.xlu0 %4768, %v4766
      %v4770 = vpop.permute.xlu0 %4769
      %vm4772 = vcmask 261120
      %v4774 = vsel %vm4772, %v4753, 0
      %4776 = vmatprep.subr.mxu0 0.0
      %4777 = vmatpush1.msra.mxu0 0.0
      %4778 = vmatprep.subr.mxu0 0.0
      %4779 = vmatpush1.msra.mxu0 0.0
      %4780 = vmatprep.subr.mxu0 0.0
      %4781 = vmatpush1.msra.mxu0 0.0
      %4782 = vmatprep.subr.mxu0 0.0
      %4783 = vmatpush1.msra.mxu0 0.0
      %4784 = vmatprep.subr.mxu0 0.0
      %4785 = vmatpush1.msra.mxu0 0.0
      %4786 = vmatprep.subr.mxu0 0.0
      %4787 = vmatpush1.msra.mxu0 0.0
      %4788 = vmatprep.subr.mxu0 0.0
      %4789 = vmatpush1.msra.mxu0 0.0
      %4790 = vmatprep.subr.mxu0 0.0
      %4791 = vmatpush1.msra.mxu0 0.0
      %4792 = vmatprep.subr.mxu0 0.0
      %4793 = vmatpush1.msra.mxu0 0.0
      %4794 = vmatprep.subr.mxu0 0.0
      %4795 = vmatpush1.msra.mxu0 0.0
      %4796 = vmatprep.subr.mxu0 0.0
      %4797 = vmatpush1.msra.mxu0 0.0
      %4798 = vmatprep.subr.mxu0 0.0
      %4799 = vmatpush1.msra.mxu0 0.0
      %4800 = vmatprep.subr.mxu0 %v4764
      %4801 = vmatpush1.msra.mxu0 %v4763
      %4802 = vmatprep.subr.mxu0 %v4761
      %4803 = vmatpush1.msra.mxu0 %v4760
      %4804 = vmatprep.subr.mxu0 %v4758
      %4805 = vmatpush1.msra.mxu0 %v4757
      %4806 = vmatprep.subr.mxu0 %v4755
      %4807 = vmatpush1.msra.mxu0 %v4754
      %4808 = vmatprep.subr.mxu0 0.0
      %4809 = vmatpush2.msra.mxu0 0.0
      %4810 = vmatprep.subr.mxu0 0.0
      %4811 = vmatpush2.msra.mxu0 0.0
      %4812 = vmatprep.subr.mxu0 0.0
      %4813 = vmatpush2.msra.mxu0 0.0
      %4814 = vmatprep.subr.mxu0 0.0
      %4815 = vmatpush2.msra.mxu0 0.0
      %4816 = vmatprep.subr.mxu0 0.0
      %4817 = vmatpush2.msra.mxu0 0.0
      %4818 = vmatprep.subr.mxu0 0.0
      %4819 = vmatpush2.msra.mxu0 0.0
      %4820 = vmatprep.subr.mxu0 0.0
      %4821 = vmatpush2.msra.mxu0 0.0
      %4822 = vmatprep.subr.mxu0 0.0
      %4823 = vmatpush2.msra.mxu0 0.0
      %4824 = vmatprep.subr.mxu0 0.0
      %4825 = vmatpush2.msra.mxu0 0.0
      %4826 = vmatprep.subr.mxu0 0.0
      %4827 = vmatpush2.msra.mxu0 0.0
      %4828 = vmatprep.subr.mxu0 0.0
      %4829 = vmatpush2.msra.mxu0 0.0
      %4830 = vmatprep.subr.mxu0 0.0
      %4831 = vmatpush2.msra.mxu0 0.0
      %4832 = vmatprep.subr.mxu0 0.0
      %4833 = vmatpush2.msra.mxu0 0.0
      %4834 = vmatprep.subr.mxu0 0.0
      %4835 = vmatpush2.msra.mxu0 0.0
      %4836 = vmatprep.subr.mxu0 0.0
      %4837 = vmatpush2.msra.mxu0 0.0
      %4838 = vmatprep.subr.mxu0 0.0
      %4839 = vmatpush2.msra.mxu0 0.0
      %4840 = vmatprep.mubr.f32.mxu0 0.0
      %4841 = vmatmul.mubr.f32.gmra.mxu0 %v4774
      %v4842 = vpop.f32.mrf.mxu0
      %v4843 = vadd.f32 %v4770, %v4842
      %v4844 = vpop.f32.mrf.mxu0
      %v4845 = vadd.f32 %v4770, %v4844
      %4846 = vdwg.mxu0
      %4847 = vmatprep.subr.mxu0 0.0
      %4848 = vmatpush1.msra.mxu0 0.0
      %4849 = vmatprep.subr.mxu0 0.0
      %4850 = vmatpush1.msra.mxu0 0.0
      %4851 = vmatprep.subr.mxu0 0.0
      %4852 = vmatpush1.msra.mxu0 0.0
      %4853 = vmatprep.subr.mxu0 0.0
      %4854 = vmatpush1.msra.mxu0 0.0
      %4855 = vmatprep.subr.mxu0 0.0
      %4856 = vmatpush1.msra.mxu0 0.0
      %4857 = vmatprep.subr.mxu0 0.0
      %4858 = vmatpush1.msra.mxu0 0.0
      %4859 = vmatprep.subr.mxu0 0.0
      %4860 = vmatpush1.msra.mxu0 0.0
      %4861 = vmatprep.subr.mxu0 0.0
      %4862 = vmatpush1.msra.mxu0 0.0
      %4863 = vmatprep.subr.mxu0 0.0
      %4864 = vmatpush1.msra.mxu0 0.0
      %4865 = vmatprep.subr.mxu0 0.0
      %4866 = vmatpush1.msra.mxu0 0.0
      %4867 = vmatprep.subr.mxu0 0.0
      %4868 = vmatpush1.msra.mxu0 0.0
      %4869 = vmatprep.subr.mxu0 0.0
      %4870 = vmatpush1.msra.mxu0 0.0
      %4871 = vmatprep.subr.mxu0 0.0
      %4872 = vmatpush1.msra.mxu0 %v4765
      %4873 = vmatprep.subr.mxu0 0.0
      %4874 = vmatpush1.msra.mxu0 %v4762
      %4875 = vmatprep.subr.mxu0 0.0
      %4876 = vmatpush1.msra.mxu0 %v4759
      %4877 = vmatprep.subr.mxu0 0.0
      %4878 = vmatpush1.msra.mxu0 %v4756
      %4879 = vmatprep.subr.mxu0 0.0
      %4880 = vmatpush2.msra.mxu0 0.0
      %4881 = vmatprep.subr.mxu0 0.0
      %4882 = vmatpush2.msra.mxu0 0.0
      %4883 = vmatprep.subr.mxu0 0.0
      %4884 = vmatpush2.msra.mxu0 0.0
      %4885 = vmatprep.subr.mxu0 0.0
      %4886 = vmatpush2.msra.mxu0 0.0
      %4887 = vmatprep.subr.mxu0 0.0
      %4888 = vmatpush2.msra.mxu0 0.0
      %4889 = vmatprep.subr.mxu0 0.0
      %4890 = vmatpush2.msra.mxu0 0.0
      %4891 = vmatprep.subr.mxu0 0.0
      %4892 = vmatpush2.msra.mxu0 0.0
      %4893 = vmatprep.subr.mxu0 0.0
      %4894 = vmatpush2.msra.mxu0 0.0
      %4895 = vmatprep.subr.mxu0 0.0
      %4896 = vmatpush2.msra.mxu0 0.0
      %4897 = vmatprep.subr.mxu0 0.0
      %4898 = vmatpush2.msra.mxu0 0.0
      %4899 = vmatprep.subr.mxu0 0.0
      %4900 = vmatpush2.msra.mxu0 0.0
      %4901 = vmatprep.subr.mxu0 0.0
      %4902 = vmatpush2.msra.mxu0 0.0
      %4903 = vmatprep.subr.mxu0 0.0
      %4904 = vmatpush2.msra.mxu0 0.0
      %4905 = vmatprep.subr.mxu0 0.0
      %4906 = vmatpush2.msra.mxu0 0.0
      %4907 = vmatprep.subr.mxu0 0.0
      %4908 = vmatpush2.msra.mxu0 0.0
      %4909 = vmatprep.subr.mxu0 0.0
      %4910 = vmatpush2.msra.mxu0 0.0
      %4911 = vmatprep.mubr.f32.mxu0 0.0
      %4912 = vmatmul.mubr.f32.gmra.mxu0 %v4774
      %v4913 = vpop.f32.mrf.mxu0
      %v4914 = vadd.f32 %v4770, %v4913
      %v4915 = vpop.f32.mrf.mxu0
      %4916 = vdwg.mxu0
      %v4917 = vmul.f32 %v4843, %v658
      %v4918 = vmul.f32 %v4845, %v662
      %v4919 = vmul.f32 %v4914, %v666
      %4920 = vst [vmem:[#allocation3] sm:$0xff] %v4917
      %4921 = vst [vmem:[#allocation3 + $0x8] sm:$0xff] %v4918
      %4922 = vst [vmem:[#allocation3 + $0x10] sm:$0xff] %v4919
      %4923 = vrot.lane.b32.xlu0 %v4917, 19
      %v4924 = vpop.permute.xlu0 %4923
      %4925 = vrot.lane.b32.xlu0 %v4918, 19
      %v4926 = vpop.permute.xlu0 %4925
      %4927 = vrot.lane.b32.xlu0 %v4919, 19
      %v4928 = vpop.permute.xlu0 %4927
      %v4929 = vlaneseq
      %v4930 = vand.u32 %v4929, 127
      %vm4931 = vcmp.lt.s32.totalorder %v4930, 19
      %v4932 = vsel %vm4931, %v4926, %v4928
      %v4933 = vsel %vm4931, %v4924, %v4926
      %v4934 = vsel %vm4931, %v4928, %v4924
      %4935 = vst [vmem:[#allocation5] sm:$0xff] %v4934
      %4936 = vst [vmem:[#allocation5 + $0x8] sm:$0xff] %v4933
      %4937 = vst [vmem:[#allocation5 + $0x10] sm:$0xff] %v4932
      %4938 = vrot.lane.b32.xlu0 %v4917, 18
      %v4939 = vpop.permute.xlu0 %4938
      %4940 = vrot.lane.b32.xlu0 %v4918, 18
      %v4941 = vpop.permute.xlu0 %4940
      %4942 = vrot.lane.b32.xlu0 %v4919, 18
      %v4943 = vpop.permute.xlu0 %4942
      %vm4944 = vcmp.lt.s32.totalorder %v4930, 18
      %v4945 = vsel %vm4944, %v4941, %v4943
      %v4946 = vsel %vm4944, %v4939, %v4941
      %v4947 = vsel %vm4944, %v4943, %v4939
      %4948 = vst [vmem:[#allocation5 + $0x18] sm:$0xff] %v4947
      %4949 = vst [vmem:[#allocation5 + $0x20] sm:$0xff] %v4946
      %4950 = vst [vmem:[#allocation5 + $0x28] sm:$0xff] %v4945
      %4951 = vrot.lane.b32.xlu0 %v4917, 17
      %v4952 = vpop.permute.xlu0 %4951
      %4953 = vrot.lane.b32.xlu0 %v4918, 17
      %v4954 = vpop.permute.xlu0 %4953
      %4955 = vrot.lane.b32.xlu0 %v4919, 17
      %v4956 = vpop.permute.xlu0 %4955
      %vm4957 = vcmp.lt.s32.totalorder %v4930, 17
      %v4958 = vsel %vm4957, %v4954, %v4956
      %v4959 = vsel %vm4957, %v4952, %v4954
      %v4960 = vsel %vm4957, %v4956, %v4952
      %4961 = vst [vmem:[#allocation5 + $0x30] sm:$0xff] %v4960
      %4962 = vst [vmem:[#allocation5 + $0x38] sm:$0xff] %v4959
      %4963 = vst [vmem:[#allocation5 + $0x40] sm:$0xff] %v4958
      %4964 = vrot.lane.b32.xlu0 %v4917, 1
      %v4965 = vpop.permute.xlu0 %4964
      %4966 = vrot.lane.b32.xlu0 %v4918, 1
      %v4967 = vpop.permute.xlu0 %4966
      %4968 = vrot.lane.b32.xlu0 %v4919, 1
      %v4969 = vpop.permute.xlu0 %4968
      %vm4970 = vcmp.lt.s32.totalorder %v4930, 1
      %v4971 = vsel %vm4970, %v4967, %v4969
      %v4972 = vsel %vm4970, %v4965, %v4967
      %v4973 = vsel %vm4970, %v4969, %v4965
      %4974 = vst [vmem:[#allocation5 + $0x48] sm:$0xff] %v4973
      %4975 = vst [vmem:[#allocation5 + $0x50] sm:$0xff] %v4972
      %4976 = vst [vmem:[#allocation5 + $0x58] sm:$0xff] %v4971
      %4977 = vst [vmem:[#allocation5 + $0x60] sm:$0xff] %v4917
      %4978 = vst [vmem:[#allocation5 + $0x68] sm:$0xff] %v4918
      %4979 = vst [vmem:[#allocation5 + $0x70] sm:$0xff] %v4919
      %4980 = vrot.lane.b32.xlu0 %v4917, 127
      %v4981 = vpop.permute.xlu0 %4980
      %4982 = vrot.lane.b32.xlu0 %v4918, 127
      %v4983 = vpop.permute.xlu0 %4982
      %4984 = vrot.lane.b32.xlu0 %v4919, 127
      %v4985 = vpop.permute.xlu0 %4984
      %vm4986 = vcmp.lt.s32.totalorder %v4930, 127
      %v4987 = vsel %vm4986, %v4983, %v4985
      %v4988 = vsel %vm4986, %v4981, %v4983
      %v4989 = vsel %vm4986, %v4985, %v4981
      %4990 = vst [vmem:[#allocation5 + $0x78] sm:$0xff] %v4988
      %4991 = vst [vmem:[#allocation5 + $0x80] sm:$0xff] %v4987
      %4992 = vst [vmem:[#allocation5 + $0x88] sm:$0xff] %v4989
      %4993 = vrot.lane.b32.xlu0 %v4917, 111
      %v4994 = vpop.permute.xlu0 %4993
      %4995 = vrot.lane.b32.xlu0 %v4918, 111
      %v4996 = vpop.permute.xlu0 %4995
      %4997 = vrot.lane.b32.xlu0 %v4919, 111
      %v4998 = vpop.permute.xlu0 %4997
      %vm4999 = vcmp.lt.s32.totalorder %v4930, 111
      %v5000 = vsel %vm4999, %v4996, %v4998
      %v5001 = vsel %vm4999, %v4994, %v4996
      %v5002 = vsel %vm4999, %v4998, %v4994
      %5003 = vst [vmem:[#allocation5 + $0x90] sm:$0xff] %v5001
      %5004 = vst [vmem:[#allocation5 + $0x98] sm:$0xff] %v5000
      %5005 = vst [vmem:[#allocation5 + $0xa0] sm:$0xff] %v5002
      %5006 = vrot.lane.b32.xlu0 %v4917, 110
      %v5007 = vpop.permute.xlu0 %5006
      %5008 = vrot.lane.b32.xlu0 %v4918, 110
      %v5009 = vpop.permute.xlu0 %5008
      %5010 = vrot.lane.b32.xlu0 %v4919, 110
      %v5011 = vpop.permute.xlu0 %5010
      %vm5012 = vcmp.lt.s32.totalorder %v4930, 110
      %v5013 = vsel %vm5012, %v5009, %v5011
      %v5014 = vsel %vm5012, %v5007, %v5009
      %v5015 = vsel %vm5012, %v5011, %v5007
      %5016 = vst [vmem:[#allocation5 + $0xa8] sm:$0xff] %v5014
      %5017 = vst [vmem:[#allocation5 + $0xb0] sm:$0xff] %v5013
      %5018 = vst [vmem:[#allocation5 + $0xb8] sm:$0xff] %v5015
      %5019 = vrot.lane.b32.xlu0 %v4917, 109
      %v5020 = vpop.permute.xlu0 %5019
      %5021 = vrot.lane.b32.xlu0 %v4918, 109
      %v5022 = vpop.permute.xlu0 %5021
      %5023 = vrot.lane.b32.xlu0 %v4919, 109
      %v5024 = vpop.permute.xlu0 %5023
      %vm5025 = vcmp.lt.s32.totalorder %v4930, 109
      %v5026 = vsel %vm5025, %v5022, %v5024
      %v5027 = vsel %vm5025, %v5020, %v5022
      %v5028 = vsel %vm5025, %v5024, %v5020
      %5029 = vst [vmem:[#allocation5 + $0xc0] sm:$0xff] %v5027
      %5030 = vst [vmem:[#allocation5 + $0xc8] sm:$0xff] %v5026
      %5031 = vst [vmem:[#allocation5 + $0xd0] sm:$0xff] %v5028
      %v5032 = vld [vmem:[#allocation5] sm:$0xff]
      %v5033 = vld [vmem:[#allocation5 + $0x8] sm:$0xff]
      %v5034 = vld [vmem:[#allocation5 + $0x10] sm:$0xff]
      %v5035 = vld [vmem:[#allocation5 + $0x18] sm:$0xff]
      %v5036 = vld [vmem:[#allocation5 + $0x20] sm:$0xff]
      %v5037 = vld [vmem:[#allocation5 + $0x28] sm:$0xff]
      %v5038 = vld [vmem:[#allocation5 + $0x30] sm:$0xff]
      %v5039 = vld [vmem:[#allocation5 + $0x38] sm:$0xff]
      %v5040 = vld [vmem:[#allocation5 + $0x40] sm:$0xff]
      %v5041 = vld [vmem:[#allocation5 + $0x48] sm:$0xff]
      %v5042 = vld [vmem:[#allocation5 + $0x50] sm:$0xff]
      %v5043 = vld [vmem:[#allocation5 + $0x58] sm:$0xff]
      %v5044 = vld [vmem:[#allocation5 + $0x60] sm:$0xff]
      %v5045 = vld [vmem:[#allocation5 + $0x68] sm:$0xff]
      %v5046 = vld [vmem:[#allocation5 + $0x70] sm:$0xff]
      %v5047 = vld [vmem:[#allocation5 + $0x78] sm:$0xff]
      %v5048 = vld [vmem:[#allocation5 + $0x80] sm:$0xff]
      %v5049 = vld [vmem:[#allocation5 + $0x88] sm:$0xff]
      %v5050 = vld [vmem:[#allocation5 + $0x90] sm:$0xff]
      %v5051 = vld [vmem:[#allocation5 + $0x98] sm:$0xff]
      %v5052 = vld [vmem:[#allocation5 + $0xa0] sm:$0xff]
      %v5053 = vld [vmem:[#allocation5 + $0xa8] sm:$0xff]
      %v5054 = vld [vmem:[#allocation5 + $0xb0] sm:$0xff]
      %v5055 = vld [vmem:[#allocation5 + $0xb8] sm:$0xff]
      %v5056 = vld [vmem:[#allocation5 + $0xc0] sm:$0xff]
      %v5057 = vld [vmem:[#allocation5 + $0xc8] sm:$0xff]
      %v5058 = vld [vmem:[#allocation5 + $0xd0] sm:$0xff]
      %v5059 = vld [vmem:[%s2] sm:$0xff]
      %v5060 = vld [vmem:[%s2 + $0x8] sm:$0xff]
      %v5061 = vld [vmem:[%s2 + $0x10] sm:$0xff]
      %v5062 = vld [vmem:[%s2 + $0x18] sm:$0xff]
      %v5063 = vld [vmem:[%s2 + $0x20] sm:$0xff]
      %v5064 = vld [vmem:[%s2 + $0x28] sm:$0xff]
      %v5065 = vld [vmem:[%s2 + $0x30] sm:$0xff]
      %v5066 = vld [vmem:[%s2 + $0x38] sm:$0xff]
      %v5067 = vld [vmem:[%s2 + $0x40] sm:$0xff]
      %v5068 = vld [vmem:[%s2 + $0x48] sm:$0xff]
      %v5069 = vld [vmem:[%s2 + $0x50] sm:$0xff]
      %v5070 = vld [vmem:[%s2 + $0x58] sm:$0xff]
      %v5071 = vld [vmem:[%s2 + $0x60] sm:$0xff]
      %v5072 = vld [vmem:[%s2 + $0x68] sm:$0xff]
      %v5073 = vld [vmem:[%s2 + $0x70] sm:$0xff]
      %v5074 = vld [vmem:[%s2 + $0x78] sm:$0xff]
      %v5075 = vld [vmem:[%s2 + $0x80] sm:$0xff]
      %v5076 = vld [vmem:[%s2 + $0x88] sm:$0xff]
      %v5077 = vld [vmem:[%s2 + $0x90] sm:$0xff]
      %v5078 = vld [vmem:[%s2 + $0x98] sm:$0xff]
      %v5079 = vld [vmem:[%s2 + $0xa0] sm:$0xff]
      %v5080 = vld [vmem:[%s2 + $0xa8] sm:$0xff]
      %v5081 = vld [vmem:[%s2 + $0xb0] sm:$0xff]
      %v5082 = vld [vmem:[%s2 + $0xb8] sm:$0xff]
      %v5083 = vld [vmem:[%s2 + $0xc0] sm:$0xff]
      %v5084 = vld [vmem:[%s2 + $0xc8] sm:$0xff]
      %v5085 = vld [vmem:[%s2 + $0xd0] sm:$0xff]
      %v5086 = vmul.f32 %v5032, %v5059
      %v5087 = vmul.f32 %v5033, %v5060
      %v5088 = vmul.f32 %v5034, %v5061
      %v5089 = vmul.f32 %v5035, %v5062
      %v5090 = vmul.f32 %v5036, %v5063
      %v5091 = vmul.f32 %v5037, %v5064
      %v5092 = vmul.f32 %v5038, %v5065
      %v5093 = vmul.f32 %v5039, %v5066
      %v5094 = vmul.f32 %v5040, %v5067
      %v5095 = vmul.f32 %v5041, %v5068
      %v5096 = vmul.f32 %v5042, %v5069
      %v5097 = vmul.f32 %v5043, %v5070
      %v5098 = vmul.f32 %v5044, %v5071
      %v5099 = vmul.f32 %v5045, %v5072
      %v5100 = vmul.f32 %v5046, %v5073
      %v5101 = vmul.f32 %v5047, %v5074
      %v5102 = vmul.f32 %v5048, %v5075
      %v5103 = vmul.f32 %v5049, %v5076
      %v5104 = vmul.f32 %v5050, %v5077
      %v5105 = vmul.f32 %v5051, %v5078
      %v5106 = vmul.f32 %v5052, %v5079
      %v5107 = vmul.f32 %v5053, %v5080
      %v5108 = vmul.f32 %v5054, %v5081
      %v5109 = vmul.f32 %v5055, %v5082
      %v5110 = vmul.f32 %v5056, %v5083
      %v5111 = vmul.f32 %v5057, %v5084
      %v5112 = vmul.f32 %v5058, %v5085
      %v5113 = vadd.f32 %v5086, %v5089
      %v5114 = vadd.f32 %v5113, %v5092
      %v5115 = vadd.f32 %v5114, %v5095
      %v5116 = vadd.f32 %v5115, %v5098
      %v5117 = vadd.f32 %v5116, %v5101
      %v5118 = vadd.f32 %v5117, %v5104
      %v5119 = vadd.f32 %v5118, %v5107
      %v5120 = vadd.f32 %v5119, %v5110
      %v5121 = vrot.slane %v5120, 4
      %v5122 = vadd.f32 %v5120, %v5121
      %v5123 = vrot.slane %v5122, 2
      %v5124 = vadd.f32 %v5122, %v5123
      %v5125 = vrot.slane %v5124, 1
      %v5126 = vadd.f32 %v5124, %v5125
      %v5127 = vadd.f32 %v5087, %v5090
      %v5128 = vadd.f32 %v5127, %v5093
      %v5129 = vadd.f32 %v5128, %v5096
      %v5130 = vadd.f32 %v5129, %v5099
      %v5131 = vadd.f32 %v5130, %v5102
      %v5132 = vadd.f32 %v5131, %v5105
      %v5133 = vadd.f32 %v5132, %v5108
      %v5134 = vadd.f32 %v5133, %v5111
      %v5135 = vrot.slane %v5134, 4
      %v5136 = vadd.f32 %v5134, %v5135
      %v5137 = vrot.slane %v5136, 2
      %v5138 = vadd.f32 %v5136, %v5137
      %v5139 = vrot.slane %v5138, 1
      %v5140 = vadd.f32 %v5138, %v5139
      %v5141 = vadd.f32 %v5088, %v5091
      %v5142 = vadd.f32 %v5141, %v5094
      %v5143 = vadd.f32 %v5142, %v5097
      %v5144 = vadd.f32 %v5143, %v5100
      %v5145 = vadd.f32 %v5144, %v5103
      %v5146 = vadd.f32 %v5145, %v5106
      %v5147 = vadd.f32 %v5146, %v5109
      %v5148 = vadd.f32 %v5147, %v5112
      %v5149 = vrot.slane %v5148, 4
      %v5150 = vadd.f32 %v5148, %v5149
      %v5151 = vrot.slane %v5150, 2
      %v5152 = vadd.f32 %v5150, %v5151
      %v5153 = vrot.slane %v5152, 1
      %v5154 = vadd.f32 %v5152, %v5153
      %s5155 = scalar_lea.vmem %s2, 216
      %v5156 = vld [vmem:[%s5155] sm:$0xff]
      %v5157 = vld [vmem:[%s5155 + $0x8] sm:$0xff]
      %v5158 = vld [vmem:[%s5155 + $0x10] sm:$0xff]
      %v5159 = vld [vmem:[%s5155 + $0x18] sm:$0xff]
      %v5160 = vld [vmem:[%s5155 + $0x20] sm:$0xff]
      %v5161 = vld [vmem:[%s5155 + $0x28] sm:$0xff]
      %v5162 = vld [vmem:[%s5155 + $0x30] sm:$0xff]
      %v5163 = vld [vmem:[%s5155 + $0x38] sm:$0xff]
      %v5164 = vld [vmem:[%s5155 + $0x40] sm:$0xff]
      %v5165 = vld [vmem:[%s5155 + $0x48] sm:$0xff]
      %v5166 = vld [vmem:[%s5155 + $0x50] sm:$0xff]
      %v5167 = vld [vmem:[%s5155 + $0x58] sm:$0xff]
      %v5168 = vld [vmem:[%s5155 + $0x60] sm:$0xff]
      %v5169 = vld [vmem:[%s5155 + $0x68] sm:$0xff]
      %v5170 = vld [vmem:[%s5155 + $0x70] sm:$0xff]
      %v5171 = vld [vmem:[%s5155 + $0x78] sm:$0xff]
      %v5172 = vld [vmem:[%s5155 + $0x80] sm:$0xff]
      %v5173 = vld [vmem:[%s5155 + $0x88] sm:$0xff]
      %v5174 = vld [vmem:[%s5155 + $0x90] sm:$0xff]
      %v5175 = vld [vmem:[%s5155 + $0x98] sm:$0xff]
      %v5176 = vld [vmem:[%s5155 + $0xa0] sm:$0xff]
      %v5177 = vld [vmem:[%s5155 + $0xa8] sm:$0xff]
      %v5178 = vld [vmem:[%s5155 + $0xb0] sm:$0xff]
      %v5179 = vld [vmem:[%s5155 + $0xb8] sm:$0xff]
      %v5180 = vld [vmem:[%s5155 + $0xc0] sm:$0xff]
      %v5181 = vld [vmem:[%s5155 + $0xc8] sm:$0xff]
      %v5182 = vld [vmem:[%s5155 + $0xd0] sm:$0xff]
      %v5183 = vmul.f32 %v5032, %v5156
      %v5184 = vmul.f32 %v5033, %v5157
      %v5185 = vmul.f32 %v5034, %v5158
      %v5186 = vmul.f32 %v5035, %v5159
      %v5187 = vmul.f32 %v5036, %v5160
      %v5188 = vmul.f32 %v5037, %v5161
      %v5189 = vmul.f32 %v5038, %v5162
      %v5190 = vmul.f32 %v5039, %v5163
      %v5191 = vmul.f32 %v5040, %v5164
      %v5192 = vmul.f32 %v5041, %v5165
      %v5193 = vmul.f32 %v5042, %v5166
      %v5194 = vmul.f32 %v5043, %v5167
      %v5195 = vmul.f32 %v5044, %v5168
      %v5196 = vmul.f32 %v5045, %v5169
      %v5197 = vmul.f32 %v5046, %v5170
      %v5198 = vmul.f32 %v5047, %v5171
      %v5199 = vmul.f32 %v5048, %v5172
      %v5200 = vmul.f32 %v5049, %v5173
      %v5201 = vmul.f32 %v5050, %v5174
      %v5202 = vmul.f32 %v5051, %v5175
      %v5203 = vmul.f32 %v5052, %v5176
      %v5204 = vmul.f32 %v5053, %v5177
      %v5205 = vmul.f32 %v5054, %v5178
      %v5206 = vmul.f32 %v5055, %v5179
      %v5207 = vmul.f32 %v5056, %v5180
      %v5208 = vmul.f32 %v5057, %v5181
      %v5209 = vmul.f32 %v5058, %v5182
      %v5210 = vadd.f32 %v5183, %v5186
      %v5211 = vadd.f32 %v5210, %v5189
      %v5212 = vadd.f32 %v5211, %v5192
      %v5213 = vadd.f32 %v5212, %v5195
      %v5214 = vadd.f32 %v5213, %v5198
      %v5215 = vadd.f32 %v5214, %v5201
      %v5216 = vadd.f32 %v5215, %v5204
      %v5217 = vadd.f32 %v5216, %v5207
      %v5218 = vrot.slane %v5217, 4
      %v5219 = vadd.f32 %v5217, %v5218
      %v5220 = vrot.slane %v5219, 2
      %v5221 = vadd.f32 %v5219, %v5220
      %v5222 = vrot.slane %v5221, 1
      %v5223 = vadd.f32 %v5221, %v5222
      %v5224 = vadd.f32 %v5184, %v5187
      %v5225 = vadd.f32 %v5224, %v5190
      %v5226 = vadd.f32 %v5225, %v5193
      %v5227 = vadd.f32 %v5226, %v5196
      %v5228 = vadd.f32 %v5227, %v5199
      %v5229 = vadd.f32 %v5228, %v5202
      %v5230 = vadd.f32 %v5229, %v5205
      %v5231 = vadd.f32 %v5230, %v5208
      %v5232 = vrot.slane %v5231, 4
      %v5233 = vadd.f32 %v5231, %v5232
      %v5234 = vrot.slane %v5233, 2
      %v5235 = vadd.f32 %v5233, %v5234
      %v5236 = vrot.slane %v5235, 1
      %v5237 = vadd.f32 %v5235, %v5236
      %v5238 = vadd.f32 %v5185, %v5188
      %v5239 = vadd.f32 %v5238, %v5191
      %v5240 = vadd.f32 %v5239, %v5194
      %v5241 = vadd.f32 %v5240, %v5197
      %v5242 = vadd.f32 %v5241, %v5200
      %v5243 = vadd.f32 %v5242, %v5203
      %v5244 = vadd.f32 %v5243, %v5206
      %v5245 = vadd.f32 %v5244, %v5209
      %v5246 = vrot.slane %v5245, 4
      %v5247 = vadd.f32 %v5245, %v5246
      %v5248 = vrot.slane %v5247, 2
      %v5249 = vadd.f32 %v5247, %v5248
      %v5250 = vrot.slane %v5249, 1
      %v5251 = vadd.f32 %v5249, %v5250
      %s5252 = scalar_lea.vmem %s2, 432
      %v5253 = vld [vmem:[%s5252] sm:$0xff]
      %v5254 = vld [vmem:[%s5252 + $0x8] sm:$0xff]
      %v5255 = vld [vmem:[%s5252 + $0x10] sm:$0xff]
      %v5256 = vld [vmem:[%s5252 + $0x18] sm:$0xff]
      %v5257 = vld [vmem:[%s5252 + $0x20] sm:$0xff]
      %v5258 = vld [vmem:[%s5252 + $0x28] sm:$0xff]
      %v5259 = vld [vmem:[%s5252 + $0x30] sm:$0xff]
      %v5260 = vld [vmem:[%s5252 + $0x38] sm:$0xff]
      %v5261 = vld [vmem:[%s5252 + $0x40] sm:$0xff]
      %v5262 = vld [vmem:[%s5252 + $0x48] sm:$0xff]
      %v5263 = vld [vmem:[%s5252 + $0x50] sm:$0xff]
      %v5264 = vld [vmem:[%s5252 + $0x58] sm:$0xff]
      %v5265 = vld [vmem:[%s5252 + $0x60] sm:$0xff]
      %v5266 = vld [vmem:[%s5252 + $0x68] sm:$0xff]
      %v5267 = vld [vmem:[%s5252 + $0x70] sm:$0xff]
      %v5268 = vld [vmem:[%s5252 + $0x78] sm:$0xff]
      %v5269 = vld [vmem:[%s5252 + $0x80] sm:$0xff]
      %v5270 = vld [vmem:[%s5252 + $0x88] sm:$0xff]
      %v5271 = vld [vmem:[%s5252 + $0x90] sm:$0xff]
      %v5272 = vld [vmem:[%s5252 + $0x98] sm:$0xff]
      %v5273 = vld [vmem:[%s5252 + $0xa0] sm:$0xff]
      %v5274 = vld [vmem:[%s5252 + $0xa8] sm:$0xff]
      %v5275 = vld [vmem:[%s5252 + $0xb0] sm:$0xff]
      %v5276 = vld [vmem:[%s5252 + $0xb8] sm:$0xff]
      %v5277 = vld [vmem:[%s5252 + $0xc0] sm:$0xff]
      %v5278 = vld [vmem:[%s5252 + $0xc8] sm:$0xff]
      %v5279 = vld [vmem:[%s5252 + $0xd0] sm:$0xff]
      %v5280 = vmul.f32 %v5032, %v5253
      %v5281 = vmul.f32 %v5033, %v5254
      %v5282 = vmul.f32 %v5034, %v5255
      %v5283 = vmul.f32 %v5035, %v5256
      %v5284 = vmul.f32 %v5036, %v5257
      %v5285 = vmul.f32 %v5037, %v5258
      %v5286 = vmul.f32 %v5038, %v5259
      %v5287 = vmul.f32 %v5039, %v5260
      %v5288 = vmul.f32 %v5040, %v5261
      %v5289 = vmul.f32 %v5041, %v5262
      %v5290 = vmul.f32 %v5042, %v5263
      %v5291 = vmul.f32 %v5043, %v5264
      %v5292 = vmul.f32 %v5044, %v5265
      %v5293 = vmul.f32 %v5045, %v5266
      %v5294 = vmul.f32 %v5046, %v5267
      %v5295 = vmul.f32 %v5047, %v5268
      %v5296 = vmul.f32 %v5048, %v5269
      %v5297 = vmul.f32 %v5049, %v5270
      %v5298 = vmul.f32 %v5050, %v5271
      %v5299 = vmul.f32 %v5051, %v5272
      %v5300 = vmul.f32 %v5052, %v5273
      %v5301 = vmul.f32 %v5053, %v5274
      %v5302 = vmul.f32 %v5054, %v5275
      %v5303 = vmul.f32 %v5055, %v5276
      %v5304 = vmul.f32 %v5056, %v5277
      %v5305 = vmul.f32 %v5057, %v5278
      %v5306 = vmul.f32 %v5058, %v5279
      %v5307 = vadd.f32 %v5280, %v5283
      %v5308 = vadd.f32 %v5307, %v5286
      %v5309 = vadd.f32 %v5308, %v5289
      %v5310 = vadd.f32 %v5309, %v5292
      %v5311 = vadd.f32 %v5310, %v5295
      %v5312 = vadd.f32 %v5311, %v5298
      %v5313 = vadd.f32 %v5312, %v5301
      %v5314 = vadd.f32 %v5313, %v5304
      %v5315 = vrot.slane %v5314, 4
      %v5316 = vadd.f32 %v5314, %v5315
      %v5317 = vrot.slane %v5316, 2
      %v5318 = vadd.f32 %v5316, %v5317
      %v5319 = vrot.slane %v5318, 1
      %v5320 = vadd.f32 %v5318, %v5319
      %v5321 = vadd.f32 %v5281, %v5284
      %v5322 = vadd.f32 %v5321, %v5287
      %v5323 = vadd.f32 %v5322, %v5290
      %v5324 = vadd.f32 %v5323, %v5293
      %v5325 = vadd.f32 %v5324, %v5296
      %v5326 = vadd.f32 %v5325, %v5299
      %v5327 = vadd.f32 %v5326, %v5302
      %v5328 = vadd.f32 %v5327, %v5305
      %v5329 = vrot.slane %v5328, 4
      %v5330 = vadd.f32 %v5328, %v5329
      %v5331 = vrot.slane %v5330, 2
      %v5332 = vadd.f32 %v5330, %v5331
      %v5333 = vrot.slane %v5332, 1
      %v5334 = vadd.f32 %v5332, %v5333
      %v5335 = vadd.f32 %v5282, %v5285
      %v5336 = vadd.f32 %v5335, %v5288
      %v5337 = vadd.f32 %v5336, %v5291
      %v5338 = vadd.f32 %v5337, %v5294
      %v5339 = vadd.f32 %v5338, %v5297
      %v5340 = vadd.f32 %v5339, %v5300
      %v5341 = vadd.f32 %v5340, %v5303
      %v5342 = vadd.f32 %v5341, %v5306
      %v5343 = vrot.slane %v5342, 4
      %v5344 = vadd.f32 %v5342, %v5343
      %v5345 = vrot.slane %v5344, 2
      %v5346 = vadd.f32 %v5344, %v5345
      %v5347 = vrot.slane %v5346, 1
      %v5348 = vadd.f32 %v5346, %v5347
      %vm5349 = vcmask 1040384
      %v5350 = vsel %vm5349, %v5126, %v5223
      %v5351 = vsel %vm5349, %v5140, %v5237
      %v5352 = vsel %vm5349, %v5154, %v5251
      %vm5353 = vcmask 1041408
      %v5354 = vsel %vm5353, %v5350, %v5320
      %v5355 = vsel %vm5353, %v5351, %v5334
      %v5356 = vsel %vm5353, %v5352, %v5348
      %v5357 = vld [vmem:[%s18] sm:$0x7]
      %v5358 = vld [vmem:[#allocation4] sm:$0x77]
      %v5359 = vld [vmem:[#allocation4 + $0x8] sm:$0x7]
      %v5361 = vcombine.high %v5358, %v5358
      %v5363 = vadd.f32 %v5354, %v5358
      %v5364 = vadd.f32 %v5355, %v5361
      %v5365 = vadd.f32 %v5356, %v5359
      %v5366 = vld [vmem:[%s19] sm:$0x7]
      %5368 = vset.pattern.permute.xlu0 0
      %5369 = vperm.xlu0 %5368, %v5366
      %v5370 = vpop.permute.xlu0 %5369
      %vm5372 = vcmask 23552
      %v5374 = vsel %vm5372, %v5357, 0
      %vm5376 = vcmask 1042432
      %v5378 = vsel %vm5376, %v5363, 0
      %v5381 = vsel %vm5376, %v5364, 0
      %v5384 = vsel %vm5376, %v5365, 0
      %5386 = vmatprep.subr.mxu0 0.0
      %5387 = vmatpush1.msra.mxu0 0.0
      %5388 = vmatprep.subr.mxu0 0.0
      %5389 = vmatpush1.msra.mxu0 0.0
      %5390 = vmatprep.subr.mxu0 0.0
      %5391 = vmatpush1.msra.mxu0 0.0
      %5392 = vmatprep.subr.mxu0 0.0
      %5393 = vmatpush1.msra.mxu0 0.0
      %5394 = vmatprep.subr.mxu0 0.0
      %5395 = vmatpush1.msra.mxu0 0.0
      %5396 = vmatprep.subr.mxu0 0.0
      %5397 = vmatpush1.msra.mxu0 0.0
      %5398 = vmatprep.subr.mxu0 0.0
      %5399 = vmatpush1.msra.mxu0 0.0
      %5400 = vmatprep.subr.mxu0 0.0
      %5401 = vmatpush1.msra.mxu0 0.0
      %5402 = vmatprep.subr.mxu0 0.0
      %5403 = vmatpush1.msra.mxu0 0.0
      %5404 = vmatprep.subr.mxu0 0.0
      %5405 = vmatpush1.msra.mxu0 0.0
      %5406 = vmatprep.subr.mxu0 0.0
      %5407 = vmatpush1.msra.mxu0 0.0
      %5408 = vmatprep.subr.mxu0 0.0
      %5409 = vmatpush1.msra.mxu0 0.0
      %5410 = vmatprep.subr.mxu0 0.0
      %5411 = vmatpush1.msra.mxu0 0.0
      %5412 = vmatprep.subr.mxu0 0.0
      %5413 = vmatpush1.msra.mxu0 0.0
      %5414 = vmatprep.subr.mxu0 0.0
      %5415 = vmatpush1.msra.mxu0 0.0
      %5416 = vmatprep.subr.mxu0 %v5381
      %5417 = vmatpush1.msra.mxu0 %v5378
      %5418 = vmatprep.subr.mxu0 0.0
      %5419 = vmatpush2.msra.mxu0 0.0
      %5420 = vmatprep.subr.mxu0 0.0
      %5421 = vmatpush2.msra.mxu0 0.0
      %5422 = vmatprep.subr.mxu0 0.0
      %5423 = vmatpush2.msra.mxu0 0.0
      %5424 = vmatprep.subr.mxu0 0.0
      %5425 = vmatpush2.msra.mxu0 0.0
      %5426 = vmatprep.subr.mxu0 0.0
      %5427 = vmatpush2.msra.mxu0 0.0
      %5428 = vmatprep.subr.mxu0 0.0
      %5429 = vmatpush2.msra.mxu0 0.0
      %5430 = vmatprep.subr.mxu0 0.0
      %5431 = vmatpush2.msra.mxu0 0.0
      %5432 = vmatprep.subr.mxu0 0.0
      %5433 = vmatpush2.msra.mxu0 0.0
      %5434 = vmatprep.subr.mxu0 0.0
      %5435 = vmatpush2.msra.mxu0 0.0
      %5436 = vmatprep.subr.mxu0 0.0
      %5437 = vmatpush2.msra.mxu0 0.0
      %5438 = vmatprep.subr.mxu0 0.0
      %5439 = vmatpush2.msra.mxu0 0.0
      %5440 = vmatprep.subr.mxu0 0.0
      %5441 = vmatpush2.msra.mxu0 0.0
      %5442 = vmatprep.subr.mxu0 0.0
      %5443 = vmatpush2.msra.mxu0 0.0
      %5444 = vmatprep.subr.mxu0 0.0
      %5445 = vmatpush2.msra.mxu0 0.0
      %5446 = vmatprep.subr.mxu0 0.0
      %5447 = vmatpush2.msra.mxu0 0.0
      %5448 = vmatprep.subr.mxu0 0.0
      %5449 = vmatpush2.msra.mxu0 0.0
      %5450 = vmatprep.mubr.f32.mxu0 0.0
      %5451 = vmatmul.mubr.f32.gmra.mxu0 %v5374
      %v5452 = vpop.f32.mrf.mxu0
      %v5453 = vadd.f32 %v5370, %v5452
      %v5454 = vpop.f32.mrf.mxu0
      %v5455 = vadd.f32 %v5370, %v5454
      %5456 = vdwg.mxu0
      %5457 = vmatprep.subr.mxu0 0.0
      %5458 = vmatpush1.msra.mxu0 0.0
      %5459 = vmatprep.subr.mxu0 0.0
      %5460 = vmatpush1.msra.mxu0 0.0
      %5461 = vmatprep.subr.mxu0 0.0
      %5462 = vmatpush1.msra.mxu0 0.0
      %5463 = vmatprep.subr.mxu0 0.0
      %5464 = vmatpush1.msra.mxu0 0.0
      %5465 = vmatprep.subr.mxu0 0.0
      %5466 = vmatpush1.msra.mxu0 0.0
      %5467 = vmatprep.subr.mxu0 0.0
      %5468 = vmatpush1.msra.mxu0 0.0
      %5469 = vmatprep.subr.mxu0 0.0
      %5470 = vmatpush1.msra.mxu0 0.0
      %5471 = vmatprep.subr.mxu0 0.0
      %5472 = vmatpush1.msra.mxu0 0.0
      %5473 = vmatprep.subr.mxu0 0.0
      %5474 = vmatpush1.msra.mxu0 0.0
      %5475 = vmatprep.subr.mxu0 0.0
      %5476 = vmatpush1.msra.mxu0 0.0
      %5477 = vmatprep.subr.mxu0 0.0
      %5478 = vmatpush1.msra.mxu0 0.0
      %5479 = vmatprep.subr.mxu0 0.0
      %5480 = vmatpush1.msra.mxu0 0.0
      %5481 = vmatprep.subr.mxu0 0.0
      %5482 = vmatpush1.msra.mxu0 0.0
      %5483 = vmatprep.subr.mxu0 0.0
      %5484 = vmatpush1.msra.mxu0 0.0
      %5485 = vmatprep.subr.mxu0 0.0
      %5486 = vmatpush1.msra.mxu0 0.0
      %5487 = vmatprep.subr.mxu0 0.0
      %5488 = vmatpush1.msra.mxu0 %v5384
      %5489 = vmatprep.subr.mxu0 0.0
      %5490 = vmatpush2.msra.mxu0 0.0
      %5491 = vmatprep.subr.mxu0 0.0
      %5492 = vmatpush2.msra.mxu0 0.0
      %5493 = vmatprep.subr.mxu0 0.0
      %5494 = vmatpush2.msra.mxu0 0.0
      %5495 = vmatprep.subr.mxu0 0.0
      %5496 = vmatpush2.msra.mxu0 0.0
      %5497 = vmatprep.subr.mxu0 0.0
      %5498 = vmatpush2.msra.mxu0 0.0
      %5499 = vmatprep.subr.mxu0 0.0
      %5500 = vmatpush2.msra.mxu0 0.0
      %5501 = vmatprep.subr.mxu0 0.0
      %5502 = vmatpush2.msra.mxu0 0.0
      %5503 = vmatprep.subr.mxu0 0.0
      %5504 = vmatpush2.msra.mxu0 0.0
      %5505 = vmatprep.subr.mxu0 0.0
      %5506 = vmatpush2.msra.mxu0 0.0
      %5507 = vmatprep.subr.mxu0 0.0
      %5508 = vmatpush2.msra.mxu0 0.0
      %5509 = vmatprep.subr.mxu0 0.0
      %5510 = vmatpush2.msra.mxu0 0.0
      %5511 = vmatprep.subr.mxu0 0.0
      %5512 = vmatpush2.msra.mxu0 0.0
      %5513 = vmatprep.subr.mxu0 0.0
      %5514 = vmatpush2.msra.mxu0 0.0
      %5515 = vmatprep.subr.mxu0 0.0
      %5516 = vmatpush2.msra.mxu0 0.0
      %5517 = vmatprep.subr.mxu0 0.0
      %5518 = vmatpush2.msra.mxu0 0.0
      %5519 = vmatprep.subr.mxu0 0.0
      %5520 = vmatpush2.msra.mxu0 0.0
      %5521 = vmatprep.mubr.f32.mxu0 0.0
      %5522 = vmatmul.mubr.f32.gmra.mxu0 %v5374
      %v5523 = vpop.f32.mrf.mxu0
      %v5524 = vadd.f32 %v5370, %v5523
      %v5525 = vpop.f32.mrf.mxu0
      %5526 = vdwg.mxu0
      %v5529 = vcombine.low %v5453, %v5455
      %5531 = vst [vmem:[%s651] sm:$0x77] %v5529
      %5532 = vst [vmem:[%s651 + $0x8] sm:$0x7] %v5524
      %p5533 = scmp.lt.s32.totalorder %s35, 1
      %s5534 = scalar_select %p5533, %s35, 1
      %p5535 = scmp.lt.s32.totalorder %s36, 3
      %s5536 = scalar_select %p5535, %s36, 3
      %s5537 = smul.addr %s5536, 3
      %s5538 = smul.addr %s5534, 12
      %s5539 = sadd.s32 %s5537, %s5538
      %s5540 = smul.addr %s5539, 4
      %s5541 = scalar_lea.vmem %s20, %s5540
      // Predicated region
      $region112: #{metafpn1_forward.3} parent=99 // pred_check
        %p5542 = pneg %p488
      $region113: #{metafpn1_forward.3} parent=99 // pred_check_branch
        %5544 = sbr.rel (%p5542) target = $region115
      $region114: #{metafpn1_forward.3} parent=99 // pred_region
        _
      $region115: #{metafpn1_forward.3} parent=99 // pred_fallthru
        _
    $region100: #{metafpn1_forward.3} parent=5 // pred_fallthru
      _
    %p5545 = scmp.le.s32.totalorder 2, %s26
    // Predicated region
    $region116: #{metafpn1_forward.3} parent=5 // pred_check
      %p5546 = pneg %p5545
    $region117: #{metafpn1_forward.3} parent=5 // pred_check_branch
      %5548 = sbr.rel (%p5546) target = $region119
    $region118: #{metafpn1_forward.3} parent=5 // pred_region
      %s5549 = ssub.s32 %s26, 2
      // Predicated region
      $region120: #{metafpn1_forward.3} parent=118 // pred_check
        %p5550 = pneg %p494
      $region121: #{metafpn1_forward.3} parent=118 // pred_check_branch
        %5552 = sbr.rel (%p5550) target = $region123
      $region122: #{metafpn1_forward.3} parent=118 // pred_region
        %p5553 = scmp.lt.s32.totalorder %s37, 1
        %s5554 = scalar_select %p5553, %s37, 1
        %p5555 = scmp.lt.s32.totalorder %s38, 3
        %s5556 = scalar_select %p5555, %s38, 3
        %s5557 = smul.addr %s5556, 3
        %s5558 = smul.addr %s5554, 12
        %s5559 = sadd.s32 %s5557, %s5558
        %s5560 = smul.addr %s5559, 4
        %s5561 = scalar_lea.vmem %s20, %s5560
      $region123: #{metafpn1_forward.3} parent=118 // pred_fallthru
        _
    $region119: #{metafpn1_forward.3} parent=5 // pred_fallthru
      _
  $region6: #{metafpn1_forward.3} parent=0 // loop_footer
    %s30 = sadd.s32 1, %s26
  $region7: #{metafpn1_forward.3} parent=0 // loop_footer_branch
    %25 = sbr.rel target = $region3
  $region8: #{metafpn1_forward.3} parent=0 // loop_exit
    _

</llo_original>
